<compile_context>
chip_gen: v7x
topology: tpu7x:2x2x1
jax: 0.10.0
libtpu: 0.0.40
codegen_flags: <defaults>
</compile_context>

<pallas_src>
import jax
import jax.numpy as jnp
import numpy as np
from jax.experimental import pallas as pl
from jax.experimental.pallas import tpu as pltpu


def _round_up(n, m):
    return ((n + m - 1) // m) * m


def _pad_to(a, rows=None, cols=None):
    """Zero-pad a 2-D array up to (rows, cols); None keeps the dim as-is."""
    r = a.shape[0] if rows is None else rows
    c = a.shape[1] if cols is None else cols
    return jnp.pad(a, ((0, r - a.shape[0]), (0, c - a.shape[1])))


# ---------------------------------------------------------------------------
# Pallas kernel: full VRNN unroll (time loop unrolled inside the kernel)
# ---------------------------------------------------------------------------
def _vrnn_kernel(
    seq_ref,                    # (T, NB, 4*HP + ZP) f32 : [xproj | eps]
    w_h_ref, b_h_ref,           # (HP, 5*HP), (1, 5*HP) : [enc_h | dec_h | gh_r | gh_z | gh_n]
    w_z_ref,                    # (ZP, 4*HP)            : [dec_z | gi_r | gi_z | gi_n]
    enc_w2_ref, enc_b2_ref,     # (HP, HP), (1, HP)
    w_ms_ref, b_ms_ref,         # (HP, 2*ZP), (1, 2*ZP) : [mean | std_pre]
    dec_w2_ref, dec_b2_ref,     # (HP, HP), (1, HP)
    decm_w_ref, decm_b_ref,     # (HP, XP), (1, XP)
    h0_ref,                     # (NB, HP)  (pad lanes zero)
    out_ref,                    # (T, NB, XP + HP) : [dec_mean | h]
):
    f32 = jnp.float32
    T, NB, _ = seq_ref.shape
    HP = h0_ref.shape[1]
    ZP = w_z_ref.shape[0]
    XP = decm_w_ref.shape[1]

    # Hoist weight reads out of the unrolled loop (a handful of vregs here).
    w_h = w_h_ref[...]
    w_z = w_z_ref[...]
    enc_w2 = enc_w2_ref[...]
    w_ms = w_ms_ref[...]
    dec_w2 = dec_w2_ref[...]
    decm_w = decm_w_ref[...]

    # Broadcast biases to (NB, width) once (JAX does not CSE broadcast_in_dim).
    b_h = jnp.broadcast_to(b_h_ref[...], (NB, b_h_ref.shape[1]))
    b_e2 = jnp.broadcast_to(enc_b2_ref[...], (NB, HP))
    b_ms = jnp.broadcast_to(b_ms_ref[...], (NB, 2 * ZP))
    b_d2 = jnp.broadcast_to(dec_b2_ref[...], (NB, HP))
    b_dm = jnp.broadcast_to(decm_b_ref[...], (NB, XP))

    def mxu(a, w):
        # f32 operands, f32 accumulation (see COMPILE FIX note above).
        return jnp.dot(a, w, preferred_element_type=f32)

    def sigmoid(v):
        # one EUP transcendental instead of exp + reciprocal
        return 0.5 * (jnp.tanh(0.5 * v) + 1.0)

    def softplus(v):
        # numerically stable log(1 + exp(v)) (torch.nn.Softplus, beta=1)
        return jnp.maximum(v, 0.0) + jnp.log1p(jnp.exp(-jnp.abs(v)))

    h = h0_ref[...]                                 # (NB, HP), pad lanes == 0

    # Fully unrolled time loop (T static & tiny): the decoder output path of
    # step t is off the h-recurrence chain and overlaps step t+1's matmuls.
    for t in range(T):
        row = seq_ref[t]                            # (NB, 4*HP + ZP)
        xp = row[:, :4 * HP]                        # x-projection (+ biases)
        eps_t = row[:, 4 * HP:]                     # (NB, ZP), pad lanes 0

        # --- chain matmul 1: everything that consumes h_{t-1} ---
        hp = mxu(h, w_h) + b_h                      # (NB, 5*HP)

        # --- encoder ---
        enc1 = jnp.maximum(xp[:, :HP] + hp[:, :HP], 0.0)
        enc2 = jnp.maximum(mxu(enc1, enc_w2) + b_e2, 0.0)        # chain matmul 2
        ms = mxu(enc2, w_ms) + b_ms                              # chain matmul 3
        z_t = eps_t * softplus(ms[:, ZP:]) + ms[:, :ZP]          # reparam sample

        # --- fused z projection: decoder layer-1 z-part + GRU input z-part ---
        zp = mxu(z_t, w_z)                                       # chain matmul 4

        # --- GRU cell on cat[x, z] with hidden h (gate order r, z, n) ---
        gi = xp[:, HP:] + zp[:, HP:]                             # (NB, 3*HP)
        rz = sigmoid(gi[:, :2 * HP] + hp[:, 2 * HP:4 * HP])
        r, zg = rz[:, :HP], rz[:, HP:]
        n = jnp.tanh(gi[:, 2 * HP:] + r * hp[:, 4 * HP:])
        h = (1.0 - zg) * n + zg * h                              # pad lanes stay 0

        # --- decoder output path (off the recurrence critical chain) ---
        dec1 = jnp.maximum(zp[:, :HP] + hp[:, HP:2 * HP], 0.0)
        dec2 = jnp.maximum(mxu(dec1, dec_w2) + b_d2, 0.0)
        dec_mean = sigmoid(mxu(dec2, decm_w) + b_dm)

        # --- one lane-dense, 128-aligned store per step ---
        out_ref[t] = jnp.concatenate([dec_mean, h], axis=-1)


# ---------------------------------------------------------------------------
# Wrapper: lane-aligned weight fusion, hoisted x-projection, pallas_call
# ---------------------------------------------------------------------------
def vrnn_forward(params, xs, eps_tm, h0, *, batch_block=None):
    """xs: (N, T, x_dim) batch-major (PyTorch layout).
    eps_tm: (T, N, z_dim) pre-drawn N(0,1) noise (time-major).
    h0: (N, h_dim).
    Returns (dec_means (N,T,x_dim), hs (N,T,h_dim)) — same as the PyTorch module."""
    N, T, x_dim = xs.shape
    H = h0.shape[1]
    Z = eps_tm.shape[2]
    f32 = jnp.float32
    p = params

    HP = _round_up(H, 128)      # lane-aligned segment widths
    ZP = _round_up(Z, 128)
    XP = _round_up(x_dim, 128)

    def gate_split(w):          # (rows, 3H) -> [r, z, n], each (rows, H)
        return [w[:, :H], w[:, H:2 * H], w[:, 2 * H:]]

    # --- fused, per-segment 128-lane-padded weights -------------------------
    # W_x  = [enc_x | gi_r | gi_z | gi_n]  applied to x_t (hoisted, below)
    wx_segs = [p["enc_w1x"]] + gate_split(p["gru_wx"])
    w_x = jnp.concatenate([_pad_to(s, cols=HP) for s in wx_segs], axis=1)      # (x, 4HP)
    bx_segs = [p["enc_b1"]] + gate_split(p["gru_bi"])
    b_x = jnp.concatenate([_pad_to(s, cols=HP) for s in bx_segs], axis=1)      # (1, 4HP)

    # W_h  = [enc_h | dec_h | gh_r | gh_z | gh_n]  applied to h_{t-1}
    wh_segs = [p["enc_w1h"], p["dec_w1h"]] + gate_split(p["gru_wh"])
    w_h = jnp.concatenate([_pad_to(s, rows=HP, cols=HP) for s in wh_segs], axis=1)  # (HP, 5HP)
    bh_segs = [jnp.zeros((1, H), f32), p["dec_b1"]] + gate_split(p["gru_bh"])
    b_h = jnp.concatenate([_pad_to(s, cols=HP) for s in bh_segs], axis=1)           # (1, 5HP)

    # W_z  = [dec_z | gi_r | gi_z | gi_n]  applied to z_t
    wz_segs = [p["dec_w1z"]] + gate_split(p["gru_wz"])
    w_z = jnp.concatenate([_pad_to(s, rows=ZP, cols=HP) for s in wz_segs], axis=1)  # (ZP, 4HP)

    enc_w2 = _pad_to(p["enc_w2"], rows=HP, cols=HP)
    enc_b2 = _pad_to(p["enc_b2"], cols=HP)
    w_ms = jnp.concatenate([_pad_to(p["encm_w"], rows=HP, cols=ZP),
                            _pad_to(p["encs_w"], rows=HP, cols=ZP)], axis=1)        # (HP, 2ZP)
    b_ms = jnp.concatenate([_pad_to(p["encm_b"], cols=ZP),
                            _pad_to(p["encs_b"], cols=ZP)], axis=1)                 # (1, 2ZP)
    dec_w2 = _pad_to(p["dec_w2"], rows=HP, cols=HP)
    dec_b2 = _pad_to(p["dec_b2"], cols=HP)
    decm_w = _pad_to(p["decm_w"], rows=HP, cols=XP)
    decm_b = _pad_to(p["decm_b"], cols=XP)

    # --- hoist the h-independent x projection out of the recurrence; fuse the
    # (N,T)->(T,N) transpose into the einsum output.  f32 matmul. -------------
    xproj = jnp.einsum("ntx,xf->tnf", xs.astype(f32), w_x) + b_x                # (T, N, 4HP)

    # --- fold eps into the same lane-dense sequence slab ---------------------
    eps_pad = jnp.pad(eps_tm.astype(f32), ((0, 0), (0, 0), (0, ZP - Z)))        # (T, N, ZP)
    seq = jnp.concatenate([xproj, eps_pad], axis=-1)                            # (T, N, 4HP+ZP)

    h0p = _pad_to(h0.astype(f32), cols=HP)                                      # (N, HP)

    sw = 4 * HP + ZP
    ow = XP + HP

    nb = N if batch_block is None else batch_block
    assert N % nb == 0 and (nb == N or nb % 8 == 0), (
        "batch_block must divide N and be either N (single block; recommended on "
        "v5e/v6e) or a multiple of 8 (use N//2 on v7x only at large per-block batch)")
    grid = (N // nb,)

    def full_spec(arr):
        nd = arr.ndim
        return pl.BlockSpec(arr.shape, lambda i: (0,) * nd)

    operands = (seq, w_h, b_h, w_z, enc_w2, enc_b2, w_ms, b_ms,
                dec_w2, dec_b2, decm_w, decm_b, h0p)
    in_specs = [
        pl.BlockSpec((T, nb, sw), lambda i: (0, i, 0)),     # fused [xproj | eps] stream
        full_spec(w_h), full_spec(b_h), full_spec(w_z),
        full_spec(enc_w2), full_spec(enc_b2),
        full_spec(w_ms), full_spec(b_ms),
        full_spec(dec_w2), full_spec(dec_b2),
        full_spec(decm_w), full_spec(decm_b),
        pl.BlockSpec((nb, HP), lambda i: (i, 0)),           # h0
    ]

    out = pl.pallas_call(
        _vrnn_kernel,
        out_shape=jax.ShapeDtypeStruct((T, N, ow), f32),
        grid=grid,
        in_specs=in_specs,
        out_specs=pl.BlockSpec((T, nb, ow), lambda i: (0, i, 0)),
        compiler_params=pltpu.CompilerParams(
            dimension_semantics=("parallel",)),   # batch blocks are independent
    )(*operands)

    # Strip lane padding and return the PyTorch (N, T, ·) layout.
    dec_means = jnp.transpose(out[..., :x_dim], (1, 0, 2))
    hs = jnp.transpose(out[..., XP:XP + H], (1, 0, 2))
    return dec_means, hs


# ---------------------------------------------------------------------------
# Deterministic parameter initialization (PyTorch-style uniform fan-in init)
# ---------------------------------------------------------------------------
def _uniform(key, shape, bound):
    return jax.random.uniform(key, shape, jnp.float32, -bound, bound)


def init_params(key, x_dim, h_dim, z_dim):
    keys = jax.random.split(key, 32)
    ki = iter(keys)
    p = {}

    def lin(fan_in, fan_out):
        b = 1.0 / np.sqrt(fan_in)
        return _uniform(next(ki), (fan_in, fan_out), b), _uniform(next(ki), (1, fan_out), b)

    b1 = 1.0 / np.sqrt(x_dim + h_dim)
    p["enc_w1x"] = _uniform(next(ki), (x_dim, h_dim), b1)
    p["enc_w1h"] = _uniform(next(ki), (h_dim, h_dim), b1)
    p["enc_b1"] = _uniform(next(ki), (1, h_dim), b1)
    p["enc_w2"], p["enc_b2"] = lin(h_dim, h_dim)
    p["encm_w"], p["encm_b"] = lin(h_dim, z_dim)
    p["encs_w"], p["encs_b"] = lin(h_dim, z_dim)

    b2 = 1.0 / np.sqrt(z_dim + h_dim)
    p["dec_w1z"] = _uniform(next(ki), (z_dim, h_dim), b2)
    p["dec_w1h"] = _uniform(next(ki), (h_dim, h_dim), b2)
    p["dec_b1"] = _uniform(next(ki), (1, h_dim), b2)
    p["dec_w2"], p["dec_b2"] = lin(h_dim, h_dim)
    p["decm_w"], p["decm_b"] = lin(h_dim, x_dim)

    bg = 1.0 / np.sqrt(h_dim)
    p["gru_wx"] = _uniform(next(ki), (x_dim, 3 * h_dim), bg)
    p["gru_wz"] = _uniform(next(ki), (z_dim, 3 * h_dim), bg)
    p["gru_bi"] = _uniform(next(ki), (1, 3 * h_dim), bg)
    p["gru_wh"] = _uniform(next(ki), (h_dim, 3 * h_dim), bg)
    p["gru_bh"] = _uniform(next(ki), (1, 3 * h_dim), bg)
    return p


# ---------------------------------------------------------------------------
# Pure-JAX f32 reference (same math as the PyTorch module, pre-drawn eps)
# ---------------------------------------------------------------------------
def vrnn_reference(p, xs, eps_tm, h0):
    N, T, x_dim = xs.shape
    H = h0.shape[1]
    softplus = lambda v: jnp.maximum(v, 0.0) + jnp.log1p(jnp.exp(-jnp.abs(v)))

    h = h0
    dec_means, hs = [], []
    for t in range(T):
        x_t = xs[:, t, :]
        eps_t = eps_tm[t]
        enc1 = jnp.maximum(x_t @ p["enc_w1x"] + h @ p["enc_w1h"] + p["enc_b1"], 0.0)
        enc2 = jnp.maximum(enc1 @ p["enc_w2"] + p["enc_b2"], 0.0)
        mean = enc2 @ p["encm_w"] + p["encm_b"]
        std = softplus(enc2 @ p["encs_w"] + p["encs_b"])
        z_t = eps_t * std + mean
        dec1 = jnp.maximum(z_t @ p["dec_w1z"] + h @ p["dec_w1h"] + p["dec_b1"], 0.0)
        dec2 = jnp.maximum(dec1 @ p["dec_w2"] + p["dec_b2"], 0.0)
        dec_mean = jax.nn.sigmoid(dec2 @ p["decm_w"] + p["decm_b"])
        gi = x_t @ p["gru_wx"] + z_t @ p["gru_wz"] + p["gru_bi"]
        gh = h @ p["gru_wh"] + p["gru_bh"]
        r = jax.nn.sigmoid(gi[:, :H] + gh[:, :H])
        zg = jax.nn.sigmoid(gi[:, H:2 * H] + gh[:, H:2 * H])
        n = jnp.tanh(gi[:, 2 * H:] + r * gh[:, 2 * H:])
        h = (1.0 - zg) * n + zg * h
        dec_means.append(dec_mean)
        hs.append(h)
    return jnp.stack(dec_means, axis=1), jnp.stack(hs, axis=1)


if __name__ == "__main__":
    # Small shapes consistent with VRNN.forward(xs): xs is (N, T, x_dim)
    N, T = 2, 8
    x_dim, h_dim, z_dim = 16, 32, 16

    key = jax.random.PRNGKey(0)
    k_par, k_x, k_eps = jax.random.split(key, 3)

    params = init_params(k_par, x_dim, h_dim, z_dim)
    xs = jax.random.normal(k_x, (N, T, x_dim), jnp.float32)
    # torch draws fresh N(0,1) noise each step; pre-draw it time-major (T, N, z)
    eps_tm = jax.random.normal(k_eps, (T, N, z_dim), jnp.float32)
    h0 = jnp.zeros((N, h_dim), jnp.float32)  # VRNN.forward starts from zero hidden state

    fwd = jax.jit(vrnn_forward)
    dec_means, hs = jax.block_until_ready(fwd(params, xs, eps_tm, h0))

    ref_dec, ref_hs = vrnn_reference(params, xs, eps_tm, h0)
    assert dec_means.shape == (N, T, x_dim) and hs.shape == (N, T, h_dim)
    # Tolerance covers the TPU MXU default-precision f32 matmul path.
    np.testing.assert_allclose(np.asarray(dec_means), np.asarray(ref_dec), atol=2e-2, rtol=2e-2)
    np.testing.assert_allclose(np.asarray(hs), np.asarray(ref_hs), atol=2e-2, rtol=2e-2)

    print("KERNEL_OK")
</pallas_src>

<mosaic_0001>
module attributes {stable_mosaic.version = 11 : i64} {
  func.func @_vrnn_kernel(%arg0: i32, %arg1: memref<8x2x640xf32, #tpu.memory_space<vmem>>, %arg2: memref<128x640xf32, #tpu.memory_space<vmem>>, %arg3: memref<1x640xf32, #tpu.memory_space<vmem>>, %arg4: memref<128x512xf32, #tpu.memory_space<vmem>>, %arg5: memref<128x128xf32, #tpu.memory_space<vmem>>, %arg6: memref<1x128xf32, #tpu.memory_space<vmem>>, %arg7: memref<128x256xf32, #tpu.memory_space<vmem>>, %arg8: memref<1x256xf32, #tpu.memory_space<vmem>>, %arg9: memref<128x128xf32, #tpu.memory_space<vmem>>, %arg10: memref<1x128xf32, #tpu.memory_space<vmem>>, %arg11: memref<128x128xf32, #tpu.memory_space<vmem>>, %arg12: memref<1x128xf32, #tpu.memory_space<vmem>>, %arg13: memref<2x128xf32, #tpu.memory_space<vmem>>, %arg14: memref<8x2x256xf32, #tpu.memory_space<vmem>>) attributes {dimension_semantics = [#tpu.dimension_semantics<parallel>], iteration_bounds = array<i64: 1>, scalar_prefetch = 0 : i64, scratch_operands = 0 : i64, tpu.core_type = #tpu.core_type<tc>, window_params = [{transform_indices = @transform_0, window_bounds = array<i64: 8, 2, 640>}, {pipeline_mode = #tpu.pipeline_mode<synchronous>, transform_indices = @transform_1, window_bounds = array<i64: 128, 640>}, {pipeline_mode = #tpu.pipeline_mode<synchronous>, transform_indices = @transform_2, window_bounds = array<i64: 1, 640>}, {pipeline_mode = #tpu.pipeline_mode<synchronous>, transform_indices = @transform_3, window_bounds = array<i64: 128, 512>}, {pipeline_mode = #tpu.pipeline_mode<synchronous>, transform_indices = @transform_4, window_bounds = array<i64: 128, 128>}, {pipeline_mode = #tpu.pipeline_mode<synchronous>, transform_indices = @transform_5, window_bounds = array<i64: 1, 128>}, {pipeline_mode = #tpu.pipeline_mode<synchronous>, transform_indices = @transform_6, window_bounds = array<i64: 128, 256>}, {pipeline_mode = #tpu.pipeline_mode<synchronous>, transform_indices = @transform_7, window_bounds = array<i64: 1, 256>}, {pipeline_mode = #tpu.pipeline_mode<synchronous>, transform_indices = @transform_8, window_bounds = array<i64: 128, 128>}, {pipeline_mode = #tpu.pipeline_mode<synchronous>, transform_indices = @transform_9, window_bounds = array<i64: 1, 128>}, {pipeline_mode = #tpu.pipeline_mode<synchronous>, transform_indices = @transform_10, window_bounds = array<i64: 128, 128>}, {pipeline_mode = #tpu.pipeline_mode<synchronous>, transform_indices = @transform_11, window_bounds = array<i64: 1, 128>}, {transform_indices = @transform_12, window_bounds = array<i64: 2, 128>}, {transform_indices = @transform_13, window_bounds = array<i64: 8, 2, 256>}]} {
    %c0 = arith.constant 0 : index
    %c0_0 = arith.constant 0 : index
    %0 = vector.load %arg2[%c0, %c0_0] : memref<128x640xf32, #tpu.memory_space<vmem>>, vector<128x640xf32>
    %c0_1 = arith.constant 0 : index
    %c0_2 = arith.constant 0 : index
    %1 = vector.load %arg4[%c0_1, %c0_2] : memref<128x512xf32, #tpu.memory_space<vmem>>, vector<128x512xf32>
    %c0_3 = arith.constant 0 : index
    %c0_4 = arith.constant 0 : index
    %2 = vector.load %arg5[%c0_3, %c0_4] : memref<128x128xf32, #tpu.memory_space<vmem>>, vector<128x128xf32>
    %c0_5 = arith.constant 0 : index
    %c0_6 = arith.constant 0 : index
    %3 = vector.load %arg7[%c0_5, %c0_6] : memref<128x256xf32, #tpu.memory_space<vmem>>, vector<128x256xf32>
    %c0_7 = arith.constant 0 : index
    %c0_8 = arith.constant 0 : index
    %4 = vector.load %arg9[%c0_7, %c0_8] : memref<128x128xf32, #tpu.memory_space<vmem>>, vector<128x128xf32>
    %c0_9 = arith.constant 0 : index
    %c0_10 = arith.constant 0 : index
    %5 = vector.load %arg11[%c0_9, %c0_10] : memref<128x128xf32, #tpu.memory_space<vmem>>, vector<128x128xf32>
    %c0_11 = arith.constant 0 : index
    %c0_12 = arith.constant 0 : index
    %6 = vector.load %arg3[%c0_11, %c0_12] : memref<1x640xf32, #tpu.memory_space<vmem>>, vector<1x640xf32>
    %7 = vector.shape_cast %6 : vector<1x640xf32> to vector<1x640xf32>
    %8 = vector.broadcast %7 : vector<1x640xf32> to vector<2x640xf32>
    %c0_13 = arith.constant 0 : index
    %c0_14 = arith.constant 0 : index
    %9 = vector.load %arg6[%c0_13, %c0_14] : memref<1x128xf32, #tpu.memory_space<vmem>>, vector<1x128xf32>
    %10 = vector.shape_cast %9 : vector<1x128xf32> to vector<1x128xf32>
    %11 = vector.broadcast %10 : vector<1x128xf32> to vector<2x128xf32>
    %c0_15 = arith.constant 0 : index
    %c0_16 = arith.constant 0 : index
    %12 = vector.load %arg8[%c0_15, %c0_16] : memref<1x256xf32, #tpu.memory_space<vmem>>, vector<1x256xf32>
    %13 = vector.shape_cast %12 : vector<1x256xf32> to vector<1x256xf32>
    %14 = vector.broadcast %13 : vector<1x256xf32> to vector<2x256xf32>
    %c0_17 = arith.constant 0 : index
    %c0_18 = arith.constant 0 : index
    %15 = vector.load %arg10[%c0_17, %c0_18] : memref<1x128xf32, #tpu.memory_space<vmem>>, vector<1x128xf32>
    %16 = vector.shape_cast %15 : vector<1x128xf32> to vector<1x128xf32>
    %17 = vector.broadcast %16 : vector<1x128xf32> to vector<2x128xf32>
    %c0_19 = arith.constant 0 : index
    %c0_20 = arith.constant 0 : index
    %18 = vector.load %arg12[%c0_19, %c0_20] : memref<1x128xf32, #tpu.memory_space<vmem>>, vector<1x128xf32>
    %19 = vector.shape_cast %18 : vector<1x128xf32> to vector<1x128xf32>
    %20 = vector.broadcast %19 : vector<1x128xf32> to vector<2x128xf32>
    %c0_21 = arith.constant 0 : index
    %c0_22 = arith.constant 0 : index
    %21 = vector.load %arg13[%c0_21, %c0_22] : memref<2x128xf32, #tpu.memory_space<vmem>>, vector<2x128xf32>
    %c0_23 = arith.constant 0 : index
    %c0_24 = arith.constant 0 : index
    %c0_25 = arith.constant 0 : index
    %22 = vector.load %arg1[%c0_23, %c0_24, %c0_25] : memref<8x2x640xf32, #tpu.memory_space<vmem>>, vector<1x2x640xf32>
    %23 = vector.shape_cast %22 : vector<1x2x640xf32> to vector<2x640xf32>
    %24 = vector.extract_strided_slice %23 {offsets = [0, 0], sizes = [2, 512], strides = [1, 1]} : vector<2x640xf32> to vector<2x512xf32>
    %25 = vector.extract_strided_slice %23 {offsets = [0, 512], sizes = [2, 128], strides = [1, 1]} : vector<2x640xf32> to vector<2x128xf32>
    %cst = arith.constant dense<0.000000e+00> : vector<2x640xf32>
    %26 = tpu.matmul %21, %0, %cst {dimension_numbers = #tpu.dot_dimension_numbers<[1], [0], [0], [1], [0, 0, 1, 1], [], []>} : vector<2x128xf32>, vector<128x640xf32>, vector<2x640xf32> -> vector<2x640xf32>
    %27 = arith.addf %26, %8 : vector<2x640xf32>
    %28 = vector.extract_strided_slice %24 {offsets = [0, 0], sizes = [2, 128], strides = [1, 1]} : vector<2x512xf32> to vector<2x128xf32>
    %29 = vector.extract_strided_slice %27 {offsets = [0, 0], sizes = [2, 128], strides = [1, 1]} : vector<2x640xf32> to vector<2x128xf32>
    %30 = arith.addf %28, %29 : vector<2x128xf32>
    %cst_26 = arith.constant 0.000000e+00 : f32
    %31 = vector.broadcast %cst_26 : f32 to vector<2x128xf32>
    %32 = arith.maximumf %30, %31 : vector<2x128xf32>
    %cst_27 = arith.constant dense<0.000000e+00> : vector<2x128xf32>
    %33 = tpu.matmul %32, %2, %cst_27 {dimension_numbers = #tpu.dot_dimension_numbers<[1], [0], [0], [1], [0, 0, 1, 1], [], []>} : vector<2x128xf32>, vector<128x128xf32>, vector<2x128xf32> -> vector<2x128xf32>
    %34 = arith.addf %33, %11 : vector<2x128xf32>
    %cst_28 = arith.constant 0.000000e+00 : f32
    %35 = vector.broadcast %cst_28 : f32 to vector<2x128xf32>
    %36 = arith.maximumf %34, %35 : vector<2x128xf32>
    %cst_29 = arith.constant dense<0.000000e+00> : vector<2x256xf32>
    %37 = tpu.matmul %36, %3, %cst_29 {dimension_numbers = #tpu.dot_dimension_numbers<[1], [0], [0], [1], [0, 0, 1, 1], [], []>} : vector<2x128xf32>, vector<128x256xf32>, vector<2x256xf32> -> vector<2x256xf32>
    %38 = arith.addf %37, %14 : vector<2x256xf32>
    %39 = vector.extract_strided_slice %38 {offsets = [0, 128], sizes = [2, 128], strides = [1, 1]} : vector<2x256xf32> to vector<2x128xf32>
    %cst_30 = arith.constant 0.000000e+00 : f32
    %40 = vector.broadcast %cst_30 : f32 to vector<2x128xf32>
    %41 = arith.maximumf %39, %40 : vector<2x128xf32>
    %42 = math.absf %39 : vector<2x128xf32>
    %cst_31 = arith.constant 0.000000e+00 : f32
    %43 = vector.broadcast %cst_31 : f32 to vector<2x128xf32>
    %44 = arith.subf %43, %42 : vector<2x128xf32>
    %45 = math.exp %44 : vector<2x128xf32>
    %46 = math.log1p %45 : vector<2x128xf32>
    %47 = arith.addf %41, %46 : vector<2x128xf32>
    %48 = arith.mulf %25, %47 : vector<2x128xf32>
    %49 = vector.extract_strided_slice %38 {offsets = [0, 0], sizes = [2, 128], strides = [1, 1]} : vector<2x256xf32> to vector<2x128xf32>
    %50 = arith.addf %48, %49 : vector<2x128xf32>
    %cst_32 = arith.constant dense<0.000000e+00> : vector<2x512xf32>
    %51 = tpu.matmul %50, %1, %cst_32 {dimension_numbers = #tpu.dot_dimension_numbers<[1], [0], [0], [1], [0, 0, 1, 1], [], []>} : vector<2x128xf32>, vector<128x512xf32>, vector<2x512xf32> -> vector<2x512xf32>
    %52 = vector.extract_strided_slice %24 {offsets = [0, 128], sizes = [2, 384], strides = [1, 1]} : vector<2x512xf32> to vector<2x384xf32>
    %53 = vector.extract_strided_slice %51 {offsets = [0, 128], sizes = [2, 384], strides = [1, 1]} : vector<2x512xf32> to vector<2x384xf32>
    %54 = arith.addf %52, %53 : vector<2x384xf32>
    %55 = vector.extract_strided_slice %54 {offsets = [0, 0], sizes = [2, 256], strides = [1, 1]} : vector<2x384xf32> to vector<2x256xf32>
    %56 = vector.extract_strided_slice %27 {offsets = [0, 256], sizes = [2, 256], strides = [1, 1]} : vector<2x640xf32> to vector<2x256xf32>
    %57 = arith.addf %55, %56 : vector<2x256xf32>
    %cst_33 = arith.constant 5.000000e-01 : f32
    %58 = vector.broadcast %cst_33 : f32 to vector<2x256xf32>
    %59 = arith.mulf %58, %57 : vector<2x256xf32>
    %60 = math.tanh %59 : vector<2x256xf32>
    %cst_34 = arith.constant 1.000000e+00 : f32
    %61 = vector.broadcast %cst_34 : f32 to vector<2x256xf32>
    %62 = arith.addf %60, %61 : vector<2x256xf32>
    %cst_35 = arith.constant 5.000000e-01 : f32
    %63 = vector.broadcast %cst_35 : f32 to vector<2x256xf32>
    %64 = arith.mulf %63, %62 : vector<2x256xf32>
    %65 = vector.extract_strided_slice %64 {offsets = [0, 0], sizes = [2, 128], strides = [1, 1]} : vector<2x256xf32> to vector<2x128xf32>
    %66 = vector.extract_strided_slice %64 {offsets = [0, 128], sizes = [2, 128], strides = [1, 1]} : vector<2x256xf32> to vector<2x128xf32>
    %67 = vector.extract_strided_slice %54 {offsets = [0, 256], sizes = [2, 128], strides = [1, 1]} : vector<2x384xf32> to vector<2x128xf32>
    %68 = vector.extract_strided_slice %27 {offsets = [0, 512], sizes = [2, 128], strides = [1, 1]} : vector<2x640xf32> to vector<2x128xf32>
    %69 = arith.mulf %65, %68 : vector<2x128xf32>
    %70 = arith.addf %67, %69 : vector<2x128xf32>
    %71 = math.tanh %70 : vector<2x128xf32>
    %cst_36 = arith.constant 1.000000e+00 : f32
    %72 = vector.broadcast %cst_36 : f32 to vector<2x128xf32>
    %73 = arith.subf %72, %66 : vector<2x128xf32>
    %74 = arith.mulf %73, %71 : vector<2x128xf32>
    %75 = arith.mulf %66, %21 : vector<2x128xf32>
    %76 = arith.addf %74, %75 : vector<2x128xf32>
    %77 = vector.extract_strided_slice %51 {offsets = [0, 0], sizes = [2, 128], strides = [1, 1]} : vector<2x512xf32> to vector<2x128xf32>
    %78 = vector.extract_strided_slice %27 {offsets = [0, 128], sizes = [2, 128], strides = [1, 1]} : vector<2x640xf32> to vector<2x128xf32>
    %79 = arith.addf %77, %78 : vector<2x128xf32>
    %cst_37 = arith.constant 0.000000e+00 : f32
    %80 = vector.broadcast %cst_37 : f32 to vector<2x128xf32>
    %81 = arith.maximumf %79, %80 : vector<2x128xf32>
    %cst_38 = arith.constant dense<0.000000e+00> : vector<2x128xf32>
    %82 = tpu.matmul %81, %4, %cst_38 {dimension_numbers = #tpu.dot_dimension_numbers<[1], [0], [0], [1], [0, 0, 1, 1], [], []>} : vector<2x128xf32>, vector<128x128xf32>, vector<2x128xf32> -> vector<2x128xf32>
    %83 = arith.addf %82, %17 : vector<2x128xf32>
    %cst_39 = arith.constant 0.000000e+00 : f32
    %84 = vector.broadcast %cst_39 : f32 to vector<2x128xf32>
    %85 = arith.maximumf %83, %84 : vector<2x128xf32>
    %cst_40 = arith.constant dense<0.000000e+00> : vector<2x128xf32>
    %86 = tpu.matmul %85, %5, %cst_40 {dimension_numbers = #tpu.dot_dimension_numbers<[1], [0], [0], [1], [0, 0, 1, 1], [], []>} : vector<2x128xf32>, vector<128x128xf32>, vector<2x128xf32> -> vector<2x128xf32>
    %87 = arith.addf %86, %20 : vector<2x128xf32>
    %cst_41 = arith.constant 5.000000e-01 : f32
    %88 = vector.broadcast %cst_41 : f32 to vector<2x128xf32>
    %89 = arith.mulf %88, %87 : vector<2x128xf32>
    %90 = math.tanh %89 : vector<2x128xf32>
    %cst_42 = arith.constant 1.000000e+00 : f32
    %91 = vector.broadcast %cst_42 : f32 to vector<2x128xf32>
    %92 = arith.addf %90, %91 : vector<2x128xf32>
    %cst_43 = arith.constant 5.000000e-01 : f32
    %93 = vector.broadcast %cst_43 : f32 to vector<2x128xf32>
    %94 = arith.mulf %93, %92 : vector<2x128xf32>
    %95 = tpu.concatenate %94, %76 in 1 : vector<2x128xf32>, vector<2x128xf32> -> vector<2x256xf32>
    %c0_44 = arith.constant 0 : index
    %c0_45 = arith.constant 0 : index
    %c0_46 = arith.constant 0 : index
    %96 = vector.load %arg14[%c0_44, %c0_45, %c0_46] : memref<8x2x256xf32, #tpu.memory_space<vmem>>, vector<1x2x256xf32>
    %97 = vector.shape_cast %96 : vector<1x2x256xf32> to vector<2x256xf32>
    %98 = vector.shape_cast %95 : vector<2x256xf32> to vector<1x2x256xf32>
    tpu.vector_store %arg14[%c0_44, %c0_45, %c0_46], %98 {strides = array<i32>} : memref<8x2x256xf32, #tpu.memory_space<vmem>>, vector<1x2x256xf32>,
    %c1 = arith.constant 1 : index
    %c0_47 = arith.constant 0 : index
    %c0_48 = arith.constant 0 : index
    %99 = vector.load %arg1[%c1, %c0_47, %c0_48] : memref<8x2x640xf32, #tpu.memory_space<vmem>>, vector<1x2x640xf32>
    %100 = vector.shape_cast %99 : vector<1x2x640xf32> to vector<2x640xf32>
    %101 = vector.extract_strided_slice %100 {offsets = [0, 0], sizes = [2, 512], strides = [1, 1]} : vector<2x640xf32> to vector<2x512xf32>
    %102 = vector.extract_strided_slice %100 {offsets = [0, 512], sizes = [2, 128], strides = [1, 1]} : vector<2x640xf32> to vector<2x128xf32>
    %cst_49 = arith.constant dense<0.000000e+00> : vector<2x640xf32>
    %103 = tpu.matmul %76, %0, %cst_49 {dimension_numbers = #tpu.dot_dimension_numbers<[1], [0], [0], [1], [0, 0, 1, 1], [], []>} : vector<2x128xf32>, vector<128x640xf32>, vector<2x640xf32> -> vector<2x640xf32>
    %104 = arith.addf %103, %8 : vector<2x640xf32>
    %105 = vector.extract_strided_slice %101 {offsets = [0, 0], sizes = [2, 128], strides = [1, 1]} : vector<2x512xf32> to vector<2x128xf32>
    %106 = vector.extract_strided_slice %104 {offsets = [0, 0], sizes = [2, 128], strides = [1, 1]} : vector<2x640xf32> to vector<2x128xf32>
    %107 = arith.addf %105, %106 : vector<2x128xf32>
    %cst_50 = arith.constant 0.000000e+00 : f32
    %108 = vector.broadcast %cst_50 : f32 to vector<2x128xf32>
    %109 = arith.maximumf %107, %108 : vector<2x128xf32>
    %cst_51 = arith.constant dense<0.000000e+00> : vector<2x128xf32>
    %110 = tpu.matmul %109, %2, %cst_51 {dimension_numbers = #tpu.dot_dimension_numbers<[1], [0], [0], [1], [0, 0, 1, 1], [], []>} : vector<2x128xf32>, vector<128x128xf32>, vector<2x128xf32> -> vector<2x128xf32>
    %111 = arith.addf %110, %11 : vector<2x128xf32>
    %cst_52 = arith.constant 0.000000e+00 : f32
    %112 = vector.broadcast %cst_52 : f32 to vector<2x128xf32>
    %113 = arith.maximumf %111, %112 : vector<2x128xf32>
    %cst_53 = arith.constant dense<0.000000e+00> : vector<2x256xf32>
    %114 = tpu.matmul %113, %3, %cst_53 {dimension_numbers = #tpu.dot_dimension_numbers<[1], [0], [0], [1], [0, 0, 1, 1], [], []>} : vector<2x128xf32>, vector<128x256xf32>, vector<2x256xf32> -> vector<2x256xf32>
    %115 = arith.addf %114, %14 : vector<2x256xf32>
    %116 = vector.extract_strided_slice %115 {offsets = [0, 128], sizes = [2, 128], strides = [1, 1]} : vector<2x256xf32> to vector<2x128xf32>
    %cst_54 = arith.constant 0.000000e+00 : f32
    %117 = vector.broadcast %cst_54 : f32 to vector<2x128xf32>
    %118 = arith.maximumf %116, %117 : vector<2x128xf32>
    %119 = math.absf %116 : vector<2x128xf32>
    %cst_55 = arith.constant 0.000000e+00 : f32
    %120 = vector.broadcast %cst_55 : f32 to vector<2x128xf32>
    %121 = arith.subf %120, %119 : vector<2x128xf32>
    %122 = math.exp %121 : vector<2x128xf32>
    %123 = math.log1p %122 : vector<2x128xf32>
    %124 = arith.addf %118, %123 : vector<2x128xf32>
    %125 = arith.mulf %102, %124 : vector<2x128xf32>
    %126 = vector.extract_strided_slice %115 {offsets = [0, 0], sizes = [2, 128], strides = [1, 1]} : vector<2x256xf32> to vector<2x128xf32>
    %127 = arith.addf %125, %126 : vector<2x128xf32>
    %cst_56 = arith.constant dense<0.000000e+00> : vector<2x512xf32>
    %128 = tpu.matmul %127, %1, %cst_56 {dimension_numbers = #tpu.dot_dimension_numbers<[1], [0], [0], [1], [0, 0, 1, 1], [], []>} : vector<2x128xf32>, vector<128x512xf32>, vector<2x512xf32> -> vector<2x512xf32>
    %129 = vector.extract_strided_slice %101 {offsets = [0, 128], sizes = [2, 384], strides = [1, 1]} : vector<2x512xf32> to vector<2x384xf32>
    %130 = vector.extract_strided_slice %128 {offsets = [0, 128], sizes = [2, 384], strides = [1, 1]} : vector<2x512xf32> to vector<2x384xf32>
    %131 = arith.addf %129, %130 : vector<2x384xf32>
    %132 = vector.extract_strided_slice %131 {offsets = [0, 0], sizes = [2, 256], strides = [1, 1]} : vector<2x384xf32> to vector<2x256xf32>
    %133 = vector.extract_strided_slice %104 {offsets = [0, 256], sizes = [2, 256], strides = [1, 1]} : vector<2x640xf32> to vector<2x256xf32>
    %134 = arith.addf %132, %133 : vector<2x256xf32>
    %cst_57 = arith.constant 5.000000e-01 : f32
    %135 = vector.broadcast %cst_57 : f32 to vector<2x256xf32>
    %136 = arith.mulf %135, %134 : vector<2x256xf32>
    %137 = math.tanh %136 : vector<2x256xf32>
    %cst_58 = arith.constant 1.000000e+00 : f32
    %138 = vector.broadcast %cst_58 : f32 to vector<2x256xf32>
    %139 = arith.addf %137, %138 : vector<2x256xf32>
    %cst_59 = arith.constant 5.000000e-01 : f32
    %140 = vector.broadcast %cst_59 : f32 to vector<2x256xf32>
    %141 = arith.mulf %140, %139 : vector<2x256xf32>
    %142 = vector.extract_strided_slice %141 {offsets = [0, 0], sizes = [2, 128], strides = [1, 1]} : vector<2x256xf32> to vector<2x128xf32>
    %143 = vector.extract_strided_slice %141 {offsets = [0, 128], sizes = [2, 128], strides = [1, 1]} : vector<2x256xf32> to vector<2x128xf32>
    %144 = vector.extract_strided_slice %131 {offsets = [0, 256], sizes = [2, 128], strides = [1, 1]} : vector<2x384xf32> to vector<2x128xf32>
    %145 = vector.extract_strided_slice %104 {offsets = [0, 512], sizes = [2, 128], strides = [1, 1]} : vector<2x640xf32> to vector<2x128xf32>
    %146 = arith.mulf %142, %145 : vector<2x128xf32>
    %147 = arith.addf %144, %146 : vector<2x128xf32>
    %148 = math.tanh %147 : vector<2x128xf32>
    %cst_60 = arith.constant 1.000000e+00 : f32
    %149 = vector.broadcast %cst_60 : f32 to vector<2x128xf32>
    %150 = arith.subf %149, %143 : vector<2x128xf32>
    %151 = arith.mulf %150, %148 : vector<2x128xf32>
    %152 = arith.mulf %143, %76 : vector<2x128xf32>
    %153 = arith.addf %151, %152 : vector<2x128xf32>
    %154 = vector.extract_strided_slice %128 {offsets = [0, 0], sizes = [2, 128], strides = [1, 1]} : vector<2x512xf32> to vector<2x128xf32>
    %155 = vector.extract_strided_slice %104 {offsets = [0, 128], sizes = [2, 128], strides = [1, 1]} : vector<2x640xf32> to vector<2x128xf32>
    %156 = arith.addf %154, %155 : vector<2x128xf32>
    %cst_61 = arith.constant 0.000000e+00 : f32
    %157 = vector.broadcast %cst_61 : f32 to vector<2x128xf32>
    %158 = arith.maximumf %156, %157 : vector<2x128xf32>
    %cst_62 = arith.constant dense<0.000000e+00> : vector<2x128xf32>
    %159 = tpu.matmul %158, %4, %cst_62 {dimension_numbers = #tpu.dot_dimension_numbers<[1], [0], [0], [1], [0, 0, 1, 1], [], []>} : vector<2x128xf32>, vector<128x128xf32>, vector<2x128xf32> -> vector<2x128xf32>
    %160 = arith.addf %159, %17 : vector<2x128xf32>
    %cst_63 = arith.constant 0.000000e+00 : f32
    %161 = vector.broadcast %cst_63 : f32 to vector<2x128xf32>
    %162 = arith.maximumf %160, %161 : vector<2x128xf32>
    %cst_64 = arith.constant dense<0.000000e+00> : vector<2x128xf32>
    %163 = tpu.matmul %162, %5, %cst_64 {dimension_numbers = #tpu.dot_dimension_numbers<[1], [0], [0], [1], [0, 0, 1, 1], [], []>} : vector<2x128xf32>, vector<128x128xf32>, vector<2x128xf32> -> vector<2x128xf32>
    %164 = arith.addf %163, %20 : vector<2x128xf32>
    %cst_65 = arith.constant 5.000000e-01 : f32
    %165 = vector.broadcast %cst_65 : f32 to vector<2x128xf32>
    %166 = arith.mulf %165, %164 : vector<2x128xf32>
    %167 = math.tanh %166 : vector<2x128xf32>
    %cst_66 = arith.constant 1.000000e+00 : f32
    %168 = vector.broadcast %cst_66 : f32 to vector<2x128xf32>
    %169 = arith.addf %167, %168 : vector<2x128xf32>
    %cst_67 = arith.constant 5.000000e-01 : f32
    %170 = vector.broadcast %cst_67 : f32 to vector<2x128xf32>
    %171 = arith.mulf %170, %169 : vector<2x128xf32>
    %172 = tpu.concatenate %171, %153 in 1 : vector<2x128xf32>, vector<2x128xf32> -> vector<2x256xf32>
    %c1_68 = arith.constant 1 : index
    %c0_69 = arith.constant 0 : index
    %c0_70 = arith.constant 0 : index
    %173 = vector.load %arg14[%c1_68, %c0_69, %c0_70] : memref<8x2x256xf32, #tpu.memory_space<vmem>>, vector<1x2x256xf32>
    %174 = vector.shape_cast %173 : vector<1x2x256xf32> to vector<2x256xf32>
    %175 = vector.shape_cast %172 : vector<2x256xf32> to vector<1x2x256xf32>
    tpu.vector_store %arg14[%c1_68, %c0_69, %c0_70], %175 {strides = array<i32>} : memref<8x2x256xf32, #tpu.memory_space<vmem>>, vector<1x2x256xf32>,
    %c2 = arith.constant 2 : index
    %c0_71 = arith.constant 0 : index
    %c0_72 = arith.constant 0 : index
    %176 = vector.load %arg1[%c2, %c0_71, %c0_72] : memref<8x2x640xf32, #tpu.memory_space<vmem>>, vector<1x2x640xf32>
    %177 = vector.shape_cast %176 : vector<1x2x640xf32> to vector<2x640xf32>
    %178 = vector.extract_strided_slice %177 {offsets = [0, 0], sizes = [2, 512], strides = [1, 1]} : vector<2x640xf32> to vector<2x512xf32>
    %179 = vector.extract_strided_slice %177 {offsets = [0, 512], sizes = [2, 128], strides = [1, 1]} : vector<2x640xf32> to vector<2x128xf32>
    %cst_73 = arith.constant dense<0.000000e+00> : vector<2x640xf32>
    %180 = tpu.matmul %153, %0, %cst_73 {dimension_numbers = #tpu.dot_dimension_numbers<[1], [0], [0], [1], [0, 0, 1, 1], [], []>} : vector<2x128xf32>, vector<128x640xf32>, vector<2x640xf32> -> vector<2x640xf32>
    %181 = arith.addf %180, %8 : vector<2x640xf32>
    %182 = vector.extract_strided_slice %178 {offsets = [0, 0], sizes = [2, 128], strides = [1, 1]} : vector<2x512xf32> to vector<2x128xf32>
    %183 = vector.extract_strided_slice %181 {offsets = [0, 0], sizes = [2, 128], strides = [1, 1]} : vector<2x640xf32> to vector<2x128xf32>
    %184 = arith.addf %182, %183 : vector<2x128xf32>
    %cst_74 = arith.constant 0.000000e+00 : f32
    %185 = vector.broadcast %cst_74 : f32 to vector<2x128xf32>
    %186 = arith.maximumf %184, %185 : vector<2x128xf32>
    %cst_75 = arith.constant dense<0.000000e+00> : vector<2x128xf32>
    %187 = tpu.matmul %186, %2, %cst_75 {dimension_numbers = #tpu.dot_dimension_numbers<[1], [0], [0], [1], [0, 0, 1, 1], [], []>} : vector<2x128xf32>, vector<128x128xf32>, vector<2x128xf32> -> vector<2x128xf32>
    %188 = arith.addf %187, %11 : vector<2x128xf32>
    %cst_76 = arith.constant 0.000000e+00 : f32
    %189 = vector.broadcast %cst_76 : f32 to vector<2x128xf32>
    %190 = arith.maximumf %188, %189 : vector<2x128xf32>
    %cst_77 = arith.constant dense<0.000000e+00> : vector<2x256xf32>
    %191 = tpu.matmul %190, %3, %cst_77 {dimension_numbers = #tpu.dot_dimension_numbers<[1], [0], [0], [1], [0, 0, 1, 1], [], []>} : vector<2x128xf32>, vector<128x256xf32>, vector<2x256xf32> -> vector<2x256xf32>
    %192 = arith.addf %191, %14 : vector<2x256xf32>
    %193 = vector.extract_strided_slice %192 {offsets = [0, 128], sizes = [2, 128], strides = [1, 1]} : vector<2x256xf32> to vector<2x128xf32>
    %cst_78 = arith.constant 0.000000e+00 : f32
    %194 = vector.broadcast %cst_78 : f32 to vector<2x128xf32>
    %195 = arith.maximumf %193, %194 : vector<2x128xf32>
    %196 = math.absf %193 : vector<2x128xf32>
    %cst_79 = arith.constant 0.000000e+00 : f32
    %197 = vector.broadcast %cst_79 : f32 to vector<2x128xf32>
    %198 = arith.subf %197, %196 : vector<2x128xf32>
    %199 = math.exp %198 : vector<2x128xf32>
    %200 = math.log1p %199 : vector<2x128xf32>
    %201 = arith.addf %195, %200 : vector<2x128xf32>
    %202 = arith.mulf %179, %201 : vector<2x128xf32>
    %203 = vector.extract_strided_slice %192 {offsets = [0, 0], sizes = [2, 128], strides = [1, 1]} : vector<2x256xf32> to vector<2x128xf32>
    %204 = arith.addf %202, %203 : vector<2x128xf32>
    %cst_80 = arith.constant dense<0.000000e+00> : vector<2x512xf32>
    %205 = tpu.matmul %204, %1, %cst_80 {dimension_numbers = #tpu.dot_dimension_numbers<[1], [0], [0], [1], [0, 0, 1, 1], [], []>} : vector<2x128xf32>, vector<128x512xf32>, vector<2x512xf32> -> vector<2x512xf32>
    %206 = vector.extract_strided_slice %178 {offsets = [0, 128], sizes = [2, 384], strides = [1, 1]} : vector<2x512xf32> to vector<2x384xf32>
    %207 = vector.extract_strided_slice %205 {offsets = [0, 128], sizes = [2, 384], strides = [1, 1]} : vector<2x512xf32> to vector<2x384xf32>
    %208 = arith.addf %206, %207 : vector<2x384xf32>
    %209 = vector.extract_strided_slice %208 {offsets = [0, 0], sizes = [2, 256], strides = [1, 1]} : vector<2x384xf32> to vector<2x256xf32>
    %210 = vector.extract_strided_slice %181 {offsets = [0, 256], sizes = [2, 256], strides = [1, 1]} : vector<2x640xf32> to vector<2x256xf32>
    %211 = arith.addf %209, %210 : vector<2x256xf32>
    %cst_81 = arith.constant 5.000000e-01 : f32
    %212 = vector.broadcast %cst_81 : f32 to vector<2x256xf32>
    %213 = arith.mulf %212, %211 : vector<2x256xf32>
    %214 = math.tanh %213 : vector<2x256xf32>
    %cst_82 = arith.constant 1.000000e+00 : f32
    %215 = vector.broadcast %cst_82 : f32 to vector<2x256xf32>
    %216 = arith.addf %214, %215 : vector<2x256xf32>
    %cst_83 = arith.constant 5.000000e-01 : f32
    %217 = vector.broadcast %cst_83 : f32 to vector<2x256xf32>
    %218 = arith.mulf %217, %216 : vector<2x256xf32>
    %219 = vector.extract_strided_slice %218 {offsets = [0, 0], sizes = [2, 128], strides = [1, 1]} : vector<2x256xf32> to vector<2x128xf32>
    %220 = vector.extract_strided_slice %218 {offsets = [0, 128], sizes = [2, 128], strides = [1, 1]} : vector<2x256xf32> to vector<2x128xf32>
    %221 = vector.extract_strided_slice %208 {offsets = [0, 256], sizes = [2, 128], strides = [1, 1]} : vector<2x384xf32> to vector<2x128xf32>
    %222 = vector.extract_strided_slice %181 {offsets = [0, 512], sizes = [2, 128], strides = [1, 1]} : vector<2x640xf32> to vector<2x128xf32>
    %223 = arith.mulf %219, %222 : vector<2x128xf32>
    %224 = arith.addf %221, %223 : vector<2x128xf32>
    %225 = math.tanh %224 : vector<2x128xf32>
    %cst_84 = arith.constant 1.000000e+00 : f32
    %226 = vector.broadcast %cst_84 : f32 to vector<2x128xf32>
    %227 = arith.subf %226, %220 : vector<2x128xf32>
    %228 = arith.mulf %227, %225 : vector<2x128xf32>
    %229 = arith.mulf %220, %153 : vector<2x128xf32>
    %230 = arith.addf %228, %229 : vector<2x128xf32>
    %231 = vector.extract_strided_slice %205 {offsets = [0, 0], sizes = [2, 128], strides = [1, 1]} : vector<2x512xf32> to vector<2x128xf32>
    %232 = vector.extract_strided_slice %181 {offsets = [0, 128], sizes = [2, 128], strides = [1, 1]} : vector<2x640xf32> to vector<2x128xf32>
    %233 = arith.addf %231, %232 : vector<2x128xf32>
    %cst_85 = arith.constant 0.000000e+00 : f32
    %234 = vector.broadcast %cst_85 : f32 to vector<2x128xf32>
    %235 = arith.maximumf %233, %234 : vector<2x128xf32>
    %cst_86 = arith.constant dense<0.000000e+00> : vector<2x128xf32>
    %236 = tpu.matmul %235, %4, %cst_86 {dimension_numbers = #tpu.dot_dimension_numbers<[1], [0], [0], [1], [0, 0, 1, 1], [], []>} : vector<2x128xf32>, vector<128x128xf32>, vector<2x128xf32> -> vector<2x128xf32>
    %237 = arith.addf %236, %17 : vector<2x128xf32>
    %cst_87 = arith.constant 0.000000e+00 : f32
    %238 = vector.broadcast %cst_87 : f32 to vector<2x128xf32>
    %239 = arith.maximumf %237, %238 : vector<2x128xf32>
    %cst_88 = arith.constant dense<0.000000e+00> : vector<2x128xf32>
    %240 = tpu.matmul %239, %5, %cst_88 {dimension_numbers = #tpu.dot_dimension_numbers<[1], [0], [0], [1], [0, 0, 1, 1], [], []>} : vector<2x128xf32>, vector<128x128xf32>, vector<2x128xf32> -> vector<2x128xf32>
    %241 = arith.addf %240, %20 : vector<2x128xf32>
    %cst_89 = arith.constant 5.000000e-01 : f32
    %242 = vector.broadcast %cst_89 : f32 to vector<2x128xf32>
    %243 = arith.mulf %242, %241 : vector<2x128xf32>
    %244 = math.tanh %243 : vector<2x128xf32>
    %cst_90 = arith.constant 1.000000e+00 : f32
    %245 = vector.broadcast %cst_90 : f32 to vector<2x128xf32>
    %246 = arith.addf %244, %245 : vector<2x128xf32>
    %cst_91 = arith.constant 5.000000e-01 : f32
    %247 = vector.broadcast %cst_91 : f32 to vector<2x128xf32>
    %248 = arith.mulf %247, %246 : vector<2x128xf32>
    %249 = tpu.concatenate %248, %230 in 1 : vector<2x128xf32>, vector<2x128xf32> -> vector<2x256xf32>
    %c2_92 = arith.constant 2 : index
    %c0_93 = arith.constant 0 : index
    %c0_94 = arith.constant 0 : index
    %250 = vector.load %arg14[%c2_92, %c0_93, %c0_94] : memref<8x2x256xf32, #tpu.memory_space<vmem>>, vector<1x2x256xf32>
    %251 = vector.shape_cast %250 : vector<1x2x256xf32> to vector<2x256xf32>
    %252 = vector.shape_cast %249 : vector<2x256xf32> to vector<1x2x256xf32>
    tpu.vector_store %arg14[%c2_92, %c0_93, %c0_94], %252 {strides = array<i32>} : memref<8x2x256xf32, #tpu.memory_space<vmem>>, vector<1x2x256xf32>,
    %c3 = arith.constant 3 : index
    %c0_95 = arith.constant 0 : index
    %c0_96 = arith.constant 0 : index
    %253 = vector.load %arg1[%c3, %c0_95, %c0_96] : memref<8x2x640xf32, #tpu.memory_space<vmem>>, vector<1x2x640xf32>
    %254 = vector.shape_cast %253 : vector<1x2x640xf32> to vector<2x640xf32>
    %255 = vector.extract_strided_slice %254 {offsets = [0, 0], sizes = [2, 512], strides = [1, 1]} : vector<2x640xf32> to vector<2x512xf32>
    %256 = vector.extract_strided_slice %254 {offsets = [0, 512], sizes = [2, 128], strides = [1, 1]} : vector<2x640xf32> to vector<2x128xf32>
    %cst_97 = arith.constant dense<0.000000e+00> : vector<2x640xf32>
    %257 = tpu.matmul %230, %0, %cst_97 {dimension_numbers = #tpu.dot_dimension_numbers<[1], [0], [0], [1], [0, 0, 1, 1], [], []>} : vector<2x128xf32>, vector<128x640xf32>, vector<2x640xf32> -> vector<2x640xf32>
    %258 = arith.addf %257, %8 : vector<2x640xf32>
    %259 = vector.extract_strided_slice %255 {offsets = [0, 0], sizes = [2, 128], strides = [1, 1]} : vector<2x512xf32> to vector<2x128xf32>
    %260 = vector.extract_strided_slice %258 {offsets = [0, 0], sizes = [2, 128], strides = [1, 1]} : vector<2x640xf32> to vector<2x128xf32>
    %261 = arith.addf %259, %260 : vector<2x128xf32>
    %cst_98 = arith.constant 0.000000e+00 : f32
    %262 = vector.broadcast %cst_98 : f32 to vector<2x128xf32>
    %263 = arith.maximumf %261, %262 : vector<2x128xf32>
    %cst_99 = arith.constant dense<0.000000e+00> : vector<2x128xf32>
    %264 = tpu.matmul %263, %2, %cst_99 {dimension_numbers = #tpu.dot_dimension_numbers<[1], [0], [0], [1], [0, 0, 1, 1], [], []>} : vector<2x128xf32>, vector<128x128xf32>, vector<2x128xf32> -> vector<2x128xf32>
    %265 = arith.addf %264, %11 : vector<2x128xf32>
    %cst_100 = arith.constant 0.000000e+00 : f32
    %266 = vector.broadcast %cst_100 : f32 to vector<2x128xf32>
    %267 = arith.maximumf %265, %266 : vector<2x128xf32>
    %cst_101 = arith.constant dense<0.000000e+00> : vector<2x256xf32>
    %268 = tpu.matmul %267, %3, %cst_101 {dimension_numbers = #tpu.dot_dimension_numbers<[1], [0], [0], [1], [0, 0, 1, 1], [], []>} : vector<2x128xf32>, vector<128x256xf32>, vector<2x256xf32> -> vector<2x256xf32>
    %269 = arith.addf %268, %14 : vector<2x256xf32>
    %270 = vector.extract_strided_slice %269 {offsets = [0, 128], sizes = [2, 128], strides = [1, 1]} : vector<2x256xf32> to vector<2x128xf32>
    %cst_102 = arith.constant 0.000000e+00 : f32
    %271 = vector.broadcast %cst_102 : f32 to vector<2x128xf32>
    %272 = arith.maximumf %270, %271 : vector<2x128xf32>
    %273 = math.absf %270 : vector<2x128xf32>
    %cst_103 = arith.constant 0.000000e+00 : f32
    %274 = vector.broadcast %cst_103 : f32 to vector<2x128xf32>
    %275 = arith.subf %274, %273 : vector<2x128xf32>
    %276 = math.exp %275 : vector<2x128xf32>
    %277 = math.log1p %276 : vector<2x128xf32>
    %278 = arith.addf %272, %277 : vector<2x128xf32>
    %279 = arith.mulf %256, %278 : vector<2x128xf32>
    %280 = vector.extract_strided_slice %269 {offsets = [0, 0], sizes = [2, 128], strides = [1, 1]} : vector<2x256xf32> to vector<2x128xf32>
    %281 = arith.addf %279, %280 : vector<2x128xf32>
    %cst_104 = arith.constant dense<0.000000e+00> : vector<2x512xf32>
    %282 = tpu.matmul %281, %1, %cst_104 {dimension_numbers = #tpu.dot_dimension_numbers<[1], [0], [0], [1], [0, 0, 1, 1], [], []>} : vector<2x128xf32>, vector<128x512xf32>, vector<2x512xf32> -> vector<2x512xf32>
    %283 = vector.extract_strided_slice %255 {offsets = [0, 128], sizes = [2, 384], strides = [1, 1]} : vector<2x512xf32> to vector<2x384xf32>
    %284 = vector.extract_strided_slice %282 {offsets = [0, 128], sizes = [2, 384], strides = [1, 1]} : vector<2x512xf32> to vector<2x384xf32>
    %285 = arith.addf %283, %284 : vector<2x384xf32>
    %286 = vector.extract_strided_slice %285 {offsets = [0, 0], sizes = [2, 256], strides = [1, 1]} : vector<2x384xf32> to vector<2x256xf32>
    %287 = vector.extract_strided_slice %258 {offsets = [0, 256], sizes = [2, 256], strides = [1, 1]} : vector<2x640xf32> to vector<2x256xf32>
    %288 = arith.addf %286, %287 : vector<2x256xf32>
    %cst_105 = arith.constant 5.000000e-01 : f32
    %289 = vector.broadcast %cst_105 : f32 to vector<2x256xf32>
    %290 = arith.mulf %289, %288 : vector<2x256xf32>
    %291 = math.tanh %290 : vector<2x256xf32>
    %cst_106 = arith.constant 1.000000e+00 : f32
    %292 = vector.broadcast %cst_106 : f32 to vector<2x256xf32>
    %293 = arith.addf %291, %292 : vector<2x256xf32>
    %cst_107 = arith.constant 5.000000e-01 : f32
    %294 = vector.broadcast %cst_107 : f32 to vector<2x256xf32>
    %295 = arith.mulf %294, %293 : vector<2x256xf32>
    %296 = vector.extract_strided_slice %295 {offsets = [0, 0], sizes = [2, 128], strides = [1, 1]} : vector<2x256xf32> to vector<2x128xf32>
    %297 = vector.extract_strided_slice %295 {offsets = [0, 128], sizes = [2, 128], strides = [1, 1]} : vector<2x256xf32> to vector<2x128xf32>
    %298 = vector.extract_strided_slice %285 {offsets = [0, 256], sizes = [2, 128], strides = [1, 1]} : vector<2x384xf32> to vector<2x128xf32>
    %299 = vector.extract_strided_slice %258 {offsets = [0, 512], sizes = [2, 128], strides = [1, 1]} : vector<2x640xf32> to vector<2x128xf32>
    %300 = arith.mulf %296, %299 : vector<2x128xf32>
    %301 = arith.addf %298, %300 : vector<2x128xf32>
    %302 = math.tanh %301 : vector<2x128xf32>
    %cst_108 = arith.constant 1.000000e+00 : f32
    %303 = vector.broadcast %cst_108 : f32 to vector<2x128xf32>
    %304 = arith.subf %303, %297 : vector<2x128xf32>
    %305 = arith.mulf %304, %302 : vector<2x128xf32>
    %306 = arith.mulf %297, %230 : vector<2x128xf32>
    %307 = arith.addf %305, %306 : vector<2x128xf32>
    %308 = vector.extract_strided_slice %282 {offsets = [0, 0], sizes = [2, 128], strides = [1, 1]} : vector<2x512xf32> to vector<2x128xf32>
    %309 = vector.extract_strided_slice %258 {offsets = [0, 128], sizes = [2, 128], strides = [1, 1]} : vector<2x640xf32> to vector<2x128xf32>
    %310 = arith.addf %308, %309 : vector<2x128xf32>
    %cst_109 = arith.constant 0.000000e+00 : f32
    %311 = vector.broadcast %cst_109 : f32 to vector<2x128xf32>
    %312 = arith.maximumf %310, %311 : vector<2x128xf32>
    %cst_110 = arith.constant dense<0.000000e+00> : vector<2x128xf32>
    %313 = tpu.matmul %312, %4, %cst_110 {dimension_numbers = #tpu.dot_dimension_numbers<[1], [0], [0], [1], [0, 0, 1, 1], [], []>} : vector<2x128xf32>, vector<128x128xf32>, vector<2x128xf32> -> vector<2x128xf32>
    %314 = arith.addf %313, %17 : vector<2x128xf32>
    %cst_111 = arith.constant 0.000000e+00 : f32
    %315 = vector.broadcast %cst_111 : f32 to vector<2x128xf32>
    %316 = arith.maximumf %314, %315 : vector<2x128xf32>
    %cst_112 = arith.constant dense<0.000000e+00> : vector<2x128xf32>
    %317 = tpu.matmul %316, %5, %cst_112 {dimension_numbers = #tpu.dot_dimension_numbers<[1], [0], [0], [1], [0, 0, 1, 1], [], []>} : vector<2x128xf32>, vector<128x128xf32>, vector<2x128xf32> -> vector<2x128xf32>
    %318 = arith.addf %317, %20 : vector<2x128xf32>
    %cst_113 = arith.constant 5.000000e-01 : f32
    %319 = vector.broadcast %cst_113 : f32 to vector<2x128xf32>
    %320 = arith.mulf %319, %318 : vector<2x128xf32>
    %321 = math.tanh %320 : vector<2x128xf32>
    %cst_114 = arith.constant 1.000000e+00 : f32
    %322 = vector.broadcast %cst_114 : f32 to vector<2x128xf32>
    %323 = arith.addf %321, %322 : vector<2x128xf32>
    %cst_115 = arith.constant 5.000000e-01 : f32
    %324 = vector.broadcast %cst_115 : f32 to vector<2x128xf32>
    %325 = arith.mulf %324, %323 : vector<2x128xf32>
    %326 = tpu.concatenate %325, %307 in 1 : vector<2x128xf32>, vector<2x128xf32> -> vector<2x256xf32>
    %c3_116 = arith.constant 3 : index
    %c0_117 = arith.constant 0 : index
    %c0_118 = arith.constant 0 : index
    %327 = vector.load %arg14[%c3_116, %c0_117, %c0_118] : memref<8x2x256xf32, #tpu.memory_space<vmem>>, vector<1x2x256xf32>
    %328 = vector.shape_cast %327 : vector<1x2x256xf32> to vector<2x256xf32>
    %329 = vector.shape_cast %326 : vector<2x256xf32> to vector<1x2x256xf32>
    tpu.vector_store %arg14[%c3_116, %c0_117, %c0_118], %329 {strides = array<i32>} : memref<8x2x256xf32, #tpu.memory_space<vmem>>, vector<1x2x256xf32>,
    %c4 = arith.constant 4 : index
    %c0_119 = arith.constant 0 : index
    %c0_120 = arith.constant 0 : index
    %330 = vector.load %arg1[%c4, %c0_119, %c0_120] : memref<8x2x640xf32, #tpu.memory_space<vmem>>, vector<1x2x640xf32>
    %331 = vector.shape_cast %330 : vector<1x2x640xf32> to vector<2x640xf32>
    %332 = vector.extract_strided_slice %331 {offsets = [0, 0], sizes = [2, 512], strides = [1, 1]} : vector<2x640xf32> to vector<2x512xf32>
    %333 = vector.extract_strided_slice %331 {offsets = [0, 512], sizes = [2, 128], strides = [1, 1]} : vector<2x640xf32> to vector<2x128xf32>
    %cst_121 = arith.constant dense<0.000000e+00> : vector<2x640xf32>
    %334 = tpu.matmul %307, %0, %cst_121 {dimension_numbers = #tpu.dot_dimension_numbers<[1], [0], [0], [1], [0, 0, 1, 1], [], []>} : vector<2x128xf32>, vector<128x640xf32>, vector<2x640xf32> -> vector<2x640xf32>
    %335 = arith.addf %334, %8 : vector<2x640xf32>
    %336 = vector.extract_strided_slice %332 {offsets = [0, 0], sizes = [2, 128], strides = [1, 1]} : vector<2x512xf32> to vector<2x128xf32>
    %337 = vector.extract_strided_slice %335 {offsets = [0, 0], sizes = [2, 128], strides = [1, 1]} : vector<2x640xf32> to vector<2x128xf32>
    %338 = arith.addf %336, %337 : vector<2x128xf32>
    %cst_122 = arith.constant 0.000000e+00 : f32
    %339 = vector.broadcast %cst_122 : f32 to vector<2x128xf32>
    %340 = arith.maximumf %338, %339 : vector<2x128xf32>
    %cst_123 = arith.constant dense<0.000000e+00> : vector<2x128xf32>
    %341 = tpu.matmul %340, %2, %cst_123 {dimension_numbers = #tpu.dot_dimension_numbers<[1], [0], [0], [1], [0, 0, 1, 1], [], []>} : vector<2x128xf32>, vector<128x128xf32>, vector<2x128xf32> -> vector<2x128xf32>
    %342 = arith.addf %341, %11 : vector<2x128xf32>
    %cst_124 = arith.constant 0.000000e+00 : f32
    %343 = vector.broadcast %cst_124 : f32 to vector<2x128xf32>
    %344 = arith.maximumf %342, %343 : vector<2x128xf32>
    %cst_125 = arith.constant dense<0.000000e+00> : vector<2x256xf32>
    %345 = tpu.matmul %344, %3, %cst_125 {dimension_numbers = #tpu.dot_dimension_numbers<[1], [0], [0], [1], [0, 0, 1, 1], [], []>} : vector<2x128xf32>, vector<128x256xf32>, vector<2x256xf32> -> vector<2x256xf32>
    %346 = arith.addf %345, %14 : vector<2x256xf32>
    %347 = vector.extract_strided_slice %346 {offsets = [0, 128], sizes = [2, 128], strides = [1, 1]} : vector<2x256xf32> to vector<2x128xf32>
    %cst_126 = arith.constant 0.000000e+00 : f32
    %348 = vector.broadcast %cst_126 : f32 to vector<2x128xf32>
    %349 = arith.maximumf %347, %348 : vector<2x128xf32>
    %350 = math.absf %347 : vector<2x128xf32>
    %cst_127 = arith.constant 0.000000e+00 : f32
    %351 = vector.broadcast %cst_127 : f32 to vector<2x128xf32>
    %352 = arith.subf %351, %350 : vector<2x128xf32>
    %353 = math.exp %352 : vector<2x128xf32>
    %354 = math.log1p %353 : vector<2x128xf32>
    %355 = arith.addf %349, %354 : vector<2x128xf32>
    %356 = arith.mulf %333, %355 : vector<2x128xf32>
    %357 = vector.extract_strided_slice %346 {offsets = [0, 0], sizes = [2, 128], strides = [1, 1]} : vector<2x256xf32> to vector<2x128xf32>
    %358 = arith.addf %356, %357 : vector<2x128xf32>
    %cst_128 = arith.constant dense<0.000000e+00> : vector<2x512xf32>
    %359 = tpu.matmul %358, %1, %cst_128 {dimension_numbers = #tpu.dot_dimension_numbers<[1], [0], [0], [1], [0, 0, 1, 1], [], []>} : vector<2x128xf32>, vector<128x512xf32>, vector<2x512xf32> -> vector<2x512xf32>
    %360 = vector.extract_strided_slice %332 {offsets = [0, 128], sizes = [2, 384], strides = [1, 1]} : vector<2x512xf32> to vector<2x384xf32>
    %361 = vector.extract_strided_slice %359 {offsets = [0, 128], sizes = [2, 384], strides = [1, 1]} : vector<2x512xf32> to vector<2x384xf32>
    %362 = arith.addf %360, %361 : vector<2x384xf32>
    %363 = vector.extract_strided_slice %362 {offsets = [0, 0], sizes = [2, 256], strides = [1, 1]} : vector<2x384xf32> to vector<2x256xf32>
    %364 = vector.extract_strided_slice %335 {offsets = [0, 256], sizes = [2, 256], strides = [1, 1]} : vector<2x640xf32> to vector<2x256xf32>
    %365 = arith.addf %363, %364 : vector<2x256xf32>
    %cst_129 = arith.constant 5.000000e-01 : f32
    %366 = vector.broadcast %cst_129 : f32 to vector<2x256xf32>
    %367 = arith.mulf %366, %365 : vector<2x256xf32>
    %368 = math.tanh %367 : vector<2x256xf32>
    %cst_130 = arith.constant 1.000000e+00 : f32
    %369 = vector.broadcast %cst_130 : f32 to vector<2x256xf32>
    %370 = arith.addf %368, %369 : vector<2x256xf32>
    %cst_131 = arith.constant 5.000000e-01 : f32
    %371 = vector.broadcast %cst_131 : f32 to vector<2x256xf32>
    %372 = arith.mulf %371, %370 : vector<2x256xf32>
    %373 = vector.extract_strided_slice %372 {offsets = [0, 0], sizes = [2, 128], strides = [1, 1]} : vector<2x256xf32> to vector<2x128xf32>
    %374 = vector.extract_strided_slice %372 {offsets = [0, 128], sizes = [2, 128], strides = [1, 1]} : vector<2x256xf32> to vector<2x128xf32>
    %375 = vector.extract_strided_slice %362 {offsets = [0, 256], sizes = [2, 128], strides = [1, 1]} : vector<2x384xf32> to vector<2x128xf32>
    %376 = vector.extract_strided_slice %335 {offsets = [0, 512], sizes = [2, 128], strides = [1, 1]} : vector<2x640xf32> to vector<2x128xf32>
    %377 = arith.mulf %373, %376 : vector<2x128xf32>
    %378 = arith.addf %375, %377 : vector<2x128xf32>
    %379 = math.tanh %378 : vector<2x128xf32>
    %cst_132 = arith.constant 1.000000e+00 : f32
    %380 = vector.broadcast %cst_132 : f32 to vector<2x128xf32>
    %381 = arith.subf %380, %374 : vector<2x128xf32>
    %382 = arith.mulf %381, %379 : vector<2x128xf32>
    %383 = arith.mulf %374, %307 : vector<2x128xf32>
    %384 = arith.addf %382, %383 : vector<2x128xf32>
    %385 = vector.extract_strided_slice %359 {offsets = [0, 0], sizes = [2, 128], strides = [1, 1]} : vector<2x512xf32> to vector<2x128xf32>
    %386 = vector.extract_strided_slice %335 {offsets = [0, 128], sizes = [2, 128], strides = [1, 1]} : vector<2x640xf32> to vector<2x128xf32>
    %387 = arith.addf %385, %386 : vector<2x128xf32>
    %cst_133 = arith.constant 0.000000e+00 : f32
    %388 = vector.broadcast %cst_133 : f32 to vector<2x128xf32>
    %389 = arith.maximumf %387, %388 : vector<2x128xf32>
    %cst_134 = arith.constant dense<0.000000e+00> : vector<2x128xf32>
    %390 = tpu.matmul %389, %4, %cst_134 {dimension_numbers = #tpu.dot_dimension_numbers<[1], [0], [0], [1], [0, 0, 1, 1], [], []>} : vector<2x128xf32>, vector<128x128xf32>, vector<2x128xf32> -> vector<2x128xf32>
    %391 = arith.addf %390, %17 : vector<2x128xf32>
    %cst_135 = arith.constant 0.000000e+00 : f32
    %392 = vector.broadcast %cst_135 : f32 to vector<2x128xf32>
    %393 = arith.maximumf %391, %392 : vector<2x128xf32>
    %cst_136 = arith.constant dense<0.000000e+00> : vector<2x128xf32>
    %394 = tpu.matmul %393, %5, %cst_136 {dimension_numbers = #tpu.dot_dimension_numbers<[1], [0], [0], [1], [0, 0, 1, 1], [], []>} : vector<2x128xf32>, vector<128x128xf32>, vector<2x128xf32> -> vector<2x128xf32>
    %395 = arith.addf %394, %20 : vector<2x128xf32>
    %cst_137 = arith.constant 5.000000e-01 : f32
    %396 = vector.broadcast %cst_137 : f32 to vector<2x128xf32>
    %397 = arith.mulf %396, %395 : vector<2x128xf32>
    %398 = math.tanh %397 : vector<2x128xf32>
    %cst_138 = arith.constant 1.000000e+00 : f32
    %399 = vector.broadcast %cst_138 : f32 to vector<2x128xf32>
    %400 = arith.addf %398, %399 : vector<2x128xf32>
    %cst_139 = arith.constant 5.000000e-01 : f32
    %401 = vector.broadcast %cst_139 : f32 to vector<2x128xf32>
    %402 = arith.mulf %401, %400 : vector<2x128xf32>
    %403 = tpu.concatenate %402, %384 in 1 : vector<2x128xf32>, vector<2x128xf32> -> vector<2x256xf32>
    %c4_140 = arith.constant 4 : index
    %c0_141 = arith.constant 0 : index
    %c0_142 = arith.constant 0 : index
    %404 = vector.load %arg14[%c4_140, %c0_141, %c0_142] : memref<8x2x256xf32, #tpu.memory_space<vmem>>, vector<1x2x256xf32>
    %405 = vector.shape_cast %404 : vector<1x2x256xf32> to vector<2x256xf32>
    %406 = vector.shape_cast %403 : vector<2x256xf32> to vector<1x2x256xf32>
    tpu.vector_store %arg14[%c4_140, %c0_141, %c0_142], %406 {strides = array<i32>} : memref<8x2x256xf32, #tpu.memory_space<vmem>>, vector<1x2x256xf32>,
    %c5 = arith.constant 5 : index
    %c0_143 = arith.constant 0 : index
    %c0_144 = arith.constant 0 : index
    %407 = vector.load %arg1[%c5, %c0_143, %c0_144] : memref<8x2x640xf32, #tpu.memory_space<vmem>>, vector<1x2x640xf32>
    %408 = vector.shape_cast %407 : vector<1x2x640xf32> to vector<2x640xf32>
    %409 = vector.extract_strided_slice %408 {offsets = [0, 0], sizes = [2, 512], strides = [1, 1]} : vector<2x640xf32> to vector<2x512xf32>
    %410 = vector.extract_strided_slice %408 {offsets = [0, 512], sizes = [2, 128], strides = [1, 1]} : vector<2x640xf32> to vector<2x128xf32>
    %cst_145 = arith.constant dense<0.000000e+00> : vector<2x640xf32>
    %411 = tpu.matmul %384, %0, %cst_145 {dimension_numbers = #tpu.dot_dimension_numbers<[1], [0], [0], [1], [0, 0, 1, 1], [], []>} : vector<2x128xf32>, vector<128x640xf32>, vector<2x640xf32> -> vector<2x640xf32>
    %412 = arith.addf %411, %8 : vector<2x640xf32>
    %413 = vector.extract_strided_slice %409 {offsets = [0, 0], sizes = [2, 128], strides = [1, 1]} : vector<2x512xf32> to vector<2x128xf32>
    %414 = vector.extract_strided_slice %412 {offsets = [0, 0], sizes = [2, 128], strides = [1, 1]} : vector<2x640xf32> to vector<2x128xf32>
    %415 = arith.addf %413, %414 : vector<2x128xf32>
    %cst_146 = arith.constant 0.000000e+00 : f32
    %416 = vector.broadcast %cst_146 : f32 to vector<2x128xf32>
    %417 = arith.maximumf %415, %416 : vector<2x128xf32>
    %cst_147 = arith.constant dense<0.000000e+00> : vector<2x128xf32>
    %418 = tpu.matmul %417, %2, %cst_147 {dimension_numbers = #tpu.dot_dimension_numbers<[1], [0], [0], [1], [0, 0, 1, 1], [], []>} : vector<2x128xf32>, vector<128x128xf32>, vector<2x128xf32> -> vector<2x128xf32>
    %419 = arith.addf %418, %11 : vector<2x128xf32>
    %cst_148 = arith.constant 0.000000e+00 : f32
    %420 = vector.broadcast %cst_148 : f32 to vector<2x128xf32>
    %421 = arith.maximumf %419, %420 : vector<2x128xf32>
    %cst_149 = arith.constant dense<0.000000e+00> : vector<2x256xf32>
    %422 = tpu.matmul %421, %3, %cst_149 {dimension_numbers = #tpu.dot_dimension_numbers<[1], [0], [0], [1], [0, 0, 1, 1], [], []>} : vector<2x128xf32>, vector<128x256xf32>, vector<2x256xf32> -> vector<2x256xf32>
    %423 = arith.addf %422, %14 : vector<2x256xf32>
    %424 = vector.extract_strided_slice %423 {offsets = [0, 128], sizes = [2, 128], strides = [1, 1]} : vector<2x256xf32> to vector<2x128xf32>
    %cst_150 = arith.constant 0.000000e+00 : f32
    %425 = vector.broadcast %cst_150 : f32 to vector<2x128xf32>
    %426 = arith.maximumf %424, %425 : vector<2x128xf32>
    %427 = math.absf %424 : vector<2x128xf32>
    %cst_151 = arith.constant 0.000000e+00 : f32
    %428 = vector.broadcast %cst_151 : f32 to vector<2x128xf32>
    %429 = arith.subf %428, %427 : vector<2x128xf32>
    %430 = math.exp %429 : vector<2x128xf32>
    %431 = math.log1p %430 : vector<2x128xf32>
    %432 = arith.addf %426, %431 : vector<2x128xf32>
    %433 = arith.mulf %410, %432 : vector<2x128xf32>
    %434 = vector.extract_strided_slice %423 {offsets = [0, 0], sizes = [2, 128], strides = [1, 1]} : vector<2x256xf32> to vector<2x128xf32>
    %435 = arith.addf %433, %434 : vector<2x128xf32>
    %cst_152 = arith.constant dense<0.000000e+00> : vector<2x512xf32>
    %436 = tpu.matmul %435, %1, %cst_152 {dimension_numbers = #tpu.dot_dimension_numbers<[1], [0], [0], [1], [0, 0, 1, 1], [], []>} : vector<2x128xf32>, vector<128x512xf32>, vector<2x512xf32> -> vector<2x512xf32>
    %437 = vector.extract_strided_slice %409 {offsets = [0, 128], sizes = [2, 384], strides = [1, 1]} : vector<2x512xf32> to vector<2x384xf32>
    %438 = vector.extract_strided_slice %436 {offsets = [0, 128], sizes = [2, 384], strides = [1, 1]} : vector<2x512xf32> to vector<2x384xf32>
    %439 = arith.addf %437, %438 : vector<2x384xf32>
    %440 = vector.extract_strided_slice %439 {offsets = [0, 0], sizes = [2, 256], strides = [1, 1]} : vector<2x384xf32> to vector<2x256xf32>
    %441 = vector.extract_strided_slice %412 {offsets = [0, 256], sizes = [2, 256], strides = [1, 1]} : vector<2x640xf32> to vector<2x256xf32>
    %442 = arith.addf %440, %441 : vector<2x256xf32>
    %cst_153 = arith.constant 5.000000e-01 : f32
    %443 = vector.broadcast %cst_153 : f32 to vector<2x256xf32>
    %444 = arith.mulf %443, %442 : vector<2x256xf32>
    %445 = math.tanh %444 : vector<2x256xf32>
    %cst_154 = arith.constant 1.000000e+00 : f32
    %446 = vector.broadcast %cst_154 : f32 to vector<2x256xf32>
    %447 = arith.addf %445, %446 : vector<2x256xf32>
    %cst_155 = arith.constant 5.000000e-01 : f32
    %448 = vector.broadcast %cst_155 : f32 to vector<2x256xf32>
    %449 = arith.mulf %448, %447 : vector<2x256xf32>
    %450 = vector.extract_strided_slice %449 {offsets = [0, 0], sizes = [2, 128], strides = [1, 1]} : vector<2x256xf32> to vector<2x128xf32>
    %451 = vector.extract_strided_slice %449 {offsets = [0, 128], sizes = [2, 128], strides = [1, 1]} : vector<2x256xf32> to vector<2x128xf32>
    %452 = vector.extract_strided_slice %439 {offsets = [0, 256], sizes = [2, 128], strides = [1, 1]} : vector<2x384xf32> to vector<2x128xf32>
    %453 = vector.extract_strided_slice %412 {offsets = [0, 512], sizes = [2, 128], strides = [1, 1]} : vector<2x640xf32> to vector<2x128xf32>
    %454 = arith.mulf %450, %453 : vector<2x128xf32>
    %455 = arith.addf %452, %454 : vector<2x128xf32>
    %456 = math.tanh %455 : vector<2x128xf32>
    %cst_156 = arith.constant 1.000000e+00 : f32
    %457 = vector.broadcast %cst_156 : f32 to vector<2x128xf32>
    %458 = arith.subf %457, %451 : vector<2x128xf32>
    %459 = arith.mulf %458, %456 : vector<2x128xf32>
    %460 = arith.mulf %451, %384 : vector<2x128xf32>
    %461 = arith.addf %459, %460 : vector<2x128xf32>
    %462 = vector.extract_strided_slice %436 {offsets = [0, 0], sizes = [2, 128], strides = [1, 1]} : vector<2x512xf32> to vector<2x128xf32>
    %463 = vector.extract_strided_slice %412 {offsets = [0, 128], sizes = [2, 128], strides = [1, 1]} : vector<2x640xf32> to vector<2x128xf32>
    %464 = arith.addf %462, %463 : vector<2x128xf32>
    %cst_157 = arith.constant 0.000000e+00 : f32
    %465 = vector.broadcast %cst_157 : f32 to vector<2x128xf32>
    %466 = arith.maximumf %464, %465 : vector<2x128xf32>
    %cst_158 = arith.constant dense<0.000000e+00> : vector<2x128xf32>
    %467 = tpu.matmul %466, %4, %cst_158 {dimension_numbers = #tpu.dot_dimension_numbers<[1], [0], [0], [1], [0, 0, 1, 1], [], []>} : vector<2x128xf32>, vector<128x128xf32>, vector<2x128xf32> -> vector<2x128xf32>
    %468 = arith.addf %467, %17 : vector<2x128xf32>
    %cst_159 = arith.constant 0.000000e+00 : f32
    %469 = vector.broadcast %cst_159 : f32 to vector<2x128xf32>
    %470 = arith.maximumf %468, %469 : vector<2x128xf32>
    %cst_160 = arith.constant dense<0.000000e+00> : vector<2x128xf32>
    %471 = tpu.matmul %470, %5, %cst_160 {dimension_numbers = #tpu.dot_dimension_numbers<[1], [0], [0], [1], [0, 0, 1, 1], [], []>} : vector<2x128xf32>, vector<128x128xf32>, vector<2x128xf32> -> vector<2x128xf32>
    %472 = arith.addf %471, %20 : vector<2x128xf32>
    %cst_161 = arith.constant 5.000000e-01 : f32
    %473 = vector.broadcast %cst_161 : f32 to vector<2x128xf32>
    %474 = arith.mulf %473, %472 : vector<2x128xf32>
    %475 = math.tanh %474 : vector<2x128xf32>
    %cst_162 = arith.constant 1.000000e+00 : f32
    %476 = vector.broadcast %cst_162 : f32 to vector<2x128xf32>
    %477 = arith.addf %475, %476 : vector<2x128xf32>
    %cst_163 = arith.constant 5.000000e-01 : f32
    %478 = vector.broadcast %cst_163 : f32 to vector<2x128xf32>
    %479 = arith.mulf %478, %477 : vector<2x128xf32>
    %480 = tpu.concatenate %479, %461 in 1 : vector<2x128xf32>, vector<2x128xf32> -> vector<2x256xf32>
    %c5_164 = arith.constant 5 : index
    %c0_165 = arith.constant 0 : index
    %c0_166 = arith.constant 0 : index
    %481 = vector.load %arg14[%c5_164, %c0_165, %c0_166] : memref<8x2x256xf32, #tpu.memory_space<vmem>>, vector<1x2x256xf32>
    %482 = vector.shape_cast %481 : vector<1x2x256xf32> to vector<2x256xf32>
    %483 = vector.shape_cast %480 : vector<2x256xf32> to vector<1x2x256xf32>
    tpu.vector_store %arg14[%c5_164, %c0_165, %c0_166], %483 {strides = array<i32>} : memref<8x2x256xf32, #tpu.memory_space<vmem>>, vector<1x2x256xf32>,
    %c6 = arith.constant 6 : index
    %c0_167 = arith.constant 0 : index
    %c0_168 = arith.constant 0 : index
    %484 = vector.load %arg1[%c6, %c0_167, %c0_168] : memref<8x2x640xf32, #tpu.memory_space<vmem>>, vector<1x2x640xf32>
    %485 = vector.shape_cast %484 : vector<1x2x640xf32> to vector<2x640xf32>
    %486 = vector.extract_strided_slice %485 {offsets = [0, 0], sizes = [2, 512], strides = [1, 1]} : vector<2x640xf32> to vector<2x512xf32>
    %487 = vector.extract_strided_slice %485 {offsets = [0, 512], sizes = [2, 128], strides = [1, 1]} : vector<2x640xf32> to vector<2x128xf32>
    %cst_169 = arith.constant dense<0.000000e+00> : vector<2x640xf32>
    %488 = tpu.matmul %461, %0, %cst_169 {dimension_numbers = #tpu.dot_dimension_numbers<[1], [0], [0], [1], [0, 0, 1, 1], [], []>} : vector<2x128xf32>, vector<128x640xf32>, vector<2x640xf32> -> vector<2x640xf32>
    %489 = arith.addf %488, %8 : vector<2x640xf32>
    %490 = vector.extract_strided_slice %486 {offsets = [0, 0], sizes = [2, 128], strides = [1, 1]} : vector<2x512xf32> to vector<2x128xf32>
    %491 = vector.extract_strided_slice %489 {offsets = [0, 0], sizes = [2, 128], strides = [1, 1]} : vector<2x640xf32> to vector<2x128xf32>
    %492 = arith.addf %490, %491 : vector<2x128xf32>
    %cst_170 = arith.constant 0.000000e+00 : f32
    %493 = vector.broadcast %cst_170 : f32 to vector<2x128xf32>
    %494 = arith.maximumf %492, %493 : vector<2x128xf32>
    %cst_171 = arith.constant dense<0.000000e+00> : vector<2x128xf32>
    %495 = tpu.matmul %494, %2, %cst_171 {dimension_numbers = #tpu.dot_dimension_numbers<[1], [0], [0], [1], [0, 0, 1, 1], [], []>} : vector<2x128xf32>, vector<128x128xf32>, vector<2x128xf32> -> vector<2x128xf32>
    %496 = arith.addf %495, %11 : vector<2x128xf32>
    %cst_172 = arith.constant 0.000000e+00 : f32
    %497 = vector.broadcast %cst_172 : f32 to vector<2x128xf32>
    %498 = arith.maximumf %496, %497 : vector<2x128xf32>
    %cst_173 = arith.constant dense<0.000000e+00> : vector<2x256xf32>
    %499 = tpu.matmul %498, %3, %cst_173 {dimension_numbers = #tpu.dot_dimension_numbers<[1], [0], [0], [1], [0, 0, 1, 1], [], []>} : vector<2x128xf32>, vector<128x256xf32>, vector<2x256xf32> -> vector<2x256xf32>
    %500 = arith.addf %499, %14 : vector<2x256xf32>
    %501 = vector.extract_strided_slice %500 {offsets = [0, 128], sizes = [2, 128], strides = [1, 1]} : vector<2x256xf32> to vector<2x128xf32>
    %cst_174 = arith.constant 0.000000e+00 : f32
    %502 = vector.broadcast %cst_174 : f32 to vector<2x128xf32>
    %503 = arith.maximumf %501, %502 : vector<2x128xf32>
    %504 = math.absf %501 : vector<2x128xf32>
    %cst_175 = arith.constant 0.000000e+00 : f32
    %505 = vector.broadcast %cst_175 : f32 to vector<2x128xf32>
    %506 = arith.subf %505, %504 : vector<2x128xf32>
    %507 = math.exp %506 : vector<2x128xf32>
    %508 = math.log1p %507 : vector<2x128xf32>
    %509 = arith.addf %503, %508 : vector<2x128xf32>
    %510 = arith.mulf %487, %509 : vector<2x128xf32>
    %511 = vector.extract_strided_slice %500 {offsets = [0, 0], sizes = [2, 128], strides = [1, 1]} : vector<2x256xf32> to vector<2x128xf32>
    %512 = arith.addf %510, %511 : vector<2x128xf32>
    %cst_176 = arith.constant dense<0.000000e+00> : vector<2x512xf32>
    %513 = tpu.matmul %512, %1, %cst_176 {dimension_numbers = #tpu.dot_dimension_numbers<[1], [0], [0], [1], [0, 0, 1, 1], [], []>} : vector<2x128xf32>, vector<128x512xf32>, vector<2x512xf32> -> vector<2x512xf32>
    %514 = vector.extract_strided_slice %486 {offsets = [0, 128], sizes = [2, 384], strides = [1, 1]} : vector<2x512xf32> to vector<2x384xf32>
    %515 = vector.extract_strided_slice %513 {offsets = [0, 128], sizes = [2, 384], strides = [1, 1]} : vector<2x512xf32> to vector<2x384xf32>
    %516 = arith.addf %514, %515 : vector<2x384xf32>
    %517 = vector.extract_strided_slice %516 {offsets = [0, 0], sizes = [2, 256], strides = [1, 1]} : vector<2x384xf32> to vector<2x256xf32>
    %518 = vector.extract_strided_slice %489 {offsets = [0, 256], sizes = [2, 256], strides = [1, 1]} : vector<2x640xf32> to vector<2x256xf32>
    %519 = arith.addf %517, %518 : vector<2x256xf32>
    %cst_177 = arith.constant 5.000000e-01 : f32
    %520 = vector.broadcast %cst_177 : f32 to vector<2x256xf32>
    %521 = arith.mulf %520, %519 : vector<2x256xf32>
    %522 = math.tanh %521 : vector<2x256xf32>
    %cst_178 = arith.constant 1.000000e+00 : f32
    %523 = vector.broadcast %cst_178 : f32 to vector<2x256xf32>
    %524 = arith.addf %522, %523 : vector<2x256xf32>
    %cst_179 = arith.constant 5.000000e-01 : f32
    %525 = vector.broadcast %cst_179 : f32 to vector<2x256xf32>
    %526 = arith.mulf %525, %524 : vector<2x256xf32>
    %527 = vector.extract_strided_slice %526 {offsets = [0, 0], sizes = [2, 128], strides = [1, 1]} : vector<2x256xf32> to vector<2x128xf32>
    %528 = vector.extract_strided_slice %526 {offsets = [0, 128], sizes = [2, 128], strides = [1, 1]} : vector<2x256xf32> to vector<2x128xf32>
    %529 = vector.extract_strided_slice %516 {offsets = [0, 256], sizes = [2, 128], strides = [1, 1]} : vector<2x384xf32> to vector<2x128xf32>
    %530 = vector.extract_strided_slice %489 {offsets = [0, 512], sizes = [2, 128], strides = [1, 1]} : vector<2x640xf32> to vector<2x128xf32>
    %531 = arith.mulf %527, %530 : vector<2x128xf32>
    %532 = arith.addf %529, %531 : vector<2x128xf32>
    %533 = math.tanh %532 : vector<2x128xf32>
    %cst_180 = arith.constant 1.000000e+00 : f32
    %534 = vector.broadcast %cst_180 : f32 to vector<2x128xf32>
    %535 = arith.subf %534, %528 : vector<2x128xf32>
    %536 = arith.mulf %535, %533 : vector<2x128xf32>
    %537 = arith.mulf %528, %461 : vector<2x128xf32>
    %538 = arith.addf %536, %537 : vector<2x128xf32>
    %539 = vector.extract_strided_slice %513 {offsets = [0, 0], sizes = [2, 128], strides = [1, 1]} : vector<2x512xf32> to vector<2x128xf32>
    %540 = vector.extract_strided_slice %489 {offsets = [0, 128], sizes = [2, 128], strides = [1, 1]} : vector<2x640xf32> to vector<2x128xf32>
    %541 = arith.addf %539, %540 : vector<2x128xf32>
    %cst_181 = arith.constant 0.000000e+00 : f32
    %542 = vector.broadcast %cst_181 : f32 to vector<2x128xf32>
    %543 = arith.maximumf %541, %542 : vector<2x128xf32>
    %cst_182 = arith.constant dense<0.000000e+00> : vector<2x128xf32>
    %544 = tpu.matmul %543, %4, %cst_182 {dimension_numbers = #tpu.dot_dimension_numbers<[1], [0], [0], [1], [0, 0, 1, 1], [], []>} : vector<2x128xf32>, vector<128x128xf32>, vector<2x128xf32> -> vector<2x128xf32>
    %545 = arith.addf %544, %17 : vector<2x128xf32>
    %cst_183 = arith.constant 0.000000e+00 : f32
    %546 = vector.broadcast %cst_183 : f32 to vector<2x128xf32>
    %547 = arith.maximumf %545, %546 : vector<2x128xf32>
    %cst_184 = arith.constant dense<0.000000e+00> : vector<2x128xf32>
    %548 = tpu.matmul %547, %5, %cst_184 {dimension_numbers = #tpu.dot_dimension_numbers<[1], [0], [0], [1], [0, 0, 1, 1], [], []>} : vector<2x128xf32>, vector<128x128xf32>, vector<2x128xf32> -> vector<2x128xf32>
    %549 = arith.addf %548, %20 : vector<2x128xf32>
    %cst_185 = arith.constant 5.000000e-01 : f32
    %550 = vector.broadcast %cst_185 : f32 to vector<2x128xf32>
    %551 = arith.mulf %550, %549 : vector<2x128xf32>
    %552 = math.tanh %551 : vector<2x128xf32>
    %cst_186 = arith.constant 1.000000e+00 : f32
    %553 = vector.broadcast %cst_186 : f32 to vector<2x128xf32>
    %554 = arith.addf %552, %553 : vector<2x128xf32>
    %cst_187 = arith.constant 5.000000e-01 : f32
    %555 = vector.broadcast %cst_187 : f32 to vector<2x128xf32>
    %556 = arith.mulf %555, %554 : vector<2x128xf32>
    %557 = tpu.concatenate %556, %538 in 1 : vector<2x128xf32>, vector<2x128xf32> -> vector<2x256xf32>
    %c6_188 = arith.constant 6 : index
    %c0_189 = arith.constant 0 : index
    %c0_190 = arith.constant 0 : index
    %558 = vector.load %arg14[%c6_188, %c0_189, %c0_190] : memref<8x2x256xf32, #tpu.memory_space<vmem>>, vector<1x2x256xf32>
    %559 = vector.shape_cast %558 : vector<1x2x256xf32> to vector<2x256xf32>
    %560 = vector.shape_cast %557 : vector<2x256xf32> to vector<1x2x256xf32>
    tpu.vector_store %arg14[%c6_188, %c0_189, %c0_190], %560 {strides = array<i32>} : memref<8x2x256xf32, #tpu.memory_space<vmem>>, vector<1x2x256xf32>,
    %c7 = arith.constant 7 : index
    %c0_191 = arith.constant 0 : index
    %c0_192 = arith.constant 0 : index
    %561 = vector.load %arg1[%c7, %c0_191, %c0_192] : memref<8x2x640xf32, #tpu.memory_space<vmem>>, vector<1x2x640xf32>
    %562 = vector.shape_cast %561 : vector<1x2x640xf32> to vector<2x640xf32>
    %563 = vector.extract_strided_slice %562 {offsets = [0, 0], sizes = [2, 512], strides = [1, 1]} : vector<2x640xf32> to vector<2x512xf32>
    %564 = vector.extract_strided_slice %562 {offsets = [0, 512], sizes = [2, 128], strides = [1, 1]} : vector<2x640xf32> to vector<2x128xf32>
    %cst_193 = arith.constant dense<0.000000e+00> : vector<2x640xf32>
    %565 = tpu.matmul %538, %0, %cst_193 {dimension_numbers = #tpu.dot_dimension_numbers<[1], [0], [0], [1], [0, 0, 1, 1], [], []>} : vector<2x128xf32>, vector<128x640xf32>, vector<2x640xf32> -> vector<2x640xf32>
    %566 = arith.addf %565, %8 : vector<2x640xf32>
    %567 = vector.extract_strided_slice %563 {offsets = [0, 0], sizes = [2, 128], strides = [1, 1]} : vector<2x512xf32> to vector<2x128xf32>
    %568 = vector.extract_strided_slice %566 {offsets = [0, 0], sizes = [2, 128], strides = [1, 1]} : vector<2x640xf32> to vector<2x128xf32>
    %569 = arith.addf %567, %568 : vector<2x128xf32>
    %cst_194 = arith.constant 0.000000e+00 : f32
    %570 = vector.broadcast %cst_194 : f32 to vector<2x128xf32>
    %571 = arith.maximumf %569, %570 : vector<2x128xf32>
    %cst_195 = arith.constant dense<0.000000e+00> : vector<2x128xf32>
    %572 = tpu.matmul %571, %2, %cst_195 {dimension_numbers = #tpu.dot_dimension_numbers<[1], [0], [0], [1], [0, 0, 1, 1], [], []>} : vector<2x128xf32>, vector<128x128xf32>, vector<2x128xf32> -> vector<2x128xf32>
    %573 = arith.addf %572, %11 : vector<2x128xf32>
    %cst_196 = arith.constant 0.000000e+00 : f32
    %574 = vector.broadcast %cst_196 : f32 to vector<2x128xf32>
    %575 = arith.maximumf %573, %574 : vector<2x128xf32>
    %cst_197 = arith.constant dense<0.000000e+00> : vector<2x256xf32>
    %576 = tpu.matmul %575, %3, %cst_197 {dimension_numbers = #tpu.dot_dimension_numbers<[1], [0], [0], [1], [0, 0, 1, 1], [], []>} : vector<2x128xf32>, vector<128x256xf32>, vector<2x256xf32> -> vector<2x256xf32>
    %577 = arith.addf %576, %14 : vector<2x256xf32>
    %578 = vector.extract_strided_slice %577 {offsets = [0, 128], sizes = [2, 128], strides = [1, 1]} : vector<2x256xf32> to vector<2x128xf32>
    %cst_198 = arith.constant 0.000000e+00 : f32
    %579 = vector.broadcast %cst_198 : f32 to vector<2x128xf32>
    %580 = arith.maximumf %578, %579 : vector<2x128xf32>
    %581 = math.absf %578 : vector<2x128xf32>
    %cst_199 = arith.constant 0.000000e+00 : f32
    %582 = vector.broadcast %cst_199 : f32 to vector<2x128xf32>
    %583 = arith.subf %582, %581 : vector<2x128xf32>
    %584 = math.exp %583 : vector<2x128xf32>
    %585 = math.log1p %584 : vector<2x128xf32>
    %586 = arith.addf %580, %585 : vector<2x128xf32>
    %587 = arith.mulf %564, %586 : vector<2x128xf32>
    %588 = vector.extract_strided_slice %577 {offsets = [0, 0], sizes = [2, 128], strides = [1, 1]} : vector<2x256xf32> to vector<2x128xf32>
    %589 = arith.addf %587, %588 : vector<2x128xf32>
    %cst_200 = arith.constant dense<0.000000e+00> : vector<2x512xf32>
    %590 = tpu.matmul %589, %1, %cst_200 {dimension_numbers = #tpu.dot_dimension_numbers<[1], [0], [0], [1], [0, 0, 1, 1], [], []>} : vector<2x128xf32>, vector<128x512xf32>, vector<2x512xf32> -> vector<2x512xf32>
    %591 = vector.extract_strided_slice %563 {offsets = [0, 128], sizes = [2, 384], strides = [1, 1]} : vector<2x512xf32> to vector<2x384xf32>
    %592 = vector.extract_strided_slice %590 {offsets = [0, 128], sizes = [2, 384], strides = [1, 1]} : vector<2x512xf32> to vector<2x384xf32>
    %593 = arith.addf %591, %592 : vector<2x384xf32>
    %594 = vector.extract_strided_slice %593 {offsets = [0, 0], sizes = [2, 256], strides = [1, 1]} : vector<2x384xf32> to vector<2x256xf32>
    %595 = vector.extract_strided_slice %566 {offsets = [0, 256], sizes = [2, 256], strides = [1, 1]} : vector<2x640xf32> to vector<2x256xf32>
    %596 = arith.addf %594, %595 : vector<2x256xf32>
    %cst_201 = arith.constant 5.000000e-01 : f32
    %597 = vector.broadcast %cst_201 : f32 to vector<2x256xf32>
    %598 = arith.mulf %597, %596 : vector<2x256xf32>
    %599 = math.tanh %598 : vector<2x256xf32>
    %cst_202 = arith.constant 1.000000e+00 : f32
    %600 = vector.broadcast %cst_202 : f32 to vector<2x256xf32>
    %601 = arith.addf %599, %600 : vector<2x256xf32>
    %cst_203 = arith.constant 5.000000e-01 : f32
    %602 = vector.broadcast %cst_203 : f32 to vector<2x256xf32>
    %603 = arith.mulf %602, %601 : vector<2x256xf32>
    %604 = vector.extract_strided_slice %603 {offsets = [0, 0], sizes = [2, 128], strides = [1, 1]} : vector<2x256xf32> to vector<2x128xf32>
    %605 = vector.extract_strided_slice %603 {offsets = [0, 128], sizes = [2, 128], strides = [1, 1]} : vector<2x256xf32> to vector<2x128xf32>
    %606 = vector.extract_strided_slice %593 {offsets = [0, 256], sizes = [2, 128], strides = [1, 1]} : vector<2x384xf32> to vector<2x128xf32>
    %607 = vector.extract_strided_slice %566 {offsets = [0, 512], sizes = [2, 128], strides = [1, 1]} : vector<2x640xf32> to vector<2x128xf32>
    %608 = arith.mulf %604, %607 : vector<2x128xf32>
    %609 = arith.addf %606, %608 : vector<2x128xf32>
    %610 = math.tanh %609 : vector<2x128xf32>
    %cst_204 = arith.constant 1.000000e+00 : f32
    %611 = vector.broadcast %cst_204 : f32 to vector<2x128xf32>
    %612 = arith.subf %611, %605 : vector<2x128xf32>
    %613 = arith.mulf %612, %610 : vector<2x128xf32>
    %614 = arith.mulf %605, %538 : vector<2x128xf32>
    %615 = arith.addf %613, %614 : vector<2x128xf32>
    %616 = vector.extract_strided_slice %590 {offsets = [0, 0], sizes = [2, 128], strides = [1, 1]} : vector<2x512xf32> to vector<2x128xf32>
    %617 = vector.extract_strided_slice %566 {offsets = [0, 128], sizes = [2, 128], strides = [1, 1]} : vector<2x640xf32> to vector<2x128xf32>
    %618 = arith.addf %616, %617 : vector<2x128xf32>
    %cst_205 = arith.constant 0.000000e+00 : f32
    %619 = vector.broadcast %cst_205 : f32 to vector<2x128xf32>
    %620 = arith.maximumf %618, %619 : vector<2x128xf32>
    %cst_206 = arith.constant dense<0.000000e+00> : vector<2x128xf32>
    %621 = tpu.matmul %620, %4, %cst_206 {dimension_numbers = #tpu.dot_dimension_numbers<[1], [0], [0], [1], [0, 0, 1, 1], [], []>} : vector<2x128xf32>, vector<128x128xf32>, vector<2x128xf32> -> vector<2x128xf32>
    %622 = arith.addf %621, %17 : vector<2x128xf32>
    %cst_207 = arith.constant 0.000000e+00 : f32
    %623 = vector.broadcast %cst_207 : f32 to vector<2x128xf32>
    %624 = arith.maximumf %622, %623 : vector<2x128xf32>
    %cst_208 = arith.constant dense<0.000000e+00> : vector<2x128xf32>
    %625 = tpu.matmul %624, %5, %cst_208 {dimension_numbers = #tpu.dot_dimension_numbers<[1], [0], [0], [1], [0, 0, 1, 1], [], []>} : vector<2x128xf32>, vector<128x128xf32>, vector<2x128xf32> -> vector<2x128xf32>
    %626 = arith.addf %625, %20 : vector<2x128xf32>
    %cst_209 = arith.constant 5.000000e-01 : f32
    %627 = vector.broadcast %cst_209 : f32 to vector<2x128xf32>
    %628 = arith.mulf %627, %626 : vector<2x128xf32>
    %629 = math.tanh %628 : vector<2x128xf32>
    %cst_210 = arith.constant 1.000000e+00 : f32
    %630 = vector.broadcast %cst_210 : f32 to vector<2x128xf32>
    %631 = arith.addf %629, %630 : vector<2x128xf32>
    %cst_211 = arith.constant 5.000000e-01 : f32
    %632 = vector.broadcast %cst_211 : f32 to vector<2x128xf32>
    %633 = arith.mulf %632, %631 : vector<2x128xf32>
    %634 = tpu.concatenate %633, %615 in 1 : vector<2x128xf32>, vector<2x128xf32> -> vector<2x256xf32>
    %c7_212 = arith.constant 7 : index
    %c0_213 = arith.constant 0 : index
    %c0_214 = arith.constant 0 : index
    %635 = vector.load %arg14[%c7_212, %c0_213, %c0_214] : memref<8x2x256xf32, #tpu.memory_space<vmem>>, vector<1x2x256xf32>
    %636 = vector.shape_cast %635 : vector<1x2x256xf32> to vector<2x256xf32>
    %637 = vector.shape_cast %634 : vector<2x256xf32> to vector<1x2x256xf32>
    tpu.vector_store %arg14[%c7_212, %c0_213, %c0_214], %637 {strides = array<i32>} : memref<8x2x256xf32, #tpu.memory_space<vmem>>, vector<1x2x256xf32>,
    return
  }
  func.func @transform_0(%arg0: i32) -> (i32, i32, i32) {
    %c0_i32 = arith.constant 0 : i32
    %c0_i32_0 = arith.constant 0 : i32
    %c0_i32_1 = arith.constant 0 : i32
    return %c0_i32, %arg0, %c0_i32_0 : i32, i32, i32
  }
  func.func @transform_1(%arg0: i32) -> (i32, i32) {
    %c0_i32 = arith.constant 0 : i32
    %c0_i32_0 = arith.constant 0 : i32
    %c0_i32_1 = arith.constant 0 : i32
    return %c0_i32, %c0_i32_0 : i32, i32
  }
  func.func @transform_2(%arg0: i32) -> (i32, i32) {
    %c0_i32 = arith.constant 0 : i32
    %c0_i32_0 = arith.constant 0 : i32
    %c0_i32_1 = arith.constant 0 : i32
    return %c0_i32, %c0_i32_0 : i32, i32
  }
  func.func @transform_3(%arg0: i32) -> (i32, i32) {
    %c0_i32 = arith.constant 0 : i32
    %c0_i32_0 = arith.constant 0 : i32
    %c0_i32_1 = arith.constant 0 : i32
    return %c0_i32, %c0_i32_0 : i32, i32
  }
  func.func @transform_4(%arg0: i32) -> (i32, i32) {
    %c0_i32 = arith.constant 0 : i32
    %c0_i32_0 = arith.constant 0 : i32
    %c0_i32_1 = arith.constant 0 : i32
    return %c0_i32, %c0_i32_0 : i32, i32
  }
  func.func @transform_5(%arg0: i32) -> (i32, i32) {
    %c0_i32 = arith.constant 0 : i32
    %c0_i32_0 = arith.constant 0 : i32
    %c0_i32_1 = arith.constant 0 : i32
    return %c0_i32, %c0_i32_0 : i32, i32
  }
  func.func @transform_6(%arg0: i32) -> (i32, i32) {
    %c0_i32 = arith.constant 0 : i32
    %c0_i32_0 = arith.constant 0 : i32
    %c0_i32_1 = arith.constant 0 : i32
    return %c0_i32, %c0_i32_0 : i32, i32
  }
  func.func @transform_7(%arg0: i32) -> (i32, i32) {
    %c0_i32 = arith.constant 0 : i32
    %c0_i32_0 = arith.constant 0 : i32
    %c0_i32_1 = arith.constant 0 : i32
    return %c0_i32, %c0_i32_0 : i32, i32
  }
  func.func @transform_8(%arg0: i32) -> (i32, i32) {
    %c0_i32 = arith.constant 0 : i32
    %c0_i32_0 = arith.constant 0 : i32
    %c0_i32_1 = arith.constant 0 : i32
    return %c0_i32, %c0_i32_0 : i32, i32
  }
  func.func @transform_9(%arg0: i32) -> (i32, i32) {
    %c0_i32 = arith.constant 0 : i32
    %c0_i32_0 = arith.constant 0 : i32
    %c0_i32_1 = arith.constant 0 : i32
    return %c0_i32, %c0_i32_0 : i32, i32
  }
  func.func @transform_10(%arg0: i32) -> (i32, i32) {
    %c0_i32 = arith.constant 0 : i32
    %c0_i32_0 = arith.constant 0 : i32
    %c0_i32_1 = arith.constant 0 : i32
    return %c0_i32, %c0_i32_0 : i32, i32
  }
  func.func @transform_11(%arg0: i32) -> (i32, i32) {
    %c0_i32 = arith.constant 0 : i32
    %c0_i32_0 = arith.constant 0 : i32
    %c0_i32_1 = arith.constant 0 : i32
    return %c0_i32, %c0_i32_0 : i32, i32
  }
  func.func @transform_12(%arg0: i32) -> (i32, i32) {
    %c0_i32 = arith.constant 0 : i32
    %c0_i32_0 = arith.constant 0 : i32
    return %arg0, %c0_i32 : i32, i32
  }
  func.func @transform_13(%arg0: i32) -> (i32, i32, i32) {
    %c0_i32 = arith.constant 0 : i32
    %c0_i32_0 = arith.constant 0 : i32
    %c0_i32_1 = arith.constant 0 : i32
    return %c0_i32, %arg0, %c0_i32_0 : i32, i32, i32
  }
}

</mosaic_0001>

<llo_original>
// kernel: vrnn_forward.1
$region0: #{vrnn_forward.1}
  #allocation0 [shape = 'u32[]', space=smem, size = 0x4, offset = 0x4, fixed_abs, tag = 'smem constant byte address 0x4 - core index']
  #allocation1 [shape = 'u32[144,128]{1,0:T(1,128)}', space=vmem, size = 0x12000, scoped, tag = 'internal scratch']
  %s0 = inlined_call_operand.vmem [shape: f32[8,2,640], index: 0, kind: input, shape index: {}]
  %s1 = inlined_call_operand.vmem [shape: f32[128,640], index: 1, kind: input, shape index: {}]
  %s2 = inlined_call_operand.vmem [shape: f32[1,640], index: 2, kind: input, shape index: {}]
  %s3 = inlined_call_operand.vmem [shape: f32[128,512], index: 3, kind: input, shape index: {}]
  %s4 = inlined_call_operand.vmem [shape: f32[128,128], index: 4, kind: input, shape index: {}]
  %s5 = inlined_call_operand.vmem [shape: f32[1,128], index: 5, kind: input, shape index: {}]
  %s6 = inlined_call_operand.vmem [shape: f32[128,256], index: 6, kind: input, shape index: {}]
  %s7 = inlined_call_operand.vmem [shape: f32[1,256], index: 7, kind: input, shape index: {}]
  %s8 = inlined_call_operand.vmem [shape: f32[128,128], index: 8, kind: input, shape index: {}]
  %s9 = inlined_call_operand.vmem [shape: f32[1,128], index: 9, kind: input, shape index: {}]
  %s10 = inlined_call_operand.vmem [shape: f32[128,128], index: 10, kind: input, shape index: {}]
  %s11 = inlined_call_operand.vmem [shape: f32[1,128], index: 11, kind: input, shape index: {}]
  %s12 = inlined_call_operand.vmem [shape: f32[2,128], index: 12, kind: input, shape index: {}]
  %s13 = inlined_call_operand.vmem [shape: f32[8,2,256], index: 13, kind: output, shape index: {}]
  %s14 = sld [smem:[#allocation0]]
  $region62: #{vrnn_forward.1} parent=0
    _
  %s16 = ssub.s32 1, %s14
  %s17 = scalar_select 0, %s16, %s14
  // Predicated region
  $region2: #{vrnn_forward.1} parent=0 // pred_check
    _
  $region3: #{vrnn_forward.1} parent=0 // pred_check_branch
    %19 = sbr.rel (0) target = $region5
  $region4: #{vrnn_forward.1} parent=0 // pred_region
    _
  $region5: #{vrnn_forward.1} parent=0 // pred_fallthru
    _
  // Predicated region
  $region6: #{vrnn_forward.1} parent=0 // pred_check
    _
  $region7: #{vrnn_forward.1} parent=0 // pred_check_branch
    %21 = sbr.rel (0) target = $region9
  $region8: #{vrnn_forward.1} parent=0 // pred_region
    _
  $region9: #{vrnn_forward.1} parent=0 // pred_fallthru
    _
  // Predicated region
  $region10: #{vrnn_forward.1} parent=0 // pred_check
    _
  $region11: #{vrnn_forward.1} parent=0 // pred_check_branch
    %23 = sbr.rel (0) target = $region13
  $region12: #{vrnn_forward.1} parent=0 // pred_region
    _
  $region13: #{vrnn_forward.1} parent=0 // pred_fallthru
    _
  // Predicated region
  $region14: #{vrnn_forward.1} parent=0 // pred_check
    _
  $region15: #{vrnn_forward.1} parent=0 // pred_check_branch
    %25 = sbr.rel (0) target = $region17
  $region16: #{vrnn_forward.1} parent=0 // pred_region
    _
  $region17: #{vrnn_forward.1} parent=0 // pred_fallthru
    _
  // Predicated region
  $region18: #{vrnn_forward.1} parent=0 // pred_check
    _
  $region19: #{vrnn_forward.1} parent=0 // pred_check_branch
    %27 = sbr.rel (0) target = $region21
  $region20: #{vrnn_forward.1} parent=0 // pred_region
    _
  $region21: #{vrnn_forward.1} parent=0 // pred_fallthru
    _
  // Predicated region
  $region22: #{vrnn_forward.1} parent=0 // pred_check
    _
  $region23: #{vrnn_forward.1} parent=0 // pred_check_branch
    %29 = sbr.rel (0) target = $region25
  $region24: #{vrnn_forward.1} parent=0 // pred_region
    _
  $region25: #{vrnn_forward.1} parent=0 // pred_fallthru
    _
  // Predicated region
  $region26: #{vrnn_forward.1} parent=0 // pred_check
    _
  $region27: #{vrnn_forward.1} parent=0 // pred_check_branch
    %31 = sbr.rel (0) target = $region29
  $region28: #{vrnn_forward.1} parent=0 // pred_region
    _
  $region29: #{vrnn_forward.1} parent=0 // pred_fallthru
    _
  // Predicated region
  $region30: #{vrnn_forward.1} parent=0 // pred_check
    _
  $region31: #{vrnn_forward.1} parent=0 // pred_check_branch
    %33 = sbr.rel (0) target = $region33
  $region32: #{vrnn_forward.1} parent=0 // pred_region
    _
  $region33: #{vrnn_forward.1} parent=0 // pred_fallthru
    _
  // Predicated region
  $region34: #{vrnn_forward.1} parent=0 // pred_check
    _
  $region35: #{vrnn_forward.1} parent=0 // pred_check_branch
    %35 = sbr.rel (0) target = $region37
  $region36: #{vrnn_forward.1} parent=0 // pred_region
    _
  $region37: #{vrnn_forward.1} parent=0 // pred_fallthru
    _
  // Predicated region
  $region38: #{vrnn_forward.1} parent=0 // pred_check
    _
  $region39: #{vrnn_forward.1} parent=0 // pred_check_branch
    %37 = sbr.rel (0) target = $region41
  $region40: #{vrnn_forward.1} parent=0 // pred_region
    _
  $region41: #{vrnn_forward.1} parent=0 // pred_fallthru
    _
  // Predicated region
  $region42: #{vrnn_forward.1} parent=0 // pred_check
    _
  $region43: #{vrnn_forward.1} parent=0 // pred_check_branch
    %39 = sbr.rel (0) target = $region45
  $region44: #{vrnn_forward.1} parent=0 // pred_region
    _
  $region45: #{vrnn_forward.1} parent=0 // pred_fallthru
    _
  // Predicated region
  $region46: #{vrnn_forward.1} parent=0 // pred_check
    _
  $region47: #{vrnn_forward.1} parent=0 // pred_check_branch
    %41 = sbr.rel (0) target = $region49
  $region48: #{vrnn_forward.1} parent=0 // pred_region
    _
  $region49: #{vrnn_forward.1} parent=0 // pred_fallthru
    _
  // Predicated region
  $region50: #{vrnn_forward.1} parent=0 // pred_check
    _
  $region51: #{vrnn_forward.1} parent=0 // pred_check_branch
    %43 = sbr.rel (0) target = $region53
  $region52: #{vrnn_forward.1} parent=0 // pred_region
    _
  $region53: #{vrnn_forward.1} parent=0 // pred_fallthru
    _
  %v44 = vld [vmem:[%s1] sm:$0xff]
  %v45 = vld [vmem:[%s1 + $0x8] sm:$0xff]
  %v46 = vld [vmem:[%s1 + $0x10] sm:$0xff]
  %v47 = vld [vmem:[%s1 + $0x18] sm:$0xff]
  %v48 = vld [vmem:[%s1 + $0x20] sm:$0xff]
  %v49 = vld [vmem:[%s1 + $0x28] sm:$0xff]
  %v50 = vld [vmem:[%s1 + $0x30] sm:$0xff]
  %v51 = vld [vmem:[%s1 + $0x38] sm:$0xff]
  %v52 = vld [vmem:[%s1 + $0x40] sm:$0xff]
  %v53 = vld [vmem:[%s1 + $0x48] sm:$0xff]
  %v54 = vld [vmem:[%s1 + $0x50] sm:$0xff]
  %v55 = vld [vmem:[%s1 + $0x58] sm:$0xff]
  %v56 = vld [vmem:[%s1 + $0x60] sm:$0xff]
  %v57 = vld [vmem:[%s1 + $0x68] sm:$0xff]
  %v58 = vld [vmem:[%s1 + $0x70] sm:$0xff]
  %v59 = vld [vmem:[%s1 + $0x78] sm:$0xff]
  %v60 = vld [vmem:[%s1 + $0x80] sm:$0xff]
  %v61 = vld [vmem:[%s1 + $0x88] sm:$0xff]
  %v62 = vld [vmem:[%s1 + $0x90] sm:$0xff]
  %v63 = vld [vmem:[%s1 + $0x98] sm:$0xff]
  %v64 = vld [vmem:[%s1 + $0xa0] sm:$0xff]
  %v65 = vld [vmem:[%s1 + $0xa8] sm:$0xff]
  %v66 = vld [vmem:[%s1 + $0xb0] sm:$0xff]
  %v67 = vld [vmem:[%s1 + $0xb8] sm:$0xff]
  %v68 = vld [vmem:[%s1 + $0xc0] sm:$0xff]
  %v69 = vld [vmem:[%s1 + $0xc8] sm:$0xff]
  %v70 = vld [vmem:[%s1 + $0xd0] sm:$0xff]
  %v71 = vld [vmem:[%s1 + $0xd8] sm:$0xff]
  %v72 = vld [vmem:[%s1 + $0xe0] sm:$0xff]
  %v73 = vld [vmem:[%s1 + $0xe8] sm:$0xff]
  %v74 = vld [vmem:[%s1 + $0xf0] sm:$0xff]
  %v75 = vld [vmem:[%s1 + $0xf8] sm:$0xff]
  %v76 = vld [vmem:[%s1 + $0x100] sm:$0xff]
  %v77 = vld [vmem:[%s1 + $0x108] sm:$0xff]
  %v78 = vld [vmem:[%s1 + $0x110] sm:$0xff]
  %v79 = vld [vmem:[%s1 + $0x118] sm:$0xff]
  %v80 = vld [vmem:[%s1 + $0x120] sm:$0xff]
  %v81 = vld [vmem:[%s1 + $0x128] sm:$0xff]
  %v82 = vld [vmem:[%s1 + $0x130] sm:$0xff]
  %v83 = vld [vmem:[%s1 + $0x138] sm:$0xff]
  %v84 = vld [vmem:[%s1 + $0x140] sm:$0xff]
  %v85 = vld [vmem:[%s1 + $0x148] sm:$0xff]
  %v86 = vld [vmem:[%s1 + $0x150] sm:$0xff]
  %v87 = vld [vmem:[%s1 + $0x158] sm:$0xff]
  %v88 = vld [vmem:[%s1 + $0x160] sm:$0xff]
  %v89 = vld [vmem:[%s1 + $0x168] sm:$0xff]
  %v90 = vld [vmem:[%s1 + $0x170] sm:$0xff]
  %v91 = vld [vmem:[%s1 + $0x178] sm:$0xff]
  %v92 = vld [vmem:[%s1 + $0x180] sm:$0xff]
  %v93 = vld [vmem:[%s1 + $0x188] sm:$0xff]
  %v94 = vld [vmem:[%s1 + $0x190] sm:$0xff]
  %v95 = vld [vmem:[%s1 + $0x198] sm:$0xff]
  %v96 = vld [vmem:[%s1 + $0x1a0] sm:$0xff]
  %v97 = vld [vmem:[%s1 + $0x1a8] sm:$0xff]
  %v98 = vld [vmem:[%s1 + $0x1b0] sm:$0xff]
  %v99 = vld [vmem:[%s1 + $0x1b8] sm:$0xff]
  %v100 = vld [vmem:[%s1 + $0x1c0] sm:$0xff]
  %v101 = vld [vmem:[%s1 + $0x1c8] sm:$0xff]
  %v102 = vld [vmem:[%s1 + $0x1d0] sm:$0xff]
  %v103 = vld [vmem:[%s1 + $0x1d8] sm:$0xff]
  %v104 = vld [vmem:[%s1 + $0x1e0] sm:$0xff]
  %v105 = vld [vmem:[%s1 + $0x1e8] sm:$0xff]
  %v106 = vld [vmem:[%s1 + $0x1f0] sm:$0xff]
  %v107 = vld [vmem:[%s1 + $0x1f8] sm:$0xff]
  %v108 = vld [vmem:[%s1 + $0x200] sm:$0xff]
  %v109 = vld [vmem:[%s1 + $0x208] sm:$0xff]
  %v110 = vld [vmem:[%s1 + $0x210] sm:$0xff]
  %v111 = vld [vmem:[%s1 + $0x218] sm:$0xff]
  %v112 = vld [vmem:[%s1 + $0x220] sm:$0xff]
  %v113 = vld [vmem:[%s1 + $0x228] sm:$0xff]
  %v114 = vld [vmem:[%s1 + $0x230] sm:$0xff]
  %v115 = vld [vmem:[%s1 + $0x238] sm:$0xff]
  %v116 = vld [vmem:[%s1 + $0x240] sm:$0xff]
  %v117 = vld [vmem:[%s1 + $0x248] sm:$0xff]
  %v118 = vld [vmem:[%s1 + $0x250] sm:$0xff]
  %v119 = vld [vmem:[%s1 + $0x258] sm:$0xff]
  %v120 = vld [vmem:[%s1 + $0x260] sm:$0xff]
  %v121 = vld [vmem:[%s1 + $0x268] sm:$0xff]
  %v122 = vld [vmem:[%s1 + $0x270] sm:$0xff]
  %v123 = vld [vmem:[%s1 + $0x278] sm:$0xff]
  %v124 = vld [vmem:[%s3] sm:$0xff]
  %v125 = vld [vmem:[%s3 + $0x8] sm:$0xff]
  %v126 = vld [vmem:[%s3 + $0x10] sm:$0xff]
  %v127 = vld [vmem:[%s3 + $0x18] sm:$0xff]
  %v128 = vld [vmem:[%s3 + $0x20] sm:$0xff]
  %v129 = vld [vmem:[%s3 + $0x28] sm:$0xff]
  %v130 = vld [vmem:[%s3 + $0x30] sm:$0xff]
  %v131 = vld [vmem:[%s3 + $0x38] sm:$0xff]
  %v132 = vld [vmem:[%s3 + $0x40] sm:$0xff]
  %v133 = vld [vmem:[%s3 + $0x48] sm:$0xff]
  %v134 = vld [vmem:[%s3 + $0x50] sm:$0xff]
  %v135 = vld [vmem:[%s3 + $0x58] sm:$0xff]
  %v136 = vld [vmem:[%s3 + $0x60] sm:$0xff]
  %v137 = vld [vmem:[%s3 + $0x68] sm:$0xff]
  %v138 = vld [vmem:[%s3 + $0x70] sm:$0xff]
  %v139 = vld [vmem:[%s3 + $0x78] sm:$0xff]
  %v140 = vld [vmem:[%s3 + $0x80] sm:$0xff]
  %v141 = vld [vmem:[%s3 + $0x88] sm:$0xff]
  %v142 = vld [vmem:[%s3 + $0x90] sm:$0xff]
  %v143 = vld [vmem:[%s3 + $0x98] sm:$0xff]
  %v144 = vld [vmem:[%s3 + $0xa0] sm:$0xff]
  %v145 = vld [vmem:[%s3 + $0xa8] sm:$0xff]
  %v146 = vld [vmem:[%s3 + $0xb0] sm:$0xff]
  %v147 = vld [vmem:[%s3 + $0xb8] sm:$0xff]
  %v148 = vld [vmem:[%s3 + $0xc0] sm:$0xff]
  %v149 = vld [vmem:[%s3 + $0xc8] sm:$0xff]
  %v150 = vld [vmem:[%s3 + $0xd0] sm:$0xff]
  %v151 = vld [vmem:[%s3 + $0xd8] sm:$0xff]
  %v152 = vld [vmem:[%s3 + $0xe0] sm:$0xff]
  %v153 = vld [vmem:[%s3 + $0xe8] sm:$0xff]
  %v154 = vld [vmem:[%s3 + $0xf0] sm:$0xff]
  %v155 = vld [vmem:[%s3 + $0xf8] sm:$0xff]
  %v156 = vld [vmem:[%s3 + $0x100] sm:$0xff]
  %v157 = vld [vmem:[%s3 + $0x108] sm:$0xff]
  %v158 = vld [vmem:[%s3 + $0x110] sm:$0xff]
  %v159 = vld [vmem:[%s3 + $0x118] sm:$0xff]
  %v160 = vld [vmem:[%s3 + $0x120] sm:$0xff]
  %v161 = vld [vmem:[%s3 + $0x128] sm:$0xff]
  %v162 = vld [vmem:[%s3 + $0x130] sm:$0xff]
  %v163 = vld [vmem:[%s3 + $0x138] sm:$0xff]
  %v164 = vld [vmem:[%s3 + $0x140] sm:$0xff]
  %v165 = vld [vmem:[%s3 + $0x148] sm:$0xff]
  %v166 = vld [vmem:[%s3 + $0x150] sm:$0xff]
  %v167 = vld [vmem:[%s3 + $0x158] sm:$0xff]
  %v168 = vld [vmem:[%s3 + $0x160] sm:$0xff]
  %v169 = vld [vmem:[%s3 + $0x168] sm:$0xff]
  %v170 = vld [vmem:[%s3 + $0x170] sm:$0xff]
  %v171 = vld [vmem:[%s3 + $0x178] sm:$0xff]
  %v172 = vld [vmem:[%s3 + $0x180] sm:$0xff]
  %v173 = vld [vmem:[%s3 + $0x188] sm:$0xff]
  %v174 = vld [vmem:[%s3 + $0x190] sm:$0xff]
  %v175 = vld [vmem:[%s3 + $0x198] sm:$0xff]
  %v176 = vld [vmem:[%s3 + $0x1a0] sm:$0xff]
  %v177 = vld [vmem:[%s3 + $0x1a8] sm:$0xff]
  %v178 = vld [vmem:[%s3 + $0x1b0] sm:$0xff]
  %v179 = vld [vmem:[%s3 + $0x1b8] sm:$0xff]
  %v180 = vld [vmem:[%s3 + $0x1c0] sm:$0xff]
  %v181 = vld [vmem:[%s3 + $0x1c8] sm:$0xff]
  %v182 = vld [vmem:[%s3 + $0x1d0] sm:$0xff]
  %v183 = vld [vmem:[%s3 + $0x1d8] sm:$0xff]
  %v184 = vld [vmem:[%s3 + $0x1e0] sm:$0xff]
  %v185 = vld [vmem:[%s3 + $0x1e8] sm:$0xff]
  %v186 = vld [vmem:[%s3 + $0x1f0] sm:$0xff]
  %v187 = vld [vmem:[%s3 + $0x1f8] sm:$0xff]
  %v188 = vld [vmem:[%s4] sm:$0xff]
  %v189 = vld [vmem:[%s4 + $0x8] sm:$0xff]
  %v190 = vld [vmem:[%s4 + $0x10] sm:$0xff]
  %v191 = vld [vmem:[%s4 + $0x18] sm:$0xff]
  %v192 = vld [vmem:[%s4 + $0x20] sm:$0xff]
  %v193 = vld [vmem:[%s4 + $0x28] sm:$0xff]
  %v194 = vld [vmem:[%s4 + $0x30] sm:$0xff]
  %v195 = vld [vmem:[%s4 + $0x38] sm:$0xff]
  %v196 = vld [vmem:[%s4 + $0x40] sm:$0xff]
  %v197 = vld [vmem:[%s4 + $0x48] sm:$0xff]
  %v198 = vld [vmem:[%s4 + $0x50] sm:$0xff]
  %v199 = vld [vmem:[%s4 + $0x58] sm:$0xff]
  %v200 = vld [vmem:[%s4 + $0x60] sm:$0xff]
  %v201 = vld [vmem:[%s4 + $0x68] sm:$0xff]
  %v202 = vld [vmem:[%s4 + $0x70] sm:$0xff]
  %v203 = vld [vmem:[%s4 + $0x78] sm:$0xff]
  %v204 = vld [vmem:[%s6] sm:$0xff]
  %v205 = vld [vmem:[%s6 + $0x8] sm:$0xff]
  %v206 = vld [vmem:[%s6 + $0x10] sm:$0xff]
  %v207 = vld [vmem:[%s6 + $0x18] sm:$0xff]
  %v208 = vld [vmem:[%s6 + $0x20] sm:$0xff]
  %v209 = vld [vmem:[%s6 + $0x28] sm:$0xff]
  %v210 = vld [vmem:[%s6 + $0x30] sm:$0xff]
  %v211 = vld [vmem:[%s6 + $0x38] sm:$0xff]
  %v212 = vld [vmem:[%s6 + $0x40] sm:$0xff]
  %v213 = vld [vmem:[%s6 + $0x48] sm:$0xff]
  %v214 = vld [vmem:[%s6 + $0x50] sm:$0xff]
  %v215 = vld [vmem:[%s6 + $0x58] sm:$0xff]
  %v216 = vld [vmem:[%s6 + $0x60] sm:$0xff]
  %v217 = vld [vmem:[%s6 + $0x68] sm:$0xff]
  %v218 = vld [vmem:[%s6 + $0x70] sm:$0xff]
  %v219 = vld [vmem:[%s6 + $0x78] sm:$0xff]
  %v220 = vld [vmem:[%s6 + $0x80] sm:$0xff]
  %v221 = vld [vmem:[%s6 + $0x88] sm:$0xff]
  %v222 = vld [vmem:[%s6 + $0x90] sm:$0xff]
  %v223 = vld [vmem:[%s6 + $0x98] sm:$0xff]
  %v224 = vld [vmem:[%s6 + $0xa0] sm:$0xff]
  %v225 = vld [vmem:[%s6 + $0xa8] sm:$0xff]
  %v226 = vld [vmem:[%s6 + $0xb0] sm:$0xff]
  %v227 = vld [vmem:[%s6 + $0xb8] sm:$0xff]
  %v228 = vld [vmem:[%s6 + $0xc0] sm:$0xff]
  %v229 = vld [vmem:[%s6 + $0xc8] sm:$0xff]
  %v230 = vld [vmem:[%s6 + $0xd0] sm:$0xff]
  %v231 = vld [vmem:[%s6 + $0xd8] sm:$0xff]
  %v232 = vld [vmem:[%s6 + $0xe0] sm:$0xff]
  %v233 = vld [vmem:[%s6 + $0xe8] sm:$0xff]
  %v234 = vld [vmem:[%s6 + $0xf0] sm:$0xff]
  %v235 = vld [vmem:[%s6 + $0xf8] sm:$0xff]
  %v236 = vld [vmem:[%s8] sm:$0xff]
  %v237 = vld [vmem:[%s8 + $0x8] sm:$0xff]
  %v238 = vld [vmem:[%s8 + $0x10] sm:$0xff]
  %v239 = vld [vmem:[%s8 + $0x18] sm:$0xff]
  %v240 = vld [vmem:[%s8 + $0x20] sm:$0xff]
  %v241 = vld [vmem:[%s8 + $0x28] sm:$0xff]
  %v242 = vld [vmem:[%s8 + $0x30] sm:$0xff]
  %v243 = vld [vmem:[%s8 + $0x38] sm:$0xff]
  %v244 = vld [vmem:[%s8 + $0x40] sm:$0xff]
  %v245 = vld [vmem:[%s8 + $0x48] sm:$0xff]
  %v246 = vld [vmem:[%s8 + $0x50] sm:$0xff]
  %v247 = vld [vmem:[%s8 + $0x58] sm:$0xff]
  %v248 = vld [vmem:[%s8 + $0x60] sm:$0xff]
  %v249 = vld [vmem:[%s8 + $0x68] sm:$0xff]
  %v250 = vld [vmem:[%s8 + $0x70] sm:$0xff]
  %v251 = vld [vmem:[%s8 + $0x78] sm:$0xff]
  %v252 = vld [vmem:[%s10] sm:$0xff]
  %v253 = vld [vmem:[%s10 + $0x8] sm:$0xff]
  %v254 = vld [vmem:[%s10 + $0x10] sm:$0xff]
  %v255 = vld [vmem:[%s10 + $0x18] sm:$0xff]
  %v256 = vld [vmem:[%s10 + $0x20] sm:$0xff]
  %v257 = vld [vmem:[%s10 + $0x28] sm:$0xff]
  %v258 = vld [vmem:[%s10 + $0x30] sm:$0xff]
  %v259 = vld [vmem:[%s10 + $0x38] sm:$0xff]
  %v260 = vld [vmem:[%s10 + $0x40] sm:$0xff]
  %v261 = vld [vmem:[%s10 + $0x48] sm:$0xff]
  %v262 = vld [vmem:[%s10 + $0x50] sm:$0xff]
  %v263 = vld [vmem:[%s10 + $0x58] sm:$0xff]
  %v264 = vld [vmem:[%s10 + $0x60] sm:$0xff]
  %v265 = vld [vmem:[%s10 + $0x68] sm:$0xff]
  %v266 = vld [vmem:[%s10 + $0x70] sm:$0xff]
  %v267 = vld [vmem:[%s10 + $0x78] sm:$0xff]
  %v268 = vld [vmem:[%s2] sm:$0x1f]
  %v270 = vlaneseq
  %v271 = vshrl.u32 %v270, 7
  %v272 = vsub.s32 0, %v271
  %v273 = vrot.slane %v268, %v272
  %v274 = vlaneseq
  %v275 = vshrl.u32 %v274, 7
  %v276 = vsub.s32 1, %v275
  %v277 = vrot.slane %v268, %v276
  %v278 = vlaneseq
  %v279 = vshrl.u32 %v278, 7
  %v280 = vsub.s32 2, %v279
  %v281 = vrot.slane %v268, %v280
  %v282 = vlaneseq
  %v283 = vshrl.u32 %v282, 7
  %v284 = vsub.s32 3, %v283
  %v285 = vrot.slane %v268, %v284
  %v286 = vlaneseq
  %v287 = vshrl.u32 %v286, 7
  %v288 = vsub.s32 4, %v287
  %v289 = vrot.slane %v268, %v288
  %v295 = vld [vmem:[%s5] sm:$0x1]
  %v297 = vlaneseq
  %v298 = vshrl.u32 %v297, 7
  %v299 = vsub.s32 0, %v298
  %v300 = vrot.slane %v295, %v299
  %v302 = vld [vmem:[%s7] sm:$0x3]
  %v304 = vlaneseq
  %v305 = vshrl.u32 %v304, 7
  %v306 = vsub.s32 0, %v305
  %v307 = vrot.slane %v302, %v306
  %v308 = vlaneseq
  %v309 = vshrl.u32 %v308, 7
  %v310 = vsub.s32 1, %v309
  %v311 = vrot.slane %v302, %v310
  %v314 = vld [vmem:[%s9] sm:$0x1]
  %v316 = vlaneseq
  %v317 = vshrl.u32 %v316, 7
  %v318 = vsub.s32 0, %v317
  %v319 = vrot.slane %v314, %v318
  %v321 = vld [vmem:[%s11] sm:$0x1]
  %v323 = vlaneseq
  %v324 = vshrl.u32 %v323, 7
  %v325 = vsub.s32 0, %v324
  %v326 = vrot.slane %v321, %v325
  %v328 = vld [vmem:[%s12] sm:$0x3]
  %v329 = vld [vmem:[%s0] sm:$0xff]
  %v330 = vld [vmem:[%s0 + $0x8] sm:$0x3]
  %331 = vmatprep.subr.mxu0 %v45
  %332 = vmatpush1.msra.mxu0 %v44
  %333 = vmatprep.subr.mxu0 %v50
  %334 = vmatpush1.msra.mxu0 %v49
  %335 = vmatprep.subr.mxu0 %v55
  %336 = vmatpush1.msra.mxu0 %v54
  %337 = vmatprep.subr.mxu0 %v60
  %338 = vmatpush1.msra.mxu0 %v59
  %339 = vmatprep.subr.mxu0 %v65
  %340 = vmatpush1.msra.mxu0 %v64
  %341 = vmatprep.subr.mxu0 %v70
  %342 = vmatpush1.msra.mxu0 %v69
  %343 = vmatprep.subr.mxu0 %v75
  %344 = vmatpush1.msra.mxu0 %v74
  %345 = vmatprep.subr.mxu0 %v80
  %346 = vmatpush1.msra.mxu0 %v79
  %347 = vmatprep.subr.mxu0 %v85
  %348 = vmatpush1.msra.mxu0 %v84
  %349 = vmatprep.subr.mxu0 %v90
  %350 = vmatpush1.msra.mxu0 %v89
  %351 = vmatprep.subr.mxu0 %v95
  %352 = vmatpush1.msra.mxu0 %v94
  %353 = vmatprep.subr.mxu0 %v100
  %354 = vmatpush1.msra.mxu0 %v99
  %355 = vmatprep.subr.mxu0 %v105
  %356 = vmatpush1.msra.mxu0 %v104
  %357 = vmatprep.subr.mxu0 %v110
  %358 = vmatpush1.msra.mxu0 %v109
  %359 = vmatprep.subr.mxu0 %v115
  %360 = vmatpush1.msra.mxu0 %v114
  %361 = vmatprep.subr.mxu0 %v120
  %362 = vmatpush1.msra.mxu0 %v119
  %363 = vmatprep.subr.mxu0 0.0
  %364 = vmatpush1.msra.mxu0 0.0
  %365 = vmatprep.subr.mxu0 0.0
  %366 = vmatpush1.msra.mxu0 0.0
  %367 = vmatprep.subr.mxu0 0.0
  %368 = vmatpush1.msra.mxu0 0.0
  %369 = vmatprep.subr.mxu0 0.0
  %370 = vmatpush1.msra.mxu0 0.0
  %371 = vmatprep.subr.mxu0 0.0
  %372 = vmatpush1.msra.mxu0 0.0
  %373 = vmatprep.subr.mxu0 0.0
  %374 = vmatpush1.msra.mxu0 0.0
  %375 = vmatprep.subr.mxu0 0.0
  %376 = vmatpush1.msra.mxu0 0.0
  %377 = vmatprep.subr.mxu0 0.0
  %378 = vmatpush1.msra.mxu0 0.0
  %379 = vmatprep.subr.mxu0 0.0
  %380 = vmatpush1.msra.mxu0 0.0
  %381 = vmatprep.subr.mxu0 0.0
  %382 = vmatpush1.msra.mxu0 0.0
  %383 = vmatprep.subr.mxu0 0.0
  %384 = vmatpush1.msra.mxu0 0.0
  %385 = vmatprep.subr.mxu0 0.0
  %386 = vmatpush1.msra.mxu0 0.0
  %387 = vmatprep.subr.mxu0 0.0
  %388 = vmatpush1.msra.mxu0 0.0
  %389 = vmatprep.subr.mxu0 0.0
  %390 = vmatpush1.msra.mxu0 0.0
  %391 = vmatprep.subr.mxu0 0.0
  %392 = vmatpush1.msra.mxu0 0.0
  %393 = vmatprep.subr.mxu0 0.0
  %394 = vmatpush1.msra.mxu0 0.0
  %395 = vmatprep.mubr.f32.mxu0 0.0
  %396 = vmatmul.mubr.f32.gmra.mrb[0].mxu0 %v328
  %v397 = vpop.f32.mrb[0].mxu0
  %v398 = vadd.f32 %v273, %v397
  %v399 = vpop.f32.mrb[0].mxu0
  %v400 = vadd.f32 %v277, %v399
  %401 = vdwg.mxu0
  %402 = vmatprep.subr.mxu0 %v47
  %403 = vmatpush1.msra.mxu0 %v46
  %404 = vmatprep.subr.mxu0 %v52
  %405 = vmatpush1.msra.mxu0 %v51
  %406 = vmatprep.subr.mxu0 %v57
  %407 = vmatpush1.msra.mxu0 %v56
  %408 = vmatprep.subr.mxu0 %v62
  %409 = vmatpush1.msra.mxu0 %v61
  %410 = vmatprep.subr.mxu0 %v67
  %411 = vmatpush1.msra.mxu0 %v66
  %412 = vmatprep.subr.mxu0 %v72
  %413 = vmatpush1.msra.mxu0 %v71
  %414 = vmatprep.subr.mxu0 %v77
  %415 = vmatpush1.msra.mxu0 %v76
  %416 = vmatprep.subr.mxu0 %v82
  %417 = vmatpush1.msra.mxu0 %v81
  %418 = vmatprep.subr.mxu0 %v87
  %419 = vmatpush1.msra.mxu0 %v86
  %420 = vmatprep.subr.mxu0 %v92
  %421 = vmatpush1.msra.mxu0 %v91
  %422 = vmatprep.subr.mxu0 %v97
  %423 = vmatpush1.msra.mxu0 %v96
  %424 = vmatprep.subr.mxu0 %v102
  %425 = vmatpush1.msra.mxu0 %v101
  %426 = vmatprep.subr.mxu0 %v107
  %427 = vmatpush1.msra.mxu0 %v106
  %428 = vmatprep.subr.mxu0 %v112
  %429 = vmatpush1.msra.mxu0 %v111
  %430 = vmatprep.subr.mxu0 %v117
  %431 = vmatpush1.msra.mxu0 %v116
  %432 = vmatprep.subr.mxu0 %v122
  %433 = vmatpush1.msra.mxu0 %v121
  %434 = vmatprep.subr.mxu0 0.0
  %435 = vmatpush1.msra.mxu0 0.0
  %436 = vmatprep.subr.mxu0 0.0
  %437 = vmatpush1.msra.mxu0 0.0
  %438 = vmatprep.subr.mxu0 0.0
  %439 = vmatpush1.msra.mxu0 0.0
  %440 = vmatprep.subr.mxu0 0.0
  %441 = vmatpush1.msra.mxu0 0.0
  %442 = vmatprep.subr.mxu0 0.0
  %443 = vmatpush1.msra.mxu0 0.0
  %444 = vmatprep.subr.mxu0 0.0
  %445 = vmatpush1.msra.mxu0 0.0
  %446 = vmatprep.subr.mxu0 0.0
  %447 = vmatpush1.msra.mxu0 0.0
  %448 = vmatprep.subr.mxu0 0.0
  %449 = vmatpush1.msra.mxu0 0.0
  %450 = vmatprep.subr.mxu0 0.0
  %451 = vmatpush1.msra.mxu0 0.0
  %452 = vmatprep.subr.mxu0 0.0
  %453 = vmatpush1.msra.mxu0 0.0
  %454 = vmatprep.subr.mxu0 0.0
  %455 = vmatpush1.msra.mxu0 0.0
  %456 = vmatprep.subr.mxu0 0.0
  %457 = vmatpush1.msra.mxu0 0.0
  %458 = vmatprep.subr.mxu0 0.0
  %459 = vmatpush1.msra.mxu0 0.0
  %460 = vmatprep.subr.mxu0 0.0
  %461 = vmatpush1.msra.mxu0 0.0
  %462 = vmatprep.subr.mxu0 0.0
  %463 = vmatpush1.msra.mxu0 0.0
  %464 = vmatprep.subr.mxu0 0.0
  %465 = vmatpush1.msra.mxu0 0.0
  %466 = vmatprep.mubr.f32.mxu0 0.0
  %467 = vmatmul.mubr.f32.gmra.mrb[0].mxu0 %v328
  %v468 = vpop.f32.mrb[0].mxu0
  %v469 = vadd.f32 %v281, %v468
  %v470 = vpop.f32.mrb[0].mxu0
  %v471 = vadd.f32 %v285, %v470
  %472 = vdwg.mxu0
  %473 = vmatprep.subr.mxu0 0.0
  %474 = vmatpush1.msra.mxu0 %v48
  %475 = vmatprep.subr.mxu0 0.0
  %476 = vmatpush1.msra.mxu0 %v53
  %477 = vmatprep.subr.mxu0 0.0
  %478 = vmatpush1.msra.mxu0 %v58
  %479 = vmatprep.subr.mxu0 0.0
  %480 = vmatpush1.msra.mxu0 %v63
  %481 = vmatprep.subr.mxu0 0.0
  %482 = vmatpush1.msra.mxu0 %v68
  %483 = vmatprep.subr.mxu0 0.0
  %484 = vmatpush1.msra.mxu0 %v73
  %485 = vmatprep.subr.mxu0 0.0
  %486 = vmatpush1.msra.mxu0 %v78
  %487 = vmatprep.subr.mxu0 0.0
  %488 = vmatpush1.msra.mxu0 %v83
  %489 = vmatprep.subr.mxu0 0.0
  %490 = vmatpush1.msra.mxu0 %v88
  %491 = vmatprep.subr.mxu0 0.0
  %492 = vmatpush1.msra.mxu0 %v93
  %493 = vmatprep.subr.mxu0 0.0
  %494 = vmatpush1.msra.mxu0 %v98
  %495 = vmatprep.subr.mxu0 0.0
  %496 = vmatpush1.msra.mxu0 %v103
  %497 = vmatprep.subr.mxu0 0.0
  %498 = vmatpush1.msra.mxu0 %v108
  %499 = vmatprep.subr.mxu0 0.0
  %500 = vmatpush1.msra.mxu0 %v113
  %501 = vmatprep.subr.mxu0 0.0
  %502 = vmatpush1.msra.mxu0 %v118
  %503 = vmatprep.subr.mxu0 0.0
  %504 = vmatpush1.msra.mxu0 %v123
  %505 = vmatprep.subr.mxu0 0.0
  %506 = vmatpush1.msra.mxu0 0.0
  %507 = vmatprep.subr.mxu0 0.0
  %508 = vmatpush1.msra.mxu0 0.0
  %509 = vmatprep.subr.mxu0 0.0
  %510 = vmatpush1.msra.mxu0 0.0
  %511 = vmatprep.subr.mxu0 0.0
  %512 = vmatpush1.msra.mxu0 0.0
  %513 = vmatprep.subr.mxu0 0.0
  %514 = vmatpush1.msra.mxu0 0.0
  %515 = vmatprep.subr.mxu0 0.0
  %516 = vmatpush1.msra.mxu0 0.0
  %517 = vmatprep.subr.mxu0 0.0
  %518 = vmatpush1.msra.mxu0 0.0
  %519 = vmatprep.subr.mxu0 0.0
  %520 = vmatpush1.msra.mxu0 0.0
  %521 = vmatprep.subr.mxu0 0.0
  %522 = vmatpush1.msra.mxu0 0.0
  %523 = vmatprep.subr.mxu0 0.0
  %524 = vmatpush1.msra.mxu0 0.0
  %525 = vmatprep.subr.mxu0 0.0
  %526 = vmatpush1.msra.mxu0 0.0
  %527 = vmatprep.subr.mxu0 0.0
  %528 = vmatpush1.msra.mxu0 0.0
  %529 = vmatprep.subr.mxu0 0.0
  %530 = vmatpush1.msra.mxu0 0.0
  %531 = vmatprep.subr.mxu0 0.0
  %532 = vmatpush1.msra.mxu0 0.0
  %533 = vmatprep.subr.mxu0 0.0
  %534 = vmatpush1.msra.mxu0 0.0
  %535 = vmatprep.subr.mxu0 0.0
  %536 = vmatpush1.msra.mxu0 0.0
  %537 = vmatprep.mubr.f32.mxu0 0.0
  %538 = vmatmul.mubr.f32.gmra.mrb[0].mxu0 %v328
  %v539 = vpop.f32.mrb[0].mxu0
  %v540 = vadd.f32 %v289, %v539
  %v541 = vpop.f32.mrb[0].mxu0
  %542 = vdwg.mxu0
  %v543 = vadd.f32 %v329, %v398
  %v544 = vmax.f32 %v543, 0.0
  %545 = vmatprep.subr.mxu0 0.0
  %546 = vmatpush1.msra.mxu0 %v188
  %547 = vmatprep.subr.mxu0 0.0
  %548 = vmatpush1.msra.mxu0 %v189
  %549 = vmatprep.subr.mxu0 0.0
  %550 = vmatpush1.msra.mxu0 %v190
  %551 = vmatprep.subr.mxu0 0.0
  %552 = vmatpush1.msra.mxu0 %v191
  %553 = vmatprep.subr.mxu0 0.0
  %554 = vmatpush1.msra.mxu0 %v192
  %555 = vmatprep.subr.mxu0 0.0
  %556 = vmatpush1.msra.mxu0 %v193
  %557 = vmatprep.subr.mxu0 0.0
  %558 = vmatpush1.msra.mxu0 %v194
  %559 = vmatprep.subr.mxu0 0.0
  %560 = vmatpush1.msra.mxu0 %v195
  %561 = vmatprep.subr.mxu0 0.0
  %562 = vmatpush1.msra.mxu0 %v196
  %563 = vmatprep.subr.mxu0 0.0
  %564 = vmatpush1.msra.mxu0 %v197
  %565 = vmatprep.subr.mxu0 0.0
  %566 = vmatpush1.msra.mxu0 %v198
  %567 = vmatprep.subr.mxu0 0.0
  %568 = vmatpush1.msra.mxu0 %v199
  %569 = vmatprep.subr.mxu0 0.0
  %570 = vmatpush1.msra.mxu0 %v200
  %571 = vmatprep.subr.mxu0 0.0
  %572 = vmatpush1.msra.mxu0 %v201
  %573 = vmatprep.subr.mxu0 0.0
  %574 = vmatpush1.msra.mxu0 %v202
  %575 = vmatprep.subr.mxu0 0.0
  %576 = vmatpush1.msra.mxu0 %v203
  %577 = vmatprep.subr.mxu0 0.0
  %578 = vmatpush1.msra.mxu0 0.0
  %579 = vmatprep.subr.mxu0 0.0
  %580 = vmatpush1.msra.mxu0 0.0
  %581 = vmatprep.subr.mxu0 0.0
  %582 = vmatpush1.msra.mxu0 0.0
  %583 = vmatprep.subr.mxu0 0.0
  %584 = vmatpush1.msra.mxu0 0.0
  %585 = vmatprep.subr.mxu0 0.0
  %586 = vmatpush1.msra.mxu0 0.0
  %587 = vmatprep.subr.mxu0 0.0
  %588 = vmatpush1.msra.mxu0 0.0
  %589 = vmatprep.subr.mxu0 0.0
  %590 = vmatpush1.msra.mxu0 0.0
  %591 = vmatprep.subr.mxu0 0.0
  %592 = vmatpush1.msra.mxu0 0.0
  %593 = vmatprep.subr.mxu0 0.0
  %594 = vmatpush1.msra.mxu0 0.0
  %595 = vmatprep.subr.mxu0 0.0
  %596 = vmatpush1.msra.mxu0 0.0
  %597 = vmatprep.subr.mxu0 0.0
  %598 = vmatpush1.msra.mxu0 0.0
  %599 = vmatprep.subr.mxu0 0.0
  %600 = vmatpush1.msra.mxu0 0.0
  %601 = vmatprep.subr.mxu0 0.0
  %602 = vmatpush1.msra.mxu0 0.0
  %603 = vmatprep.subr.mxu0 0.0
  %604 = vmatpush1.msra.mxu0 0.0
  %605 = vmatprep.subr.mxu0 0.0
  %606 = vmatpush1.msra.mxu0 0.0
  %607 = vmatprep.subr.mxu0 0.0
  %608 = vmatpush1.msra.mxu0 0.0
  %609 = vmatprep.mubr.f32.mxu0 0.0
  %610 = vmatmul.mubr.f32.gmra.mrb[0].mxu0 %v544
  %v611 = vpop.f32.mrb[0].mxu0
  %v612 = vadd.f32 %v300, %v611
  %v613 = vpop.f32.mrb[0].mxu0
  %614 = vdwg.mxu0
  %v615 = vmax.f32 %v612, 0.0
  %616 = vmatprep.subr.mxu0 %v205
  %617 = vmatpush1.msra.mxu0 %v204
  %618 = vmatprep.subr.mxu0 %v207
  %619 = vmatpush1.msra.mxu0 %v206
  %620 = vmatprep.subr.mxu0 %v209
  %621 = vmatpush1.msra.mxu0 %v208
  %622 = vmatprep.subr.mxu0 %v211
  %623 = vmatpush1.msra.mxu0 %v210
  %624 = vmatprep.subr.mxu0 %v213
  %625 = vmatpush1.msra.mxu0 %v212
  %626 = vmatprep.subr.mxu0 %v215
  %627 = vmatpush1.msra.mxu0 %v214
  %628 = vmatprep.subr.mxu0 %v217
  %629 = vmatpush1.msra.mxu0 %v216
  %630 = vmatprep.subr.mxu0 %v219
  %631 = vmatpush1.msra.mxu0 %v218
  %632 = vmatprep.subr.mxu0 %v221
  %633 = vmatpush1.msra.mxu0 %v220
  %634 = vmatprep.subr.mxu0 %v223
  %635 = vmatpush1.msra.mxu0 %v222
  %636 = vmatprep.subr.mxu0 %v225
  %637 = vmatpush1.msra.mxu0 %v224
  %638 = vmatprep.subr.mxu0 %v227
  %639 = vmatpush1.msra.mxu0 %v226
  %640 = vmatprep.subr.mxu0 %v229
  %641 = vmatpush1.msra.mxu0 %v228
  %642 = vmatprep.subr.mxu0 %v231
  %643 = vmatpush1.msra.mxu0 %v230
  %644 = vmatprep.subr.mxu0 %v233
  %645 = vmatpush1.msra.mxu0 %v232
  %646 = vmatprep.subr.mxu0 %v235
  %647 = vmatpush1.msra.mxu0 %v234
  %648 = vmatprep.subr.mxu0 0.0
  %649 = vmatpush1.msra.mxu0 0.0
  %650 = vmatprep.subr.mxu0 0.0
  %651 = vmatpush1.msra.mxu0 0.0
  %652 = vmatprep.subr.mxu0 0.0
  %653 = vmatpush1.msra.mxu0 0.0
  %654 = vmatprep.subr.mxu0 0.0
  %655 = vmatpush1.msra.mxu0 0.0
  %656 = vmatprep.subr.mxu0 0.0
  %657 = vmatpush1.msra.mxu0 0.0
  %658 = vmatprep.subr.mxu0 0.0
  %659 = vmatpush1.msra.mxu0 0.0
  %660 = vmatprep.subr.mxu0 0.0
  %661 = vmatpush1.msra.mxu0 0.0
  %662 = vmatprep.subr.mxu0 0.0
  %663 = vmatpush1.msra.mxu0 0.0
  %664 = vmatprep.subr.mxu0 0.0
  %665 = vmatpush1.msra.mxu0 0.0
  %666 = vmatprep.subr.mxu0 0.0
  %667 = vmatpush1.msra.mxu0 0.0
  %668 = vmatprep.subr.mxu0 0.0
  %669 = vmatpush1.msra.mxu0 0.0
  %670 = vmatprep.subr.mxu0 0.0
  %671 = vmatpush1.msra.mxu0 0.0
  %672 = vmatprep.subr.mxu0 0.0
  %673 = vmatpush1.msra.mxu0 0.0
  %674 = vmatprep.subr.mxu0 0.0
  %675 = vmatpush1.msra.mxu0 0.0
  %676 = vmatprep.subr.mxu0 0.0
  %677 = vmatpush1.msra.mxu0 0.0
  %678 = vmatprep.subr.mxu0 0.0
  %679 = vmatpush1.msra.mxu0 0.0
  %680 = vmatprep.mubr.f32.mxu0 0.0
  %681 = vmatmul.mubr.f32.gmra.mrb[0].mxu0 %v615
  %v682 = vpop.f32.mrb[0].mxu0
  %v683 = vadd.f32 %v307, %v682
  %v684 = vpop.f32.mrb[0].mxu0
  %v685 = vadd.f32 %v311, %v684
  %686 = vdwg.mxu0
  %v687 = vmax.f32 %v685, 0.0
  %v688 = vand.u32 2147483647, %v685
  %v689 = vsub.f32 0.0, %v688
  %v690 = vmul.f32 %v689, 1.442695
  %v691 = vpow.pop %v690
  %v692 = vadd.f32 %v691, 1.0
  %v693 = vlog2.pop %v692
  %v694 = vmul.f32 %v693, 0.6931472
  %v695 = vmul.f32 -0.5, %v691
  %v696 = vadd.f32 %v695, 1.0
  %v697 = vmul.f32 %v696, %v691
  %v698 = vand.u32 2147483647, %v691
  %vm699 = vcmp.lt.f32.partialorder %v698, 0.0004427343
  %v700 = vsel %vm699, %v697, %v694
  %v701 = vadd.f32 %v687, %v700
  %v702 = vmul.f32 %v330, %v701
  %v703 = vadd.f32 %v702, %v683
  %704 = vmatprep.subr.mxu0 %v125
  %705 = vmatpush1.msra.mxu0 %v124
  %706 = vmatprep.subr.mxu0 %v129
  %707 = vmatpush1.msra.mxu0 %v128
  %708 = vmatprep.subr.mxu0 %v133
  %709 = vmatpush1.msra.mxu0 %v132
  %710 = vmatprep.subr.mxu0 %v137
  %711 = vmatpush1.msra.mxu0 %v136
  %712 = vmatprep.subr.mxu0 %v141
  %713 = vmatpush1.msra.mxu0 %v140
  %714 = vmatprep.subr.mxu0 %v145
  %715 = vmatpush1.msra.mxu0 %v144
  %716 = vmatprep.subr.mxu0 %v149
  %717 = vmatpush1.msra.mxu0 %v148
  %718 = vmatprep.subr.mxu0 %v153
  %719 = vmatpush1.msra.mxu0 %v152
  %720 = vmatprep.subr.mxu0 %v157
  %721 = vmatpush1.msra.mxu0 %v156
  %722 = vmatprep.subr.mxu0 %v161
  %723 = vmatpush1.msra.mxu0 %v160
  %724 = vmatprep.subr.mxu0 %v165
  %725 = vmatpush1.msra.mxu0 %v164
  %726 = vmatprep.subr.mxu0 %v169
  %727 = vmatpush1.msra.mxu0 %v168
  %728 = vmatprep.subr.mxu0 %v173
  %729 = vmatpush1.msra.mxu0 %v172
  %730 = vmatprep.subr.mxu0 %v177
  %731 = vmatpush1.msra.mxu0 %v176
  %732 = vmatprep.subr.mxu0 %v181
  %733 = vmatpush1.msra.mxu0 %v180
  %734 = vmatprep.subr.mxu0 %v185
  %735 = vmatpush1.msra.mxu0 %v184
  %736 = vmatprep.subr.mxu0 0.0
  %737 = vmatpush1.msra.mxu0 0.0
  %738 = vmatprep.subr.mxu0 0.0
  %739 = vmatpush1.msra.mxu0 0.0
  %740 = vmatprep.subr.mxu0 0.0
  %741 = vmatpush1.msra.mxu0 0.0
  %742 = vmatprep.subr.mxu0 0.0
  %743 = vmatpush1.msra.mxu0 0.0
  %744 = vmatprep.subr.mxu0 0.0
  %745 = vmatpush1.msra.mxu0 0.0
  %746 = vmatprep.subr.mxu0 0.0
  %747 = vmatpush1.msra.mxu0 0.0
  %748 = vmatprep.subr.mxu0 0.0
  %749 = vmatpush1.msra.mxu0 0.0
  %750 = vmatprep.subr.mxu0 0.0
  %751 = vmatpush1.msra.mxu0 0.0
  %752 = vmatprep.subr.mxu0 0.0
  %753 = vmatpush1.msra.mxu0 0.0
  %754 = vmatprep.subr.mxu0 0.0
  %755 = vmatpush1.msra.mxu0 0.0
  %756 = vmatprep.subr.mxu0 0.0
  %757 = vmatpush1.msra.mxu0 0.0
  %758 = vmatprep.subr.mxu0 0.0
  %759 = vmatpush1.msra.mxu0 0.0
  %760 = vmatprep.subr.mxu0 0.0
  %761 = vmatpush1.msra.mxu0 0.0
  %762 = vmatprep.subr.mxu0 0.0
  %763 = vmatpush1.msra.mxu0 0.0
  %764 = vmatprep.subr.mxu0 0.0
  %765 = vmatpush1.msra.mxu0 0.0
  %766 = vmatprep.subr.mxu0 0.0
  %767 = vmatpush1.msra.mxu0 0.0
  %768 = vmatprep.mubr.f32.mxu0 0.0
  %769 = vmatmul.mubr.f32.gmra.mrb[0].mxu0 %v703
  %v770 = vpop.f32.mrb[0].mxu0
  %v771 = vadd.f32 0.0, %v770
  %v772 = vpop.f32.mrb[0].mxu0
  %v773 = vadd.f32 0.0, %v772
  %774 = vdwg.mxu0
  %775 = vmatprep.subr.mxu0 %v127
  %776 = vmatpush1.msra.mxu0 %v126
  %777 = vmatprep.subr.mxu0 %v131
  %778 = vmatpush1.msra.mxu0 %v130
  %779 = vmatprep.subr.mxu0 %v135
  %780 = vmatpush1.msra.mxu0 %v134
  %781 = vmatprep.subr.mxu0 %v139
  %782 = vmatpush1.msra.mxu0 %v138
  %783 = vmatprep.subr.mxu0 %v143
  %784 = vmatpush1.msra.mxu0 %v142
  %785 = vmatprep.subr.mxu0 %v147
  %786 = vmatpush1.msra.mxu0 %v146
  %787 = vmatprep.subr.mxu0 %v151
  %788 = vmatpush1.msra.mxu0 %v150
  %789 = vmatprep.subr.mxu0 %v155
  %790 = vmatpush1.msra.mxu0 %v154
  %791 = vmatprep.subr.mxu0 %v159
  %792 = vmatpush1.msra.mxu0 %v158
  %793 = vmatprep.subr.mxu0 %v163
  %794 = vmatpush1.msra.mxu0 %v162
  %795 = vmatprep.subr.mxu0 %v167
  %796 = vmatpush1.msra.mxu0 %v166
  %797 = vmatprep.subr.mxu0 %v171
  %798 = vmatpush1.msra.mxu0 %v170
  %799 = vmatprep.subr.mxu0 %v175
  %800 = vmatpush1.msra.mxu0 %v174
  %801 = vmatprep.subr.mxu0 %v179
  %802 = vmatpush1.msra.mxu0 %v178
  %803 = vmatprep.subr.mxu0 %v183
  %804 = vmatpush1.msra.mxu0 %v182
  %805 = vmatprep.subr.mxu0 %v187
  %806 = vmatpush1.msra.mxu0 %v186
  %807 = vmatprep.subr.mxu0 0.0
  %808 = vmatpush1.msra.mxu0 0.0
  %809 = vmatprep.subr.mxu0 0.0
  %810 = vmatpush1.msra.mxu0 0.0
  %811 = vmatprep.subr.mxu0 0.0
  %812 = vmatpush1.msra.mxu0 0.0
  %813 = vmatprep.subr.mxu0 0.0
  %814 = vmatpush1.msra.mxu0 0.0
  %815 = vmatprep.subr.mxu0 0.0
  %816 = vmatpush1.msra.mxu0 0.0
  %817 = vmatprep.subr.mxu0 0.0
  %818 = vmatpush1.msra.mxu0 0.0
  %819 = vmatprep.subr.mxu0 0.0
  %820 = vmatpush1.msra.mxu0 0.0
  %821 = vmatprep.subr.mxu0 0.0
  %822 = vmatpush1.msra.mxu0 0.0
  %823 = vmatprep.subr.mxu0 0.0
  %824 = vmatpush1.msra.mxu0 0.0
  %825 = vmatprep.subr.mxu0 0.0
  %826 = vmatpush1.msra.mxu0 0.0
  %827 = vmatprep.subr.mxu0 0.0
  %828 = vmatpush1.msra.mxu0 0.0
  %829 = vmatprep.subr.mxu0 0.0
  %830 = vmatpush1.msra.mxu0 0.0
  %831 = vmatprep.subr.mxu0 0.0
  %832 = vmatpush1.msra.mxu0 0.0
  %833 = vmatprep.subr.mxu0 0.0
  %834 = vmatpush1.msra.mxu0 0.0
  %835 = vmatprep.subr.mxu0 0.0
  %836 = vmatpush1.msra.mxu0 0.0
  %837 = vmatprep.subr.mxu0 0.0
  %838 = vmatpush1.msra.mxu0 0.0
  %839 = vmatprep.mubr.f32.mxu0 0.0
  %840 = vmatmul.mubr.f32.gmra.mrb[0].mxu0 %v703
  %v841 = vpop.f32.mrb[0].mxu0
  %v842 = vadd.f32 0.0, %v841
  %v843 = vpop.f32.mrb[0].mxu0
  %v844 = vadd.f32 0.0, %v843
  %845 = vdwg.mxu0
  %v847 = vrot.slane %v329, 2
  %v852 = vcombine.low %v773, %v842
  %v854 = vunpack.c.l.s4 1983009808
  %v855 = vunpack.c.0.s8 %v854
  %v856 = vlaneseq
  %v857 = vshrl.u32 %v856, 7
  %v858 = vsub.s32 %v855, %v857
  %v859 = vrot.slane %v852, %v858
  %v861 = vunpack.c.l.s4 1983009808
  %v862 = vunpack.c.0.s8 %v861
  %v863 = vlaneseq
  %v864 = vshrl.u32 %v863, 7
  %v865 = vsub.s32 %v862, %v864
  %v866 = vrot.slane %v844, %v865
  %v867 = vcombine.low %v859, %v866
  %v869 = vadd.f32 %v847, %v867
  %v872 = vcombine.low %v469, %v471
  %v874 = vunpack.c.l.s4 1983009808
  %v875 = vunpack.c.0.s8 %v874
  %v876 = vlaneseq
  %v877 = vshrl.u32 %v876, 7
  %v878 = vsub.s32 %v875, %v877
  %v879 = vrot.slane %v872, %v878
  %v881 = vadd.f32 %v869, %v879
  %v882 = vmul.f32 %v881, 0.5
  %v883 = vtanh.pop %v882
  %v884 = vadd.f32 %v883, 1.0
  %v885 = vmul.f32 %v884, 0.5
  %v886 = vmul.f32 %v885, %v540
  %v888 = vrot.slane %v869, 4
  %v890 = vadd.f32 %v888, %v886
  %v891 = vtanh.pop %v890
  %v893 = vrot.slane %v885, 2
  %v895 = vsub.f32 1.0, %v893
  %v896 = vmul.f32 %v895, %v891
  %v897 = vmul.f32 %v893, %v328
  %v898 = vadd.f32 %v896, %v897
  %v899 = vadd.f32 %v771, %v400
  %v900 = vmax.f32 %v899, 0.0
  %901 = vmatprep.subr.mxu0 0.0
  %902 = vmatpush1.msra.mxu0 %v236
  %903 = vmatprep.subr.mxu0 0.0
  %904 = vmatpush1.msra.mxu0 %v237
  %905 = vmatprep.subr.mxu0 0.0
  %906 = vmatpush1.msra.mxu0 %v238
  %907 = vmatprep.subr.mxu0 0.0
  %908 = vmatpush1.msra.mxu0 %v239
  %909 = vmatprep.subr.mxu0 0.0
  %910 = vmatpush1.msra.mxu0 %v240
  %911 = vmatprep.subr.mxu0 0.0
  %912 = vmatpush1.msra.mxu0 %v241
  %913 = vmatprep.subr.mxu0 0.0
  %914 = vmatpush1.msra.mxu0 %v242
  %915 = vmatprep.subr.mxu0 0.0
  %916 = vmatpush1.msra.mxu0 %v243
  %917 = vmatprep.subr.mxu0 0.0
  %918 = vmatpush1.msra.mxu0 %v244
  %919 = vmatprep.subr.mxu0 0.0
  %920 = vmatpush1.msra.mxu0 %v245
  %921 = vmatprep.subr.mxu0 0.0
  %922 = vmatpush1.msra.mxu0 %v246
  %923 = vmatprep.subr.mxu0 0.0
  %924 = vmatpush1.msra.mxu0 %v247
  %925 = vmatprep.subr.mxu0 0.0
  %926 = vmatpush1.msra.mxu0 %v248
  %927 = vmatprep.subr.mxu0 0.0
  %928 = vmatpush1.msra.mxu0 %v249
  %929 = vmatprep.subr.mxu0 0.0
  %930 = vmatpush1.msra.mxu0 %v250
  %931 = vmatprep.subr.mxu0 0.0
  %932 = vmatpush1.msra.mxu0 %v251
  %933 = vmatprep.subr.mxu0 0.0
  %934 = vmatpush1.msra.mxu0 0.0
  %935 = vmatprep.subr.mxu0 0.0
  %936 = vmatpush1.msra.mxu0 0.0
  %937 = vmatprep.subr.mxu0 0.0
  %938 = vmatpush1.msra.mxu0 0.0
  %939 = vmatprep.subr.mxu0 0.0
  %940 = vmatpush1.msra.mxu0 0.0
  %941 = vmatprep.subr.mxu0 0.0
  %942 = vmatpush1.msra.mxu0 0.0
  %943 = vmatprep.subr.mxu0 0.0
  %944 = vmatpush1.msra.mxu0 0.0
  %945 = vmatprep.subr.mxu0 0.0
  %946 = vmatpush1.msra.mxu0 0.0
  %947 = vmatprep.subr.mxu0 0.0
  %948 = vmatpush1.msra.mxu0 0.0
  %949 = vmatprep.subr.mxu0 0.0
  %950 = vmatpush1.msra.mxu0 0.0
  %951 = vmatprep.subr.mxu0 0.0
  %952 = vmatpush1.msra.mxu0 0.0
  %953 = vmatprep.subr.mxu0 0.0
  %954 = vmatpush1.msra.mxu0 0.0
  %955 = vmatprep.subr.mxu0 0.0
  %956 = vmatpush1.msra.mxu0 0.0
  %957 = vmatprep.subr.mxu0 0.0
  %958 = vmatpush1.msra.mxu0 0.0
  %959 = vmatprep.subr.mxu0 0.0
  %960 = vmatpush1.msra.mxu0 0.0
  %961 = vmatprep.subr.mxu0 0.0
  %962 = vmatpush1.msra.mxu0 0.0
  %963 = vmatprep.subr.mxu0 0.0
  %964 = vmatpush1.msra.mxu0 0.0
  %965 = vmatprep.mubr.f32.mxu0 0.0
  %966 = vmatmul.mubr.f32.gmra.mrb[0].mxu0 %v900
  %v967 = vpop.f32.mrb[0].mxu0
  %v968 = vadd.f32 %v319, %v967
  %v969 = vpop.f32.mrb[0].mxu0
  %970 = vdwg.mxu0
  %v971 = vmax.f32 %v968, 0.0
  %972 = vmatprep.subr.mxu0 0.0
  %973 = vmatpush1.msra.mxu0 %v252
  %974 = vmatprep.subr.mxu0 0.0
  %975 = vmatpush1.msra.mxu0 %v253
  %976 = vmatprep.subr.mxu0 0.0
  %977 = vmatpush1.msra.mxu0 %v254
  %978 = vmatprep.subr.mxu0 0.0
  %979 = vmatpush1.msra.mxu0 %v255
  %980 = vmatprep.subr.mxu0 0.0
  %981 = vmatpush1.msra.mxu0 %v256
  %982 = vmatprep.subr.mxu0 0.0
  %983 = vmatpush1.msra.mxu0 %v257
  %984 = vmatprep.subr.mxu0 0.0
  %985 = vmatpush1.msra.mxu0 %v258
  %986 = vmatprep.subr.mxu0 0.0
  %987 = vmatpush1.msra.mxu0 %v259
  %988 = vmatprep.subr.mxu0 0.0
  %989 = vmatpush1.msra.mxu0 %v260
  %990 = vmatprep.subr.mxu0 0.0
  %991 = vmatpush1.msra.mxu0 %v261
  %992 = vmatprep.subr.mxu0 0.0
  %993 = vmatpush1.msra.mxu0 %v262
  %994 = vmatprep.subr.mxu0 0.0
  %995 = vmatpush1.msra.mxu0 %v263
  %996 = vmatprep.subr.mxu0 0.0
  %997 = vmatpush1.msra.mxu0 %v264
  %998 = vmatprep.subr.mxu0 0.0
  %999 = vmatpush1.msra.mxu0 %v265
  %1000 = vmatprep.subr.mxu0 0.0
  %1001 = vmatpush1.msra.mxu0 %v266
  %1002 = vmatprep.subr.mxu0 0.0
  %1003 = vmatpush1.msra.mxu0 %v267
  %1004 = vmatprep.subr.mxu0 0.0
  %1005 = vmatpush1.msra.mxu0 0.0
  %1006 = vmatprep.subr.mxu0 0.0
  %1007 = vmatpush1.msra.mxu0 0.0
  %1008 = vmatprep.subr.mxu0 0.0
  %1009 = vmatpush1.msra.mxu0 0.0
  %1010 = vmatprep.subr.mxu0 0.0
  %1011 = vmatpush1.msra.mxu0 0.0
  %1012 = vmatprep.subr.mxu0 0.0
  %1013 = vmatpush1.msra.mxu0 0.0
  %1014 = vmatprep.subr.mxu0 0.0
  %1015 = vmatpush1.msra.mxu0 0.0
  %1016 = vmatprep.subr.mxu0 0.0
  %1017 = vmatpush1.msra.mxu0 0.0
  %1018 = vmatprep.subr.mxu0 0.0
  %1019 = vmatpush1.msra.mxu0 0.0
  %1020 = vmatprep.subr.mxu0 0.0
  %1021 = vmatpush1.msra.mxu0 0.0
  %1022 = vmatprep.subr.mxu0 0.0
  %1023 = vmatpush1.msra.mxu0 0.0
  %1024 = vmatprep.subr.mxu0 0.0
  %1025 = vmatpush1.msra.mxu0 0.0
  %1026 = vmatprep.subr.mxu0 0.0
  %1027 = vmatpush1.msra.mxu0 0.0
  %1028 = vmatprep.subr.mxu0 0.0
  %1029 = vmatpush1.msra.mxu0 0.0
  %1030 = vmatprep.subr.mxu0 0.0
  %1031 = vmatpush1.msra.mxu0 0.0
  %1032 = vmatprep.subr.mxu0 0.0
  %1033 = vmatpush1.msra.mxu0 0.0
  %1034 = vmatprep.subr.mxu0 0.0
  %1035 = vmatpush1.msra.mxu0 0.0
  %1036 = vmatprep.mubr.f32.mxu0 0.0
  %1037 = vmatmul.mubr.f32.gmra.mrb[0].mxu0 %v971
  %v1038 = vpop.f32.mrb[0].mxu0
  %v1039 = vadd.f32 %v326, %v1038
  %v1040 = vpop.f32.mrb[0].mxu0
  %1041 = vdwg.mxu0
  %v1042 = vmul.f32 %v1039, 0.5
  %v1043 = vtanh.pop %v1042
  %v1044 = vadd.f32 %v1043, 1.0
  %v1045 = vmul.f32 %v1044, 0.5
  %v1048 = vcombine.low %v1045, %v898
  %v1050 = vunpack.c.l.s4 1983009808
  %v1051 = vunpack.c.0.s8 %v1050
  %v1052 = vlaneseq
  %v1053 = vshrl.u32 %v1052, 7
  %v1054 = vsub.s32 %v1051, %v1053
  %v1055 = vrot.slane %v1048, %v1054
  %1057 = vst [vmem:[%s13] sm:$0xf] %v1055
  %s1058 = scalar_lea.vmem %s0, 10
  %v1059 = vld [vmem:[%s1058] sm:$0xff]
  %v1060 = vld [vmem:[%s1058 + $0x8] sm:$0x3]
  %1061 = vmatprep.subr.mxu0 %v45
  %1062 = vmatpush1.msra.mxu0 %v44
  %1063 = vmatprep.subr.mxu0 %v50
  %1064 = vmatpush1.msra.mxu0 %v49
  %1065 = vmatprep.subr.mxu0 %v55
  %1066 = vmatpush1.msra.mxu0 %v54
  %1067 = vmatprep.subr.mxu0 %v60
  %1068 = vmatpush1.msra.mxu0 %v59
  %1069 = vmatprep.subr.mxu0 %v65
  %1070 = vmatpush1.msra.mxu0 %v64
  %1071 = vmatprep.subr.mxu0 %v70
  %1072 = vmatpush1.msra.mxu0 %v69
  %1073 = vmatprep.subr.mxu0 %v75
  %1074 = vmatpush1.msra.mxu0 %v74
  %1075 = vmatprep.subr.mxu0 %v80
  %1076 = vmatpush1.msra.mxu0 %v79
  %1077 = vmatprep.subr.mxu0 %v85
  %1078 = vmatpush1.msra.mxu0 %v84
  %1079 = vmatprep.subr.mxu0 %v90
  %1080 = vmatpush1.msra.mxu0 %v89
  %1081 = vmatprep.subr.mxu0 %v95
  %1082 = vmatpush1.msra.mxu0 %v94
  %1083 = vmatprep.subr.mxu0 %v100
  %1084 = vmatpush1.msra.mxu0 %v99
  %1085 = vmatprep.subr.mxu0 %v105
  %1086 = vmatpush1.msra.mxu0 %v104
  %1087 = vmatprep.subr.mxu0 %v110
  %1088 = vmatpush1.msra.mxu0 %v109
  %1089 = vmatprep.subr.mxu0 %v115
  %1090 = vmatpush1.msra.mxu0 %v114
  %1091 = vmatprep.subr.mxu0 %v120
  %1092 = vmatpush1.msra.mxu0 %v119
  %1093 = vmatprep.subr.mxu0 0.0
  %1094 = vmatpush1.msra.mxu0 0.0
  %1095 = vmatprep.subr.mxu0 0.0
  %1096 = vmatpush1.msra.mxu0 0.0
  %1097 = vmatprep.subr.mxu0 0.0
  %1098 = vmatpush1.msra.mxu0 0.0
  %1099 = vmatprep.subr.mxu0 0.0
  %1100 = vmatpush1.msra.mxu0 0.0
  %1101 = vmatprep.subr.mxu0 0.0
  %1102 = vmatpush1.msra.mxu0 0.0
  %1103 = vmatprep.subr.mxu0 0.0
  %1104 = vmatpush1.msra.mxu0 0.0
  %1105 = vmatprep.subr.mxu0 0.0
  %1106 = vmatpush1.msra.mxu0 0.0
  %1107 = vmatprep.subr.mxu0 0.0
  %1108 = vmatpush1.msra.mxu0 0.0
  %1109 = vmatprep.subr.mxu0 0.0
  %1110 = vmatpush1.msra.mxu0 0.0
  %1111 = vmatprep.subr.mxu0 0.0
  %1112 = vmatpush1.msra.mxu0 0.0
  %1113 = vmatprep.subr.mxu0 0.0
  %1114 = vmatpush1.msra.mxu0 0.0
  %1115 = vmatprep.subr.mxu0 0.0
  %1116 = vmatpush1.msra.mxu0 0.0
  %1117 = vmatprep.subr.mxu0 0.0
  %1118 = vmatpush1.msra.mxu0 0.0
  %1119 = vmatprep.subr.mxu0 0.0
  %1120 = vmatpush1.msra.mxu0 0.0
  %1121 = vmatprep.subr.mxu0 0.0
  %1122 = vmatpush1.msra.mxu0 0.0
  %1123 = vmatprep.subr.mxu0 0.0
  %1124 = vmatpush1.msra.mxu0 0.0
  %1125 = vmatprep.mubr.f32.mxu0 0.0
  %1126 = vmatmul.mubr.f32.gmra.mrb[0].mxu0 %v898
  %v1127 = vpop.f32.mrb[0].mxu0
  %v1128 = vadd.f32 %v273, %v1127
  %v1129 = vpop.f32.mrb[0].mxu0
  %v1130 = vadd.f32 %v277, %v1129
  %1131 = vdwg.mxu0
  %1132 = vmatprep.subr.mxu0 %v47
  %1133 = vmatpush1.msra.mxu0 %v46
  %1134 = vmatprep.subr.mxu0 %v52
  %1135 = vmatpush1.msra.mxu0 %v51
  %1136 = vmatprep.subr.mxu0 %v57
  %1137 = vmatpush1.msra.mxu0 %v56
  %1138 = vmatprep.subr.mxu0 %v62
  %1139 = vmatpush1.msra.mxu0 %v61
  %1140 = vmatprep.subr.mxu0 %v67
  %1141 = vmatpush1.msra.mxu0 %v66
  %1142 = vmatprep.subr.mxu0 %v72
  %1143 = vmatpush1.msra.mxu0 %v71
  %1144 = vmatprep.subr.mxu0 %v77
  %1145 = vmatpush1.msra.mxu0 %v76
  %1146 = vmatprep.subr.mxu0 %v82
  %1147 = vmatpush1.msra.mxu0 %v81
  %1148 = vmatprep.subr.mxu0 %v87
  %1149 = vmatpush1.msra.mxu0 %v86
  %1150 = vmatprep.subr.mxu0 %v92
  %1151 = vmatpush1.msra.mxu0 %v91
  %1152 = vmatprep.subr.mxu0 %v97
  %1153 = vmatpush1.msra.mxu0 %v96
  %1154 = vmatprep.subr.mxu0 %v102
  %1155 = vmatpush1.msra.mxu0 %v101
  %1156 = vmatprep.subr.mxu0 %v107
  %1157 = vmatpush1.msra.mxu0 %v106
  %1158 = vmatprep.subr.mxu0 %v112
  %1159 = vmatpush1.msra.mxu0 %v111
  %1160 = vmatprep.subr.mxu0 %v117
  %1161 = vmatpush1.msra.mxu0 %v116
  %1162 = vmatprep.subr.mxu0 %v122
  %1163 = vmatpush1.msra.mxu0 %v121
  %1164 = vmatprep.subr.mxu0 0.0
  %1165 = vmatpush1.msra.mxu0 0.0
  %1166 = vmatprep.subr.mxu0 0.0
  %1167 = vmatpush1.msra.mxu0 0.0
  %1168 = vmatprep.subr.mxu0 0.0
  %1169 = vmatpush1.msra.mxu0 0.0
  %1170 = vmatprep.subr.mxu0 0.0
  %1171 = vmatpush1.msra.mxu0 0.0
  %1172 = vmatprep.subr.mxu0 0.0
  %1173 = vmatpush1.msra.mxu0 0.0
  %1174 = vmatprep.subr.mxu0 0.0
  %1175 = vmatpush1.msra.mxu0 0.0
  %1176 = vmatprep.subr.mxu0 0.0
  %1177 = vmatpush1.msra.mxu0 0.0
  %1178 = vmatprep.subr.mxu0 0.0
  %1179 = vmatpush1.msra.mxu0 0.0
  %1180 = vmatprep.subr.mxu0 0.0
  %1181 = vmatpush1.msra.mxu0 0.0
  %1182 = vmatprep.subr.mxu0 0.0
  %1183 = vmatpush1.msra.mxu0 0.0
  %1184 = vmatprep.subr.mxu0 0.0
  %1185 = vmatpush1.msra.mxu0 0.0
  %1186 = vmatprep.subr.mxu0 0.0
  %1187 = vmatpush1.msra.mxu0 0.0
  %1188 = vmatprep.subr.mxu0 0.0
  %1189 = vmatpush1.msra.mxu0 0.0
  %1190 = vmatprep.subr.mxu0 0.0
  %1191 = vmatpush1.msra.mxu0 0.0
  %1192 = vmatprep.subr.mxu0 0.0
  %1193 = vmatpush1.msra.mxu0 0.0
  %1194 = vmatprep.subr.mxu0 0.0
  %1195 = vmatpush1.msra.mxu0 0.0
  %1196 = vmatprep.mubr.f32.mxu0 0.0
  %1197 = vmatmul.mubr.f32.gmra.mrb[0].mxu0 %v898
  %v1198 = vpop.f32.mrb[0].mxu0
  %v1199 = vadd.f32 %v281, %v1198
  %v1200 = vpop.f32.mrb[0].mxu0
  %v1201 = vadd.f32 %v285, %v1200
  %1202 = vdwg.mxu0
  %1203 = vmatprep.subr.mxu0 0.0
  %1204 = vmatpush1.msra.mxu0 %v48
  %1205 = vmatprep.subr.mxu0 0.0
  %1206 = vmatpush1.msra.mxu0 %v53
  %1207 = vmatprep.subr.mxu0 0.0
  %1208 = vmatpush1.msra.mxu0 %v58
  %1209 = vmatprep.subr.mxu0 0.0
  %1210 = vmatpush1.msra.mxu0 %v63
  %1211 = vmatprep.subr.mxu0 0.0
  %1212 = vmatpush1.msra.mxu0 %v68
  %1213 = vmatprep.subr.mxu0 0.0
  %1214 = vmatpush1.msra.mxu0 %v73
  %1215 = vmatprep.subr.mxu0 0.0
  %1216 = vmatpush1.msra.mxu0 %v78
  %1217 = vmatprep.subr.mxu0 0.0
  %1218 = vmatpush1.msra.mxu0 %v83
  %1219 = vmatprep.subr.mxu0 0.0
  %1220 = vmatpush1.msra.mxu0 %v88
  %1221 = vmatprep.subr.mxu0 0.0
  %1222 = vmatpush1.msra.mxu0 %v93
  %1223 = vmatprep.subr.mxu0 0.0
  %1224 = vmatpush1.msra.mxu0 %v98
  %1225 = vmatprep.subr.mxu0 0.0
  %1226 = vmatpush1.msra.mxu0 %v103
  %1227 = vmatprep.subr.mxu0 0.0
  %1228 = vmatpush1.msra.mxu0 %v108
  %1229 = vmatprep.subr.mxu0 0.0
  %1230 = vmatpush1.msra.mxu0 %v113
  %1231 = vmatprep.subr.mxu0 0.0
  %1232 = vmatpush1.msra.mxu0 %v118
  %1233 = vmatprep.subr.mxu0 0.0
  %1234 = vmatpush1.msra.mxu0 %v123
  %1235 = vmatprep.subr.mxu0 0.0
  %1236 = vmatpush1.msra.mxu0 0.0
  %1237 = vmatprep.subr.mxu0 0.0
  %1238 = vmatpush1.msra.mxu0 0.0
  %1239 = vmatprep.subr.mxu0 0.0
  %1240 = vmatpush1.msra.mxu0 0.0
  %1241 = vmatprep.subr.mxu0 0.0
  %1242 = vmatpush1.msra.mxu0 0.0
  %1243 = vmatprep.subr.mxu0 0.0
  %1244 = vmatpush1.msra.mxu0 0.0
  %1245 = vmatprep.subr.mxu0 0.0
  %1246 = vmatpush1.msra.mxu0 0.0
  %1247 = vmatprep.subr.mxu0 0.0
  %1248 = vmatpush1.msra.mxu0 0.0
  %1249 = vmatprep.subr.mxu0 0.0
  %1250 = vmatpush1.msra.mxu0 0.0
  %1251 = vmatprep.subr.mxu0 0.0
  %1252 = vmatpush1.msra.mxu0 0.0
  %1253 = vmatprep.subr.mxu0 0.0
  %1254 = vmatpush1.msra.mxu0 0.0
  %1255 = vmatprep.subr.mxu0 0.0
  %1256 = vmatpush1.msra.mxu0 0.0
  %1257 = vmatprep.subr.mxu0 0.0
  %1258 = vmatpush1.msra.mxu0 0.0
  %1259 = vmatprep.subr.mxu0 0.0
  %1260 = vmatpush1.msra.mxu0 0.0
  %1261 = vmatprep.subr.mxu0 0.0
  %1262 = vmatpush1.msra.mxu0 0.0
  %1263 = vmatprep.subr.mxu0 0.0
  %1264 = vmatpush1.msra.mxu0 0.0
  %1265 = vmatprep.subr.mxu0 0.0
  %1266 = vmatpush1.msra.mxu0 0.0
  %1267 = vmatprep.mubr.f32.mxu0 0.0
  %1268 = vmatmul.mubr.f32.gmra.mrb[0].mxu0 %v898
  %v1269 = vpop.f32.mrb[0].mxu0
  %v1270 = vadd.f32 %v289, %v1269
  %v1271 = vpop.f32.mrb[0].mxu0
  %1272 = vdwg.mxu0
  %v1273 = vadd.f32 %v1059, %v1128
  %v1274 = vmax.f32 %v1273, 0.0
  %1275 = vmatprep.subr.mxu0 0.0
  %1276 = vmatpush1.msra.mxu0 %v188
  %1277 = vmatprep.subr.mxu0 0.0
  %1278 = vmatpush1.msra.mxu0 %v189
  %1279 = vmatprep.subr.mxu0 0.0
  %1280 = vmatpush1.msra.mxu0 %v190
  %1281 = vmatprep.subr.mxu0 0.0
  %1282 = vmatpush1.msra.mxu0 %v191
  %1283 = vmatprep.subr.mxu0 0.0
  %1284 = vmatpush1.msra.mxu0 %v192
  %1285 = vmatprep.subr.mxu0 0.0
  %1286 = vmatpush1.msra.mxu0 %v193
  %1287 = vmatprep.subr.mxu0 0.0
  %1288 = vmatpush1.msra.mxu0 %v194
  %1289 = vmatprep.subr.mxu0 0.0
  %1290 = vmatpush1.msra.mxu0 %v195
  %1291 = vmatprep.subr.mxu0 0.0
  %1292 = vmatpush1.msra.mxu0 %v196
  %1293 = vmatprep.subr.mxu0 0.0
  %1294 = vmatpush1.msra.mxu0 %v197
  %1295 = vmatprep.subr.mxu0 0.0
  %1296 = vmatpush1.msra.mxu0 %v198
  %1297 = vmatprep.subr.mxu0 0.0
  %1298 = vmatpush1.msra.mxu0 %v199
  %1299 = vmatprep.subr.mxu0 0.0
  %1300 = vmatpush1.msra.mxu0 %v200
  %1301 = vmatprep.subr.mxu0 0.0
  %1302 = vmatpush1.msra.mxu0 %v201
  %1303 = vmatprep.subr.mxu0 0.0
  %1304 = vmatpush1.msra.mxu0 %v202
  %1305 = vmatprep.subr.mxu0 0.0
  %1306 = vmatpush1.msra.mxu0 %v203
  %1307 = vmatprep.subr.mxu0 0.0
  %1308 = vmatpush1.msra.mxu0 0.0
  %1309 = vmatprep.subr.mxu0 0.0
  %1310 = vmatpush1.msra.mxu0 0.0
  %1311 = vmatprep.subr.mxu0 0.0
  %1312 = vmatpush1.msra.mxu0 0.0
  %1313 = vmatprep.subr.mxu0 0.0
  %1314 = vmatpush1.msra.mxu0 0.0
  %1315 = vmatprep.subr.mxu0 0.0
  %1316 = vmatpush1.msra.mxu0 0.0
  %1317 = vmatprep.subr.mxu0 0.0
  %1318 = vmatpush1.msra.mxu0 0.0
  %1319 = vmatprep.subr.mxu0 0.0
  %1320 = vmatpush1.msra.mxu0 0.0
  %1321 = vmatprep.subr.mxu0 0.0
  %1322 = vmatpush1.msra.mxu0 0.0
  %1323 = vmatprep.subr.mxu0 0.0
  %1324 = vmatpush1.msra.mxu0 0.0
  %1325 = vmatprep.subr.mxu0 0.0
  %1326 = vmatpush1.msra.mxu0 0.0
  %1327 = vmatprep.subr.mxu0 0.0
  %1328 = vmatpush1.msra.mxu0 0.0
  %1329 = vmatprep.subr.mxu0 0.0
  %1330 = vmatpush1.msra.mxu0 0.0
  %1331 = vmatprep.subr.mxu0 0.0
  %1332 = vmatpush1.msra.mxu0 0.0
  %1333 = vmatprep.subr.mxu0 0.0
  %1334 = vmatpush1.msra.mxu0 0.0
  %1335 = vmatprep.subr.mxu0 0.0
  %1336 = vmatpush1.msra.mxu0 0.0
  %1337 = vmatprep.subr.mxu0 0.0
  %1338 = vmatpush1.msra.mxu0 0.0
  %1339 = vmatprep.mubr.f32.mxu0 0.0
  %1340 = vmatmul.mubr.f32.gmra.mrb[0].mxu0 %v1274
  %v1341 = vpop.f32.mrb[0].mxu0
  %v1342 = vadd.f32 %v300, %v1341
  %v1343 = vpop.f32.mrb[0].mxu0
  %1344 = vdwg.mxu0
  %v1345 = vmax.f32 %v1342, 0.0
  %1346 = vmatprep.subr.mxu0 %v205
  %1347 = vmatpush1.msra.mxu0 %v204
  %1348 = vmatprep.subr.mxu0 %v207
  %1349 = vmatpush1.msra.mxu0 %v206
  %1350 = vmatprep.subr.mxu0 %v209
  %1351 = vmatpush1.msra.mxu0 %v208
  %1352 = vmatprep.subr.mxu0 %v211
  %1353 = vmatpush1.msra.mxu0 %v210
  %1354 = vmatprep.subr.mxu0 %v213
  %1355 = vmatpush1.msra.mxu0 %v212
  %1356 = vmatprep.subr.mxu0 %v215
  %1357 = vmatpush1.msra.mxu0 %v214
  %1358 = vmatprep.subr.mxu0 %v217
  %1359 = vmatpush1.msra.mxu0 %v216
  %1360 = vmatprep.subr.mxu0 %v219
  %1361 = vmatpush1.msra.mxu0 %v218
  %1362 = vmatprep.subr.mxu0 %v221
  %1363 = vmatpush1.msra.mxu0 %v220
  %1364 = vmatprep.subr.mxu0 %v223
  %1365 = vmatpush1.msra.mxu0 %v222
  %1366 = vmatprep.subr.mxu0 %v225
  %1367 = vmatpush1.msra.mxu0 %v224
  %1368 = vmatprep.subr.mxu0 %v227
  %1369 = vmatpush1.msra.mxu0 %v226
  %1370 = vmatprep.subr.mxu0 %v229
  %1371 = vmatpush1.msra.mxu0 %v228
  %1372 = vmatprep.subr.mxu0 %v231
  %1373 = vmatpush1.msra.mxu0 %v230
  %1374 = vmatprep.subr.mxu0 %v233
  %1375 = vmatpush1.msra.mxu0 %v232
  %1376 = vmatprep.subr.mxu0 %v235
  %1377 = vmatpush1.msra.mxu0 %v234
  %1378 = vmatprep.subr.mxu0 0.0
  %1379 = vmatpush1.msra.mxu0 0.0
  %1380 = vmatprep.subr.mxu0 0.0
  %1381 = vmatpush1.msra.mxu0 0.0
  %1382 = vmatprep.subr.mxu0 0.0
  %1383 = vmatpush1.msra.mxu0 0.0
  %1384 = vmatprep.subr.mxu0 0.0
  %1385 = vmatpush1.msra.mxu0 0.0
  %1386 = vmatprep.subr.mxu0 0.0
  %1387 = vmatpush1.msra.mxu0 0.0
  %1388 = vmatprep.subr.mxu0 0.0
  %1389 = vmatpush1.msra.mxu0 0.0
  %1390 = vmatprep.subr.mxu0 0.0
  %1391 = vmatpush1.msra.mxu0 0.0
  %1392 = vmatprep.subr.mxu0 0.0
  %1393 = vmatpush1.msra.mxu0 0.0
  %1394 = vmatprep.subr.mxu0 0.0
  %1395 = vmatpush1.msra.mxu0 0.0
  %1396 = vmatprep.subr.mxu0 0.0
  %1397 = vmatpush1.msra.mxu0 0.0
  %1398 = vmatprep.subr.mxu0 0.0
  %1399 = vmatpush1.msra.mxu0 0.0
  %1400 = vmatprep.subr.mxu0 0.0
  %1401 = vmatpush1.msra.mxu0 0.0
  %1402 = vmatprep.subr.mxu0 0.0
  %1403 = vmatpush1.msra.mxu0 0.0
  %1404 = vmatprep.subr.mxu0 0.0
  %1405 = vmatpush1.msra.mxu0 0.0
  %1406 = vmatprep.subr.mxu0 0.0
  %1407 = vmatpush1.msra.mxu0 0.0
  %1408 = vmatprep.subr.mxu0 0.0
  %1409 = vmatpush1.msra.mxu0 0.0
  %1410 = vmatprep.mubr.f32.mxu0 0.0
  %1411 = vmatmul.mubr.f32.gmra.mrb[0].mxu0 %v1345
  %v1412 = vpop.f32.mrb[0].mxu0
  %v1413 = vadd.f32 %v307, %v1412
  %v1414 = vpop.f32.mrb[0].mxu0
  %v1415 = vadd.f32 %v311, %v1414
  %1416 = vdwg.mxu0
  %v1417 = vmax.f32 %v1415, 0.0
  %v1418 = vand.u32 2147483647, %v1415
  %v1419 = vsub.f32 0.0, %v1418
  %v1420 = vmul.f32 %v1419, 1.442695
  %v1421 = vpow.pop %v1420
  %v1422 = vadd.f32 %v1421, 1.0
  %v1423 = vlog2.pop %v1422
  %v1424 = vmul.f32 %v1423, 0.6931472
  %v1425 = vmul.f32 -0.5, %v1421
  %v1426 = vadd.f32 %v1425, 1.0
  %v1427 = vmul.f32 %v1426, %v1421
  %v1428 = vand.u32 2147483647, %v1421
  %vm1429 = vcmp.lt.f32.partialorder %v1428, 0.0004427343
  %v1430 = vsel %vm1429, %v1427, %v1424
  %v1431 = vadd.f32 %v1417, %v1430
  %v1432 = vmul.f32 %v1060, %v1431
  %v1433 = vadd.f32 %v1432, %v1413
  %1434 = vmatprep.subr.mxu0 %v125
  %1435 = vmatpush1.msra.mxu0 %v124
  %1436 = vmatprep.subr.mxu0 %v129
  %1437 = vmatpush1.msra.mxu0 %v128
  %1438 = vmatprep.subr.mxu0 %v133
  %1439 = vmatpush1.msra.mxu0 %v132
  %1440 = vmatprep.subr.mxu0 %v137
  %1441 = vmatpush1.msra.mxu0 %v136
  %1442 = vmatprep.subr.mxu0 %v141
  %1443 = vmatpush1.msra.mxu0 %v140
  %1444 = vmatprep.subr.mxu0 %v145
  %1445 = vmatpush1.msra.mxu0 %v144
  %1446 = vmatprep.subr.mxu0 %v149
  %1447 = vmatpush1.msra.mxu0 %v148
  %1448 = vmatprep.subr.mxu0 %v153
  %1449 = vmatpush1.msra.mxu0 %v152
  %1450 = vmatprep.subr.mxu0 %v157
  %1451 = vmatpush1.msra.mxu0 %v156
  %1452 = vmatprep.subr.mxu0 %v161
  %1453 = vmatpush1.msra.mxu0 %v160
  %1454 = vmatprep.subr.mxu0 %v165
  %1455 = vmatpush1.msra.mxu0 %v164
  %1456 = vmatprep.subr.mxu0 %v169
  %1457 = vmatpush1.msra.mxu0 %v168
  %1458 = vmatprep.subr.mxu0 %v173
  %1459 = vmatpush1.msra.mxu0 %v172
  %1460 = vmatprep.subr.mxu0 %v177
  %1461 = vmatpush1.msra.mxu0 %v176
  %1462 = vmatprep.subr.mxu0 %v181
  %1463 = vmatpush1.msra.mxu0 %v180
  %1464 = vmatprep.subr.mxu0 %v185
  %1465 = vmatpush1.msra.mxu0 %v184
  %1466 = vmatprep.subr.mxu0 0.0
  %1467 = vmatpush1.msra.mxu0 0.0
  %1468 = vmatprep.subr.mxu0 0.0
  %1469 = vmatpush1.msra.mxu0 0.0
  %1470 = vmatprep.subr.mxu0 0.0
  %1471 = vmatpush1.msra.mxu0 0.0
  %1472 = vmatprep.subr.mxu0 0.0
  %1473 = vmatpush1.msra.mxu0 0.0
  %1474 = vmatprep.subr.mxu0 0.0
  %1475 = vmatpush1.msra.mxu0 0.0
  %1476 = vmatprep.subr.mxu0 0.0
  %1477 = vmatpush1.msra.mxu0 0.0
  %1478 = vmatprep.subr.mxu0 0.0
  %1479 = vmatpush1.msra.mxu0 0.0
  %1480 = vmatprep.subr.mxu0 0.0
  %1481 = vmatpush1.msra.mxu0 0.0
  %1482 = vmatprep.subr.mxu0 0.0
  %1483 = vmatpush1.msra.mxu0 0.0
  %1484 = vmatprep.subr.mxu0 0.0
  %1485 = vmatpush1.msra.mxu0 0.0
  %1486 = vmatprep.subr.mxu0 0.0
  %1487 = vmatpush1.msra.mxu0 0.0
  %1488 = vmatprep.subr.mxu0 0.0
  %1489 = vmatpush1.msra.mxu0 0.0
  %1490 = vmatprep.subr.mxu0 0.0
  %1491 = vmatpush1.msra.mxu0 0.0
  %1492 = vmatprep.subr.mxu0 0.0
  %1493 = vmatpush1.msra.mxu0 0.0
  %1494 = vmatprep.subr.mxu0 0.0
  %1495 = vmatpush1.msra.mxu0 0.0
  %1496 = vmatprep.subr.mxu0 0.0
  %1497 = vmatpush1.msra.mxu0 0.0
  %1498 = vmatprep.mubr.f32.mxu0 0.0
  %1499 = vmatmul.mubr.f32.gmra.mrb[0].mxu0 %v1433
  %v1500 = vpop.f32.mrb[0].mxu0
  %v1501 = vadd.f32 0.0, %v1500
  %v1502 = vpop.f32.mrb[0].mxu0
  %v1503 = vadd.f32 0.0, %v1502
  %1504 = vdwg.mxu0
  %1505 = vmatprep.subr.mxu0 %v127
  %1506 = vmatpush1.msra.mxu0 %v126
  %1507 = vmatprep.subr.mxu0 %v131
  %1508 = vmatpush1.msra.mxu0 %v130
  %1509 = vmatprep.subr.mxu0 %v135
  %1510 = vmatpush1.msra.mxu0 %v134
  %1511 = vmatprep.subr.mxu0 %v139
  %1512 = vmatpush1.msra.mxu0 %v138
  %1513 = vmatprep.subr.mxu0 %v143
  %1514 = vmatpush1.msra.mxu0 %v142
  %1515 = vmatprep.subr.mxu0 %v147
  %1516 = vmatpush1.msra.mxu0 %v146
  %1517 = vmatprep.subr.mxu0 %v151
  %1518 = vmatpush1.msra.mxu0 %v150
  %1519 = vmatprep.subr.mxu0 %v155
  %1520 = vmatpush1.msra.mxu0 %v154
  %1521 = vmatprep.subr.mxu0 %v159
  %1522 = vmatpush1.msra.mxu0 %v158
  %1523 = vmatprep.subr.mxu0 %v163
  %1524 = vmatpush1.msra.mxu0 %v162
  %1525 = vmatprep.subr.mxu0 %v167
  %1526 = vmatpush1.msra.mxu0 %v166
  %1527 = vmatprep.subr.mxu0 %v171
  %1528 = vmatpush1.msra.mxu0 %v170
  %1529 = vmatprep.subr.mxu0 %v175
  %1530 = vmatpush1.msra.mxu0 %v174
  %1531 = vmatprep.subr.mxu0 %v179
  %1532 = vmatpush1.msra.mxu0 %v178
  %1533 = vmatprep.subr.mxu0 %v183
  %1534 = vmatpush1.msra.mxu0 %v182
  %1535 = vmatprep.subr.mxu0 %v187
  %1536 = vmatpush1.msra.mxu0 %v186
  %1537 = vmatprep.subr.mxu0 0.0
  %1538 = vmatpush1.msra.mxu0 0.0
  %1539 = vmatprep.subr.mxu0 0.0
  %1540 = vmatpush1.msra.mxu0 0.0
  %1541 = vmatprep.subr.mxu0 0.0
  %1542 = vmatpush1.msra.mxu0 0.0
  %1543 = vmatprep.subr.mxu0 0.0
  %1544 = vmatpush1.msra.mxu0 0.0
  %1545 = vmatprep.subr.mxu0 0.0
  %1546 = vmatpush1.msra.mxu0 0.0
  %1547 = vmatprep.subr.mxu0 0.0
  %1548 = vmatpush1.msra.mxu0 0.0
  %1549 = vmatprep.subr.mxu0 0.0
  %1550 = vmatpush1.msra.mxu0 0.0
  %1551 = vmatprep.subr.mxu0 0.0
  %1552 = vmatpush1.msra.mxu0 0.0
  %1553 = vmatprep.subr.mxu0 0.0
  %1554 = vmatpush1.msra.mxu0 0.0
  %1555 = vmatprep.subr.mxu0 0.0
  %1556 = vmatpush1.msra.mxu0 0.0
  %1557 = vmatprep.subr.mxu0 0.0
  %1558 = vmatpush1.msra.mxu0 0.0
  %1559 = vmatprep.subr.mxu0 0.0
  %1560 = vmatpush1.msra.mxu0 0.0
  %1561 = vmatprep.subr.mxu0 0.0
  %1562 = vmatpush1.msra.mxu0 0.0
  %1563 = vmatprep.subr.mxu0 0.0
  %1564 = vmatpush1.msra.mxu0 0.0
  %1565 = vmatprep.subr.mxu0 0.0
  %1566 = vmatpush1.msra.mxu0 0.0
  %1567 = vmatprep.subr.mxu0 0.0
  %1568 = vmatpush1.msra.mxu0 0.0
  %1569 = vmatprep.mubr.f32.mxu0 0.0
  %1570 = vmatmul.mubr.f32.gmra.mrb[0].mxu0 %v1433
  %v1571 = vpop.f32.mrb[0].mxu0
  %v1572 = vadd.f32 0.0, %v1571
  %v1573 = vpop.f32.mrb[0].mxu0
  %v1574 = vadd.f32 0.0, %v1573
  %1575 = vdwg.mxu0
  %v1577 = vrot.slane %v1059, 2
  %v1582 = vcombine.low %v1503, %v1572
  %v1584 = vunpack.c.l.s4 1983009808
  %v1585 = vunpack.c.0.s8 %v1584
  %v1586 = vlaneseq
  %v1587 = vshrl.u32 %v1586, 7
  %v1588 = vsub.s32 %v1585, %v1587
  %v1589 = vrot.slane %v1582, %v1588
  %v1591 = vunpack.c.l.s4 1983009808
  %v1592 = vunpack.c.0.s8 %v1591
  %v1593 = vlaneseq
  %v1594 = vshrl.u32 %v1593, 7
  %v1595 = vsub.s32 %v1592, %v1594
  %v1596 = vrot.slane %v1574, %v1595
  %v1597 = vcombine.low %v1589, %v1596
  %v1599 = vadd.f32 %v1577, %v1597
  %v1602 = vcombine.low %v1199, %v1201
  %v1604 = vunpack.c.l.s4 1983009808
  %v1605 = vunpack.c.0.s8 %v1604
  %v1606 = vlaneseq
  %v1607 = vshrl.u32 %v1606, 7
  %v1608 = vsub.s32 %v1605, %v1607
  %v1609 = vrot.slane %v1602, %v1608
  %v1611 = vadd.f32 %v1599, %v1609
  %v1612 = vmul.f32 %v1611, 0.5
  %v1613 = vtanh.pop %v1612
  %v1614 = vadd.f32 %v1613, 1.0
  %v1615 = vmul.f32 %v1614, 0.5
  %v1616 = vmul.f32 %v1615, %v1270
  %v1618 = vrot.slane %v1599, 4
  %v1620 = vadd.f32 %v1618, %v1616
  %v1621 = vtanh.pop %v1620
  %v1623 = vrot.slane %v1615, 2
  %v1625 = vsub.f32 1.0, %v1623
  %v1626 = vmul.f32 %v1625, %v1621
  %v1627 = vmul.f32 %v1623, %v898
  %v1628 = vadd.f32 %v1626, %v1627
  %v1629 = vadd.f32 %v1501, %v1130
  %v1630 = vmax.f32 %v1629, 0.0
  %1631 = vmatprep.subr.mxu0 0.0
  %1632 = vmatpush1.msra.mxu0 %v236
  %1633 = vmatprep.subr.mxu0 0.0
  %1634 = vmatpush1.msra.mxu0 %v237
  %1635 = vmatprep.subr.mxu0 0.0
  %1636 = vmatpush1.msra.mxu0 %v238
  %1637 = vmatprep.subr.mxu0 0.0
  %1638 = vmatpush1.msra.mxu0 %v239
  %1639 = vmatprep.subr.mxu0 0.0
  %1640 = vmatpush1.msra.mxu0 %v240
  %1641 = vmatprep.subr.mxu0 0.0
  %1642 = vmatpush1.msra.mxu0 %v241
  %1643 = vmatprep.subr.mxu0 0.0
  %1644 = vmatpush1.msra.mxu0 %v242
  %1645 = vmatprep.subr.mxu0 0.0
  %1646 = vmatpush1.msra.mxu0 %v243
  %1647 = vmatprep.subr.mxu0 0.0
  %1648 = vmatpush1.msra.mxu0 %v244
  %1649 = vmatprep.subr.mxu0 0.0
  %1650 = vmatpush1.msra.mxu0 %v245
  %1651 = vmatprep.subr.mxu0 0.0
  %1652 = vmatpush1.msra.mxu0 %v246
  %1653 = vmatprep.subr.mxu0 0.0
  %1654 = vmatpush1.msra.mxu0 %v247
  %1655 = vmatprep.subr.mxu0 0.0
  %1656 = vmatpush1.msra.mxu0 %v248
  %1657 = vmatprep.subr.mxu0 0.0
  %1658 = vmatpush1.msra.mxu0 %v249
  %1659 = vmatprep.subr.mxu0 0.0
  %1660 = vmatpush1.msra.mxu0 %v250
  %1661 = vmatprep.subr.mxu0 0.0
  %1662 = vmatpush1.msra.mxu0 %v251
  %1663 = vmatprep.subr.mxu0 0.0
  %1664 = vmatpush1.msra.mxu0 0.0
  %1665 = vmatprep.subr.mxu0 0.0
  %1666 = vmatpush1.msra.mxu0 0.0
  %1667 = vmatprep.subr.mxu0 0.0
  %1668 = vmatpush1.msra.mxu0 0.0
  %1669 = vmatprep.subr.mxu0 0.0
  %1670 = vmatpush1.msra.mxu0 0.0
  %1671 = vmatprep.subr.mxu0 0.0
  %1672 = vmatpush1.msra.mxu0 0.0
  %1673 = vmatprep.subr.mxu0 0.0
  %1674 = vmatpush1.msra.mxu0 0.0
  %1675 = vmatprep.subr.mxu0 0.0
  %1676 = vmatpush1.msra.mxu0 0.0
  %1677 = vmatprep.subr.mxu0 0.0
  %1678 = vmatpush1.msra.mxu0 0.0
  %1679 = vmatprep.subr.mxu0 0.0
  %1680 = vmatpush1.msra.mxu0 0.0
  %1681 = vmatprep.subr.mxu0 0.0
  %1682 = vmatpush1.msra.mxu0 0.0
  %1683 = vmatprep.subr.mxu0 0.0
  %1684 = vmatpush1.msra.mxu0 0.0
  %1685 = vmatprep.subr.mxu0 0.0
  %1686 = vmatpush1.msra.mxu0 0.0
  %1687 = vmatprep.subr.mxu0 0.0
  %1688 = vmatpush1.msra.mxu0 0.0
  %1689 = vmatprep.subr.mxu0 0.0
  %1690 = vmatpush1.msra.mxu0 0.0
  %1691 = vmatprep.subr.mxu0 0.0
  %1692 = vmatpush1.msra.mxu0 0.0
  %1693 = vmatprep.subr.mxu0 0.0
  %1694 = vmatpush1.msra.mxu0 0.0
  %1695 = vmatprep.mubr.f32.mxu0 0.0
  %1696 = vmatmul.mubr.f32.gmra.mrb[0].mxu0 %v1630
  %v1697 = vpop.f32.mrb[0].mxu0
  %v1698 = vadd.f32 %v319, %v1697
  %v1699 = vpop.f32.mrb[0].mxu0
  %1700 = vdwg.mxu0
  %v1701 = vmax.f32 %v1698, 0.0
  %1702 = vmatprep.subr.mxu0 0.0
  %1703 = vmatpush1.msra.mxu0 %v252
  %1704 = vmatprep.subr.mxu0 0.0
  %1705 = vmatpush1.msra.mxu0 %v253
  %1706 = vmatprep.subr.mxu0 0.0
  %1707 = vmatpush1.msra.mxu0 %v254
  %1708 = vmatprep.subr.mxu0 0.0
  %1709 = vmatpush1.msra.mxu0 %v255
  %1710 = vmatprep.subr.mxu0 0.0
  %1711 = vmatpush1.msra.mxu0 %v256
  %1712 = vmatprep.subr.mxu0 0.0
  %1713 = vmatpush1.msra.mxu0 %v257
  %1714 = vmatprep.subr.mxu0 0.0
  %1715 = vmatpush1.msra.mxu0 %v258
  %1716 = vmatprep.subr.mxu0 0.0
  %1717 = vmatpush1.msra.mxu0 %v259
  %1718 = vmatprep.subr.mxu0 0.0
  %1719 = vmatpush1.msra.mxu0 %v260
  %1720 = vmatprep.subr.mxu0 0.0
  %1721 = vmatpush1.msra.mxu0 %v261
  %1722 = vmatprep.subr.mxu0 0.0
  %1723 = vmatpush1.msra.mxu0 %v262
  %1724 = vmatprep.subr.mxu0 0.0
  %1725 = vmatpush1.msra.mxu0 %v263
  %1726 = vmatprep.subr.mxu0 0.0
  %1727 = vmatpush1.msra.mxu0 %v264
  %1728 = vmatprep.subr.mxu0 0.0
  %1729 = vmatpush1.msra.mxu0 %v265
  %1730 = vmatprep.subr.mxu0 0.0
  %1731 = vmatpush1.msra.mxu0 %v266
  %1732 = vmatprep.subr.mxu0 0.0
  %1733 = vmatpush1.msra.mxu0 %v267
  %1734 = vmatprep.subr.mxu0 0.0
  %1735 = vmatpush1.msra.mxu0 0.0
  %1736 = vmatprep.subr.mxu0 0.0
  %1737 = vmatpush1.msra.mxu0 0.0
  %1738 = vmatprep.subr.mxu0 0.0
  %1739 = vmatpush1.msra.mxu0 0.0
  %1740 = vmatprep.subr.mxu0 0.0
  %1741 = vmatpush1.msra.mxu0 0.0
  %1742 = vmatprep.subr.mxu0 0.0
  %1743 = vmatpush1.msra.mxu0 0.0
  %1744 = vmatprep.subr.mxu0 0.0
  %1745 = vmatpush1.msra.mxu0 0.0
  %1746 = vmatprep.subr.mxu0 0.0
  %1747 = vmatpush1.msra.mxu0 0.0
  %1748 = vmatprep.subr.mxu0 0.0
  %1749 = vmatpush1.msra.mxu0 0.0
  %1750 = vmatprep.subr.mxu0 0.0
  %1751 = vmatpush1.msra.mxu0 0.0
  %1752 = vmatprep.subr.mxu0 0.0
  %1753 = vmatpush1.msra.mxu0 0.0
  %1754 = vmatprep.subr.mxu0 0.0
  %1755 = vmatpush1.msra.mxu0 0.0
  %1756 = vmatprep.subr.mxu0 0.0
  %1757 = vmatpush1.msra.mxu0 0.0
  %1758 = vmatprep.subr.mxu0 0.0
  %1759 = vmatpush1.msra.mxu0 0.0
  %1760 = vmatprep.subr.mxu0 0.0
  %1761 = vmatpush1.msra.mxu0 0.0
  %1762 = vmatprep.subr.mxu0 0.0
  %1763 = vmatpush1.msra.mxu0 0.0
  %1764 = vmatprep.subr.mxu0 0.0
  %1765 = vmatpush1.msra.mxu0 0.0
  %1766 = vmatprep.mubr.f32.mxu0 0.0
  %1767 = vmatmul.mubr.f32.gmra.mrb[0].mxu0 %v1701
  %v1768 = vpop.f32.mrb[0].mxu0
  %v1769 = vadd.f32 %v326, %v1768
  %v1770 = vpop.f32.mrb[0].mxu0
  %1771 = vdwg.mxu0
  %v1772 = vmul.f32 %v1769, 0.5
  %v1773 = vtanh.pop %v1772
  %v1774 = vadd.f32 %v1773, 1.0
  %v1775 = vmul.f32 %v1774, 0.5
  %v1778 = vcombine.low %v1775, %v1628
  %v1780 = vunpack.c.l.s4 1983009808
  %v1781 = vunpack.c.0.s8 %v1780
  %v1782 = vlaneseq
  %v1783 = vshrl.u32 %v1782, 7
  %v1784 = vsub.s32 %v1781, %v1783
  %v1785 = vrot.slane %v1778, %v1784
  %s1787 = scalar_lea.vmem %s13, 4
  %1788 = vst [vmem:[%s1787] sm:$0xf] %v1785
  %s1789 = scalar_lea.vmem %s0, 20
  %v1790 = vld [vmem:[%s1789] sm:$0xff]
  %v1791 = vld [vmem:[%s1789 + $0x8] sm:$0x3]
  %1792 = vmatprep.subr.mxu0 %v45
  %1793 = vmatpush1.msra.mxu0 %v44
  %1794 = vmatprep.subr.mxu0 %v50
  %1795 = vmatpush1.msra.mxu0 %v49
  %1796 = vmatprep.subr.mxu0 %v55
  %1797 = vmatpush1.msra.mxu0 %v54
  %1798 = vmatprep.subr.mxu0 %v60
  %1799 = vmatpush1.msra.mxu0 %v59
  %1800 = vmatprep.subr.mxu0 %v65
  %1801 = vmatpush1.msra.mxu0 %v64
  %1802 = vmatprep.subr.mxu0 %v70
  %1803 = vmatpush1.msra.mxu0 %v69
  %1804 = vmatprep.subr.mxu0 %v75
  %1805 = vmatpush1.msra.mxu0 %v74
  %1806 = vmatprep.subr.mxu0 %v80
  %1807 = vmatpush1.msra.mxu0 %v79
  %1808 = vmatprep.subr.mxu0 %v85
  %1809 = vmatpush1.msra.mxu0 %v84
  %1810 = vmatprep.subr.mxu0 %v90
  %1811 = vmatpush1.msra.mxu0 %v89
  %1812 = vmatprep.subr.mxu0 %v95
  %1813 = vmatpush1.msra.mxu0 %v94
  %1814 = vmatprep.subr.mxu0 %v100
  %1815 = vmatpush1.msra.mxu0 %v99
  %1816 = vmatprep.subr.mxu0 %v105
  %1817 = vmatpush1.msra.mxu0 %v104
  %1818 = vmatprep.subr.mxu0 %v110
  %1819 = vmatpush1.msra.mxu0 %v109
  %1820 = vmatprep.subr.mxu0 %v115
  %1821 = vmatpush1.msra.mxu0 %v114
  %1822 = vmatprep.subr.mxu0 %v120
  %1823 = vmatpush1.msra.mxu0 %v119
  %1824 = vmatprep.subr.mxu0 0.0
  %1825 = vmatpush1.msra.mxu0 0.0
  %1826 = vmatprep.subr.mxu0 0.0
  %1827 = vmatpush1.msra.mxu0 0.0
  %1828 = vmatprep.subr.mxu0 0.0
  %1829 = vmatpush1.msra.mxu0 0.0
  %1830 = vmatprep.subr.mxu0 0.0
  %1831 = vmatpush1.msra.mxu0 0.0
  %1832 = vmatprep.subr.mxu0 0.0
  %1833 = vmatpush1.msra.mxu0 0.0
  %1834 = vmatprep.subr.mxu0 0.0
  %1835 = vmatpush1.msra.mxu0 0.0
  %1836 = vmatprep.subr.mxu0 0.0
  %1837 = vmatpush1.msra.mxu0 0.0
  %1838 = vmatprep.subr.mxu0 0.0
  %1839 = vmatpush1.msra.mxu0 0.0
  %1840 = vmatprep.subr.mxu0 0.0
  %1841 = vmatpush1.msra.mxu0 0.0
  %1842 = vmatprep.subr.mxu0 0.0
  %1843 = vmatpush1.msra.mxu0 0.0
  %1844 = vmatprep.subr.mxu0 0.0
  %1845 = vmatpush1.msra.mxu0 0.0
  %1846 = vmatprep.subr.mxu0 0.0
  %1847 = vmatpush1.msra.mxu0 0.0
  %1848 = vmatprep.subr.mxu0 0.0
  %1849 = vmatpush1.msra.mxu0 0.0
  %1850 = vmatprep.subr.mxu0 0.0
  %1851 = vmatpush1.msra.mxu0 0.0
  %1852 = vmatprep.subr.mxu0 0.0
  %1853 = vmatpush1.msra.mxu0 0.0
  %1854 = vmatprep.subr.mxu0 0.0
  %1855 = vmatpush1.msra.mxu0 0.0
  %1856 = vmatprep.mubr.f32.mxu0 0.0
  %1857 = vmatmul.mubr.f32.gmra.mrb[0].mxu0 %v1628
  %v1858 = vpop.f32.mrb[0].mxu0
  %v1859 = vadd.f32 %v273, %v1858
  %v1860 = vpop.f32.mrb[0].mxu0
  %v1861 = vadd.f32 %v277, %v1860
  %1862 = vdwg.mxu0
  %1863 = vmatprep.subr.mxu0 %v47
  %1864 = vmatpush1.msra.mxu0 %v46
  %1865 = vmatprep.subr.mxu0 %v52
  %1866 = vmatpush1.msra.mxu0 %v51
  %1867 = vmatprep.subr.mxu0 %v57
  %1868 = vmatpush1.msra.mxu0 %v56
  %1869 = vmatprep.subr.mxu0 %v62
  %1870 = vmatpush1.msra.mxu0 %v61
  %1871 = vmatprep.subr.mxu0 %v67
  %1872 = vmatpush1.msra.mxu0 %v66
  %1873 = vmatprep.subr.mxu0 %v72
  %1874 = vmatpush1.msra.mxu0 %v71
  %1875 = vmatprep.subr.mxu0 %v77
  %1876 = vmatpush1.msra.mxu0 %v76
  %1877 = vmatprep.subr.mxu0 %v82
  %1878 = vmatpush1.msra.mxu0 %v81
  %1879 = vmatprep.subr.mxu0 %v87
  %1880 = vmatpush1.msra.mxu0 %v86
  %1881 = vmatprep.subr.mxu0 %v92
  %1882 = vmatpush1.msra.mxu0 %v91
  %1883 = vmatprep.subr.mxu0 %v97
  %1884 = vmatpush1.msra.mxu0 %v96
  %1885 = vmatprep.subr.mxu0 %v102
  %1886 = vmatpush1.msra.mxu0 %v101
  %1887 = vmatprep.subr.mxu0 %v107
  %1888 = vmatpush1.msra.mxu0 %v106
  %1889 = vmatprep.subr.mxu0 %v112
  %1890 = vmatpush1.msra.mxu0 %v111
  %1891 = vmatprep.subr.mxu0 %v117
  %1892 = vmatpush1.msra.mxu0 %v116
  %1893 = vmatprep.subr.mxu0 %v122
  %1894 = vmatpush1.msra.mxu0 %v121
  %1895 = vmatprep.subr.mxu0 0.0
  %1896 = vmatpush1.msra.mxu0 0.0
  %1897 = vmatprep.subr.mxu0 0.0
  %1898 = vmatpush1.msra.mxu0 0.0
  %1899 = vmatprep.subr.mxu0 0.0
  %1900 = vmatpush1.msra.mxu0 0.0
  %1901 = vmatprep.subr.mxu0 0.0
  %1902 = vmatpush1.msra.mxu0 0.0
  %1903 = vmatprep.subr.mxu0 0.0
  %1904 = vmatpush1.msra.mxu0 0.0
  %1905 = vmatprep.subr.mxu0 0.0
  %1906 = vmatpush1.msra.mxu0 0.0
  %1907 = vmatprep.subr.mxu0 0.0
  %1908 = vmatpush1.msra.mxu0 0.0
  %1909 = vmatprep.subr.mxu0 0.0
  %1910 = vmatpush1.msra.mxu0 0.0
  %1911 = vmatprep.subr.mxu0 0.0
  %1912 = vmatpush1.msra.mxu0 0.0
  %1913 = vmatprep.subr.mxu0 0.0
  %1914 = vmatpush1.msra.mxu0 0.0
  %1915 = vmatprep.subr.mxu0 0.0
  %1916 = vmatpush1.msra.mxu0 0.0
  %1917 = vmatprep.subr.mxu0 0.0
  %1918 = vmatpush1.msra.mxu0 0.0
  %1919 = vmatprep.subr.mxu0 0.0
  %1920 = vmatpush1.msra.mxu0 0.0
  %1921 = vmatprep.subr.mxu0 0.0
  %1922 = vmatpush1.msra.mxu0 0.0
  %1923 = vmatprep.subr.mxu0 0.0
  %1924 = vmatpush1.msra.mxu0 0.0
  %1925 = vmatprep.subr.mxu0 0.0
  %1926 = vmatpush1.msra.mxu0 0.0
  %1927 = vmatprep.mubr.f32.mxu0 0.0
  %1928 = vmatmul.mubr.f32.gmra.mrb[0].mxu0 %v1628
  %v1929 = vpop.f32.mrb[0].mxu0
  %v1930 = vadd.f32 %v281, %v1929
  %v1931 = vpop.f32.mrb[0].mxu0
  %v1932 = vadd.f32 %v285, %v1931
  %1933 = vdwg.mxu0
  %1934 = vmatprep.subr.mxu0 0.0
  %1935 = vmatpush1.msra.mxu0 %v48
  %1936 = vmatprep.subr.mxu0 0.0
  %1937 = vmatpush1.msra.mxu0 %v53
  %1938 = vmatprep.subr.mxu0 0.0
  %1939 = vmatpush1.msra.mxu0 %v58
  %1940 = vmatprep.subr.mxu0 0.0
  %1941 = vmatpush1.msra.mxu0 %v63
  %1942 = vmatprep.subr.mxu0 0.0
  %1943 = vmatpush1.msra.mxu0 %v68
  %1944 = vmatprep.subr.mxu0 0.0
  %1945 = vmatpush1.msra.mxu0 %v73
  %1946 = vmatprep.subr.mxu0 0.0
  %1947 = vmatpush1.msra.mxu0 %v78
  %1948 = vmatprep.subr.mxu0 0.0
  %1949 = vmatpush1.msra.mxu0 %v83
  %1950 = vmatprep.subr.mxu0 0.0
  %1951 = vmatpush1.msra.mxu0 %v88
  %1952 = vmatprep.subr.mxu0 0.0
  %1953 = vmatpush1.msra.mxu0 %v93
  %1954 = vmatprep.subr.mxu0 0.0
  %1955 = vmatpush1.msra.mxu0 %v98
  %1956 = vmatprep.subr.mxu0 0.0
  %1957 = vmatpush1.msra.mxu0 %v103
  %1958 = vmatprep.subr.mxu0 0.0
  %1959 = vmatpush1.msra.mxu0 %v108
  %1960 = vmatprep.subr.mxu0 0.0
  %1961 = vmatpush1.msra.mxu0 %v113
  %1962 = vmatprep.subr.mxu0 0.0
  %1963 = vmatpush1.msra.mxu0 %v118
  %1964 = vmatprep.subr.mxu0 0.0
  %1965 = vmatpush1.msra.mxu0 %v123
  %1966 = vmatprep.subr.mxu0 0.0
  %1967 = vmatpush1.msra.mxu0 0.0
  %1968 = vmatprep.subr.mxu0 0.0
  %1969 = vmatpush1.msra.mxu0 0.0
  %1970 = vmatprep.subr.mxu0 0.0
  %1971 = vmatpush1.msra.mxu0 0.0
  %1972 = vmatprep.subr.mxu0 0.0
  %1973 = vmatpush1.msra.mxu0 0.0
  %1974 = vmatprep.subr.mxu0 0.0
  %1975 = vmatpush1.msra.mxu0 0.0
  %1976 = vmatprep.subr.mxu0 0.0
  %1977 = vmatpush1.msra.mxu0 0.0
  %1978 = vmatprep.subr.mxu0 0.0
  %1979 = vmatpush1.msra.mxu0 0.0
  %1980 = vmatprep.subr.mxu0 0.0
  %1981 = vmatpush1.msra.mxu0 0.0
  %1982 = vmatprep.subr.mxu0 0.0
  %1983 = vmatpush1.msra.mxu0 0.0
  %1984 = vmatprep.subr.mxu0 0.0
  %1985 = vmatpush1.msra.mxu0 0.0
  %1986 = vmatprep.subr.mxu0 0.0
  %1987 = vmatpush1.msra.mxu0 0.0
  %1988 = vmatprep.subr.mxu0 0.0
  %1989 = vmatpush1.msra.mxu0 0.0
  %1990 = vmatprep.subr.mxu0 0.0
  %1991 = vmatpush1.msra.mxu0 0.0
  %1992 = vmatprep.subr.mxu0 0.0
  %1993 = vmatpush1.msra.mxu0 0.0
  %1994 = vmatprep.subr.mxu0 0.0
  %1995 = vmatpush1.msra.mxu0 0.0
  %1996 = vmatprep.subr.mxu0 0.0
  %1997 = vmatpush1.msra.mxu0 0.0
  %1998 = vmatprep.mubr.f32.mxu0 0.0
  %1999 = vmatmul.mubr.f32.gmra.mrb[0].mxu0 %v1628
  %v2000 = vpop.f32.mrb[0].mxu0
  %v2001 = vadd.f32 %v289, %v2000
  %v2002 = vpop.f32.mrb[0].mxu0
  %2003 = vdwg.mxu0
  %v2004 = vadd.f32 %v1790, %v1859
  %v2005 = vmax.f32 %v2004, 0.0
  %2006 = vmatprep.subr.mxu0 0.0
  %2007 = vmatpush1.msra.mxu0 %v188
  %2008 = vmatprep.subr.mxu0 0.0
  %2009 = vmatpush1.msra.mxu0 %v189
  %2010 = vmatprep.subr.mxu0 0.0
  %2011 = vmatpush1.msra.mxu0 %v190
  %2012 = vmatprep.subr.mxu0 0.0
  %2013 = vmatpush1.msra.mxu0 %v191
  %2014 = vmatprep.subr.mxu0 0.0
  %2015 = vmatpush1.msra.mxu0 %v192
  %2016 = vmatprep.subr.mxu0 0.0
  %2017 = vmatpush1.msra.mxu0 %v193
  %2018 = vmatprep.subr.mxu0 0.0
  %2019 = vmatpush1.msra.mxu0 %v194
  %2020 = vmatprep.subr.mxu0 0.0
  %2021 = vmatpush1.msra.mxu0 %v195
  %2022 = vmatprep.subr.mxu0 0.0
  %2023 = vmatpush1.msra.mxu0 %v196
  %2024 = vmatprep.subr.mxu0 0.0
  %2025 = vmatpush1.msra.mxu0 %v197
  %2026 = vmatprep.subr.mxu0 0.0
  %2027 = vmatpush1.msra.mxu0 %v198
  %2028 = vmatprep.subr.mxu0 0.0
  %2029 = vmatpush1.msra.mxu0 %v199
  %2030 = vmatprep.subr.mxu0 0.0
  %2031 = vmatpush1.msra.mxu0 %v200
  %2032 = vmatprep.subr.mxu0 0.0
  %2033 = vmatpush1.msra.mxu0 %v201
  %2034 = vmatprep.subr.mxu0 0.0
  %2035 = vmatpush1.msra.mxu0 %v202
  %2036 = vmatprep.subr.mxu0 0.0
  %2037 = vmatpush1.msra.mxu0 %v203
  %2038 = vmatprep.subr.mxu0 0.0
  %2039 = vmatpush1.msra.mxu0 0.0
  %2040 = vmatprep.subr.mxu0 0.0
  %2041 = vmatpush1.msra.mxu0 0.0
  %2042 = vmatprep.subr.mxu0 0.0
  %2043 = vmatpush1.msra.mxu0 0.0
  %2044 = vmatprep.subr.mxu0 0.0
  %2045 = vmatpush1.msra.mxu0 0.0
  %2046 = vmatprep.subr.mxu0 0.0
  %2047 = vmatpush1.msra.mxu0 0.0
  %2048 = vmatprep.subr.mxu0 0.0
  %2049 = vmatpush1.msra.mxu0 0.0
  %2050 = vmatprep.subr.mxu0 0.0
  %2051 = vmatpush1.msra.mxu0 0.0
  %2052 = vmatprep.subr.mxu0 0.0
  %2053 = vmatpush1.msra.mxu0 0.0
  %2054 = vmatprep.subr.mxu0 0.0
  %2055 = vmatpush1.msra.mxu0 0.0
  %2056 = vmatprep.subr.mxu0 0.0
  %2057 = vmatpush1.msra.mxu0 0.0
  %2058 = vmatprep.subr.mxu0 0.0
  %2059 = vmatpush1.msra.mxu0 0.0
  %2060 = vmatprep.subr.mxu0 0.0
  %2061 = vmatpush1.msra.mxu0 0.0
  %2062 = vmatprep.subr.mxu0 0.0
  %2063 = vmatpush1.msra.mxu0 0.0
  %2064 = vmatprep.subr.mxu0 0.0
  %2065 = vmatpush1.msra.mxu0 0.0
  %2066 = vmatprep.subr.mxu0 0.0
  %2067 = vmatpush1.msra.mxu0 0.0
  %2068 = vmatprep.subr.mxu0 0.0
  %2069 = vmatpush1.msra.mxu0 0.0
  %2070 = vmatprep.mubr.f32.mxu0 0.0
  %2071 = vmatmul.mubr.f32.gmra.mrb[0].mxu0 %v2005
  %v2072 = vpop.f32.mrb[0].mxu0
  %v2073 = vadd.f32 %v300, %v2072
  %v2074 = vpop.f32.mrb[0].mxu0
  %2075 = vdwg.mxu0
  %v2076 = vmax.f32 %v2073, 0.0
  %2077 = vmatprep.subr.mxu0 %v205
  %2078 = vmatpush1.msra.mxu0 %v204
  %2079 = vmatprep.subr.mxu0 %v207
  %2080 = vmatpush1.msra.mxu0 %v206
  %2081 = vmatprep.subr.mxu0 %v209
  %2082 = vmatpush1.msra.mxu0 %v208
  %2083 = vmatprep.subr.mxu0 %v211
  %2084 = vmatpush1.msra.mxu0 %v210
  %2085 = vmatprep.subr.mxu0 %v213
  %2086 = vmatpush1.msra.mxu0 %v212
  %2087 = vmatprep.subr.mxu0 %v215
  %2088 = vmatpush1.msra.mxu0 %v214
  %2089 = vmatprep.subr.mxu0 %v217
  %2090 = vmatpush1.msra.mxu0 %v216
  %2091 = vmatprep.subr.mxu0 %v219
  %2092 = vmatpush1.msra.mxu0 %v218
  %2093 = vmatprep.subr.mxu0 %v221
  %2094 = vmatpush1.msra.mxu0 %v220
  %2095 = vmatprep.subr.mxu0 %v223
  %2096 = vmatpush1.msra.mxu0 %v222
  %2097 = vmatprep.subr.mxu0 %v225
  %2098 = vmatpush1.msra.mxu0 %v224
  %2099 = vmatprep.subr.mxu0 %v227
  %2100 = vmatpush1.msra.mxu0 %v226
  %2101 = vmatprep.subr.mxu0 %v229
  %2102 = vmatpush1.msra.mxu0 %v228
  %2103 = vmatprep.subr.mxu0 %v231
  %2104 = vmatpush1.msra.mxu0 %v230
  %2105 = vmatprep.subr.mxu0 %v233
  %2106 = vmatpush1.msra.mxu0 %v232
  %2107 = vmatprep.subr.mxu0 %v235
  %2108 = vmatpush1.msra.mxu0 %v234
  %2109 = vmatprep.subr.mxu0 0.0
  %2110 = vmatpush1.msra.mxu0 0.0
  %2111 = vmatprep.subr.mxu0 0.0
  %2112 = vmatpush1.msra.mxu0 0.0
  %2113 = vmatprep.subr.mxu0 0.0
  %2114 = vmatpush1.msra.mxu0 0.0
  %2115 = vmatprep.subr.mxu0 0.0
  %2116 = vmatpush1.msra.mxu0 0.0
  %2117 = vmatprep.subr.mxu0 0.0
  %2118 = vmatpush1.msra.mxu0 0.0
  %2119 = vmatprep.subr.mxu0 0.0
  %2120 = vmatpush1.msra.mxu0 0.0
  %2121 = vmatprep.subr.mxu0 0.0
  %2122 = vmatpush1.msra.mxu0 0.0
  %2123 = vmatprep.subr.mxu0 0.0
  %2124 = vmatpush1.msra.mxu0 0.0
  %2125 = vmatprep.subr.mxu0 0.0
  %2126 = vmatpush1.msra.mxu0 0.0
  %2127 = vmatprep.subr.mxu0 0.0
  %2128 = vmatpush1.msra.mxu0 0.0
  %2129 = vmatprep.subr.mxu0 0.0
  %2130 = vmatpush1.msra.mxu0 0.0
  %2131 = vmatprep.subr.mxu0 0.0
  %2132 = vmatpush1.msra.mxu0 0.0
  %2133 = vmatprep.subr.mxu0 0.0
  %2134 = vmatpush1.msra.mxu0 0.0
  %2135 = vmatprep.subr.mxu0 0.0
  %2136 = vmatpush1.msra.mxu0 0.0
  %2137 = vmatprep.subr.mxu0 0.0
  %2138 = vmatpush1.msra.mxu0 0.0
  %2139 = vmatprep.subr.mxu0 0.0
  %2140 = vmatpush1.msra.mxu0 0.0
  %2141 = vmatprep.mubr.f32.mxu0 0.0
  %2142 = vmatmul.mubr.f32.gmra.mrb[0].mxu0 %v2076
  %v2143 = vpop.f32.mrb[0].mxu0
  %v2144 = vadd.f32 %v307, %v2143
  %v2145 = vpop.f32.mrb[0].mxu0
  %v2146 = vadd.f32 %v311, %v2145
  %2147 = vdwg.mxu0
  %v2148 = vmax.f32 %v2146, 0.0
  %v2149 = vand.u32 2147483647, %v2146
  %v2150 = vsub.f32 0.0, %v2149
  %v2151 = vmul.f32 %v2150, 1.442695
  %v2152 = vpow.pop %v2151
  %v2153 = vadd.f32 %v2152, 1.0
  %v2154 = vlog2.pop %v2153
  %v2155 = vmul.f32 %v2154, 0.6931472
  %v2156 = vmul.f32 -0.5, %v2152
  %v2157 = vadd.f32 %v2156, 1.0
  %v2158 = vmul.f32 %v2157, %v2152
  %v2159 = vand.u32 2147483647, %v2152
  %vm2160 = vcmp.lt.f32.partialorder %v2159, 0.0004427343
  %v2161 = vsel %vm2160, %v2158, %v2155
  %v2162 = vadd.f32 %v2148, %v2161
  %v2163 = vmul.f32 %v1791, %v2162
  %v2164 = vadd.f32 %v2163, %v2144
  %2165 = vmatprep.subr.mxu0 %v125
  %2166 = vmatpush1.msra.mxu0 %v124
  %2167 = vmatprep.subr.mxu0 %v129
  %2168 = vmatpush1.msra.mxu0 %v128
  %2169 = vmatprep.subr.mxu0 %v133
  %2170 = vmatpush1.msra.mxu0 %v132
  %2171 = vmatprep.subr.mxu0 %v137
  %2172 = vmatpush1.msra.mxu0 %v136
  %2173 = vmatprep.subr.mxu0 %v141
  %2174 = vmatpush1.msra.mxu0 %v140
  %2175 = vmatprep.subr.mxu0 %v145
  %2176 = vmatpush1.msra.mxu0 %v144
  %2177 = vmatprep.subr.mxu0 %v149
  %2178 = vmatpush1.msra.mxu0 %v148
  %2179 = vmatprep.subr.mxu0 %v153
  %2180 = vmatpush1.msra.mxu0 %v152
  %2181 = vmatprep.subr.mxu0 %v157
  %2182 = vmatpush1.msra.mxu0 %v156
  %2183 = vmatprep.subr.mxu0 %v161
  %2184 = vmatpush1.msra.mxu0 %v160
  %2185 = vmatprep.subr.mxu0 %v165
  %2186 = vmatpush1.msra.mxu0 %v164
  %2187 = vmatprep.subr.mxu0 %v169
  %2188 = vmatpush1.msra.mxu0 %v168
  %2189 = vmatprep.subr.mxu0 %v173
  %2190 = vmatpush1.msra.mxu0 %v172
  %2191 = vmatprep.subr.mxu0 %v177
  %2192 = vmatpush1.msra.mxu0 %v176
  %2193 = vmatprep.subr.mxu0 %v181
  %2194 = vmatpush1.msra.mxu0 %v180
  %2195 = vmatprep.subr.mxu0 %v185
  %2196 = vmatpush1.msra.mxu0 %v184
  %2197 = vmatprep.subr.mxu0 0.0
  %2198 = vmatpush1.msra.mxu0 0.0
  %2199 = vmatprep.subr.mxu0 0.0
  %2200 = vmatpush1.msra.mxu0 0.0
  %2201 = vmatprep.subr.mxu0 0.0
  %2202 = vmatpush1.msra.mxu0 0.0
  %2203 = vmatprep.subr.mxu0 0.0
  %2204 = vmatpush1.msra.mxu0 0.0
  %2205 = vmatprep.subr.mxu0 0.0
  %2206 = vmatpush1.msra.mxu0 0.0
  %2207 = vmatprep.subr.mxu0 0.0
  %2208 = vmatpush1.msra.mxu0 0.0
  %2209 = vmatprep.subr.mxu0 0.0
  %2210 = vmatpush1.msra.mxu0 0.0
  %2211 = vmatprep.subr.mxu0 0.0
  %2212 = vmatpush1.msra.mxu0 0.0
  %2213 = vmatprep.subr.mxu0 0.0
  %2214 = vmatpush1.msra.mxu0 0.0
  %2215 = vmatprep.subr.mxu0 0.0
  %2216 = vmatpush1.msra.mxu0 0.0
  %2217 = vmatprep.subr.mxu0 0.0
  %2218 = vmatpush1.msra.mxu0 0.0
  %2219 = vmatprep.subr.mxu0 0.0
  %2220 = vmatpush1.msra.mxu0 0.0
  %2221 = vmatprep.subr.mxu0 0.0
  %2222 = vmatpush1.msra.mxu0 0.0
  %2223 = vmatprep.subr.mxu0 0.0
  %2224 = vmatpush1.msra.mxu0 0.0
  %2225 = vmatprep.subr.mxu0 0.0
  %2226 = vmatpush1.msra.mxu0 0.0
  %2227 = vmatprep.subr.mxu0 0.0
  %2228 = vmatpush1.msra.mxu0 0.0
  %2229 = vmatprep.mubr.f32.mxu0 0.0
  %2230 = vmatmul.mubr.f32.gmra.mrb[0].mxu0 %v2164
  %v2231 = vpop.f32.mrb[0].mxu0
  %v2232 = vadd.f32 0.0, %v2231
  %v2233 = vpop.f32.mrb[0].mxu0
  %v2234 = vadd.f32 0.0, %v2233
  %2235 = vdwg.mxu0
  %2236 = vmatprep.subr.mxu0 %v127
  %2237 = vmatpush1.msra.mxu0 %v126
  %2238 = vmatprep.subr.mxu0 %v131
  %2239 = vmatpush1.msra.mxu0 %v130
  %2240 = vmatprep.subr.mxu0 %v135
  %2241 = vmatpush1.msra.mxu0 %v134
  %2242 = vmatprep.subr.mxu0 %v139
  %2243 = vmatpush1.msra.mxu0 %v138
  %2244 = vmatprep.subr.mxu0 %v143
  %2245 = vmatpush1.msra.mxu0 %v142
  %2246 = vmatprep.subr.mxu0 %v147
  %2247 = vmatpush1.msra.mxu0 %v146
  %2248 = vmatprep.subr.mxu0 %v151
  %2249 = vmatpush1.msra.mxu0 %v150
  %2250 = vmatprep.subr.mxu0 %v155
  %2251 = vmatpush1.msra.mxu0 %v154
  %2252 = vmatprep.subr.mxu0 %v159
  %2253 = vmatpush1.msra.mxu0 %v158
  %2254 = vmatprep.subr.mxu0 %v163
  %2255 = vmatpush1.msra.mxu0 %v162
  %2256 = vmatprep.subr.mxu0 %v167
  %2257 = vmatpush1.msra.mxu0 %v166
  %2258 = vmatprep.subr.mxu0 %v171
  %2259 = vmatpush1.msra.mxu0 %v170
  %2260 = vmatprep.subr.mxu0 %v175
  %2261 = vmatpush1.msra.mxu0 %v174
  %2262 = vmatprep.subr.mxu0 %v179
  %2263 = vmatpush1.msra.mxu0 %v178
  %2264 = vmatprep.subr.mxu0 %v183
  %2265 = vmatpush1.msra.mxu0 %v182
  %2266 = vmatprep.subr.mxu0 %v187
  %2267 = vmatpush1.msra.mxu0 %v186
  %2268 = vmatprep.subr.mxu0 0.0
  %2269 = vmatpush1.msra.mxu0 0.0
  %2270 = vmatprep.subr.mxu0 0.0
  %2271 = vmatpush1.msra.mxu0 0.0
  %2272 = vmatprep.subr.mxu0 0.0
  %2273 = vmatpush1.msra.mxu0 0.0
  %2274 = vmatprep.subr.mxu0 0.0
  %2275 = vmatpush1.msra.mxu0 0.0
  %2276 = vmatprep.subr.mxu0 0.0
  %2277 = vmatpush1.msra.mxu0 0.0
  %2278 = vmatprep.subr.mxu0 0.0
  %2279 = vmatpush1.msra.mxu0 0.0
  %2280 = vmatprep.subr.mxu0 0.0
  %2281 = vmatpush1.msra.mxu0 0.0
  %2282 = vmatprep.subr.mxu0 0.0
  %2283 = vmatpush1.msra.mxu0 0.0
  %2284 = vmatprep.subr.mxu0 0.0
  %2285 = vmatpush1.msra.mxu0 0.0
  %2286 = vmatprep.subr.mxu0 0.0
  %2287 = vmatpush1.msra.mxu0 0.0
  %2288 = vmatprep.subr.mxu0 0.0
  %2289 = vmatpush1.msra.mxu0 0.0
  %2290 = vmatprep.subr.mxu0 0.0
  %2291 = vmatpush1.msra.mxu0 0.0
  %2292 = vmatprep.subr.mxu0 0.0
  %2293 = vmatpush1.msra.mxu0 0.0
  %2294 = vmatprep.subr.mxu0 0.0
  %2295 = vmatpush1.msra.mxu0 0.0
  %2296 = vmatprep.subr.mxu0 0.0
  %2297 = vmatpush1.msra.mxu0 0.0
  %2298 = vmatprep.subr.mxu0 0.0
  %2299 = vmatpush1.msra.mxu0 0.0
  %2300 = vmatprep.mubr.f32.mxu0 0.0
  %2301 = vmatmul.mubr.f32.gmra.mrb[0].mxu0 %v2164
  %v2302 = vpop.f32.mrb[0].mxu0
  %v2303 = vadd.f32 0.0, %v2302
  %v2304 = vpop.f32.mrb[0].mxu0
  %v2305 = vadd.f32 0.0, %v2304
  %2306 = vdwg.mxu0
  %v2308 = vrot.slane %v1790, 2
  %v2313 = vcombine.low %v2234, %v2303
  %v2315 = vunpack.c.l.s4 1983009808
  %v2316 = vunpack.c.0.s8 %v2315
  %v2317 = vlaneseq
  %v2318 = vshrl.u32 %v2317, 7
  %v2319 = vsub.s32 %v2316, %v2318
  %v2320 = vrot.slane %v2313, %v2319
  %v2322 = vunpack.c.l.s4 1983009808
  %v2323 = vunpack.c.0.s8 %v2322
  %v2324 = vlaneseq
  %v2325 = vshrl.u32 %v2324, 7
  %v2326 = vsub.s32 %v2323, %v2325
  %v2327 = vrot.slane %v2305, %v2326
  %v2328 = vcombine.low %v2320, %v2327
  %v2330 = vadd.f32 %v2308, %v2328
  %v2333 = vcombine.low %v1930, %v1932
  %v2335 = vunpack.c.l.s4 1983009808
  %v2336 = vunpack.c.0.s8 %v2335
  %v2337 = vlaneseq
  %v2338 = vshrl.u32 %v2337, 7
  %v2339 = vsub.s32 %v2336, %v2338
  %v2340 = vrot.slane %v2333, %v2339
  %v2342 = vadd.f32 %v2330, %v2340
  %v2343 = vmul.f32 %v2342, 0.5
  %v2344 = vtanh.pop %v2343
  %v2345 = vadd.f32 %v2344, 1.0
  %v2346 = vmul.f32 %v2345, 0.5
  %v2347 = vmul.f32 %v2346, %v2001
  %v2349 = vrot.slane %v2330, 4
  %v2351 = vadd.f32 %v2349, %v2347
  %v2352 = vtanh.pop %v2351
  %v2354 = vrot.slane %v2346, 2
  %v2356 = vsub.f32 1.0, %v2354
  %v2357 = vmul.f32 %v2356, %v2352
  %v2358 = vmul.f32 %v2354, %v1628
  %v2359 = vadd.f32 %v2357, %v2358
  %v2360 = vadd.f32 %v2232, %v1861
  %v2361 = vmax.f32 %v2360, 0.0
  %2362 = vmatprep.subr.mxu0 0.0
  %2363 = vmatpush1.msra.mxu0 %v236
  %2364 = vmatprep.subr.mxu0 0.0
  %2365 = vmatpush1.msra.mxu0 %v237
  %2366 = vmatprep.subr.mxu0 0.0
  %2367 = vmatpush1.msra.mxu0 %v238
  %2368 = vmatprep.subr.mxu0 0.0
  %2369 = vmatpush1.msra.mxu0 %v239
  %2370 = vmatprep.subr.mxu0 0.0
  %2371 = vmatpush1.msra.mxu0 %v240
  %2372 = vmatprep.subr.mxu0 0.0
  %2373 = vmatpush1.msra.mxu0 %v241
  %2374 = vmatprep.subr.mxu0 0.0
  %2375 = vmatpush1.msra.mxu0 %v242
  %2376 = vmatprep.subr.mxu0 0.0
  %2377 = vmatpush1.msra.mxu0 %v243
  %2378 = vmatprep.subr.mxu0 0.0
  %2379 = vmatpush1.msra.mxu0 %v244
  %2380 = vmatprep.subr.mxu0 0.0
  %2381 = vmatpush1.msra.mxu0 %v245
  %2382 = vmatprep.subr.mxu0 0.0
  %2383 = vmatpush1.msra.mxu0 %v246
  %2384 = vmatprep.subr.mxu0 0.0
  %2385 = vmatpush1.msra.mxu0 %v247
  %2386 = vmatprep.subr.mxu0 0.0
  %2387 = vmatpush1.msra.mxu0 %v248
  %2388 = vmatprep.subr.mxu0 0.0
  %2389 = vmatpush1.msra.mxu0 %v249
  %2390 = vmatprep.subr.mxu0 0.0
  %2391 = vmatpush1.msra.mxu0 %v250
  %2392 = vmatprep.subr.mxu0 0.0
  %2393 = vmatpush1.msra.mxu0 %v251
  %2394 = vmatprep.subr.mxu0 0.0
  %2395 = vmatpush1.msra.mxu0 0.0
  %2396 = vmatprep.subr.mxu0 0.0
  %2397 = vmatpush1.msra.mxu0 0.0
  %2398 = vmatprep.subr.mxu0 0.0
  %2399 = vmatpush1.msra.mxu0 0.0
  %2400 = vmatprep.subr.mxu0 0.0
  %2401 = vmatpush1.msra.mxu0 0.0
  %2402 = vmatprep.subr.mxu0 0.0
  %2403 = vmatpush1.msra.mxu0 0.0
  %2404 = vmatprep.subr.mxu0 0.0
  %2405 = vmatpush1.msra.mxu0 0.0
  %2406 = vmatprep.subr.mxu0 0.0
  %2407 = vmatpush1.msra.mxu0 0.0
  %2408 = vmatprep.subr.mxu0 0.0
  %2409 = vmatpush1.msra.mxu0 0.0
  %2410 = vmatprep.subr.mxu0 0.0
  %2411 = vmatpush1.msra.mxu0 0.0
  %2412 = vmatprep.subr.mxu0 0.0
  %2413 = vmatpush1.msra.mxu0 0.0
  %2414 = vmatprep.subr.mxu0 0.0
  %2415 = vmatpush1.msra.mxu0 0.0
  %2416 = vmatprep.subr.mxu0 0.0
  %2417 = vmatpush1.msra.mxu0 0.0
  %2418 = vmatprep.subr.mxu0 0.0
  %2419 = vmatpush1.msra.mxu0 0.0
  %2420 = vmatprep.subr.mxu0 0.0
  %2421 = vmatpush1.msra.mxu0 0.0
  %2422 = vmatprep.subr.mxu0 0.0
  %2423 = vmatpush1.msra.mxu0 0.0
  %2424 = vmatprep.subr.mxu0 0.0
  %2425 = vmatpush1.msra.mxu0 0.0
  %2426 = vmatprep.mubr.f32.mxu0 0.0
  %2427 = vmatmul.mubr.f32.gmra.mrb[0].mxu0 %v2361
  %v2428 = vpop.f32.mrb[0].mxu0
  %v2429 = vadd.f32 %v319, %v2428
  %v2430 = vpop.f32.mrb[0].mxu0
  %2431 = vdwg.mxu0
  %v2432 = vmax.f32 %v2429, 0.0
  %2433 = vmatprep.subr.mxu0 0.0
  %2434 = vmatpush1.msra.mxu0 %v252
  %2435 = vmatprep.subr.mxu0 0.0
  %2436 = vmatpush1.msra.mxu0 %v253
  %2437 = vmatprep.subr.mxu0 0.0
  %2438 = vmatpush1.msra.mxu0 %v254
  %2439 = vmatprep.subr.mxu0 0.0
  %2440 = vmatpush1.msra.mxu0 %v255
  %2441 = vmatprep.subr.mxu0 0.0
  %2442 = vmatpush1.msra.mxu0 %v256
  %2443 = vmatprep.subr.mxu0 0.0
  %2444 = vmatpush1.msra.mxu0 %v257
  %2445 = vmatprep.subr.mxu0 0.0
  %2446 = vmatpush1.msra.mxu0 %v258
  %2447 = vmatprep.subr.mxu0 0.0
  %2448 = vmatpush1.msra.mxu0 %v259
  %2449 = vmatprep.subr.mxu0 0.0
  %2450 = vmatpush1.msra.mxu0 %v260
  %2451 = vmatprep.subr.mxu0 0.0
  %2452 = vmatpush1.msra.mxu0 %v261
  %2453 = vmatprep.subr.mxu0 0.0
  %2454 = vmatpush1.msra.mxu0 %v262
  %2455 = vmatprep.subr.mxu0 0.0
  %2456 = vmatpush1.msra.mxu0 %v263
  %2457 = vmatprep.subr.mxu0 0.0
  %2458 = vmatpush1.msra.mxu0 %v264
  %2459 = vmatprep.subr.mxu0 0.0
  %2460 = vmatpush1.msra.mxu0 %v265
  %2461 = vmatprep.subr.mxu0 0.0
  %2462 = vmatpush1.msra.mxu0 %v266
  %2463 = vmatprep.subr.mxu0 0.0
  %2464 = vmatpush1.msra.mxu0 %v267
  %2465 = vmatprep.subr.mxu0 0.0
  %2466 = vmatpush1.msra.mxu0 0.0
  %2467 = vmatprep.subr.mxu0 0.0
  %2468 = vmatpush1.msra.mxu0 0.0
  %2469 = vmatprep.subr.mxu0 0.0
  %2470 = vmatpush1.msra.mxu0 0.0
  %2471 = vmatprep.subr.mxu0 0.0
  %2472 = vmatpush1.msra.mxu0 0.0
  %2473 = vmatprep.subr.mxu0 0.0
  %2474 = vmatpush1.msra.mxu0 0.0
  %2475 = vmatprep.subr.mxu0 0.0
  %2476 = vmatpush1.msra.mxu0 0.0
  %2477 = vmatprep.subr.mxu0 0.0
  %2478 = vmatpush1.msra.mxu0 0.0
  %2479 = vmatprep.subr.mxu0 0.0
  %2480 = vmatpush1.msra.mxu0 0.0
  %2481 = vmatprep.subr.mxu0 0.0
  %2482 = vmatpush1.msra.mxu0 0.0
  %2483 = vmatprep.subr.mxu0 0.0
  %2484 = vmatpush1.msra.mxu0 0.0
  %2485 = vmatprep.subr.mxu0 0.0
  %2486 = vmatpush1.msra.mxu0 0.0
  %2487 = vmatprep.subr.mxu0 0.0
  %2488 = vmatpush1.msra.mxu0 0.0
  %2489 = vmatprep.subr.mxu0 0.0
  %2490 = vmatpush1.msra.mxu0 0.0
  %2491 = vmatprep.subr.mxu0 0.0
  %2492 = vmatpush1.msra.mxu0 0.0
  %2493 = vmatprep.subr.mxu0 0.0
  %2494 = vmatpush1.msra.mxu0 0.0
  %2495 = vmatprep.subr.mxu0 0.0
  %2496 = vmatpush1.msra.mxu0 0.0
  %2497 = vmatprep.mubr.f32.mxu0 0.0
  %2498 = vmatmul.mubr.f32.gmra.mrb[0].mxu0 %v2432
  %v2499 = vpop.f32.mrb[0].mxu0
  %v2500 = vadd.f32 %v326, %v2499
  %v2501 = vpop.f32.mrb[0].mxu0
  %2502 = vdwg.mxu0
  %v2503 = vmul.f32 %v2500, 0.5
  %v2504 = vtanh.pop %v2503
  %v2505 = vadd.f32 %v2504, 1.0
  %v2506 = vmul.f32 %v2505, 0.5
  %v2509 = vcombine.low %v2506, %v2359
  %v2511 = vunpack.c.l.s4 1983009808
  %v2512 = vunpack.c.0.s8 %v2511
  %v2513 = vlaneseq
  %v2514 = vshrl.u32 %v2513, 7
  %v2515 = vsub.s32 %v2512, %v2514
  %v2516 = vrot.slane %v2509, %v2515
  %s2518 = scalar_lea.vmem %s13, 8
  %2519 = vst [vmem:[%s2518] sm:$0xf] %v2516
  %s2520 = scalar_lea.vmem %s0, 30
  %v2521 = vld [vmem:[%s2520] sm:$0xff]
  %v2522 = vld [vmem:[%s2520 + $0x8] sm:$0x3]
  %2523 = vmatprep.subr.mxu0 %v45
  %2524 = vmatpush1.msra.mxu0 %v44
  %2525 = vmatprep.subr.mxu0 %v50
  %2526 = vmatpush1.msra.mxu0 %v49
  %2527 = vmatprep.subr.mxu0 %v55
  %2528 = vmatpush1.msra.mxu0 %v54
  %2529 = vmatprep.subr.mxu0 %v60
  %2530 = vmatpush1.msra.mxu0 %v59
  %2531 = vmatprep.subr.mxu0 %v65
  %2532 = vmatpush1.msra.mxu0 %v64
  %2533 = vmatprep.subr.mxu0 %v70
  %2534 = vmatpush1.msra.mxu0 %v69
  %2535 = vmatprep.subr.mxu0 %v75
  %2536 = vmatpush1.msra.mxu0 %v74
  %2537 = vmatprep.subr.mxu0 %v80
  %2538 = vmatpush1.msra.mxu0 %v79
  %2539 = vmatprep.subr.mxu0 %v85
  %2540 = vmatpush1.msra.mxu0 %v84
  %2541 = vmatprep.subr.mxu0 %v90
  %2542 = vmatpush1.msra.mxu0 %v89
  %2543 = vmatprep.subr.mxu0 %v95
  %2544 = vmatpush1.msra.mxu0 %v94
  %2545 = vmatprep.subr.mxu0 %v100
  %2546 = vmatpush1.msra.mxu0 %v99
  %2547 = vmatprep.subr.mxu0 %v105
  %2548 = vmatpush1.msra.mxu0 %v104
  %2549 = vmatprep.subr.mxu0 %v110
  %2550 = vmatpush1.msra.mxu0 %v109
  %2551 = vmatprep.subr.mxu0 %v115
  %2552 = vmatpush1.msra.mxu0 %v114
  %2553 = vmatprep.subr.mxu0 %v120
  %2554 = vmatpush1.msra.mxu0 %v119
  %2555 = vmatprep.subr.mxu0 0.0
  %2556 = vmatpush1.msra.mxu0 0.0
  %2557 = vmatprep.subr.mxu0 0.0
  %2558 = vmatpush1.msra.mxu0 0.0
  %2559 = vmatprep.subr.mxu0 0.0
  %2560 = vmatpush1.msra.mxu0 0.0
  %2561 = vmatprep.subr.mxu0 0.0
  %2562 = vmatpush1.msra.mxu0 0.0
  %2563 = vmatprep.subr.mxu0 0.0
  %2564 = vmatpush1.msra.mxu0 0.0
  %2565 = vmatprep.subr.mxu0 0.0
  %2566 = vmatpush1.msra.mxu0 0.0
  %2567 = vmatprep.subr.mxu0 0.0
  %2568 = vmatpush1.msra.mxu0 0.0
  %2569 = vmatprep.subr.mxu0 0.0
  %2570 = vmatpush1.msra.mxu0 0.0
  %2571 = vmatprep.subr.mxu0 0.0
  %2572 = vmatpush1.msra.mxu0 0.0
  %2573 = vmatprep.subr.mxu0 0.0
  %2574 = vmatpush1.msra.mxu0 0.0
  %2575 = vmatprep.subr.mxu0 0.0
  %2576 = vmatpush1.msra.mxu0 0.0
  %2577 = vmatprep.subr.mxu0 0.0
  %2578 = vmatpush1.msra.mxu0 0.0
  %2579 = vmatprep.subr.mxu0 0.0
  %2580 = vmatpush1.msra.mxu0 0.0
  %2581 = vmatprep.subr.mxu0 0.0
  %2582 = vmatpush1.msra.mxu0 0.0
  %2583 = vmatprep.subr.mxu0 0.0
  %2584 = vmatpush1.msra.mxu0 0.0
  %2585 = vmatprep.subr.mxu0 0.0
  %2586 = vmatpush1.msra.mxu0 0.0
  %2587 = vmatprep.mubr.f32.mxu0 0.0
  %2588 = vmatmul.mubr.f32.gmra.mrb[0].mxu0 %v2359
  %v2589 = vpop.f32.mrb[0].mxu0
  %v2590 = vadd.f32 %v273, %v2589
  %v2591 = vpop.f32.mrb[0].mxu0
  %v2592 = vadd.f32 %v277, %v2591
  %2593 = vdwg.mxu0
  %2594 = vmatprep.subr.mxu0 %v47
  %2595 = vmatpush1.msra.mxu0 %v46
  %2596 = vmatprep.subr.mxu0 %v52
  %2597 = vmatpush1.msra.mxu0 %v51
  %2598 = vmatprep.subr.mxu0 %v57
  %2599 = vmatpush1.msra.mxu0 %v56
  %2600 = vmatprep.subr.mxu0 %v62
  %2601 = vmatpush1.msra.mxu0 %v61
  %2602 = vmatprep.subr.mxu0 %v67
  %2603 = vmatpush1.msra.mxu0 %v66
  %2604 = vmatprep.subr.mxu0 %v72
  %2605 = vmatpush1.msra.mxu0 %v71
  %2606 = vmatprep.subr.mxu0 %v77
  %2607 = vmatpush1.msra.mxu0 %v76
  %2608 = vmatprep.subr.mxu0 %v82
  %2609 = vmatpush1.msra.mxu0 %v81
  %2610 = vmatprep.subr.mxu0 %v87
  %2611 = vmatpush1.msra.mxu0 %v86
  %2612 = vmatprep.subr.mxu0 %v92
  %2613 = vmatpush1.msra.mxu0 %v91
  %2614 = vmatprep.subr.mxu0 %v97
  %2615 = vmatpush1.msra.mxu0 %v96
  %2616 = vmatprep.subr.mxu0 %v102
  %2617 = vmatpush1.msra.mxu0 %v101
  %2618 = vmatprep.subr.mxu0 %v107
  %2619 = vmatpush1.msra.mxu0 %v106
  %2620 = vmatprep.subr.mxu0 %v112
  %2621 = vmatpush1.msra.mxu0 %v111
  %2622 = vmatprep.subr.mxu0 %v117
  %2623 = vmatpush1.msra.mxu0 %v116
  %2624 = vmatprep.subr.mxu0 %v122
  %2625 = vmatpush1.msra.mxu0 %v121
  %2626 = vmatprep.subr.mxu0 0.0
  %2627 = vmatpush1.msra.mxu0 0.0
  %2628 = vmatprep.subr.mxu0 0.0
  %2629 = vmatpush1.msra.mxu0 0.0
  %2630 = vmatprep.subr.mxu0 0.0
  %2631 = vmatpush1.msra.mxu0 0.0
  %2632 = vmatprep.subr.mxu0 0.0
  %2633 = vmatpush1.msra.mxu0 0.0
  %2634 = vmatprep.subr.mxu0 0.0
  %2635 = vmatpush1.msra.mxu0 0.0
  %2636 = vmatprep.subr.mxu0 0.0
  %2637 = vmatpush1.msra.mxu0 0.0
  %2638 = vmatprep.subr.mxu0 0.0
  %2639 = vmatpush1.msra.mxu0 0.0
  %2640 = vmatprep.subr.mxu0 0.0
  %2641 = vmatpush1.msra.mxu0 0.0
  %2642 = vmatprep.subr.mxu0 0.0
  %2643 = vmatpush1.msra.mxu0 0.0
  %2644 = vmatprep.subr.mxu0 0.0
  %2645 = vmatpush1.msra.mxu0 0.0
  %2646 = vmatprep.subr.mxu0 0.0
  %2647 = vmatpush1.msra.mxu0 0.0
  %2648 = vmatprep.subr.mxu0 0.0
  %2649 = vmatpush1.msra.mxu0 0.0
  %2650 = vmatprep.subr.mxu0 0.0
  %2651 = vmatpush1.msra.mxu0 0.0
  %2652 = vmatprep.subr.mxu0 0.0
  %2653 = vmatpush1.msra.mxu0 0.0
  %2654 = vmatprep.subr.mxu0 0.0
  %2655 = vmatpush1.msra.mxu0 0.0
  %2656 = vmatprep.subr.mxu0 0.0
  %2657 = vmatpush1.msra.mxu0 0.0
  %2658 = vmatprep.mubr.f32.mxu0 0.0
  %2659 = vmatmul.mubr.f32.gmra.mrb[0].mxu0 %v2359
  %v2660 = vpop.f32.mrb[0].mxu0
  %v2661 = vadd.f32 %v281, %v2660
  %v2662 = vpop.f32.mrb[0].mxu0
  %v2663 = vadd.f32 %v285, %v2662
  %2664 = vdwg.mxu0
  %2665 = vmatprep.subr.mxu0 0.0
  %2666 = vmatpush1.msra.mxu0 %v48
  %2667 = vmatprep.subr.mxu0 0.0
  %2668 = vmatpush1.msra.mxu0 %v53
  %2669 = vmatprep.subr.mxu0 0.0
  %2670 = vmatpush1.msra.mxu0 %v58
  %2671 = vmatprep.subr.mxu0 0.0
  %2672 = vmatpush1.msra.mxu0 %v63
  %2673 = vmatprep.subr.mxu0 0.0
  %2674 = vmatpush1.msra.mxu0 %v68
  %2675 = vmatprep.subr.mxu0 0.0
  %2676 = vmatpush1.msra.mxu0 %v73
  %2677 = vmatprep.subr.mxu0 0.0
  %2678 = vmatpush1.msra.mxu0 %v78
  %2679 = vmatprep.subr.mxu0 0.0
  %2680 = vmatpush1.msra.mxu0 %v83
  %2681 = vmatprep.subr.mxu0 0.0
  %2682 = vmatpush1.msra.mxu0 %v88
  %2683 = vmatprep.subr.mxu0 0.0
  %2684 = vmatpush1.msra.mxu0 %v93
  %2685 = vmatprep.subr.mxu0 0.0
  %2686 = vmatpush1.msra.mxu0 %v98
  %2687 = vmatprep.subr.mxu0 0.0
  %2688 = vmatpush1.msra.mxu0 %v103
  %2689 = vmatprep.subr.mxu0 0.0
  %2690 = vmatpush1.msra.mxu0 %v108
  %2691 = vmatprep.subr.mxu0 0.0
  %2692 = vmatpush1.msra.mxu0 %v113
  %2693 = vmatprep.subr.mxu0 0.0
  %2694 = vmatpush1.msra.mxu0 %v118
  %2695 = vmatprep.subr.mxu0 0.0
  %2696 = vmatpush1.msra.mxu0 %v123
  %2697 = vmatprep.subr.mxu0 0.0
  %2698 = vmatpush1.msra.mxu0 0.0
  %2699 = vmatprep.subr.mxu0 0.0
  %2700 = vmatpush1.msra.mxu0 0.0
  %2701 = vmatprep.subr.mxu0 0.0
  %2702 = vmatpush1.msra.mxu0 0.0
  %2703 = vmatprep.subr.mxu0 0.0
  %2704 = vmatpush1.msra.mxu0 0.0
  %2705 = vmatprep.subr.mxu0 0.0
  %2706 = vmatpush1.msra.mxu0 0.0
  %2707 = vmatprep.subr.mxu0 0.0
  %2708 = vmatpush1.msra.mxu0 0.0
  %2709 = vmatprep.subr.mxu0 0.0
  %2710 = vmatpush1.msra.mxu0 0.0
  %2711 = vmatprep.subr.mxu0 0.0
  %2712 = vmatpush1.msra.mxu0 0.0
  %2713 = vmatprep.subr.mxu0 0.0
  %2714 = vmatpush1.msra.mxu0 0.0
  %2715 = vmatprep.subr.mxu0 0.0
  %2716 = vmatpush1.msra.mxu0 0.0
  %2717 = vmatprep.subr.mxu0 0.0
  %2718 = vmatpush1.msra.mxu0 0.0
  %2719 = vmatprep.subr.mxu0 0.0
  %2720 = vmatpush1.msra.mxu0 0.0
  %2721 = vmatprep.subr.mxu0 0.0
  %2722 = vmatpush1.msra.mxu0 0.0
  %2723 = vmatprep.subr.mxu0 0.0
  %2724 = vmatpush1.msra.mxu0 0.0
  %2725 = vmatprep.subr.mxu0 0.0
  %2726 = vmatpush1.msra.mxu0 0.0
  %2727 = vmatprep.subr.mxu0 0.0
  %2728 = vmatpush1.msra.mxu0 0.0
  %2729 = vmatprep.mubr.f32.mxu0 0.0
  %2730 = vmatmul.mubr.f32.gmra.mrb[0].mxu0 %v2359
  %v2731 = vpop.f32.mrb[0].mxu0
  %v2732 = vadd.f32 %v289, %v2731
  %v2733 = vpop.f32.mrb[0].mxu0
  %2734 = vdwg.mxu0
  %v2735 = vadd.f32 %v2521, %v2590
  %v2736 = vmax.f32 %v2735, 0.0
  %2737 = vmatprep.subr.mxu0 0.0
  %2738 = vmatpush1.msra.mxu0 %v188
  %2739 = vmatprep.subr.mxu0 0.0
  %2740 = vmatpush1.msra.mxu0 %v189
  %2741 = vmatprep.subr.mxu0 0.0
  %2742 = vmatpush1.msra.mxu0 %v190
  %2743 = vmatprep.subr.mxu0 0.0
  %2744 = vmatpush1.msra.mxu0 %v191
  %2745 = vmatprep.subr.mxu0 0.0
  %2746 = vmatpush1.msra.mxu0 %v192
  %2747 = vmatprep.subr.mxu0 0.0
  %2748 = vmatpush1.msra.mxu0 %v193
  %2749 = vmatprep.subr.mxu0 0.0
  %2750 = vmatpush1.msra.mxu0 %v194
  %2751 = vmatprep.subr.mxu0 0.0
  %2752 = vmatpush1.msra.mxu0 %v195
  %2753 = vmatprep.subr.mxu0 0.0
  %2754 = vmatpush1.msra.mxu0 %v196
  %2755 = vmatprep.subr.mxu0 0.0
  %2756 = vmatpush1.msra.mxu0 %v197
  %2757 = vmatprep.subr.mxu0 0.0
  %2758 = vmatpush1.msra.mxu0 %v198
  %2759 = vmatprep.subr.mxu0 0.0
  %2760 = vmatpush1.msra.mxu0 %v199
  %2761 = vmatprep.subr.mxu0 0.0
  %2762 = vmatpush1.msra.mxu0 %v200
  %2763 = vmatprep.subr.mxu0 0.0
  %2764 = vmatpush1.msra.mxu0 %v201
  %2765 = vmatprep.subr.mxu0 0.0
  %2766 = vmatpush1.msra.mxu0 %v202
  %2767 = vmatprep.subr.mxu0 0.0
  %2768 = vmatpush1.msra.mxu0 %v203
  %2769 = vmatprep.subr.mxu0 0.0
  %2770 = vmatpush1.msra.mxu0 0.0
  %2771 = vmatprep.subr.mxu0 0.0
  %2772 = vmatpush1.msra.mxu0 0.0
  %2773 = vmatprep.subr.mxu0 0.0
  %2774 = vmatpush1.msra.mxu0 0.0
  %2775 = vmatprep.subr.mxu0 0.0
  %2776 = vmatpush1.msra.mxu0 0.0
  %2777 = vmatprep.subr.mxu0 0.0
  %2778 = vmatpush1.msra.mxu0 0.0
  %2779 = vmatprep.subr.mxu0 0.0
  %2780 = vmatpush1.msra.mxu0 0.0
  %2781 = vmatprep.subr.mxu0 0.0
  %2782 = vmatpush1.msra.mxu0 0.0
  %2783 = vmatprep.subr.mxu0 0.0
  %2784 = vmatpush1.msra.mxu0 0.0
  %2785 = vmatprep.subr.mxu0 0.0
  %2786 = vmatpush1.msra.mxu0 0.0
  %2787 = vmatprep.subr.mxu0 0.0
  %2788 = vmatpush1.msra.mxu0 0.0
  %2789 = vmatprep.subr.mxu0 0.0
  %2790 = vmatpush1.msra.mxu0 0.0
  %2791 = vmatprep.subr.mxu0 0.0
  %2792 = vmatpush1.msra.mxu0 0.0
  %2793 = vmatprep.subr.mxu0 0.0
  %2794 = vmatpush1.msra.mxu0 0.0
  %2795 = vmatprep.subr.mxu0 0.0
  %2796 = vmatpush1.msra.mxu0 0.0
  %2797 = vmatprep.subr.mxu0 0.0
  %2798 = vmatpush1.msra.mxu0 0.0
  %2799 = vmatprep.subr.mxu0 0.0
  %2800 = vmatpush1.msra.mxu0 0.0
  %2801 = vmatprep.mubr.f32.mxu0 0.0
  %2802 = vmatmul.mubr.f32.gmra.mrb[0].mxu0 %v2736
  %v2803 = vpop.f32.mrb[0].mxu0
  %v2804 = vadd.f32 %v300, %v2803
  %v2805 = vpop.f32.mrb[0].mxu0
  %2806 = vdwg.mxu0
  %v2807 = vmax.f32 %v2804, 0.0
  %2808 = vmatprep.subr.mxu0 %v205
  %2809 = vmatpush1.msra.mxu0 %v204
  %2810 = vmatprep.subr.mxu0 %v207
  %2811 = vmatpush1.msra.mxu0 %v206
  %2812 = vmatprep.subr.mxu0 %v209
  %2813 = vmatpush1.msra.mxu0 %v208
  %2814 = vmatprep.subr.mxu0 %v211
  %2815 = vmatpush1.msra.mxu0 %v210
  %2816 = vmatprep.subr.mxu0 %v213
  %2817 = vmatpush1.msra.mxu0 %v212
  %2818 = vmatprep.subr.mxu0 %v215
  %2819 = vmatpush1.msra.mxu0 %v214
  %2820 = vmatprep.subr.mxu0 %v217
  %2821 = vmatpush1.msra.mxu0 %v216
  %2822 = vmatprep.subr.mxu0 %v219
  %2823 = vmatpush1.msra.mxu0 %v218
  %2824 = vmatprep.subr.mxu0 %v221
  %2825 = vmatpush1.msra.mxu0 %v220
  %2826 = vmatprep.subr.mxu0 %v223
  %2827 = vmatpush1.msra.mxu0 %v222
  %2828 = vmatprep.subr.mxu0 %v225
  %2829 = vmatpush1.msra.mxu0 %v224
  %2830 = vmatprep.subr.mxu0 %v227
  %2831 = vmatpush1.msra.mxu0 %v226
  %2832 = vmatprep.subr.mxu0 %v229
  %2833 = vmatpush1.msra.mxu0 %v228
  %2834 = vmatprep.subr.mxu0 %v231
  %2835 = vmatpush1.msra.mxu0 %v230
  %2836 = vmatprep.subr.mxu0 %v233
  %2837 = vmatpush1.msra.mxu0 %v232
  %2838 = vmatprep.subr.mxu0 %v235
  %2839 = vmatpush1.msra.mxu0 %v234
  %2840 = vmatprep.subr.mxu0 0.0
  %2841 = vmatpush1.msra.mxu0 0.0
  %2842 = vmatprep.subr.mxu0 0.0
  %2843 = vmatpush1.msra.mxu0 0.0
  %2844 = vmatprep.subr.mxu0 0.0
  %2845 = vmatpush1.msra.mxu0 0.0
  %2846 = vmatprep.subr.mxu0 0.0
  %2847 = vmatpush1.msra.mxu0 0.0
  %2848 = vmatprep.subr.mxu0 0.0
  %2849 = vmatpush1.msra.mxu0 0.0
  %2850 = vmatprep.subr.mxu0 0.0
  %2851 = vmatpush1.msra.mxu0 0.0
  %2852 = vmatprep.subr.mxu0 0.0
  %2853 = vmatpush1.msra.mxu0 0.0
  %2854 = vmatprep.subr.mxu0 0.0
  %2855 = vmatpush1.msra.mxu0 0.0
  %2856 = vmatprep.subr.mxu0 0.0
  %2857 = vmatpush1.msra.mxu0 0.0
  %2858 = vmatprep.subr.mxu0 0.0
  %2859 = vmatpush1.msra.mxu0 0.0
  %2860 = vmatprep.subr.mxu0 0.0
  %2861 = vmatpush1.msra.mxu0 0.0
  %2862 = vmatprep.subr.mxu0 0.0
  %2863 = vmatpush1.msra.mxu0 0.0
  %2864 = vmatprep.subr.mxu0 0.0
  %2865 = vmatpush1.msra.mxu0 0.0
  %2866 = vmatprep.subr.mxu0 0.0
  %2867 = vmatpush1.msra.mxu0 0.0
  %2868 = vmatprep.subr.mxu0 0.0
  %2869 = vmatpush1.msra.mxu0 0.0
  %2870 = vmatprep.subr.mxu0 0.0
  %2871 = vmatpush1.msra.mxu0 0.0
  %2872 = vmatprep.mubr.f32.mxu0 0.0
  %2873 = vmatmul.mubr.f32.gmra.mrb[0].mxu0 %v2807
  %v2874 = vpop.f32.mrb[0].mxu0
  %v2875 = vadd.f32 %v307, %v2874
  %v2876 = vpop.f32.mrb[0].mxu0
  %v2877 = vadd.f32 %v311, %v2876
  %2878 = vdwg.mxu0
  %v2879 = vmax.f32 %v2877, 0.0
  %v2880 = vand.u32 2147483647, %v2877
  %v2881 = vsub.f32 0.0, %v2880
  %v2882 = vmul.f32 %v2881, 1.442695
  %v2883 = vpow.pop %v2882
  %v2884 = vadd.f32 %v2883, 1.0
  %v2885 = vlog2.pop %v2884
  %v2886 = vmul.f32 %v2885, 0.6931472
  %v2887 = vmul.f32 -0.5, %v2883
  %v2888 = vadd.f32 %v2887, 1.0
  %v2889 = vmul.f32 %v2888, %v2883
  %v2890 = vand.u32 2147483647, %v2883
  %vm2891 = vcmp.lt.f32.partialorder %v2890, 0.0004427343
  %v2892 = vsel %vm2891, %v2889, %v2886
  %v2893 = vadd.f32 %v2879, %v2892
  %v2894 = vmul.f32 %v2522, %v2893
  %v2895 = vadd.f32 %v2894, %v2875
  %2896 = vmatprep.subr.mxu0 %v125
  %2897 = vmatpush1.msra.mxu0 %v124
  %2898 = vmatprep.subr.mxu0 %v129
  %2899 = vmatpush1.msra.mxu0 %v128
  %2900 = vmatprep.subr.mxu0 %v133
  %2901 = vmatpush1.msra.mxu0 %v132
  %2902 = vmatprep.subr.mxu0 %v137
  %2903 = vmatpush1.msra.mxu0 %v136
  %2904 = vmatprep.subr.mxu0 %v141
  %2905 = vmatpush1.msra.mxu0 %v140
  %2906 = vmatprep.subr.mxu0 %v145
  %2907 = vmatpush1.msra.mxu0 %v144
  %2908 = vmatprep.subr.mxu0 %v149
  %2909 = vmatpush1.msra.mxu0 %v148
  %2910 = vmatprep.subr.mxu0 %v153
  %2911 = vmatpush1.msra.mxu0 %v152
  %2912 = vmatprep.subr.mxu0 %v157
  %2913 = vmatpush1.msra.mxu0 %v156
  %2914 = vmatprep.subr.mxu0 %v161
  %2915 = vmatpush1.msra.mxu0 %v160
  %2916 = vmatprep.subr.mxu0 %v165
  %2917 = vmatpush1.msra.mxu0 %v164
  %2918 = vmatprep.subr.mxu0 %v169
  %2919 = vmatpush1.msra.mxu0 %v168
  %2920 = vmatprep.subr.mxu0 %v173
  %2921 = vmatpush1.msra.mxu0 %v172
  %2922 = vmatprep.subr.mxu0 %v177
  %2923 = vmatpush1.msra.mxu0 %v176
  %2924 = vmatprep.subr.mxu0 %v181
  %2925 = vmatpush1.msra.mxu0 %v180
  %2926 = vmatprep.subr.mxu0 %v185
  %2927 = vmatpush1.msra.mxu0 %v184
  %2928 = vmatprep.subr.mxu0 0.0
  %2929 = vmatpush1.msra.mxu0 0.0
  %2930 = vmatprep.subr.mxu0 0.0
  %2931 = vmatpush1.msra.mxu0 0.0
  %2932 = vmatprep.subr.mxu0 0.0
  %2933 = vmatpush1.msra.mxu0 0.0
  %2934 = vmatprep.subr.mxu0 0.0
  %2935 = vmatpush1.msra.mxu0 0.0
  %2936 = vmatprep.subr.mxu0 0.0
  %2937 = vmatpush1.msra.mxu0 0.0
  %2938 = vmatprep.subr.mxu0 0.0
  %2939 = vmatpush1.msra.mxu0 0.0
  %2940 = vmatprep.subr.mxu0 0.0
  %2941 = vmatpush1.msra.mxu0 0.0
  %2942 = vmatprep.subr.mxu0 0.0
  %2943 = vmatpush1.msra.mxu0 0.0
  %2944 = vmatprep.subr.mxu0 0.0
  %2945 = vmatpush1.msra.mxu0 0.0
  %2946 = vmatprep.subr.mxu0 0.0
  %2947 = vmatpush1.msra.mxu0 0.0
  %2948 = vmatprep.subr.mxu0 0.0
  %2949 = vmatpush1.msra.mxu0 0.0
  %2950 = vmatprep.subr.mxu0 0.0
  %2951 = vmatpush1.msra.mxu0 0.0
  %2952 = vmatprep.subr.mxu0 0.0
  %2953 = vmatpush1.msra.mxu0 0.0
  %2954 = vmatprep.subr.mxu0 0.0
  %2955 = vmatpush1.msra.mxu0 0.0
  %2956 = vmatprep.subr.mxu0 0.0
  %2957 = vmatpush1.msra.mxu0 0.0
  %2958 = vmatprep.subr.mxu0 0.0
  %2959 = vmatpush1.msra.mxu0 0.0
  %2960 = vmatprep.mubr.f32.mxu0 0.0
  %2961 = vmatmul.mubr.f32.gmra.mrb[0].mxu0 %v2895
  %v2962 = vpop.f32.mrb[0].mxu0
  %v2963 = vadd.f32 0.0, %v2962
  %v2964 = vpop.f32.mrb[0].mxu0
  %v2965 = vadd.f32 0.0, %v2964
  %2966 = vdwg.mxu0
  %2967 = vmatprep.subr.mxu0 %v127
  %2968 = vmatpush1.msra.mxu0 %v126
  %2969 = vmatprep.subr.mxu0 %v131
  %2970 = vmatpush1.msra.mxu0 %v130
  %2971 = vmatprep.subr.mxu0 %v135
  %2972 = vmatpush1.msra.mxu0 %v134
  %2973 = vmatprep.subr.mxu0 %v139
  %2974 = vmatpush1.msra.mxu0 %v138
  %2975 = vmatprep.subr.mxu0 %v143
  %2976 = vmatpush1.msra.mxu0 %v142
  %2977 = vmatprep.subr.mxu0 %v147
  %2978 = vmatpush1.msra.mxu0 %v146
  %2979 = vmatprep.subr.mxu0 %v151
  %2980 = vmatpush1.msra.mxu0 %v150
  %2981 = vmatprep.subr.mxu0 %v155
  %2982 = vmatpush1.msra.mxu0 %v154
  %2983 = vmatprep.subr.mxu0 %v159
  %2984 = vmatpush1.msra.mxu0 %v158
  %2985 = vmatprep.subr.mxu0 %v163
  %2986 = vmatpush1.msra.mxu0 %v162
  %2987 = vmatprep.subr.mxu0 %v167
  %2988 = vmatpush1.msra.mxu0 %v166
  %2989 = vmatprep.subr.mxu0 %v171
  %2990 = vmatpush1.msra.mxu0 %v170
  %2991 = vmatprep.subr.mxu0 %v175
  %2992 = vmatpush1.msra.mxu0 %v174
  %2993 = vmatprep.subr.mxu0 %v179
  %2994 = vmatpush1.msra.mxu0 %v178
  %2995 = vmatprep.subr.mxu0 %v183
  %2996 = vmatpush1.msra.mxu0 %v182
  %2997 = vmatprep.subr.mxu0 %v187
  %2998 = vmatpush1.msra.mxu0 %v186
  %2999 = vmatprep.subr.mxu0 0.0
  %3000 = vmatpush1.msra.mxu0 0.0
  %3001 = vmatprep.subr.mxu0 0.0
  %3002 = vmatpush1.msra.mxu0 0.0
  %3003 = vmatprep.subr.mxu0 0.0
  %3004 = vmatpush1.msra.mxu0 0.0
  %3005 = vmatprep.subr.mxu0 0.0
  %3006 = vmatpush1.msra.mxu0 0.0
  %3007 = vmatprep.subr.mxu0 0.0
  %3008 = vmatpush1.msra.mxu0 0.0
  %3009 = vmatprep.subr.mxu0 0.0
  %3010 = vmatpush1.msra.mxu0 0.0
  %3011 = vmatprep.subr.mxu0 0.0
  %3012 = vmatpush1.msra.mxu0 0.0
  %3013 = vmatprep.subr.mxu0 0.0
  %3014 = vmatpush1.msra.mxu0 0.0
  %3015 = vmatprep.subr.mxu0 0.0
  %3016 = vmatpush1.msra.mxu0 0.0
  %3017 = vmatprep.subr.mxu0 0.0
  %3018 = vmatpush1.msra.mxu0 0.0
  %3019 = vmatprep.subr.mxu0 0.0
  %3020 = vmatpush1.msra.mxu0 0.0
  %3021 = vmatprep.subr.mxu0 0.0
  %3022 = vmatpush1.msra.mxu0 0.0
  %3023 = vmatprep.subr.mxu0 0.0
  %3024 = vmatpush1.msra.mxu0 0.0
  %3025 = vmatprep.subr.mxu0 0.0
  %3026 = vmatpush1.msra.mxu0 0.0
  %3027 = vmatprep.subr.mxu0 0.0
  %3028 = vmatpush1.msra.mxu0 0.0
  %3029 = vmatprep.subr.mxu0 0.0
  %3030 = vmatpush1.msra.mxu0 0.0
  %3031 = vmatprep.mubr.f32.mxu0 0.0
  %3032 = vmatmul.mubr.f32.gmra.mrb[0].mxu0 %v2895
  %v3033 = vpop.f32.mrb[0].mxu0
  %v3034 = vadd.f32 0.0, %v3033
  %v3035 = vpop.f32.mrb[0].mxu0
  %v3036 = vadd.f32 0.0, %v3035
  %3037 = vdwg.mxu0
  %v3039 = vrot.slane %v2521, 2
  %v3044 = vcombine.low %v2965, %v3034
  %v3046 = vunpack.c.l.s4 1983009808
  %v3047 = vunpack.c.0.s8 %v3046
  %v3048 = vlaneseq
  %v3049 = vshrl.u32 %v3048, 7
  %v3050 = vsub.s32 %v3047, %v3049
  %v3051 = vrot.slane %v3044, %v3050
  %v3053 = vunpack.c.l.s4 1983009808
  %v3054 = vunpack.c.0.s8 %v3053
  %v3055 = vlaneseq
  %v3056 = vshrl.u32 %v3055, 7
  %v3057 = vsub.s32 %v3054, %v3056
  %v3058 = vrot.slane %v3036, %v3057
  %v3059 = vcombine.low %v3051, %v3058
  %v3061 = vadd.f32 %v3039, %v3059
  %v3064 = vcombine.low %v2661, %v2663
  %v3066 = vunpack.c.l.s4 1983009808
  %v3067 = vunpack.c.0.s8 %v3066
  %v3068 = vlaneseq
  %v3069 = vshrl.u32 %v3068, 7
  %v3070 = vsub.s32 %v3067, %v3069
  %v3071 = vrot.slane %v3064, %v3070
  %v3073 = vadd.f32 %v3061, %v3071
  %v3074 = vmul.f32 %v3073, 0.5
  %v3075 = vtanh.pop %v3074
  %v3076 = vadd.f32 %v3075, 1.0
  %v3077 = vmul.f32 %v3076, 0.5
  %v3078 = vmul.f32 %v3077, %v2732
  %v3080 = vrot.slane %v3061, 4
  %v3082 = vadd.f32 %v3080, %v3078
  %v3083 = vtanh.pop %v3082
  %v3085 = vrot.slane %v3077, 2
  %v3087 = vsub.f32 1.0, %v3085
  %v3088 = vmul.f32 %v3087, %v3083
  %v3089 = vmul.f32 %v3085, %v2359
  %v3090 = vadd.f32 %v3088, %v3089
  %v3091 = vadd.f32 %v2963, %v2592
  %v3092 = vmax.f32 %v3091, 0.0
  %3093 = vmatprep.subr.mxu0 0.0
  %3094 = vmatpush1.msra.mxu0 %v236
  %3095 = vmatprep.subr.mxu0 0.0
  %3096 = vmatpush1.msra.mxu0 %v237
  %3097 = vmatprep.subr.mxu0 0.0
  %3098 = vmatpush1.msra.mxu0 %v238
  %3099 = vmatprep.subr.mxu0 0.0
  %3100 = vmatpush1.msra.mxu0 %v239
  %3101 = vmatprep.subr.mxu0 0.0
  %3102 = vmatpush1.msra.mxu0 %v240
  %3103 = vmatprep.subr.mxu0 0.0
  %3104 = vmatpush1.msra.mxu0 %v241
  %3105 = vmatprep.subr.mxu0 0.0
  %3106 = vmatpush1.msra.mxu0 %v242
  %3107 = vmatprep.subr.mxu0 0.0
  %3108 = vmatpush1.msra.mxu0 %v243
  %3109 = vmatprep.subr.mxu0 0.0
  %3110 = vmatpush1.msra.mxu0 %v244
  %3111 = vmatprep.subr.mxu0 0.0
  %3112 = vmatpush1.msra.mxu0 %v245
  %3113 = vmatprep.subr.mxu0 0.0
  %3114 = vmatpush1.msra.mxu0 %v246
  %3115 = vmatprep.subr.mxu0 0.0
  %3116 = vmatpush1.msra.mxu0 %v247
  %3117 = vmatprep.subr.mxu0 0.0
  %3118 = vmatpush1.msra.mxu0 %v248
  %3119 = vmatprep.subr.mxu0 0.0
  %3120 = vmatpush1.msra.mxu0 %v249
  %3121 = vmatprep.subr.mxu0 0.0
  %3122 = vmatpush1.msra.mxu0 %v250
  %3123 = vmatprep.subr.mxu0 0.0
  %3124 = vmatpush1.msra.mxu0 %v251
  %3125 = vmatprep.subr.mxu0 0.0
  %3126 = vmatpush1.msra.mxu0 0.0
  %3127 = vmatprep.subr.mxu0 0.0
  %3128 = vmatpush1.msra.mxu0 0.0
  %3129 = vmatprep.subr.mxu0 0.0
  %3130 = vmatpush1.msra.mxu0 0.0
  %3131 = vmatprep.subr.mxu0 0.0
  %3132 = vmatpush1.msra.mxu0 0.0
  %3133 = vmatprep.subr.mxu0 0.0
  %3134 = vmatpush1.msra.mxu0 0.0
  %3135 = vmatprep.subr.mxu0 0.0
  %3136 = vmatpush1.msra.mxu0 0.0
  %3137 = vmatprep.subr.mxu0 0.0
  %3138 = vmatpush1.msra.mxu0 0.0
  %3139 = vmatprep.subr.mxu0 0.0
  %3140 = vmatpush1.msra.mxu0 0.0
  %3141 = vmatprep.subr.mxu0 0.0
  %3142 = vmatpush1.msra.mxu0 0.0
  %3143 = vmatprep.subr.mxu0 0.0
  %3144 = vmatpush1.msra.mxu0 0.0
  %3145 = vmatprep.subr.mxu0 0.0
  %3146 = vmatpush1.msra.mxu0 0.0
  %3147 = vmatprep.subr.mxu0 0.0
  %3148 = vmatpush1.msra.mxu0 0.0
  %3149 = vmatprep.subr.mxu0 0.0
  %3150 = vmatpush1.msra.mxu0 0.0
  %3151 = vmatprep.subr.mxu0 0.0
  %3152 = vmatpush1.msra.mxu0 0.0
  %3153 = vmatprep.subr.mxu0 0.0
  %3154 = vmatpush1.msra.mxu0 0.0
  %3155 = vmatprep.subr.mxu0 0.0
  %3156 = vmatpush1.msra.mxu0 0.0
  %3157 = vmatprep.mubr.f32.mxu0 0.0
  %3158 = vmatmul.mubr.f32.gmra.mrb[0].mxu0 %v3092
  %v3159 = vpop.f32.mrb[0].mxu0
  %v3160 = vadd.f32 %v319, %v3159
  %v3161 = vpop.f32.mrb[0].mxu0
  %3162 = vdwg.mxu0
  %v3163 = vmax.f32 %v3160, 0.0
  %3164 = vmatprep.subr.mxu0 0.0
  %3165 = vmatpush1.msra.mxu0 %v252
  %3166 = vmatprep.subr.mxu0 0.0
  %3167 = vmatpush1.msra.mxu0 %v253
  %3168 = vmatprep.subr.mxu0 0.0
  %3169 = vmatpush1.msra.mxu0 %v254
  %3170 = vmatprep.subr.mxu0 0.0
  %3171 = vmatpush1.msra.mxu0 %v255
  %3172 = vmatprep.subr.mxu0 0.0
  %3173 = vmatpush1.msra.mxu0 %v256
  %3174 = vmatprep.subr.mxu0 0.0
  %3175 = vmatpush1.msra.mxu0 %v257
  %3176 = vmatprep.subr.mxu0 0.0
  %3177 = vmatpush1.msra.mxu0 %v258
  %3178 = vmatprep.subr.mxu0 0.0
  %3179 = vmatpush1.msra.mxu0 %v259
  %3180 = vmatprep.subr.mxu0 0.0
  %3181 = vmatpush1.msra.mxu0 %v260
  %3182 = vmatprep.subr.mxu0 0.0
  %3183 = vmatpush1.msra.mxu0 %v261
  %3184 = vmatprep.subr.mxu0 0.0
  %3185 = vmatpush1.msra.mxu0 %v262
  %3186 = vmatprep.subr.mxu0 0.0
  %3187 = vmatpush1.msra.mxu0 %v263
  %3188 = vmatprep.subr.mxu0 0.0
  %3189 = vmatpush1.msra.mxu0 %v264
  %3190 = vmatprep.subr.mxu0 0.0
  %3191 = vmatpush1.msra.mxu0 %v265
  %3192 = vmatprep.subr.mxu0 0.0
  %3193 = vmatpush1.msra.mxu0 %v266
  %3194 = vmatprep.subr.mxu0 0.0
  %3195 = vmatpush1.msra.mxu0 %v267
  %3196 = vmatprep.subr.mxu0 0.0
  %3197 = vmatpush1.msra.mxu0 0.0
  %3198 = vmatprep.subr.mxu0 0.0
  %3199 = vmatpush1.msra.mxu0 0.0
  %3200 = vmatprep.subr.mxu0 0.0
  %3201 = vmatpush1.msra.mxu0 0.0
  %3202 = vmatprep.subr.mxu0 0.0
  %3203 = vmatpush1.msra.mxu0 0.0
  %3204 = vmatprep.subr.mxu0 0.0
  %3205 = vmatpush1.msra.mxu0 0.0
  %3206 = vmatprep.subr.mxu0 0.0
  %3207 = vmatpush1.msra.mxu0 0.0
  %3208 = vmatprep.subr.mxu0 0.0
  %3209 = vmatpush1.msra.mxu0 0.0
  %3210 = vmatprep.subr.mxu0 0.0
  %3211 = vmatpush1.msra.mxu0 0.0
  %3212 = vmatprep.subr.mxu0 0.0
  %3213 = vmatpush1.msra.mxu0 0.0
  %3214 = vmatprep.subr.mxu0 0.0
  %3215 = vmatpush1.msra.mxu0 0.0
  %3216 = vmatprep.subr.mxu0 0.0
  %3217 = vmatpush1.msra.mxu0 0.0
  %3218 = vmatprep.subr.mxu0 0.0
  %3219 = vmatpush1.msra.mxu0 0.0
  %3220 = vmatprep.subr.mxu0 0.0
  %3221 = vmatpush1.msra.mxu0 0.0
  %3222 = vmatprep.subr.mxu0 0.0
  %3223 = vmatpush1.msra.mxu0 0.0
  %3224 = vmatprep.subr.mxu0 0.0
  %3225 = vmatpush1.msra.mxu0 0.0
  %3226 = vmatprep.subr.mxu0 0.0
  %3227 = vmatpush1.msra.mxu0 0.0
  %3228 = vmatprep.mubr.f32.mxu0 0.0
  %3229 = vmatmul.mubr.f32.gmra.mrb[0].mxu0 %v3163
  %v3230 = vpop.f32.mrb[0].mxu0
  %v3231 = vadd.f32 %v326, %v3230
  %v3232 = vpop.f32.mrb[0].mxu0
  %3233 = vdwg.mxu0
  %v3234 = vmul.f32 %v3231, 0.5
  %v3235 = vtanh.pop %v3234
  %v3236 = vadd.f32 %v3235, 1.0
  %v3237 = vmul.f32 %v3236, 0.5
  %v3240 = vcombine.low %v3237, %v3090
  %v3242 = vunpack.c.l.s4 1983009808
  %v3243 = vunpack.c.0.s8 %v3242
  %v3244 = vlaneseq
  %v3245 = vshrl.u32 %v3244, 7
  %v3246 = vsub.s32 %v3243, %v3245
  %v3247 = vrot.slane %v3240, %v3246
  %s3249 = scalar_lea.vmem %s13, 12
  %3250 = vst [vmem:[%s3249] sm:$0xf] %v3247
  %s3251 = scalar_lea.vmem %s0, 40
  %v3252 = vld [vmem:[%s3251] sm:$0xff]
  %v3253 = vld [vmem:[%s3251 + $0x8] sm:$0x3]
  %3254 = vmatprep.subr.mxu0 %v45
  %3255 = vmatpush1.msra.mxu0 %v44
  %3256 = vmatprep.subr.mxu0 %v50
  %3257 = vmatpush1.msra.mxu0 %v49
  %3258 = vmatprep.subr.mxu0 %v55
  %3259 = vmatpush1.msra.mxu0 %v54
  %3260 = vmatprep.subr.mxu0 %v60
  %3261 = vmatpush1.msra.mxu0 %v59
  %3262 = vmatprep.subr.mxu0 %v65
  %3263 = vmatpush1.msra.mxu0 %v64
  %3264 = vmatprep.subr.mxu0 %v70
  %3265 = vmatpush1.msra.mxu0 %v69
  %3266 = vmatprep.subr.mxu0 %v75
  %3267 = vmatpush1.msra.mxu0 %v74
  %3268 = vmatprep.subr.mxu0 %v80
  %3269 = vmatpush1.msra.mxu0 %v79
  %3270 = vmatprep.subr.mxu0 %v85
  %3271 = vmatpush1.msra.mxu0 %v84
  %3272 = vmatprep.subr.mxu0 %v90
  %3273 = vmatpush1.msra.mxu0 %v89
  %3274 = vmatprep.subr.mxu0 %v95
  %3275 = vmatpush1.msra.mxu0 %v94
  %3276 = vmatprep.subr.mxu0 %v100
  %3277 = vmatpush1.msra.mxu0 %v99
  %3278 = vmatprep.subr.mxu0 %v105
  %3279 = vmatpush1.msra.mxu0 %v104
  %3280 = vmatprep.subr.mxu0 %v110
  %3281 = vmatpush1.msra.mxu0 %v109
  %3282 = vmatprep.subr.mxu0 %v115
  %3283 = vmatpush1.msra.mxu0 %v114
  %3284 = vmatprep.subr.mxu0 %v120
  %3285 = vmatpush1.msra.mxu0 %v119
  %3286 = vmatprep.subr.mxu0 0.0
  %3287 = vmatpush1.msra.mxu0 0.0
  %3288 = vmatprep.subr.mxu0 0.0
  %3289 = vmatpush1.msra.mxu0 0.0
  %3290 = vmatprep.subr.mxu0 0.0
  %3291 = vmatpush1.msra.mxu0 0.0
  %3292 = vmatprep.subr.mxu0 0.0
  %3293 = vmatpush1.msra.mxu0 0.0
  %3294 = vmatprep.subr.mxu0 0.0
  %3295 = vmatpush1.msra.mxu0 0.0
  %3296 = vmatprep.subr.mxu0 0.0
  %3297 = vmatpush1.msra.mxu0 0.0
  %3298 = vmatprep.subr.mxu0 0.0
  %3299 = vmatpush1.msra.mxu0 0.0
  %3300 = vmatprep.subr.mxu0 0.0
  %3301 = vmatpush1.msra.mxu0 0.0
  %3302 = vmatprep.subr.mxu0 0.0
  %3303 = vmatpush1.msra.mxu0 0.0
  %3304 = vmatprep.subr.mxu0 0.0
  %3305 = vmatpush1.msra.mxu0 0.0
  %3306 = vmatprep.subr.mxu0 0.0
  %3307 = vmatpush1.msra.mxu0 0.0
  %3308 = vmatprep.subr.mxu0 0.0
  %3309 = vmatpush1.msra.mxu0 0.0
  %3310 = vmatprep.subr.mxu0 0.0
  %3311 = vmatpush1.msra.mxu0 0.0
  %3312 = vmatprep.subr.mxu0 0.0
  %3313 = vmatpush1.msra.mxu0 0.0
  %3314 = vmatprep.subr.mxu0 0.0
  %3315 = vmatpush1.msra.mxu0 0.0
  %3316 = vmatprep.subr.mxu0 0.0
  %3317 = vmatpush1.msra.mxu0 0.0
  %3318 = vmatprep.mubr.f32.mxu0 0.0
  %3319 = vmatmul.mubr.f32.gmra.mrb[0].mxu0 %v3090
  %v3320 = vpop.f32.mrb[0].mxu0
  %v3321 = vadd.f32 %v273, %v3320
  %v3322 = vpop.f32.mrb[0].mxu0
  %v3323 = vadd.f32 %v277, %v3322
  %3324 = vdwg.mxu0
  %3325 = vmatprep.subr.mxu0 %v47
  %3326 = vmatpush1.msra.mxu0 %v46
  %3327 = vmatprep.subr.mxu0 %v52
  %3328 = vmatpush1.msra.mxu0 %v51
  %3329 = vmatprep.subr.mxu0 %v57
  %3330 = vmatpush1.msra.mxu0 %v56
  %3331 = vmatprep.subr.mxu0 %v62
  %3332 = vmatpush1.msra.mxu0 %v61
  %3333 = vmatprep.subr.mxu0 %v67
  %3334 = vmatpush1.msra.mxu0 %v66
  %3335 = vmatprep.subr.mxu0 %v72
  %3336 = vmatpush1.msra.mxu0 %v71
  %3337 = vmatprep.subr.mxu0 %v77
  %3338 = vmatpush1.msra.mxu0 %v76
  %3339 = vmatprep.subr.mxu0 %v82
  %3340 = vmatpush1.msra.mxu0 %v81
  %3341 = vmatprep.subr.mxu0 %v87
  %3342 = vmatpush1.msra.mxu0 %v86
  %3343 = vmatprep.subr.mxu0 %v92
  %3344 = vmatpush1.msra.mxu0 %v91
  %3345 = vmatprep.subr.mxu0 %v97
  %3346 = vmatpush1.msra.mxu0 %v96
  %3347 = vmatprep.subr.mxu0 %v102
  %3348 = vmatpush1.msra.mxu0 %v101
  %3349 = vmatprep.subr.mxu0 %v107
  %3350 = vmatpush1.msra.mxu0 %v106
  %3351 = vmatprep.subr.mxu0 %v112
  %3352 = vmatpush1.msra.mxu0 %v111
  %3353 = vmatprep.subr.mxu0 %v117
  %3354 = vmatpush1.msra.mxu0 %v116
  %3355 = vmatprep.subr.mxu0 %v122
  %3356 = vmatpush1.msra.mxu0 %v121
  %3357 = vmatprep.subr.mxu0 0.0
  %3358 = vmatpush1.msra.mxu0 0.0
  %3359 = vmatprep.subr.mxu0 0.0
  %3360 = vmatpush1.msra.mxu0 0.0
  %3361 = vmatprep.subr.mxu0 0.0
  %3362 = vmatpush1.msra.mxu0 0.0
  %3363 = vmatprep.subr.mxu0 0.0
  %3364 = vmatpush1.msra.mxu0 0.0
  %3365 = vmatprep.subr.mxu0 0.0
  %3366 = vmatpush1.msra.mxu0 0.0
  %3367 = vmatprep.subr.mxu0 0.0
  %3368 = vmatpush1.msra.mxu0 0.0
  %3369 = vmatprep.subr.mxu0 0.0
  %3370 = vmatpush1.msra.mxu0 0.0
  %3371 = vmatprep.subr.mxu0 0.0
  %3372 = vmatpush1.msra.mxu0 0.0
  %3373 = vmatprep.subr.mxu0 0.0
  %3374 = vmatpush1.msra.mxu0 0.0
  %3375 = vmatprep.subr.mxu0 0.0
  %3376 = vmatpush1.msra.mxu0 0.0
  %3377 = vmatprep.subr.mxu0 0.0
  %3378 = vmatpush1.msra.mxu0 0.0
  %3379 = vmatprep.subr.mxu0 0.0
  %3380 = vmatpush1.msra.mxu0 0.0
  %3381 = vmatprep.subr.mxu0 0.0
  %3382 = vmatpush1.msra.mxu0 0.0
  %3383 = vmatprep.subr.mxu0 0.0
  %3384 = vmatpush1.msra.mxu0 0.0
  %3385 = vmatprep.subr.mxu0 0.0
  %3386 = vmatpush1.msra.mxu0 0.0
  %3387 = vmatprep.subr.mxu0 0.0
  %3388 = vmatpush1.msra.mxu0 0.0
  %3389 = vmatprep.mubr.f32.mxu0 0.0
  %3390 = vmatmul.mubr.f32.gmra.mrb[0].mxu0 %v3090
  %v3391 = vpop.f32.mrb[0].mxu0
  %v3392 = vadd.f32 %v281, %v3391
  %v3393 = vpop.f32.mrb[0].mxu0
  %v3394 = vadd.f32 %v285, %v3393
  %3395 = vdwg.mxu0
  %3396 = vmatprep.subr.mxu0 0.0
  %3397 = vmatpush1.msra.mxu0 %v48
  %3398 = vmatprep.subr.mxu0 0.0
  %3399 = vmatpush1.msra.mxu0 %v53
  %3400 = vmatprep.subr.mxu0 0.0
  %3401 = vmatpush1.msra.mxu0 %v58
  %3402 = vmatprep.subr.mxu0 0.0
  %3403 = vmatpush1.msra.mxu0 %v63
  %3404 = vmatprep.subr.mxu0 0.0
  %3405 = vmatpush1.msra.mxu0 %v68
  %3406 = vmatprep.subr.mxu0 0.0
  %3407 = vmatpush1.msra.mxu0 %v73
  %3408 = vmatprep.subr.mxu0 0.0
  %3409 = vmatpush1.msra.mxu0 %v78
  %3410 = vmatprep.subr.mxu0 0.0
  %3411 = vmatpush1.msra.mxu0 %v83
  %3412 = vmatprep.subr.mxu0 0.0
  %3413 = vmatpush1.msra.mxu0 %v88
  %3414 = vmatprep.subr.mxu0 0.0
  %3415 = vmatpush1.msra.mxu0 %v93
  %3416 = vmatprep.subr.mxu0 0.0
  %3417 = vmatpush1.msra.mxu0 %v98
  %3418 = vmatprep.subr.mxu0 0.0
  %3419 = vmatpush1.msra.mxu0 %v103
  %3420 = vmatprep.subr.mxu0 0.0
  %3421 = vmatpush1.msra.mxu0 %v108
  %3422 = vmatprep.subr.mxu0 0.0
  %3423 = vmatpush1.msra.mxu0 %v113
  %3424 = vmatprep.subr.mxu0 0.0
  %3425 = vmatpush1.msra.mxu0 %v118
  %3426 = vmatprep.subr.mxu0 0.0
  %3427 = vmatpush1.msra.mxu0 %v123
  %3428 = vmatprep.subr.mxu0 0.0
  %3429 = vmatpush1.msra.mxu0 0.0
  %3430 = vmatprep.subr.mxu0 0.0
  %3431 = vmatpush1.msra.mxu0 0.0
  %3432 = vmatprep.subr.mxu0 0.0
  %3433 = vmatpush1.msra.mxu0 0.0
  %3434 = vmatprep.subr.mxu0 0.0
  %3435 = vmatpush1.msra.mxu0 0.0
  %3436 = vmatprep.subr.mxu0 0.0
  %3437 = vmatpush1.msra.mxu0 0.0
  %3438 = vmatprep.subr.mxu0 0.0
  %3439 = vmatpush1.msra.mxu0 0.0
  %3440 = vmatprep.subr.mxu0 0.0
  %3441 = vmatpush1.msra.mxu0 0.0
  %3442 = vmatprep.subr.mxu0 0.0
  %3443 = vmatpush1.msra.mxu0 0.0
  %3444 = vmatprep.subr.mxu0 0.0
  %3445 = vmatpush1.msra.mxu0 0.0
  %3446 = vmatprep.subr.mxu0 0.0
  %3447 = vmatpush1.msra.mxu0 0.0
  %3448 = vmatprep.subr.mxu0 0.0
  %3449 = vmatpush1.msra.mxu0 0.0
  %3450 = vmatprep.subr.mxu0 0.0
  %3451 = vmatpush1.msra.mxu0 0.0
  %3452 = vmatprep.subr.mxu0 0.0
  %3453 = vmatpush1.msra.mxu0 0.0
  %3454 = vmatprep.subr.mxu0 0.0
  %3455 = vmatpush1.msra.mxu0 0.0
  %3456 = vmatprep.subr.mxu0 0.0
  %3457 = vmatpush1.msra.mxu0 0.0
  %3458 = vmatprep.subr.mxu0 0.0
  %3459 = vmatpush1.msra.mxu0 0.0
  %3460 = vmatprep.mubr.f32.mxu0 0.0
  %3461 = vmatmul.mubr.f32.gmra.mrb[0].mxu0 %v3090
  %v3462 = vpop.f32.mrb[0].mxu0
  %v3463 = vadd.f32 %v289, %v3462
  %v3464 = vpop.f32.mrb[0].mxu0
  %3465 = vdwg.mxu0
  %v3466 = vadd.f32 %v3252, %v3321
  %v3467 = vmax.f32 %v3466, 0.0
  %3468 = vmatprep.subr.mxu0 0.0
  %3469 = vmatpush1.msra.mxu0 %v188
  %3470 = vmatprep.subr.mxu0 0.0
  %3471 = vmatpush1.msra.mxu0 %v189
  %3472 = vmatprep.subr.mxu0 0.0
  %3473 = vmatpush1.msra.mxu0 %v190
  %3474 = vmatprep.subr.mxu0 0.0
  %3475 = vmatpush1.msra.mxu0 %v191
  %3476 = vmatprep.subr.mxu0 0.0
  %3477 = vmatpush1.msra.mxu0 %v192
  %3478 = vmatprep.subr.mxu0 0.0
  %3479 = vmatpush1.msra.mxu0 %v193
  %3480 = vmatprep.subr.mxu0 0.0
  %3481 = vmatpush1.msra.mxu0 %v194
  %3482 = vmatprep.subr.mxu0 0.0
  %3483 = vmatpush1.msra.mxu0 %v195
  %3484 = vmatprep.subr.mxu0 0.0
  %3485 = vmatpush1.msra.mxu0 %v196
  %3486 = vmatprep.subr.mxu0 0.0
  %3487 = vmatpush1.msra.mxu0 %v197
  %3488 = vmatprep.subr.mxu0 0.0
  %3489 = vmatpush1.msra.mxu0 %v198
  %3490 = vmatprep.subr.mxu0 0.0
  %3491 = vmatpush1.msra.mxu0 %v199
  %3492 = vmatprep.subr.mxu0 0.0
  %3493 = vmatpush1.msra.mxu0 %v200
  %3494 = vmatprep.subr.mxu0 0.0
  %3495 = vmatpush1.msra.mxu0 %v201
  %3496 = vmatprep.subr.mxu0 0.0
  %3497 = vmatpush1.msra.mxu0 %v202
  %3498 = vmatprep.subr.mxu0 0.0
  %3499 = vmatpush1.msra.mxu0 %v203
  %3500 = vmatprep.subr.mxu0 0.0
  %3501 = vmatpush1.msra.mxu0 0.0
  %3502 = vmatprep.subr.mxu0 0.0
  %3503 = vmatpush1.msra.mxu0 0.0
  %3504 = vmatprep.subr.mxu0 0.0
  %3505 = vmatpush1.msra.mxu0 0.0
  %3506 = vmatprep.subr.mxu0 0.0
  %3507 = vmatpush1.msra.mxu0 0.0
  %3508 = vmatprep.subr.mxu0 0.0
  %3509 = vmatpush1.msra.mxu0 0.0
  %3510 = vmatprep.subr.mxu0 0.0
  %3511 = vmatpush1.msra.mxu0 0.0
  %3512 = vmatprep.subr.mxu0 0.0
  %3513 = vmatpush1.msra.mxu0 0.0
  %3514 = vmatprep.subr.mxu0 0.0
  %3515 = vmatpush1.msra.mxu0 0.0
  %3516 = vmatprep.subr.mxu0 0.0
  %3517 = vmatpush1.msra.mxu0 0.0
  %3518 = vmatprep.subr.mxu0 0.0
  %3519 = vmatpush1.msra.mxu0 0.0
  %3520 = vmatprep.subr.mxu0 0.0
  %3521 = vmatpush1.msra.mxu0 0.0
  %3522 = vmatprep.subr.mxu0 0.0
  %3523 = vmatpush1.msra.mxu0 0.0
  %3524 = vmatprep.subr.mxu0 0.0
  %3525 = vmatpush1.msra.mxu0 0.0
  %3526 = vmatprep.subr.mxu0 0.0
  %3527 = vmatpush1.msra.mxu0 0.0
  %3528 = vmatprep.subr.mxu0 0.0
  %3529 = vmatpush1.msra.mxu0 0.0
  %3530 = vmatprep.subr.mxu0 0.0
  %3531 = vmatpush1.msra.mxu0 0.0
  %3532 = vmatprep.mubr.f32.mxu0 0.0
  %3533 = vmatmul.mubr.f32.gmra.mrb[0].mxu0 %v3467
  %v3534 = vpop.f32.mrb[0].mxu0
  %v3535 = vadd.f32 %v300, %v3534
  %v3536 = vpop.f32.mrb[0].mxu0
  %3537 = vdwg.mxu0
  %v3538 = vmax.f32 %v3535, 0.0
  %3539 = vmatprep.subr.mxu0 %v205
  %3540 = vmatpush1.msra.mxu0 %v204
  %3541 = vmatprep.subr.mxu0 %v207
  %3542 = vmatpush1.msra.mxu0 %v206
  %3543 = vmatprep.subr.mxu0 %v209
  %3544 = vmatpush1.msra.mxu0 %v208
  %3545 = vmatprep.subr.mxu0 %v211
  %3546 = vmatpush1.msra.mxu0 %v210
  %3547 = vmatprep.subr.mxu0 %v213
  %3548 = vmatpush1.msra.mxu0 %v212
  %3549 = vmatprep.subr.mxu0 %v215
  %3550 = vmatpush1.msra.mxu0 %v214
  %3551 = vmatprep.subr.mxu0 %v217
  %3552 = vmatpush1.msra.mxu0 %v216
  %3553 = vmatprep.subr.mxu0 %v219
  %3554 = vmatpush1.msra.mxu0 %v218
  %3555 = vmatprep.subr.mxu0 %v221
  %3556 = vmatpush1.msra.mxu0 %v220
  %3557 = vmatprep.subr.mxu0 %v223
  %3558 = vmatpush1.msra.mxu0 %v222
  %3559 = vmatprep.subr.mxu0 %v225
  %3560 = vmatpush1.msra.mxu0 %v224
  %3561 = vmatprep.subr.mxu0 %v227
  %3562 = vmatpush1.msra.mxu0 %v226
  %3563 = vmatprep.subr.mxu0 %v229
  %3564 = vmatpush1.msra.mxu0 %v228
  %3565 = vmatprep.subr.mxu0 %v231
  %3566 = vmatpush1.msra.mxu0 %v230
  %3567 = vmatprep.subr.mxu0 %v233
  %3568 = vmatpush1.msra.mxu0 %v232
  %3569 = vmatprep.subr.mxu0 %v235
  %3570 = vmatpush1.msra.mxu0 %v234
  %3571 = vmatprep.subr.mxu0 0.0
  %3572 = vmatpush1.msra.mxu0 0.0
  %3573 = vmatprep.subr.mxu0 0.0
  %3574 = vmatpush1.msra.mxu0 0.0
  %3575 = vmatprep.subr.mxu0 0.0
  %3576 = vmatpush1.msra.mxu0 0.0
  %3577 = vmatprep.subr.mxu0 0.0
  %3578 = vmatpush1.msra.mxu0 0.0
  %3579 = vmatprep.subr.mxu0 0.0
  %3580 = vmatpush1.msra.mxu0 0.0
  %3581 = vmatprep.subr.mxu0 0.0
  %3582 = vmatpush1.msra.mxu0 0.0
  %3583 = vmatprep.subr.mxu0 0.0
  %3584 = vmatpush1.msra.mxu0 0.0
  %3585 = vmatprep.subr.mxu0 0.0
  %3586 = vmatpush1.msra.mxu0 0.0
  %3587 = vmatprep.subr.mxu0 0.0
  %3588 = vmatpush1.msra.mxu0 0.0
  %3589 = vmatprep.subr.mxu0 0.0
  %3590 = vmatpush1.msra.mxu0 0.0
  %3591 = vmatprep.subr.mxu0 0.0
  %3592 = vmatpush1.msra.mxu0 0.0
  %3593 = vmatprep.subr.mxu0 0.0
  %3594 = vmatpush1.msra.mxu0 0.0
  %3595 = vmatprep.subr.mxu0 0.0
  %3596 = vmatpush1.msra.mxu0 0.0
  %3597 = vmatprep.subr.mxu0 0.0
  %3598 = vmatpush1.msra.mxu0 0.0
  %3599 = vmatprep.subr.mxu0 0.0
  %3600 = vmatpush1.msra.mxu0 0.0
  %3601 = vmatprep.subr.mxu0 0.0
  %3602 = vmatpush1.msra.mxu0 0.0
  %3603 = vmatprep.mubr.f32.mxu0 0.0
  %3604 = vmatmul.mubr.f32.gmra.mrb[0].mxu0 %v3538
  %v3605 = vpop.f32.mrb[0].mxu0
  %v3606 = vadd.f32 %v307, %v3605
  %v3607 = vpop.f32.mrb[0].mxu0
  %v3608 = vadd.f32 %v311, %v3607
  %3609 = vdwg.mxu0
  %v3610 = vmax.f32 %v3608, 0.0
  %v3611 = vand.u32 2147483647, %v3608
  %v3612 = vsub.f32 0.0, %v3611
  %v3613 = vmul.f32 %v3612, 1.442695
  %v3614 = vpow.pop %v3613
  %v3615 = vadd.f32 %v3614, 1.0
  %v3616 = vlog2.pop %v3615
  %v3617 = vmul.f32 %v3616, 0.6931472
  %v3618 = vmul.f32 -0.5, %v3614
  %v3619 = vadd.f32 %v3618, 1.0
  %v3620 = vmul.f32 %v3619, %v3614
  %v3621 = vand.u32 2147483647, %v3614
  %vm3622 = vcmp.lt.f32.partialorder %v3621, 0.0004427343
  %v3623 = vsel %vm3622, %v3620, %v3617
  %v3624 = vadd.f32 %v3610, %v3623
  %v3625 = vmul.f32 %v3253, %v3624
  %v3626 = vadd.f32 %v3625, %v3606
  %3627 = vmatprep.subr.mxu0 %v125
  %3628 = vmatpush1.msra.mxu0 %v124
  %3629 = vmatprep.subr.mxu0 %v129
  %3630 = vmatpush1.msra.mxu0 %v128
  %3631 = vmatprep.subr.mxu0 %v133
  %3632 = vmatpush1.msra.mxu0 %v132
  %3633 = vmatprep.subr.mxu0 %v137
  %3634 = vmatpush1.msra.mxu0 %v136
  %3635 = vmatprep.subr.mxu0 %v141
  %3636 = vmatpush1.msra.mxu0 %v140
  %3637 = vmatprep.subr.mxu0 %v145
  %3638 = vmatpush1.msra.mxu0 %v144
  %3639 = vmatprep.subr.mxu0 %v149
  %3640 = vmatpush1.msra.mxu0 %v148
  %3641 = vmatprep.subr.mxu0 %v153
  %3642 = vmatpush1.msra.mxu0 %v152
  %3643 = vmatprep.subr.mxu0 %v157
  %3644 = vmatpush1.msra.mxu0 %v156
  %3645 = vmatprep.subr.mxu0 %v161
  %3646 = vmatpush1.msra.mxu0 %v160
  %3647 = vmatprep.subr.mxu0 %v165
  %3648 = vmatpush1.msra.mxu0 %v164
  %3649 = vmatprep.subr.mxu0 %v169
  %3650 = vmatpush1.msra.mxu0 %v168
  %3651 = vmatprep.subr.mxu0 %v173
  %3652 = vmatpush1.msra.mxu0 %v172
  %3653 = vmatprep.subr.mxu0 %v177
  %3654 = vmatpush1.msra.mxu0 %v176
  %3655 = vmatprep.subr.mxu0 %v181
  %3656 = vmatpush1.msra.mxu0 %v180
  %3657 = vmatprep.subr.mxu0 %v185
  %3658 = vmatpush1.msra.mxu0 %v184
  %3659 = vmatprep.subr.mxu0 0.0
  %3660 = vmatpush1.msra.mxu0 0.0
  %3661 = vmatprep.subr.mxu0 0.0
  %3662 = vmatpush1.msra.mxu0 0.0
  %3663 = vmatprep.subr.mxu0 0.0
  %3664 = vmatpush1.msra.mxu0 0.0
  %3665 = vmatprep.subr.mxu0 0.0
  %3666 = vmatpush1.msra.mxu0 0.0
  %3667 = vmatprep.subr.mxu0 0.0
  %3668 = vmatpush1.msra.mxu0 0.0
  %3669 = vmatprep.subr.mxu0 0.0
  %3670 = vmatpush1.msra.mxu0 0.0
  %3671 = vmatprep.subr.mxu0 0.0
  %3672 = vmatpush1.msra.mxu0 0.0
  %3673 = vmatprep.subr.mxu0 0.0
  %3674 = vmatpush1.msra.mxu0 0.0
  %3675 = vmatprep.subr.mxu0 0.0
  %3676 = vmatpush1.msra.mxu0 0.0
  %3677 = vmatprep.subr.mxu0 0.0
  %3678 = vmatpush1.msra.mxu0 0.0
  %3679 = vmatprep.subr.mxu0 0.0
  %3680 = vmatpush1.msra.mxu0 0.0
  %3681 = vmatprep.subr.mxu0 0.0
  %3682 = vmatpush1.msra.mxu0 0.0
  %3683 = vmatprep.subr.mxu0 0.0
  %3684 = vmatpush1.msra.mxu0 0.0
  %3685 = vmatprep.subr.mxu0 0.0
  %3686 = vmatpush1.msra.mxu0 0.0
  %3687 = vmatprep.subr.mxu0 0.0
  %3688 = vmatpush1.msra.mxu0 0.0
  %3689 = vmatprep.subr.mxu0 0.0
  %3690 = vmatpush1.msra.mxu0 0.0
  %3691 = vmatprep.mubr.f32.mxu0 0.0
  %3692 = vmatmul.mubr.f32.gmra.mrb[0].mxu0 %v3626
  %v3693 = vpop.f32.mrb[0].mxu0
  %v3694 = vadd.f32 0.0, %v3693
  %v3695 = vpop.f32.mrb[0].mxu0
  %v3696 = vadd.f32 0.0, %v3695
  %3697 = vdwg.mxu0
  %3698 = vmatprep.subr.mxu0 %v127
  %3699 = vmatpush1.msra.mxu0 %v126
  %3700 = vmatprep.subr.mxu0 %v131
  %3701 = vmatpush1.msra.mxu0 %v130
  %3702 = vmatprep.subr.mxu0 %v135
  %3703 = vmatpush1.msra.mxu0 %v134
  %3704 = vmatprep.subr.mxu0 %v139
  %3705 = vmatpush1.msra.mxu0 %v138
  %3706 = vmatprep.subr.mxu0 %v143
  %3707 = vmatpush1.msra.mxu0 %v142
  %3708 = vmatprep.subr.mxu0 %v147
  %3709 = vmatpush1.msra.mxu0 %v146
  %3710 = vmatprep.subr.mxu0 %v151
  %3711 = vmatpush1.msra.mxu0 %v150
  %3712 = vmatprep.subr.mxu0 %v155
  %3713 = vmatpush1.msra.mxu0 %v154
  %3714 = vmatprep.subr.mxu0 %v159
  %3715 = vmatpush1.msra.mxu0 %v158
  %3716 = vmatprep.subr.mxu0 %v163
  %3717 = vmatpush1.msra.mxu0 %v162
  %3718 = vmatprep.subr.mxu0 %v167
  %3719 = vmatpush1.msra.mxu0 %v166
  %3720 = vmatprep.subr.mxu0 %v171
  %3721 = vmatpush1.msra.mxu0 %v170
  %3722 = vmatprep.subr.mxu0 %v175
  %3723 = vmatpush1.msra.mxu0 %v174
  %3724 = vmatprep.subr.mxu0 %v179
  %3725 = vmatpush1.msra.mxu0 %v178
  %3726 = vmatprep.subr.mxu0 %v183
  %3727 = vmatpush1.msra.mxu0 %v182
  %3728 = vmatprep.subr.mxu0 %v187
  %3729 = vmatpush1.msra.mxu0 %v186
  %3730 = vmatprep.subr.mxu0 0.0
  %3731 = vmatpush1.msra.mxu0 0.0
  %3732 = vmatprep.subr.mxu0 0.0
  %3733 = vmatpush1.msra.mxu0 0.0
  %3734 = vmatprep.subr.mxu0 0.0
  %3735 = vmatpush1.msra.mxu0 0.0
  %3736 = vmatprep.subr.mxu0 0.0
  %3737 = vmatpush1.msra.mxu0 0.0
  %3738 = vmatprep.subr.mxu0 0.0
  %3739 = vmatpush1.msra.mxu0 0.0
  %3740 = vmatprep.subr.mxu0 0.0
  %3741 = vmatpush1.msra.mxu0 0.0
  %3742 = vmatprep.subr.mxu0 0.0
  %3743 = vmatpush1.msra.mxu0 0.0
  %3744 = vmatprep.subr.mxu0 0.0
  %3745 = vmatpush1.msra.mxu0 0.0
  %3746 = vmatprep.subr.mxu0 0.0
  %3747 = vmatpush1.msra.mxu0 0.0
  %3748 = vmatprep.subr.mxu0 0.0
  %3749 = vmatpush1.msra.mxu0 0.0
  %3750 = vmatprep.subr.mxu0 0.0
  %3751 = vmatpush1.msra.mxu0 0.0
  %3752 = vmatprep.subr.mxu0 0.0
  %3753 = vmatpush1.msra.mxu0 0.0
  %3754 = vmatprep.subr.mxu0 0.0
  %3755 = vmatpush1.msra.mxu0 0.0
  %3756 = vmatprep.subr.mxu0 0.0
  %3757 = vmatpush1.msra.mxu0 0.0
  %3758 = vmatprep.subr.mxu0 0.0
  %3759 = vmatpush1.msra.mxu0 0.0
  %3760 = vmatprep.subr.mxu0 0.0
  %3761 = vmatpush1.msra.mxu0 0.0
  %3762 = vmatprep.mubr.f32.mxu0 0.0
  %3763 = vmatmul.mubr.f32.gmra.mrb[0].mxu0 %v3626
  %v3764 = vpop.f32.mrb[0].mxu0
  %v3765 = vadd.f32 0.0, %v3764
  %v3766 = vpop.f32.mrb[0].mxu0
  %v3767 = vadd.f32 0.0, %v3766
  %3768 = vdwg.mxu0
  %v3770 = vrot.slane %v3252, 2
  %v3775 = vcombine.low %v3696, %v3765
  %v3777 = vunpack.c.l.s4 1983009808
  %v3778 = vunpack.c.0.s8 %v3777
  %v3779 = vlaneseq
  %v3780 = vshrl.u32 %v3779, 7
  %v3781 = vsub.s32 %v3778, %v3780
  %v3782 = vrot.slane %v3775, %v3781
  %v3784 = vunpack.c.l.s4 1983009808
  %v3785 = vunpack.c.0.s8 %v3784
  %v3786 = vlaneseq
  %v3787 = vshrl.u32 %v3786, 7
  %v3788 = vsub.s32 %v3785, %v3787
  %v3789 = vrot.slane %v3767, %v3788
  %v3790 = vcombine.low %v3782, %v3789
  %v3792 = vadd.f32 %v3770, %v3790
  %v3795 = vcombine.low %v3392, %v3394
  %v3797 = vunpack.c.l.s4 1983009808
  %v3798 = vunpack.c.0.s8 %v3797
  %v3799 = vlaneseq
  %v3800 = vshrl.u32 %v3799, 7
  %v3801 = vsub.s32 %v3798, %v3800
  %v3802 = vrot.slane %v3795, %v3801
  %v3804 = vadd.f32 %v3792, %v3802
  %v3805 = vmul.f32 %v3804, 0.5
  %v3806 = vtanh.pop %v3805
  %v3807 = vadd.f32 %v3806, 1.0
  %v3808 = vmul.f32 %v3807, 0.5
  %v3809 = vmul.f32 %v3808, %v3463
  %v3811 = vrot.slane %v3792, 4
  %v3813 = vadd.f32 %v3811, %v3809
  %v3814 = vtanh.pop %v3813
  %v3816 = vrot.slane %v3808, 2
  %v3818 = vsub.f32 1.0, %v3816
  %v3819 = vmul.f32 %v3818, %v3814
  %v3820 = vmul.f32 %v3816, %v3090
  %v3821 = vadd.f32 %v3819, %v3820
  %v3822 = vadd.f32 %v3694, %v3323
  %v3823 = vmax.f32 %v3822, 0.0
  %3824 = vmatprep.subr.mxu0 0.0
  %3825 = vmatpush1.msra.mxu0 %v236
  %3826 = vmatprep.subr.mxu0 0.0
  %3827 = vmatpush1.msra.mxu0 %v237
  %3828 = vmatprep.subr.mxu0 0.0
  %3829 = vmatpush1.msra.mxu0 %v238
  %3830 = vmatprep.subr.mxu0 0.0
  %3831 = vmatpush1.msra.mxu0 %v239
  %3832 = vmatprep.subr.mxu0 0.0
  %3833 = vmatpush1.msra.mxu0 %v240
  %3834 = vmatprep.subr.mxu0 0.0
  %3835 = vmatpush1.msra.mxu0 %v241
  %3836 = vmatprep.subr.mxu0 0.0
  %3837 = vmatpush1.msra.mxu0 %v242
  %3838 = vmatprep.subr.mxu0 0.0
  %3839 = vmatpush1.msra.mxu0 %v243
  %3840 = vmatprep.subr.mxu0 0.0
  %3841 = vmatpush1.msra.mxu0 %v244
  %3842 = vmatprep.subr.mxu0 0.0
  %3843 = vmatpush1.msra.mxu0 %v245
  %3844 = vmatprep.subr.mxu0 0.0
  %3845 = vmatpush1.msra.mxu0 %v246
  %3846 = vmatprep.subr.mxu0 0.0
  %3847 = vmatpush1.msra.mxu0 %v247
  %3848 = vmatprep.subr.mxu0 0.0
  %3849 = vmatpush1.msra.mxu0 %v248
  %3850 = vmatprep.subr.mxu0 0.0
  %3851 = vmatpush1.msra.mxu0 %v249
  %3852 = vmatprep.subr.mxu0 0.0
  %3853 = vmatpush1.msra.mxu0 %v250
  %3854 = vmatprep.subr.mxu0 0.0
  %3855 = vmatpush1.msra.mxu0 %v251
  %3856 = vmatprep.subr.mxu0 0.0
  %3857 = vmatpush1.msra.mxu0 0.0
  %3858 = vmatprep.subr.mxu0 0.0
  %3859 = vmatpush1.msra.mxu0 0.0
  %3860 = vmatprep.subr.mxu0 0.0
  %3861 = vmatpush1.msra.mxu0 0.0
  %3862 = vmatprep.subr.mxu0 0.0
  %3863 = vmatpush1.msra.mxu0 0.0
  %3864 = vmatprep.subr.mxu0 0.0
  %3865 = vmatpush1.msra.mxu0 0.0
  %3866 = vmatprep.subr.mxu0 0.0
  %3867 = vmatpush1.msra.mxu0 0.0
  %3868 = vmatprep.subr.mxu0 0.0
  %3869 = vmatpush1.msra.mxu0 0.0
  %3870 = vmatprep.subr.mxu0 0.0
  %3871 = vmatpush1.msra.mxu0 0.0
  %3872 = vmatprep.subr.mxu0 0.0
  %3873 = vmatpush1.msra.mxu0 0.0
  %3874 = vmatprep.subr.mxu0 0.0
  %3875 = vmatpush1.msra.mxu0 0.0
  %3876 = vmatprep.subr.mxu0 0.0
  %3877 = vmatpush1.msra.mxu0 0.0
  %3878 = vmatprep.subr.mxu0 0.0
  %3879 = vmatpush1.msra.mxu0 0.0
  %3880 = vmatprep.subr.mxu0 0.0
  %3881 = vmatpush1.msra.mxu0 0.0
  %3882 = vmatprep.subr.mxu0 0.0
  %3883 = vmatpush1.msra.mxu0 0.0
  %3884 = vmatprep.subr.mxu0 0.0
  %3885 = vmatpush1.msra.mxu0 0.0
  %3886 = vmatprep.subr.mxu0 0.0
  %3887 = vmatpush1.msra.mxu0 0.0
  %3888 = vmatprep.mubr.f32.mxu0 0.0
  %3889 = vmatmul.mubr.f32.gmra.mrb[0].mxu0 %v3823
  %v3890 = vpop.f32.mrb[0].mxu0
  %v3891 = vadd.f32 %v319, %v3890
  %v3892 = vpop.f32.mrb[0].mxu0
  %3893 = vdwg.mxu0
  %v3894 = vmax.f32 %v3891, 0.0
  %3895 = vmatprep.subr.mxu0 0.0
  %3896 = vmatpush1.msra.mxu0 %v252
  %3897 = vmatprep.subr.mxu0 0.0
  %3898 = vmatpush1.msra.mxu0 %v253
  %3899 = vmatprep.subr.mxu0 0.0
  %3900 = vmatpush1.msra.mxu0 %v254
  %3901 = vmatprep.subr.mxu0 0.0
  %3902 = vmatpush1.msra.mxu0 %v255
  %3903 = vmatprep.subr.mxu0 0.0
  %3904 = vmatpush1.msra.mxu0 %v256
  %3905 = vmatprep.subr.mxu0 0.0
  %3906 = vmatpush1.msra.mxu0 %v257
  %3907 = vmatprep.subr.mxu0 0.0
  %3908 = vmatpush1.msra.mxu0 %v258
  %3909 = vmatprep.subr.mxu0 0.0
  %3910 = vmatpush1.msra.mxu0 %v259
  %3911 = vmatprep.subr.mxu0 0.0
  %3912 = vmatpush1.msra.mxu0 %v260
  %3913 = vmatprep.subr.mxu0 0.0
  %3914 = vmatpush1.msra.mxu0 %v261
  %3915 = vmatprep.subr.mxu0 0.0
  %3916 = vmatpush1.msra.mxu0 %v262
  %3917 = vmatprep.subr.mxu0 0.0
  %3918 = vmatpush1.msra.mxu0 %v263
  %3919 = vmatprep.subr.mxu0 0.0
  %3920 = vmatpush1.msra.mxu0 %v264
  %3921 = vmatprep.subr.mxu0 0.0
  %3922 = vmatpush1.msra.mxu0 %v265
  %3923 = vmatprep.subr.mxu0 0.0
  %3924 = vmatpush1.msra.mxu0 %v266
  %3925 = vmatprep.subr.mxu0 0.0
  %3926 = vmatpush1.msra.mxu0 %v267
  %3927 = vmatprep.subr.mxu0 0.0
  %3928 = vmatpush1.msra.mxu0 0.0
  %3929 = vmatprep.subr.mxu0 0.0
  %3930 = vmatpush1.msra.mxu0 0.0
  %3931 = vmatprep.subr.mxu0 0.0
  %3932 = vmatpush1.msra.mxu0 0.0
  %3933 = vmatprep.subr.mxu0 0.0
  %3934 = vmatpush1.msra.mxu0 0.0
  %3935 = vmatprep.subr.mxu0 0.0
  %3936 = vmatpush1.msra.mxu0 0.0
  %3937 = vmatprep.subr.mxu0 0.0
  %3938 = vmatpush1.msra.mxu0 0.0
  %3939 = vmatprep.subr.mxu0 0.0
  %3940 = vmatpush1.msra.mxu0 0.0
  %3941 = vmatprep.subr.mxu0 0.0
  %3942 = vmatpush1.msra.mxu0 0.0
  %3943 = vmatprep.subr.mxu0 0.0
  %3944 = vmatpush1.msra.mxu0 0.0
  %3945 = vmatprep.subr.mxu0 0.0
  %3946 = vmatpush1.msra.mxu0 0.0
  %3947 = vmatprep.subr.mxu0 0.0
  %3948 = vmatpush1.msra.mxu0 0.0
  %3949 = vmatprep.subr.mxu0 0.0
  %3950 = vmatpush1.msra.mxu0 0.0
  %3951 = vmatprep.subr.mxu0 0.0
  %3952 = vmatpush1.msra.mxu0 0.0
  %3953 = vmatprep.subr.mxu0 0.0
  %3954 = vmatpush1.msra.mxu0 0.0
  %3955 = vmatprep.subr.mxu0 0.0
  %3956 = vmatpush1.msra.mxu0 0.0
  %3957 = vmatprep.subr.mxu0 0.0
  %3958 = vmatpush1.msra.mxu0 0.0
  %3959 = vmatprep.mubr.f32.mxu0 0.0
  %3960 = vmatmul.mubr.f32.gmra.mrb[0].mxu0 %v3894
  %v3961 = vpop.f32.mrb[0].mxu0
  %v3962 = vadd.f32 %v326, %v3961
  %v3963 = vpop.f32.mrb[0].mxu0
  %3964 = vdwg.mxu0
  %v3965 = vmul.f32 %v3962, 0.5
  %v3966 = vtanh.pop %v3965
  %v3967 = vadd.f32 %v3966, 1.0
  %v3968 = vmul.f32 %v3967, 0.5
  %v3971 = vcombine.low %v3968, %v3821
  %v3973 = vunpack.c.l.s4 1983009808
  %v3974 = vunpack.c.0.s8 %v3973
  %v3975 = vlaneseq
  %v3976 = vshrl.u32 %v3975, 7
  %v3977 = vsub.s32 %v3974, %v3976
  %v3978 = vrot.slane %v3971, %v3977
  %s3980 = scalar_lea.vmem %s13, 16
  %3981 = vst [vmem:[%s3980] sm:$0xf] %v3978
  %s3982 = scalar_lea.vmem %s0, 50
  %v3983 = vld [vmem:[%s3982] sm:$0xff]
  %v3984 = vld [vmem:[%s3982 + $0x8] sm:$0x3]
  %3985 = vmatprep.subr.mxu0 %v45
  %3986 = vmatpush1.msra.mxu0 %v44
  %3987 = vmatprep.subr.mxu0 %v50
  %3988 = vmatpush1.msra.mxu0 %v49
  %3989 = vmatprep.subr.mxu0 %v55
  %3990 = vmatpush1.msra.mxu0 %v54
  %3991 = vmatprep.subr.mxu0 %v60
  %3992 = vmatpush1.msra.mxu0 %v59
  %3993 = vmatprep.subr.mxu0 %v65
  %3994 = vmatpush1.msra.mxu0 %v64
  %3995 = vmatprep.subr.mxu0 %v70
  %3996 = vmatpush1.msra.mxu0 %v69
  %3997 = vmatprep.subr.mxu0 %v75
  %3998 = vmatpush1.msra.mxu0 %v74
  %3999 = vmatprep.subr.mxu0 %v80
  %4000 = vmatpush1.msra.mxu0 %v79
  %4001 = vmatprep.subr.mxu0 %v85
  %4002 = vmatpush1.msra.mxu0 %v84
  %4003 = vmatprep.subr.mxu0 %v90
  %4004 = vmatpush1.msra.mxu0 %v89
  %4005 = vmatprep.subr.mxu0 %v95
  %4006 = vmatpush1.msra.mxu0 %v94
  %4007 = vmatprep.subr.mxu0 %v100
  %4008 = vmatpush1.msra.mxu0 %v99
  %4009 = vmatprep.subr.mxu0 %v105
  %4010 = vmatpush1.msra.mxu0 %v104
  %4011 = vmatprep.subr.mxu0 %v110
  %4012 = vmatpush1.msra.mxu0 %v109
  %4013 = vmatprep.subr.mxu0 %v115
  %4014 = vmatpush1.msra.mxu0 %v114
  %4015 = vmatprep.subr.mxu0 %v120
  %4016 = vmatpush1.msra.mxu0 %v119
  %4017 = vmatprep.subr.mxu0 0.0
  %4018 = vmatpush1.msra.mxu0 0.0
  %4019 = vmatprep.subr.mxu0 0.0
  %4020 = vmatpush1.msra.mxu0 0.0
  %4021 = vmatprep.subr.mxu0 0.0
  %4022 = vmatpush1.msra.mxu0 0.0
  %4023 = vmatprep.subr.mxu0 0.0
  %4024 = vmatpush1.msra.mxu0 0.0
  %4025 = vmatprep.subr.mxu0 0.0
  %4026 = vmatpush1.msra.mxu0 0.0
  %4027 = vmatprep.subr.mxu0 0.0
  %4028 = vmatpush1.msra.mxu0 0.0
  %4029 = vmatprep.subr.mxu0 0.0
  %4030 = vmatpush1.msra.mxu0 0.0
  %4031 = vmatprep.subr.mxu0 0.0
  %4032 = vmatpush1.msra.mxu0 0.0
  %4033 = vmatprep.subr.mxu0 0.0
  %4034 = vmatpush1.msra.mxu0 0.0
  %4035 = vmatprep.subr.mxu0 0.0
  %4036 = vmatpush1.msra.mxu0 0.0
  %4037 = vmatprep.subr.mxu0 0.0
  %4038 = vmatpush1.msra.mxu0 0.0
  %4039 = vmatprep.subr.mxu0 0.0
  %4040 = vmatpush1.msra.mxu0 0.0
  %4041 = vmatprep.subr.mxu0 0.0
  %4042 = vmatpush1.msra.mxu0 0.0
  %4043 = vmatprep.subr.mxu0 0.0
  %4044 = vmatpush1.msra.mxu0 0.0
  %4045 = vmatprep.subr.mxu0 0.0
  %4046 = vmatpush1.msra.mxu0 0.0
  %4047 = vmatprep.subr.mxu0 0.0
  %4048 = vmatpush1.msra.mxu0 0.0
  %4049 = vmatprep.mubr.f32.mxu0 0.0
  %4050 = vmatmul.mubr.f32.gmra.mrb[0].mxu0 %v3821
  %v4051 = vpop.f32.mrb[0].mxu0
  %v4052 = vadd.f32 %v273, %v4051
  %v4053 = vpop.f32.mrb[0].mxu0
  %v4054 = vadd.f32 %v277, %v4053
  %4055 = vdwg.mxu0
  %4056 = vmatprep.subr.mxu0 %v47
  %4057 = vmatpush1.msra.mxu0 %v46
  %4058 = vmatprep.subr.mxu0 %v52
  %4059 = vmatpush1.msra.mxu0 %v51
  %4060 = vmatprep.subr.mxu0 %v57
  %4061 = vmatpush1.msra.mxu0 %v56
  %4062 = vmatprep.subr.mxu0 %v62
  %4063 = vmatpush1.msra.mxu0 %v61
  %4064 = vmatprep.subr.mxu0 %v67
  %4065 = vmatpush1.msra.mxu0 %v66
  %4066 = vmatprep.subr.mxu0 %v72
  %4067 = vmatpush1.msra.mxu0 %v71
  %4068 = vmatprep.subr.mxu0 %v77
  %4069 = vmatpush1.msra.mxu0 %v76
  %4070 = vmatprep.subr.mxu0 %v82
  %4071 = vmatpush1.msra.mxu0 %v81
  %4072 = vmatprep.subr.mxu0 %v87
  %4073 = vmatpush1.msra.mxu0 %v86
  %4074 = vmatprep.subr.mxu0 %v92
  %4075 = vmatpush1.msra.mxu0 %v91
  %4076 = vmatprep.subr.mxu0 %v97
  %4077 = vmatpush1.msra.mxu0 %v96
  %4078 = vmatprep.subr.mxu0 %v102
  %4079 = vmatpush1.msra.mxu0 %v101
  %4080 = vmatprep.subr.mxu0 %v107
  %4081 = vmatpush1.msra.mxu0 %v106
  %4082 = vmatprep.subr.mxu0 %v112
  %4083 = vmatpush1.msra.mxu0 %v111
  %4084 = vmatprep.subr.mxu0 %v117
  %4085 = vmatpush1.msra.mxu0 %v116
  %4086 = vmatprep.subr.mxu0 %v122
  %4087 = vmatpush1.msra.mxu0 %v121
  %4088 = vmatprep.subr.mxu0 0.0
  %4089 = vmatpush1.msra.mxu0 0.0
  %4090 = vmatprep.subr.mxu0 0.0
  %4091 = vmatpush1.msra.mxu0 0.0
  %4092 = vmatprep.subr.mxu0 0.0
  %4093 = vmatpush1.msra.mxu0 0.0
  %4094 = vmatprep.subr.mxu0 0.0
  %4095 = vmatpush1.msra.mxu0 0.0
  %4096 = vmatprep.subr.mxu0 0.0
  %4097 = vmatpush1.msra.mxu0 0.0
  %4098 = vmatprep.subr.mxu0 0.0
  %4099 = vmatpush1.msra.mxu0 0.0
  %4100 = vmatprep.subr.mxu0 0.0
  %4101 = vmatpush1.msra.mxu0 0.0
  %4102 = vmatprep.subr.mxu0 0.0
  %4103 = vmatpush1.msra.mxu0 0.0
  %4104 = vmatprep.subr.mxu0 0.0
  %4105 = vmatpush1.msra.mxu0 0.0
  %4106 = vmatprep.subr.mxu0 0.0
  %4107 = vmatpush1.msra.mxu0 0.0
  %4108 = vmatprep.subr.mxu0 0.0
  %4109 = vmatpush1.msra.mxu0 0.0
  %4110 = vmatprep.subr.mxu0 0.0
  %4111 = vmatpush1.msra.mxu0 0.0
  %4112 = vmatprep.subr.mxu0 0.0
  %4113 = vmatpush1.msra.mxu0 0.0
  %4114 = vmatprep.subr.mxu0 0.0
  %4115 = vmatpush1.msra.mxu0 0.0
  %4116 = vmatprep.subr.mxu0 0.0
  %4117 = vmatpush1.msra.mxu0 0.0
  %4118 = vmatprep.subr.mxu0 0.0
  %4119 = vmatpush1.msra.mxu0 0.0
  %4120 = vmatprep.mubr.f32.mxu0 0.0
  %4121 = vmatmul.mubr.f32.gmra.mrb[0].mxu0 %v3821
  %v4122 = vpop.f32.mrb[0].mxu0
  %v4123 = vadd.f32 %v281, %v4122
  %v4124 = vpop.f32.mrb[0].mxu0
  %v4125 = vadd.f32 %v285, %v4124
  %4126 = vdwg.mxu0
  %4127 = vmatprep.subr.mxu0 0.0
  %4128 = vmatpush1.msra.mxu0 %v48
  %4129 = vmatprep.subr.mxu0 0.0
  %4130 = vmatpush1.msra.mxu0 %v53
  %4131 = vmatprep.subr.mxu0 0.0
  %4132 = vmatpush1.msra.mxu0 %v58
  %4133 = vmatprep.subr.mxu0 0.0
  %4134 = vmatpush1.msra.mxu0 %v63
  %4135 = vmatprep.subr.mxu0 0.0
  %4136 = vmatpush1.msra.mxu0 %v68
  %4137 = vmatprep.subr.mxu0 0.0
  %4138 = vmatpush1.msra.mxu0 %v73
  %4139 = vmatprep.subr.mxu0 0.0
  %4140 = vmatpush1.msra.mxu0 %v78
  %4141 = vmatprep.subr.mxu0 0.0
  %4142 = vmatpush1.msra.mxu0 %v83
  %4143 = vmatprep.subr.mxu0 0.0
  %4144 = vmatpush1.msra.mxu0 %v88
  %4145 = vmatprep.subr.mxu0 0.0
  %4146 = vmatpush1.msra.mxu0 %v93
  %4147 = vmatprep.subr.mxu0 0.0
  %4148 = vmatpush1.msra.mxu0 %v98
  %4149 = vmatprep.subr.mxu0 0.0
  %4150 = vmatpush1.msra.mxu0 %v103
  %4151 = vmatprep.subr.mxu0 0.0
  %4152 = vmatpush1.msra.mxu0 %v108
  %4153 = vmatprep.subr.mxu0 0.0
  %4154 = vmatpush1.msra.mxu0 %v113
  %4155 = vmatprep.subr.mxu0 0.0
  %4156 = vmatpush1.msra.mxu0 %v118
  %4157 = vmatprep.subr.mxu0 0.0
  %4158 = vmatpush1.msra.mxu0 %v123
  %4159 = vmatprep.subr.mxu0 0.0
  %4160 = vmatpush1.msra.mxu0 0.0
  %4161 = vmatprep.subr.mxu0 0.0
  %4162 = vmatpush1.msra.mxu0 0.0
  %4163 = vmatprep.subr.mxu0 0.0
  %4164 = vmatpush1.msra.mxu0 0.0
  %4165 = vmatprep.subr.mxu0 0.0
  %4166 = vmatpush1.msra.mxu0 0.0
  %4167 = vmatprep.subr.mxu0 0.0
  %4168 = vmatpush1.msra.mxu0 0.0
  %4169 = vmatprep.subr.mxu0 0.0
  %4170 = vmatpush1.msra.mxu0 0.0
  %4171 = vmatprep.subr.mxu0 0.0
  %4172 = vmatpush1.msra.mxu0 0.0
  %4173 = vmatprep.subr.mxu0 0.0
  %4174 = vmatpush1.msra.mxu0 0.0
  %4175 = vmatprep.subr.mxu0 0.0
  %4176 = vmatpush1.msra.mxu0 0.0
  %4177 = vmatprep.subr.mxu0 0.0
  %4178 = vmatpush1.msra.mxu0 0.0
  %4179 = vmatprep.subr.mxu0 0.0
  %4180 = vmatpush1.msra.mxu0 0.0
  %4181 = vmatprep.subr.mxu0 0.0
  %4182 = vmatpush1.msra.mxu0 0.0
  %4183 = vmatprep.subr.mxu0 0.0
  %4184 = vmatpush1.msra.mxu0 0.0
  %4185 = vmatprep.subr.mxu0 0.0
  %4186 = vmatpush1.msra.mxu0 0.0
  %4187 = vmatprep.subr.mxu0 0.0
  %4188 = vmatpush1.msra.mxu0 0.0
  %4189 = vmatprep.subr.mxu0 0.0
  %4190 = vmatpush1.msra.mxu0 0.0
  %4191 = vmatprep.mubr.f32.mxu0 0.0
  %4192 = vmatmul.mubr.f32.gmra.mrb[0].mxu0 %v3821
  %v4193 = vpop.f32.mrb[0].mxu0
  %v4194 = vadd.f32 %v289, %v4193
  %v4195 = vpop.f32.mrb[0].mxu0
  %4196 = vdwg.mxu0
  %v4197 = vadd.f32 %v3983, %v4052
  %v4198 = vmax.f32 %v4197, 0.0
  %4199 = vmatprep.subr.mxu0 0.0
  %4200 = vmatpush1.msra.mxu0 %v188
  %4201 = vmatprep.subr.mxu0 0.0
  %4202 = vmatpush1.msra.mxu0 %v189
  %4203 = vmatprep.subr.mxu0 0.0
  %4204 = vmatpush1.msra.mxu0 %v190
  %4205 = vmatprep.subr.mxu0 0.0
  %4206 = vmatpush1.msra.mxu0 %v191
  %4207 = vmatprep.subr.mxu0 0.0
  %4208 = vmatpush1.msra.mxu0 %v192
  %4209 = vmatprep.subr.mxu0 0.0
  %4210 = vmatpush1.msra.mxu0 %v193
  %4211 = vmatprep.subr.mxu0 0.0
  %4212 = vmatpush1.msra.mxu0 %v194
  %4213 = vmatprep.subr.mxu0 0.0
  %4214 = vmatpush1.msra.mxu0 %v195
  %4215 = vmatprep.subr.mxu0 0.0
  %4216 = vmatpush1.msra.mxu0 %v196
  %4217 = vmatprep.subr.mxu0 0.0
  %4218 = vmatpush1.msra.mxu0 %v197
  %4219 = vmatprep.subr.mxu0 0.0
  %4220 = vmatpush1.msra.mxu0 %v198
  %4221 = vmatprep.subr.mxu0 0.0
  %4222 = vmatpush1.msra.mxu0 %v199
  %4223 = vmatprep.subr.mxu0 0.0
  %4224 = vmatpush1.msra.mxu0 %v200
  %4225 = vmatprep.subr.mxu0 0.0
  %4226 = vmatpush1.msra.mxu0 %v201
  %4227 = vmatprep.subr.mxu0 0.0
  %4228 = vmatpush1.msra.mxu0 %v202
  %4229 = vmatprep.subr.mxu0 0.0
  %4230 = vmatpush1.msra.mxu0 %v203
  %4231 = vmatprep.subr.mxu0 0.0
  %4232 = vmatpush1.msra.mxu0 0.0
  %4233 = vmatprep.subr.mxu0 0.0
  %4234 = vmatpush1.msra.mxu0 0.0
  %4235 = vmatprep.subr.mxu0 0.0
  %4236 = vmatpush1.msra.mxu0 0.0
  %4237 = vmatprep.subr.mxu0 0.0
  %4238 = vmatpush1.msra.mxu0 0.0
  %4239 = vmatprep.subr.mxu0 0.0
  %4240 = vmatpush1.msra.mxu0 0.0
  %4241 = vmatprep.subr.mxu0 0.0
  %4242 = vmatpush1.msra.mxu0 0.0
  %4243 = vmatprep.subr.mxu0 0.0
  %4244 = vmatpush1.msra.mxu0 0.0
  %4245 = vmatprep.subr.mxu0 0.0
  %4246 = vmatpush1.msra.mxu0 0.0
  %4247 = vmatprep.subr.mxu0 0.0
  %4248 = vmatpush1.msra.mxu0 0.0
  %4249 = vmatprep.subr.mxu0 0.0
  %4250 = vmatpush1.msra.mxu0 0.0
  %4251 = vmatprep.subr.mxu0 0.0
  %4252 = vmatpush1.msra.mxu0 0.0
  %4253 = vmatprep.subr.mxu0 0.0
  %4254 = vmatpush1.msra.mxu0 0.0
  %4255 = vmatprep.subr.mxu0 0.0
  %4256 = vmatpush1.msra.mxu0 0.0
  %4257 = vmatprep.subr.mxu0 0.0
  %4258 = vmatpush1.msra.mxu0 0.0
  %4259 = vmatprep.subr.mxu0 0.0
  %4260 = vmatpush1.msra.mxu0 0.0
  %4261 = vmatprep.subr.mxu0 0.0
  %4262 = vmatpush1.msra.mxu0 0.0
  %4263 = vmatprep.mubr.f32.mxu0 0.0
  %4264 = vmatmul.mubr.f32.gmra.mrb[0].mxu0 %v4198
  %v4265 = vpop.f32.mrb[0].mxu0
  %v4266 = vadd.f32 %v300, %v4265
  %v4267 = vpop.f32.mrb[0].mxu0
  %4268 = vdwg.mxu0
  %v4269 = vmax.f32 %v4266, 0.0
  %4270 = vmatprep.subr.mxu0 %v205
  %4271 = vmatpush1.msra.mxu0 %v204
  %4272 = vmatprep.subr.mxu0 %v207
  %4273 = vmatpush1.msra.mxu0 %v206
  %4274 = vmatprep.subr.mxu0 %v209
  %4275 = vmatpush1.msra.mxu0 %v208
  %4276 = vmatprep.subr.mxu0 %v211
  %4277 = vmatpush1.msra.mxu0 %v210
  %4278 = vmatprep.subr.mxu0 %v213
  %4279 = vmatpush1.msra.mxu0 %v212
  %4280 = vmatprep.subr.mxu0 %v215
  %4281 = vmatpush1.msra.mxu0 %v214
  %4282 = vmatprep.subr.mxu0 %v217
  %4283 = vmatpush1.msra.mxu0 %v216
  %4284 = vmatprep.subr.mxu0 %v219
  %4285 = vmatpush1.msra.mxu0 %v218
  %4286 = vmatprep.subr.mxu0 %v221
  %4287 = vmatpush1.msra.mxu0 %v220
  %4288 = vmatprep.subr.mxu0 %v223
  %4289 = vmatpush1.msra.mxu0 %v222
  %4290 = vmatprep.subr.mxu0 %v225
  %4291 = vmatpush1.msra.mxu0 %v224
  %4292 = vmatprep.subr.mxu0 %v227
  %4293 = vmatpush1.msra.mxu0 %v226
  %4294 = vmatprep.subr.mxu0 %v229
  %4295 = vmatpush1.msra.mxu0 %v228
  %4296 = vmatprep.subr.mxu0 %v231
  %4297 = vmatpush1.msra.mxu0 %v230
  %4298 = vmatprep.subr.mxu0 %v233
  %4299 = vmatpush1.msra.mxu0 %v232
  %4300 = vmatprep.subr.mxu0 %v235
  %4301 = vmatpush1.msra.mxu0 %v234
  %4302 = vmatprep.subr.mxu0 0.0
  %4303 = vmatpush1.msra.mxu0 0.0
  %4304 = vmatprep.subr.mxu0 0.0
  %4305 = vmatpush1.msra.mxu0 0.0
  %4306 = vmatprep.subr.mxu0 0.0
  %4307 = vmatpush1.msra.mxu0 0.0
  %4308 = vmatprep.subr.mxu0 0.0
  %4309 = vmatpush1.msra.mxu0 0.0
  %4310 = vmatprep.subr.mxu0 0.0
  %4311 = vmatpush1.msra.mxu0 0.0
  %4312 = vmatprep.subr.mxu0 0.0
  %4313 = vmatpush1.msra.mxu0 0.0
  %4314 = vmatprep.subr.mxu0 0.0
  %4315 = vmatpush1.msra.mxu0 0.0
  %4316 = vmatprep.subr.mxu0 0.0
  %4317 = vmatpush1.msra.mxu0 0.0
  %4318 = vmatprep.subr.mxu0 0.0
  %4319 = vmatpush1.msra.mxu0 0.0
  %4320 = vmatprep.subr.mxu0 0.0
  %4321 = vmatpush1.msra.mxu0 0.0
  %4322 = vmatprep.subr.mxu0 0.0
  %4323 = vmatpush1.msra.mxu0 0.0
  %4324 = vmatprep.subr.mxu0 0.0
  %4325 = vmatpush1.msra.mxu0 0.0
  %4326 = vmatprep.subr.mxu0 0.0
  %4327 = vmatpush1.msra.mxu0 0.0
  %4328 = vmatprep.subr.mxu0 0.0
  %4329 = vmatpush1.msra.mxu0 0.0
  %4330 = vmatprep.subr.mxu0 0.0
  %4331 = vmatpush1.msra.mxu0 0.0
  %4332 = vmatprep.subr.mxu0 0.0
  %4333 = vmatpush1.msra.mxu0 0.0
  %4334 = vmatprep.mubr.f32.mxu0 0.0
  %4335 = vmatmul.mubr.f32.gmra.mrb[0].mxu0 %v4269
  %v4336 = vpop.f32.mrb[0].mxu0
  %v4337 = vadd.f32 %v307, %v4336
  %v4338 = vpop.f32.mrb[0].mxu0
  %v4339 = vadd.f32 %v311, %v4338
  %4340 = vdwg.mxu0
  %v4341 = vmax.f32 %v4339, 0.0
  %v4342 = vand.u32 2147483647, %v4339
  %v4343 = vsub.f32 0.0, %v4342
  %v4344 = vmul.f32 %v4343, 1.442695
  %v4345 = vpow.pop %v4344
  %v4346 = vadd.f32 %v4345, 1.0
  %v4347 = vlog2.pop %v4346
  %v4348 = vmul.f32 %v4347, 0.6931472
  %v4349 = vmul.f32 -0.5, %v4345
  %v4350 = vadd.f32 %v4349, 1.0
  %v4351 = vmul.f32 %v4350, %v4345
  %v4352 = vand.u32 2147483647, %v4345
  %vm4353 = vcmp.lt.f32.partialorder %v4352, 0.0004427343
  %v4354 = vsel %vm4353, %v4351, %v4348
  %v4355 = vadd.f32 %v4341, %v4354
  %v4356 = vmul.f32 %v3984, %v4355
  %v4357 = vadd.f32 %v4356, %v4337
  %4358 = vmatprep.subr.mxu0 %v125
  %4359 = vmatpush1.msra.mxu0 %v124
  %4360 = vmatprep.subr.mxu0 %v129
  %4361 = vmatpush1.msra.mxu0 %v128
  %4362 = vmatprep.subr.mxu0 %v133
  %4363 = vmatpush1.msra.mxu0 %v132
  %4364 = vmatprep.subr.mxu0 %v137
  %4365 = vmatpush1.msra.mxu0 %v136
  %4366 = vmatprep.subr.mxu0 %v141
  %4367 = vmatpush1.msra.mxu0 %v140
  %4368 = vmatprep.subr.mxu0 %v145
  %4369 = vmatpush1.msra.mxu0 %v144
  %4370 = vmatprep.subr.mxu0 %v149
  %4371 = vmatpush1.msra.mxu0 %v148
  %4372 = vmatprep.subr.mxu0 %v153
  %4373 = vmatpush1.msra.mxu0 %v152
  %4374 = vmatprep.subr.mxu0 %v157
  %4375 = vmatpush1.msra.mxu0 %v156
  %4376 = vmatprep.subr.mxu0 %v161
  %4377 = vmatpush1.msra.mxu0 %v160
  %4378 = vmatprep.subr.mxu0 %v165
  %4379 = vmatpush1.msra.mxu0 %v164
  %4380 = vmatprep.subr.mxu0 %v169
  %4381 = vmatpush1.msra.mxu0 %v168
  %4382 = vmatprep.subr.mxu0 %v173
  %4383 = vmatpush1.msra.mxu0 %v172
  %4384 = vmatprep.subr.mxu0 %v177
  %4385 = vmatpush1.msra.mxu0 %v176
  %4386 = vmatprep.subr.mxu0 %v181
  %4387 = vmatpush1.msra.mxu0 %v180
  %4388 = vmatprep.subr.mxu0 %v185
  %4389 = vmatpush1.msra.mxu0 %v184
  %4390 = vmatprep.subr.mxu0 0.0
  %4391 = vmatpush1.msra.mxu0 0.0
  %4392 = vmatprep.subr.mxu0 0.0
  %4393 = vmatpush1.msra.mxu0 0.0
  %4394 = vmatprep.subr.mxu0 0.0
  %4395 = vmatpush1.msra.mxu0 0.0
  %4396 = vmatprep.subr.mxu0 0.0
  %4397 = vmatpush1.msra.mxu0 0.0
  %4398 = vmatprep.subr.mxu0 0.0
  %4399 = vmatpush1.msra.mxu0 0.0
  %4400 = vmatprep.subr.mxu0 0.0
  %4401 = vmatpush1.msra.mxu0 0.0
  %4402 = vmatprep.subr.mxu0 0.0
  %4403 = vmatpush1.msra.mxu0 0.0
  %4404 = vmatprep.subr.mxu0 0.0
  %4405 = vmatpush1.msra.mxu0 0.0
  %4406 = vmatprep.subr.mxu0 0.0
  %4407 = vmatpush1.msra.mxu0 0.0
  %4408 = vmatprep.subr.mxu0 0.0
  %4409 = vmatpush1.msra.mxu0 0.0
  %4410 = vmatprep.subr.mxu0 0.0
  %4411 = vmatpush1.msra.mxu0 0.0
  %4412 = vmatprep.subr.mxu0 0.0
  %4413 = vmatpush1.msra.mxu0 0.0
  %4414 = vmatprep.subr.mxu0 0.0
  %4415 = vmatpush1.msra.mxu0 0.0
  %4416 = vmatprep.subr.mxu0 0.0
  %4417 = vmatpush1.msra.mxu0 0.0
  %4418 = vmatprep.subr.mxu0 0.0
  %4419 = vmatpush1.msra.mxu0 0.0
  %4420 = vmatprep.subr.mxu0 0.0
  %4421 = vmatpush1.msra.mxu0 0.0
  %4422 = vmatprep.mubr.f32.mxu0 0.0
  %4423 = vmatmul.mubr.f32.gmra.mrb[0].mxu0 %v4357
  %v4424 = vpop.f32.mrb[0].mxu0
  %v4425 = vadd.f32 0.0, %v4424
  %v4426 = vpop.f32.mrb[0].mxu0
  %v4427 = vadd.f32 0.0, %v4426
  %4428 = vdwg.mxu0
  %4429 = vmatprep.subr.mxu0 %v127
  %4430 = vmatpush1.msra.mxu0 %v126
  %4431 = vmatprep.subr.mxu0 %v131
  %4432 = vmatpush1.msra.mxu0 %v130
  %4433 = vmatprep.subr.mxu0 %v135
  %4434 = vmatpush1.msra.mxu0 %v134
  %4435 = vmatprep.subr.mxu0 %v139
  %4436 = vmatpush1.msra.mxu0 %v138
  %4437 = vmatprep.subr.mxu0 %v143
  %4438 = vmatpush1.msra.mxu0 %v142
  %4439 = vmatprep.subr.mxu0 %v147
  %4440 = vmatpush1.msra.mxu0 %v146
  %4441 = vmatprep.subr.mxu0 %v151
  %4442 = vmatpush1.msra.mxu0 %v150
  %4443 = vmatprep.subr.mxu0 %v155
  %4444 = vmatpush1.msra.mxu0 %v154
  %4445 = vmatprep.subr.mxu0 %v159
  %4446 = vmatpush1.msra.mxu0 %v158
  %4447 = vmatprep.subr.mxu0 %v163
  %4448 = vmatpush1.msra.mxu0 %v162
  %4449 = vmatprep.subr.mxu0 %v167
  %4450 = vmatpush1.msra.mxu0 %v166
  %4451 = vmatprep.subr.mxu0 %v171
  %4452 = vmatpush1.msra.mxu0 %v170
  %4453 = vmatprep.subr.mxu0 %v175
  %4454 = vmatpush1.msra.mxu0 %v174
  %4455 = vmatprep.subr.mxu0 %v179
  %4456 = vmatpush1.msra.mxu0 %v178
  %4457 = vmatprep.subr.mxu0 %v183
  %4458 = vmatpush1.msra.mxu0 %v182
  %4459 = vmatprep.subr.mxu0 %v187
  %4460 = vmatpush1.msra.mxu0 %v186
  %4461 = vmatprep.subr.mxu0 0.0
  %4462 = vmatpush1.msra.mxu0 0.0
  %4463 = vmatprep.subr.mxu0 0.0
  %4464 = vmatpush1.msra.mxu0 0.0
  %4465 = vmatprep.subr.mxu0 0.0
  %4466 = vmatpush1.msra.mxu0 0.0
  %4467 = vmatprep.subr.mxu0 0.0
  %4468 = vmatpush1.msra.mxu0 0.0
  %4469 = vmatprep.subr.mxu0 0.0
  %4470 = vmatpush1.msra.mxu0 0.0
  %4471 = vmatprep.subr.mxu0 0.0
  %4472 = vmatpush1.msra.mxu0 0.0
  %4473 = vmatprep.subr.mxu0 0.0
  %4474 = vmatpush1.msra.mxu0 0.0
  %4475 = vmatprep.subr.mxu0 0.0
  %4476 = vmatpush1.msra.mxu0 0.0
  %4477 = vmatprep.subr.mxu0 0.0
  %4478 = vmatpush1.msra.mxu0 0.0
  %4479 = vmatprep.subr.mxu0 0.0
  %4480 = vmatpush1.msra.mxu0 0.0
  %4481 = vmatprep.subr.mxu0 0.0
  %4482 = vmatpush1.msra.mxu0 0.0
  %4483 = vmatprep.subr.mxu0 0.0
  %4484 = vmatpush1.msra.mxu0 0.0
  %4485 = vmatprep.subr.mxu0 0.0
  %4486 = vmatpush1.msra.mxu0 0.0
  %4487 = vmatprep.subr.mxu0 0.0
  %4488 = vmatpush1.msra.mxu0 0.0
  %4489 = vmatprep.subr.mxu0 0.0
  %4490 = vmatpush1.msra.mxu0 0.0
  %4491 = vmatprep.subr.mxu0 0.0
  %4492 = vmatpush1.msra.mxu0 0.0
  %4493 = vmatprep.mubr.f32.mxu0 0.0
  %4494 = vmatmul.mubr.f32.gmra.mrb[0].mxu0 %v4357
  %v4495 = vpop.f32.mrb[0].mxu0
  %v4496 = vadd.f32 0.0, %v4495
  %v4497 = vpop.f32.mrb[0].mxu0
  %v4498 = vadd.f32 0.0, %v4497
  %4499 = vdwg.mxu0
  %v4501 = vrot.slane %v3983, 2
  %v4506 = vcombine.low %v4427, %v4496
  %v4508 = vunpack.c.l.s4 1983009808
  %v4509 = vunpack.c.0.s8 %v4508
  %v4510 = vlaneseq
  %v4511 = vshrl.u32 %v4510, 7
  %v4512 = vsub.s32 %v4509, %v4511
  %v4513 = vrot.slane %v4506, %v4512
  %v4515 = vunpack.c.l.s4 1983009808
  %v4516 = vunpack.c.0.s8 %v4515
  %v4517 = vlaneseq
  %v4518 = vshrl.u32 %v4517, 7
  %v4519 = vsub.s32 %v4516, %v4518
  %v4520 = vrot.slane %v4498, %v4519
  %v4521 = vcombine.low %v4513, %v4520
  %v4523 = vadd.f32 %v4501, %v4521
  %v4526 = vcombine.low %v4123, %v4125
  %v4528 = vunpack.c.l.s4 1983009808
  %v4529 = vunpack.c.0.s8 %v4528
  %v4530 = vlaneseq
  %v4531 = vshrl.u32 %v4530, 7
  %v4532 = vsub.s32 %v4529, %v4531
  %v4533 = vrot.slane %v4526, %v4532
  %v4535 = vadd.f32 %v4523, %v4533
  %v4536 = vmul.f32 %v4535, 0.5
  %v4537 = vtanh.pop %v4536
  %v4538 = vadd.f32 %v4537, 1.0
  %v4539 = vmul.f32 %v4538, 0.5
  %v4540 = vmul.f32 %v4539, %v4194
  %v4542 = vrot.slane %v4523, 4
  %v4544 = vadd.f32 %v4542, %v4540
  %v4545 = vtanh.pop %v4544
  %v4547 = vrot.slane %v4539, 2
  %v4549 = vsub.f32 1.0, %v4547
  %v4550 = vmul.f32 %v4549, %v4545
  %v4551 = vmul.f32 %v4547, %v3821
  %v4552 = vadd.f32 %v4550, %v4551
  %v4553 = vadd.f32 %v4425, %v4054
  %v4554 = vmax.f32 %v4553, 0.0
  %4555 = vmatprep.subr.mxu0 0.0
  %4556 = vmatpush1.msra.mxu0 %v236
  %4557 = vmatprep.subr.mxu0 0.0
  %4558 = vmatpush1.msra.mxu0 %v237
  %4559 = vmatprep.subr.mxu0 0.0
  %4560 = vmatpush1.msra.mxu0 %v238
  %4561 = vmatprep.subr.mxu0 0.0
  %4562 = vmatpush1.msra.mxu0 %v239
  %4563 = vmatprep.subr.mxu0 0.0
  %4564 = vmatpush1.msra.mxu0 %v240
  %4565 = vmatprep.subr.mxu0 0.0
  %4566 = vmatpush1.msra.mxu0 %v241
  %4567 = vmatprep.subr.mxu0 0.0
  %4568 = vmatpush1.msra.mxu0 %v242
  %4569 = vmatprep.subr.mxu0 0.0
  %4570 = vmatpush1.msra.mxu0 %v243
  %4571 = vmatprep.subr.mxu0 0.0
  %4572 = vmatpush1.msra.mxu0 %v244
  %4573 = vmatprep.subr.mxu0 0.0
  %4574 = vmatpush1.msra.mxu0 %v245
  %4575 = vmatprep.subr.mxu0 0.0
  %4576 = vmatpush1.msra.mxu0 %v246
  %4577 = vmatprep.subr.mxu0 0.0
  %4578 = vmatpush1.msra.mxu0 %v247
  %4579 = vmatprep.subr.mxu0 0.0
  %4580 = vmatpush1.msra.mxu0 %v248
  %4581 = vmatprep.subr.mxu0 0.0
  %4582 = vmatpush1.msra.mxu0 %v249
  %4583 = vmatprep.subr.mxu0 0.0
  %4584 = vmatpush1.msra.mxu0 %v250
  %4585 = vmatprep.subr.mxu0 0.0
  %4586 = vmatpush1.msra.mxu0 %v251
  %4587 = vmatprep.subr.mxu0 0.0
  %4588 = vmatpush1.msra.mxu0 0.0
  %4589 = vmatprep.subr.mxu0 0.0
  %4590 = vmatpush1.msra.mxu0 0.0
  %4591 = vmatprep.subr.mxu0 0.0
  %4592 = vmatpush1.msra.mxu0 0.0
  %4593 = vmatprep.subr.mxu0 0.0
  %4594 = vmatpush1.msra.mxu0 0.0
  %4595 = vmatprep.subr.mxu0 0.0
  %4596 = vmatpush1.msra.mxu0 0.0
  %4597 = vmatprep.subr.mxu0 0.0
  %4598 = vmatpush1.msra.mxu0 0.0
  %4599 = vmatprep.subr.mxu0 0.0
  %4600 = vmatpush1.msra.mxu0 0.0
  %4601 = vmatprep.subr.mxu0 0.0
  %4602 = vmatpush1.msra.mxu0 0.0
  %4603 = vmatprep.subr.mxu0 0.0
  %4604 = vmatpush1.msra.mxu0 0.0
  %4605 = vmatprep.subr.mxu0 0.0
  %4606 = vmatpush1.msra.mxu0 0.0
  %4607 = vmatprep.subr.mxu0 0.0
  %4608 = vmatpush1.msra.mxu0 0.0
  %4609 = vmatprep.subr.mxu0 0.0
  %4610 = vmatpush1.msra.mxu0 0.0
  %4611 = vmatprep.subr.mxu0 0.0
  %4612 = vmatpush1.msra.mxu0 0.0
  %4613 = vmatprep.subr.mxu0 0.0
  %4614 = vmatpush1.msra.mxu0 0.0
  %4615 = vmatprep.subr.mxu0 0.0
  %4616 = vmatpush1.msra.mxu0 0.0
  %4617 = vmatprep.subr.mxu0 0.0
  %4618 = vmatpush1.msra.mxu0 0.0
  %4619 = vmatprep.mubr.f32.mxu0 0.0
  %4620 = vmatmul.mubr.f32.gmra.mrb[0].mxu0 %v4554
  %v4621 = vpop.f32.mrb[0].mxu0
  %v4622 = vadd.f32 %v319, %v4621
  %v4623 = vpop.f32.mrb[0].mxu0
  %4624 = vdwg.mxu0
  %v4625 = vmax.f32 %v4622, 0.0
  %4626 = vmatprep.subr.mxu0 0.0
  %4627 = vmatpush1.msra.mxu0 %v252
  %4628 = vmatprep.subr.mxu0 0.0
  %4629 = vmatpush1.msra.mxu0 %v253
  %4630 = vmatprep.subr.mxu0 0.0
  %4631 = vmatpush1.msra.mxu0 %v254
  %4632 = vmatprep.subr.mxu0 0.0
  %4633 = vmatpush1.msra.mxu0 %v255
  %4634 = vmatprep.subr.mxu0 0.0
  %4635 = vmatpush1.msra.mxu0 %v256
  %4636 = vmatprep.subr.mxu0 0.0
  %4637 = vmatpush1.msra.mxu0 %v257
  %4638 = vmatprep.subr.mxu0 0.0
  %4639 = vmatpush1.msra.mxu0 %v258
  %4640 = vmatprep.subr.mxu0 0.0
  %4641 = vmatpush1.msra.mxu0 %v259
  %4642 = vmatprep.subr.mxu0 0.0
  %4643 = vmatpush1.msra.mxu0 %v260
  %4644 = vmatprep.subr.mxu0 0.0
  %4645 = vmatpush1.msra.mxu0 %v261
  %4646 = vmatprep.subr.mxu0 0.0
  %4647 = vmatpush1.msra.mxu0 %v262
  %4648 = vmatprep.subr.mxu0 0.0
  %4649 = vmatpush1.msra.mxu0 %v263
  %4650 = vmatprep.subr.mxu0 0.0
  %4651 = vmatpush1.msra.mxu0 %v264
  %4652 = vmatprep.subr.mxu0 0.0
  %4653 = vmatpush1.msra.mxu0 %v265
  %4654 = vmatprep.subr.mxu0 0.0
  %4655 = vmatpush1.msra.mxu0 %v266
  %4656 = vmatprep.subr.mxu0 0.0
  %4657 = vmatpush1.msra.mxu0 %v267
  %4658 = vmatprep.subr.mxu0 0.0
  %4659 = vmatpush1.msra.mxu0 0.0
  %4660 = vmatprep.subr.mxu0 0.0
  %4661 = vmatpush1.msra.mxu0 0.0
  %4662 = vmatprep.subr.mxu0 0.0
  %4663 = vmatpush1.msra.mxu0 0.0
  %4664 = vmatprep.subr.mxu0 0.0
  %4665 = vmatpush1.msra.mxu0 0.0
  %4666 = vmatprep.subr.mxu0 0.0
  %4667 = vmatpush1.msra.mxu0 0.0
  %4668 = vmatprep.subr.mxu0 0.0
  %4669 = vmatpush1.msra.mxu0 0.0
  %4670 = vmatprep.subr.mxu0 0.0
  %4671 = vmatpush1.msra.mxu0 0.0
  %4672 = vmatprep.subr.mxu0 0.0
  %4673 = vmatpush1.msra.mxu0 0.0
  %4674 = vmatprep.subr.mxu0 0.0
  %4675 = vmatpush1.msra.mxu0 0.0
  %4676 = vmatprep.subr.mxu0 0.0
  %4677 = vmatpush1.msra.mxu0 0.0
  %4678 = vmatprep.subr.mxu0 0.0
  %4679 = vmatpush1.msra.mxu0 0.0
  %4680 = vmatprep.subr.mxu0 0.0
  %4681 = vmatpush1.msra.mxu0 0.0
  %4682 = vmatprep.subr.mxu0 0.0
  %4683 = vmatpush1.msra.mxu0 0.0
  %4684 = vmatprep.subr.mxu0 0.0
  %4685 = vmatpush1.msra.mxu0 0.0
  %4686 = vmatprep.subr.mxu0 0.0
  %4687 = vmatpush1.msra.mxu0 0.0
  %4688 = vmatprep.subr.mxu0 0.0
  %4689 = vmatpush1.msra.mxu0 0.0
  %4690 = vmatprep.mubr.f32.mxu0 0.0
  %4691 = vmatmul.mubr.f32.gmra.mrb[0].mxu0 %v4625
  %v4692 = vpop.f32.mrb[0].mxu0
  %v4693 = vadd.f32 %v326, %v4692
  %v4694 = vpop.f32.mrb[0].mxu0
  %4695 = vdwg.mxu0
  %v4696 = vmul.f32 %v4693, 0.5
  %v4697 = vtanh.pop %v4696
  %v4698 = vadd.f32 %v4697, 1.0
  %v4699 = vmul.f32 %v4698, 0.5
  %v4702 = vcombine.low %v4699, %v4552
  %v4704 = vunpack.c.l.s4 1983009808
  %v4705 = vunpack.c.0.s8 %v4704
  %v4706 = vlaneseq
  %v4707 = vshrl.u32 %v4706, 7
  %v4708 = vsub.s32 %v4705, %v4707
  %v4709 = vrot.slane %v4702, %v4708
  %s4711 = scalar_lea.vmem %s13, 20
  %4712 = vst [vmem:[%s4711] sm:$0xf] %v4709
  %s4713 = scalar_lea.vmem %s0, 60
  %v4714 = vld [vmem:[%s4713] sm:$0xff]
  %v4715 = vld [vmem:[%s4713 + $0x8] sm:$0x3]
  %4716 = vmatprep.subr.mxu0 %v45
  %4717 = vmatpush1.msra.mxu0 %v44
  %4718 = vmatprep.subr.mxu0 %v50
  %4719 = vmatpush1.msra.mxu0 %v49
  %4720 = vmatprep.subr.mxu0 %v55
  %4721 = vmatpush1.msra.mxu0 %v54
  %4722 = vmatprep.subr.mxu0 %v60
  %4723 = vmatpush1.msra.mxu0 %v59
  %4724 = vmatprep.subr.mxu0 %v65
  %4725 = vmatpush1.msra.mxu0 %v64
  %4726 = vmatprep.subr.mxu0 %v70
  %4727 = vmatpush1.msra.mxu0 %v69
  %4728 = vmatprep.subr.mxu0 %v75
  %4729 = vmatpush1.msra.mxu0 %v74
  %4730 = vmatprep.subr.mxu0 %v80
  %4731 = vmatpush1.msra.mxu0 %v79
  %4732 = vmatprep.subr.mxu0 %v85
  %4733 = vmatpush1.msra.mxu0 %v84
  %4734 = vmatprep.subr.mxu0 %v90
  %4735 = vmatpush1.msra.mxu0 %v89
  %4736 = vmatprep.subr.mxu0 %v95
  %4737 = vmatpush1.msra.mxu0 %v94
  %4738 = vmatprep.subr.mxu0 %v100
  %4739 = vmatpush1.msra.mxu0 %v99
  %4740 = vmatprep.subr.mxu0 %v105
  %4741 = vmatpush1.msra.mxu0 %v104
  %4742 = vmatprep.subr.mxu0 %v110
  %4743 = vmatpush1.msra.mxu0 %v109
  %4744 = vmatprep.subr.mxu0 %v115
  %4745 = vmatpush1.msra.mxu0 %v114
  %4746 = vmatprep.subr.mxu0 %v120
  %4747 = vmatpush1.msra.mxu0 %v119
  %4748 = vmatprep.subr.mxu0 0.0
  %4749 = vmatpush1.msra.mxu0 0.0
  %4750 = vmatprep.subr.mxu0 0.0
  %4751 = vmatpush1.msra.mxu0 0.0
  %4752 = vmatprep.subr.mxu0 0.0
  %4753 = vmatpush1.msra.mxu0 0.0
  %4754 = vmatprep.subr.mxu0 0.0
  %4755 = vmatpush1.msra.mxu0 0.0
  %4756 = vmatprep.subr.mxu0 0.0
  %4757 = vmatpush1.msra.mxu0 0.0
  %4758 = vmatprep.subr.mxu0 0.0
  %4759 = vmatpush1.msra.mxu0 0.0
  %4760 = vmatprep.subr.mxu0 0.0
  %4761 = vmatpush1.msra.mxu0 0.0
  %4762 = vmatprep.subr.mxu0 0.0
  %4763 = vmatpush1.msra.mxu0 0.0
  %4764 = vmatprep.subr.mxu0 0.0
  %4765 = vmatpush1.msra.mxu0 0.0
  %4766 = vmatprep.subr.mxu0 0.0
  %4767 = vmatpush1.msra.mxu0 0.0
  %4768 = vmatprep.subr.mxu0 0.0
  %4769 = vmatpush1.msra.mxu0 0.0
  %4770 = vmatprep.subr.mxu0 0.0
  %4771 = vmatpush1.msra.mxu0 0.0
  %4772 = vmatprep.subr.mxu0 0.0
  %4773 = vmatpush1.msra.mxu0 0.0
  %4774 = vmatprep.subr.mxu0 0.0
  %4775 = vmatpush1.msra.mxu0 0.0
  %4776 = vmatprep.subr.mxu0 0.0
  %4777 = vmatpush1.msra.mxu0 0.0
  %4778 = vmatprep.subr.mxu0 0.0
  %4779 = vmatpush1.msra.mxu0 0.0
  %4780 = vmatprep.mubr.f32.mxu0 0.0
  %4781 = vmatmul.mubr.f32.gmra.mrb[0].mxu0 %v4552
  %v4782 = vpop.f32.mrb[0].mxu0
  %v4783 = vadd.f32 %v273, %v4782
  %v4784 = vpop.f32.mrb[0].mxu0
  %v4785 = vadd.f32 %v277, %v4784
  %4786 = vdwg.mxu0
  %4787 = vmatprep.subr.mxu0 %v47
  %4788 = vmatpush1.msra.mxu0 %v46
  %4789 = vmatprep.subr.mxu0 %v52
  %4790 = vmatpush1.msra.mxu0 %v51
  %4791 = vmatprep.subr.mxu0 %v57
  %4792 = vmatpush1.msra.mxu0 %v56
  %4793 = vmatprep.subr.mxu0 %v62
  %4794 = vmatpush1.msra.mxu0 %v61
  %4795 = vmatprep.subr.mxu0 %v67
  %4796 = vmatpush1.msra.mxu0 %v66
  %4797 = vmatprep.subr.mxu0 %v72
  %4798 = vmatpush1.msra.mxu0 %v71
  %4799 = vmatprep.subr.mxu0 %v77
  %4800 = vmatpush1.msra.mxu0 %v76
  %4801 = vmatprep.subr.mxu0 %v82
  %4802 = vmatpush1.msra.mxu0 %v81
  %4803 = vmatprep.subr.mxu0 %v87
  %4804 = vmatpush1.msra.mxu0 %v86
  %4805 = vmatprep.subr.mxu0 %v92
  %4806 = vmatpush1.msra.mxu0 %v91
  %4807 = vmatprep.subr.mxu0 %v97
  %4808 = vmatpush1.msra.mxu0 %v96
  %4809 = vmatprep.subr.mxu0 %v102
  %4810 = vmatpush1.msra.mxu0 %v101
  %4811 = vmatprep.subr.mxu0 %v107
  %4812 = vmatpush1.msra.mxu0 %v106
  %4813 = vmatprep.subr.mxu0 %v112
  %4814 = vmatpush1.msra.mxu0 %v111
  %4815 = vmatprep.subr.mxu0 %v117
  %4816 = vmatpush1.msra.mxu0 %v116
  %4817 = vmatprep.subr.mxu0 %v122
  %4818 = vmatpush1.msra.mxu0 %v121
  %4819 = vmatprep.subr.mxu0 0.0
  %4820 = vmatpush1.msra.mxu0 0.0
  %4821 = vmatprep.subr.mxu0 0.0
  %4822 = vmatpush1.msra.mxu0 0.0
  %4823 = vmatprep.subr.mxu0 0.0
  %4824 = vmatpush1.msra.mxu0 0.0
  %4825 = vmatprep.subr.mxu0 0.0
  %4826 = vmatpush1.msra.mxu0 0.0
  %4827 = vmatprep.subr.mxu0 0.0
  %4828 = vmatpush1.msra.mxu0 0.0
  %4829 = vmatprep.subr.mxu0 0.0
  %4830 = vmatpush1.msra.mxu0 0.0
  %4831 = vmatprep.subr.mxu0 0.0
  %4832 = vmatpush1.msra.mxu0 0.0
  %4833 = vmatprep.subr.mxu0 0.0
  %4834 = vmatpush1.msra.mxu0 0.0
  %4835 = vmatprep.subr.mxu0 0.0
  %4836 = vmatpush1.msra.mxu0 0.0
  %4837 = vmatprep.subr.mxu0 0.0
  %4838 = vmatpush1.msra.mxu0 0.0
  %4839 = vmatprep.subr.mxu0 0.0
  %4840 = vmatpush1.msra.mxu0 0.0
  %4841 = vmatprep.subr.mxu0 0.0
  %4842 = vmatpush1.msra.mxu0 0.0
  %4843 = vmatprep.subr.mxu0 0.0
  %4844 = vmatpush1.msra.mxu0 0.0
  %4845 = vmatprep.subr.mxu0 0.0
  %4846 = vmatpush1.msra.mxu0 0.0
  %4847 = vmatprep.subr.mxu0 0.0
  %4848 = vmatpush1.msra.mxu0 0.0
  %4849 = vmatprep.subr.mxu0 0.0
  %4850 = vmatpush1.msra.mxu0 0.0
  %4851 = vmatprep.mubr.f32.mxu0 0.0
  %4852 = vmatmul.mubr.f32.gmra.mrb[0].mxu0 %v4552
  %v4853 = vpop.f32.mrb[0].mxu0
  %v4854 = vadd.f32 %v281, %v4853
  %v4855 = vpop.f32.mrb[0].mxu0
  %v4856 = vadd.f32 %v285, %v4855
  %4857 = vdwg.mxu0
  %4858 = vmatprep.subr.mxu0 0.0
  %4859 = vmatpush1.msra.mxu0 %v48
  %4860 = vmatprep.subr.mxu0 0.0
  %4861 = vmatpush1.msra.mxu0 %v53
  %4862 = vmatprep.subr.mxu0 0.0
  %4863 = vmatpush1.msra.mxu0 %v58
  %4864 = vmatprep.subr.mxu0 0.0
  %4865 = vmatpush1.msra.mxu0 %v63
  %4866 = vmatprep.subr.mxu0 0.0
  %4867 = vmatpush1.msra.mxu0 %v68
  %4868 = vmatprep.subr.mxu0 0.0
  %4869 = vmatpush1.msra.mxu0 %v73
  %4870 = vmatprep.subr.mxu0 0.0
  %4871 = vmatpush1.msra.mxu0 %v78
  %4872 = vmatprep.subr.mxu0 0.0
  %4873 = vmatpush1.msra.mxu0 %v83
  %4874 = vmatprep.subr.mxu0 0.0
  %4875 = vmatpush1.msra.mxu0 %v88
  %4876 = vmatprep.subr.mxu0 0.0
  %4877 = vmatpush1.msra.mxu0 %v93
  %4878 = vmatprep.subr.mxu0 0.0
  %4879 = vmatpush1.msra.mxu0 %v98
  %4880 = vmatprep.subr.mxu0 0.0
  %4881 = vmatpush1.msra.mxu0 %v103
  %4882 = vmatprep.subr.mxu0 0.0
  %4883 = vmatpush1.msra.mxu0 %v108
  %4884 = vmatprep.subr.mxu0 0.0
  %4885 = vmatpush1.msra.mxu0 %v113
  %4886 = vmatprep.subr.mxu0 0.0
  %4887 = vmatpush1.msra.mxu0 %v118
  %4888 = vmatprep.subr.mxu0 0.0
  %4889 = vmatpush1.msra.mxu0 %v123
  %4890 = vmatprep.subr.mxu0 0.0
  %4891 = vmatpush1.msra.mxu0 0.0
  %4892 = vmatprep.subr.mxu0 0.0
  %4893 = vmatpush1.msra.mxu0 0.0
  %4894 = vmatprep.subr.mxu0 0.0
  %4895 = vmatpush1.msra.mxu0 0.0
  %4896 = vmatprep.subr.mxu0 0.0
  %4897 = vmatpush1.msra.mxu0 0.0
  %4898 = vmatprep.subr.mxu0 0.0
  %4899 = vmatpush1.msra.mxu0 0.0
  %4900 = vmatprep.subr.mxu0 0.0
  %4901 = vmatpush1.msra.mxu0 0.0
  %4902 = vmatprep.subr.mxu0 0.0
  %4903 = vmatpush1.msra.mxu0 0.0
  %4904 = vmatprep.subr.mxu0 0.0
  %4905 = vmatpush1.msra.mxu0 0.0
  %4906 = vmatprep.subr.mxu0 0.0
  %4907 = vmatpush1.msra.mxu0 0.0
  %4908 = vmatprep.subr.mxu0 0.0
  %4909 = vmatpush1.msra.mxu0 0.0
  %4910 = vmatprep.subr.mxu0 0.0
  %4911 = vmatpush1.msra.mxu0 0.0
  %4912 = vmatprep.subr.mxu0 0.0
  %4913 = vmatpush1.msra.mxu0 0.0
  %4914 = vmatprep.subr.mxu0 0.0
  %4915 = vmatpush1.msra.mxu0 0.0
  %4916 = vmatprep.subr.mxu0 0.0
  %4917 = vmatpush1.msra.mxu0 0.0
  %4918 = vmatprep.subr.mxu0 0.0
  %4919 = vmatpush1.msra.mxu0 0.0
  %4920 = vmatprep.subr.mxu0 0.0
  %4921 = vmatpush1.msra.mxu0 0.0
  %4922 = vmatprep.mubr.f32.mxu0 0.0
  %4923 = vmatmul.mubr.f32.gmra.mrb[0].mxu0 %v4552
  %v4924 = vpop.f32.mrb[0].mxu0
  %v4925 = vadd.f32 %v289, %v4924
  %v4926 = vpop.f32.mrb[0].mxu0
  %4927 = vdwg.mxu0
  %v4928 = vadd.f32 %v4714, %v4783
  %v4929 = vmax.f32 %v4928, 0.0
  %4930 = vmatprep.subr.mxu0 0.0
  %4931 = vmatpush1.msra.mxu0 %v188
  %4932 = vmatprep.subr.mxu0 0.0
  %4933 = vmatpush1.msra.mxu0 %v189
  %4934 = vmatprep.subr.mxu0 0.0
  %4935 = vmatpush1.msra.mxu0 %v190
  %4936 = vmatprep.subr.mxu0 0.0
  %4937 = vmatpush1.msra.mxu0 %v191
  %4938 = vmatprep.subr.mxu0 0.0
  %4939 = vmatpush1.msra.mxu0 %v192
  %4940 = vmatprep.subr.mxu0 0.0
  %4941 = vmatpush1.msra.mxu0 %v193
  %4942 = vmatprep.subr.mxu0 0.0
  %4943 = vmatpush1.msra.mxu0 %v194
  %4944 = vmatprep.subr.mxu0 0.0
  %4945 = vmatpush1.msra.mxu0 %v195
  %4946 = vmatprep.subr.mxu0 0.0
  %4947 = vmatpush1.msra.mxu0 %v196
  %4948 = vmatprep.subr.mxu0 0.0
  %4949 = vmatpush1.msra.mxu0 %v197
  %4950 = vmatprep.subr.mxu0 0.0
  %4951 = vmatpush1.msra.mxu0 %v198
  %4952 = vmatprep.subr.mxu0 0.0
  %4953 = vmatpush1.msra.mxu0 %v199
  %4954 = vmatprep.subr.mxu0 0.0
  %4955 = vmatpush1.msra.mxu0 %v200
  %4956 = vmatprep.subr.mxu0 0.0
  %4957 = vmatpush1.msra.mxu0 %v201
  %4958 = vmatprep.subr.mxu0 0.0
  %4959 = vmatpush1.msra.mxu0 %v202
  %4960 = vmatprep.subr.mxu0 0.0
  %4961 = vmatpush1.msra.mxu0 %v203
  %4962 = vmatprep.subr.mxu0 0.0
  %4963 = vmatpush1.msra.mxu0 0.0
  %4964 = vmatprep.subr.mxu0 0.0
  %4965 = vmatpush1.msra.mxu0 0.0
  %4966 = vmatprep.subr.mxu0 0.0
  %4967 = vmatpush1.msra.mxu0 0.0
  %4968 = vmatprep.subr.mxu0 0.0
  %4969 = vmatpush1.msra.mxu0 0.0
  %4970 = vmatprep.subr.mxu0 0.0
  %4971 = vmatpush1.msra.mxu0 0.0
  %4972 = vmatprep.subr.mxu0 0.0
  %4973 = vmatpush1.msra.mxu0 0.0
  %4974 = vmatprep.subr.mxu0 0.0
  %4975 = vmatpush1.msra.mxu0 0.0
  %4976 = vmatprep.subr.mxu0 0.0
  %4977 = vmatpush1.msra.mxu0 0.0
  %4978 = vmatprep.subr.mxu0 0.0
  %4979 = vmatpush1.msra.mxu0 0.0
  %4980 = vmatprep.subr.mxu0 0.0
  %4981 = vmatpush1.msra.mxu0 0.0
  %4982 = vmatprep.subr.mxu0 0.0
  %4983 = vmatpush1.msra.mxu0 0.0
  %4984 = vmatprep.subr.mxu0 0.0
  %4985 = vmatpush1.msra.mxu0 0.0
  %4986 = vmatprep.subr.mxu0 0.0
  %4987 = vmatpush1.msra.mxu0 0.0
  %4988 = vmatprep.subr.mxu0 0.0
  %4989 = vmatpush1.msra.mxu0 0.0
  %4990 = vmatprep.subr.mxu0 0.0
  %4991 = vmatpush1.msra.mxu0 0.0
  %4992 = vmatprep.subr.mxu0 0.0
  %4993 = vmatpush1.msra.mxu0 0.0
  %4994 = vmatprep.mubr.f32.mxu0 0.0
  %4995 = vmatmul.mubr.f32.gmra.mrb[0].mxu0 %v4929
  %v4996 = vpop.f32.mrb[0].mxu0
  %v4997 = vadd.f32 %v300, %v4996
  %v4998 = vpop.f32.mrb[0].mxu0
  %4999 = vdwg.mxu0
  %v5000 = vmax.f32 %v4997, 0.0
  %5001 = vmatprep.subr.mxu0 %v205
  %5002 = vmatpush1.msra.mxu0 %v204
  %5003 = vmatprep.subr.mxu0 %v207
  %5004 = vmatpush1.msra.mxu0 %v206
  %5005 = vmatprep.subr.mxu0 %v209
  %5006 = vmatpush1.msra.mxu0 %v208
  %5007 = vmatprep.subr.mxu0 %v211
  %5008 = vmatpush1.msra.mxu0 %v210
  %5009 = vmatprep.subr.mxu0 %v213
  %5010 = vmatpush1.msra.mxu0 %v212
  %5011 = vmatprep.subr.mxu0 %v215
  %5012 = vmatpush1.msra.mxu0 %v214
  %5013 = vmatprep.subr.mxu0 %v217
  %5014 = vmatpush1.msra.mxu0 %v216
  %5015 = vmatprep.subr.mxu0 %v219
  %5016 = vmatpush1.msra.mxu0 %v218
  %5017 = vmatprep.subr.mxu0 %v221
  %5018 = vmatpush1.msra.mxu0 %v220
  %5019 = vmatprep.subr.mxu0 %v223
  %5020 = vmatpush1.msra.mxu0 %v222
  %5021 = vmatprep.subr.mxu0 %v225
  %5022 = vmatpush1.msra.mxu0 %v224
  %5023 = vmatprep.subr.mxu0 %v227
  %5024 = vmatpush1.msra.mxu0 %v226
  %5025 = vmatprep.subr.mxu0 %v229
  %5026 = vmatpush1.msra.mxu0 %v228
  %5027 = vmatprep.subr.mxu0 %v231
  %5028 = vmatpush1.msra.mxu0 %v230
  %5029 = vmatprep.subr.mxu0 %v233
  %5030 = vmatpush1.msra.mxu0 %v232
  %5031 = vmatprep.subr.mxu0 %v235
  %5032 = vmatpush1.msra.mxu0 %v234
  %5033 = vmatprep.subr.mxu0 0.0
  %5034 = vmatpush1.msra.mxu0 0.0
  %5035 = vmatprep.subr.mxu0 0.0
  %5036 = vmatpush1.msra.mxu0 0.0
  %5037 = vmatprep.subr.mxu0 0.0
  %5038 = vmatpush1.msra.mxu0 0.0
  %5039 = vmatprep.subr.mxu0 0.0
  %5040 = vmatpush1.msra.mxu0 0.0
  %5041 = vmatprep.subr.mxu0 0.0
  %5042 = vmatpush1.msra.mxu0 0.0
  %5043 = vmatprep.subr.mxu0 0.0
  %5044 = vmatpush1.msra.mxu0 0.0
  %5045 = vmatprep.subr.mxu0 0.0
  %5046 = vmatpush1.msra.mxu0 0.0
  %5047 = vmatprep.subr.mxu0 0.0
  %5048 = vmatpush1.msra.mxu0 0.0
  %5049 = vmatprep.subr.mxu0 0.0
  %5050 = vmatpush1.msra.mxu0 0.0
  %5051 = vmatprep.subr.mxu0 0.0
  %5052 = vmatpush1.msra.mxu0 0.0
  %5053 = vmatprep.subr.mxu0 0.0
  %5054 = vmatpush1.msra.mxu0 0.0
  %5055 = vmatprep.subr.mxu0 0.0
  %5056 = vmatpush1.msra.mxu0 0.0
  %5057 = vmatprep.subr.mxu0 0.0
  %5058 = vmatpush1.msra.mxu0 0.0
  %5059 = vmatprep.subr.mxu0 0.0
  %5060 = vmatpush1.msra.mxu0 0.0
  %5061 = vmatprep.subr.mxu0 0.0
  %5062 = vmatpush1.msra.mxu0 0.0
  %5063 = vmatprep.subr.mxu0 0.0
  %5064 = vmatpush1.msra.mxu0 0.0
  %5065 = vmatprep.mubr.f32.mxu0 0.0
  %5066 = vmatmul.mubr.f32.gmra.mrb[0].mxu0 %v5000
  %v5067 = vpop.f32.mrb[0].mxu0
  %v5068 = vadd.f32 %v307, %v5067
  %v5069 = vpop.f32.mrb[0].mxu0
  %v5070 = vadd.f32 %v311, %v5069
  %5071 = vdwg.mxu0
  %v5072 = vmax.f32 %v5070, 0.0
  %v5073 = vand.u32 2147483647, %v5070
  %v5074 = vsub.f32 0.0, %v5073
  %v5075 = vmul.f32 %v5074, 1.442695
  %v5076 = vpow.pop %v5075
  %v5077 = vadd.f32 %v5076, 1.0
  %v5078 = vlog2.pop %v5077
  %v5079 = vmul.f32 %v5078, 0.6931472
  %v5080 = vmul.f32 -0.5, %v5076
  %v5081 = vadd.f32 %v5080, 1.0
  %v5082 = vmul.f32 %v5081, %v5076
  %v5083 = vand.u32 2147483647, %v5076
  %vm5084 = vcmp.lt.f32.partialorder %v5083, 0.0004427343
  %v5085 = vsel %vm5084, %v5082, %v5079
  %v5086 = vadd.f32 %v5072, %v5085
  %v5087 = vmul.f32 %v4715, %v5086
  %v5088 = vadd.f32 %v5087, %v5068
  %5089 = vmatprep.subr.mxu0 %v125
  %5090 = vmatpush1.msra.mxu0 %v124
  %5091 = vmatprep.subr.mxu0 %v129
  %5092 = vmatpush1.msra.mxu0 %v128
  %5093 = vmatprep.subr.mxu0 %v133
  %5094 = vmatpush1.msra.mxu0 %v132
  %5095 = vmatprep.subr.mxu0 %v137
  %5096 = vmatpush1.msra.mxu0 %v136
  %5097 = vmatprep.subr.mxu0 %v141
  %5098 = vmatpush1.msra.mxu0 %v140
  %5099 = vmatprep.subr.mxu0 %v145
  %5100 = vmatpush1.msra.mxu0 %v144
  %5101 = vmatprep.subr.mxu0 %v149
  %5102 = vmatpush1.msra.mxu0 %v148
  %5103 = vmatprep.subr.mxu0 %v153
  %5104 = vmatpush1.msra.mxu0 %v152
  %5105 = vmatprep.subr.mxu0 %v157
  %5106 = vmatpush1.msra.mxu0 %v156
  %5107 = vmatprep.subr.mxu0 %v161
  %5108 = vmatpush1.msra.mxu0 %v160
  %5109 = vmatprep.subr.mxu0 %v165
  %5110 = vmatpush1.msra.mxu0 %v164
  %5111 = vmatprep.subr.mxu0 %v169
  %5112 = vmatpush1.msra.mxu0 %v168
  %5113 = vmatprep.subr.mxu0 %v173
  %5114 = vmatpush1.msra.mxu0 %v172
  %5115 = vmatprep.subr.mxu0 %v177
  %5116 = vmatpush1.msra.mxu0 %v176
  %5117 = vmatprep.subr.mxu0 %v181
  %5118 = vmatpush1.msra.mxu0 %v180
  %5119 = vmatprep.subr.mxu0 %v185
  %5120 = vmatpush1.msra.mxu0 %v184
  %5121 = vmatprep.subr.mxu0 0.0
  %5122 = vmatpush1.msra.mxu0 0.0
  %5123 = vmatprep.subr.mxu0 0.0
  %5124 = vmatpush1.msra.mxu0 0.0
  %5125 = vmatprep.subr.mxu0 0.0
  %5126 = vmatpush1.msra.mxu0 0.0
  %5127 = vmatprep.subr.mxu0 0.0
  %5128 = vmatpush1.msra.mxu0 0.0
  %5129 = vmatprep.subr.mxu0 0.0
  %5130 = vmatpush1.msra.mxu0 0.0
  %5131 = vmatprep.subr.mxu0 0.0
  %5132 = vmatpush1.msra.mxu0 0.0
  %5133 = vmatprep.subr.mxu0 0.0
  %5134 = vmatpush1.msra.mxu0 0.0
  %5135 = vmatprep.subr.mxu0 0.0
  %5136 = vmatpush1.msra.mxu0 0.0
  %5137 = vmatprep.subr.mxu0 0.0
  %5138 = vmatpush1.msra.mxu0 0.0
  %5139 = vmatprep.subr.mxu0 0.0
  %5140 = vmatpush1.msra.mxu0 0.0
  %5141 = vmatprep.subr.mxu0 0.0
  %5142 = vmatpush1.msra.mxu0 0.0
  %5143 = vmatprep.subr.mxu0 0.0
  %5144 = vmatpush1.msra.mxu0 0.0
  %5145 = vmatprep.subr.mxu0 0.0
  %5146 = vmatpush1.msra.mxu0 0.0
  %5147 = vmatprep.subr.mxu0 0.0
  %5148 = vmatpush1.msra.mxu0 0.0
  %5149 = vmatprep.subr.mxu0 0.0
  %5150 = vmatpush1.msra.mxu0 0.0
  %5151 = vmatprep.subr.mxu0 0.0
  %5152 = vmatpush1.msra.mxu0 0.0
  %5153 = vmatprep.mubr.f32.mxu0 0.0
  %5154 = vmatmul.mubr.f32.gmra.mrb[0].mxu0 %v5088
  %v5155 = vpop.f32.mrb[0].mxu0
  %v5156 = vadd.f32 0.0, %v5155
  %v5157 = vpop.f32.mrb[0].mxu0
  %v5158 = vadd.f32 0.0, %v5157
  %5159 = vdwg.mxu0
  %5160 = vmatprep.subr.mxu0 %v127
  %5161 = vmatpush1.msra.mxu0 %v126
  %5162 = vmatprep.subr.mxu0 %v131
  %5163 = vmatpush1.msra.mxu0 %v130
  %5164 = vmatprep.subr.mxu0 %v135
  %5165 = vmatpush1.msra.mxu0 %v134
  %5166 = vmatprep.subr.mxu0 %v139
  %5167 = vmatpush1.msra.mxu0 %v138
  %5168 = vmatprep.subr.mxu0 %v143
  %5169 = vmatpush1.msra.mxu0 %v142
  %5170 = vmatprep.subr.mxu0 %v147
  %5171 = vmatpush1.msra.mxu0 %v146
  %5172 = vmatprep.subr.mxu0 %v151
  %5173 = vmatpush1.msra.mxu0 %v150
  %5174 = vmatprep.subr.mxu0 %v155
  %5175 = vmatpush1.msra.mxu0 %v154
  %5176 = vmatprep.subr.mxu0 %v159
  %5177 = vmatpush1.msra.mxu0 %v158
  %5178 = vmatprep.subr.mxu0 %v163
  %5179 = vmatpush1.msra.mxu0 %v162
  %5180 = vmatprep.subr.mxu0 %v167
  %5181 = vmatpush1.msra.mxu0 %v166
  %5182 = vmatprep.subr.mxu0 %v171
  %5183 = vmatpush1.msra.mxu0 %v170
  %5184 = vmatprep.subr.mxu0 %v175
  %5185 = vmatpush1.msra.mxu0 %v174
  %5186 = vmatprep.subr.mxu0 %v179
  %5187 = vmatpush1.msra.mxu0 %v178
  %5188 = vmatprep.subr.mxu0 %v183
  %5189 = vmatpush1.msra.mxu0 %v182
  %5190 = vmatprep.subr.mxu0 %v187
  %5191 = vmatpush1.msra.mxu0 %v186
  %5192 = vmatprep.subr.mxu0 0.0
  %5193 = vmatpush1.msra.mxu0 0.0
  %5194 = vmatprep.subr.mxu0 0.0
  %5195 = vmatpush1.msra.mxu0 0.0
  %5196 = vmatprep.subr.mxu0 0.0
  %5197 = vmatpush1.msra.mxu0 0.0
  %5198 = vmatprep.subr.mxu0 0.0
  %5199 = vmatpush1.msra.mxu0 0.0
  %5200 = vmatprep.subr.mxu0 0.0
  %5201 = vmatpush1.msra.mxu0 0.0
  %5202 = vmatprep.subr.mxu0 0.0
  %5203 = vmatpush1.msra.mxu0 0.0
  %5204 = vmatprep.subr.mxu0 0.0
  %5205 = vmatpush1.msra.mxu0 0.0
  %5206 = vmatprep.subr.mxu0 0.0
  %5207 = vmatpush1.msra.mxu0 0.0
  %5208 = vmatprep.subr.mxu0 0.0
  %5209 = vmatpush1.msra.mxu0 0.0
  %5210 = vmatprep.subr.mxu0 0.0
  %5211 = vmatpush1.msra.mxu0 0.0
  %5212 = vmatprep.subr.mxu0 0.0
  %5213 = vmatpush1.msra.mxu0 0.0
  %5214 = vmatprep.subr.mxu0 0.0
  %5215 = vmatpush1.msra.mxu0 0.0
  %5216 = vmatprep.subr.mxu0 0.0
  %5217 = vmatpush1.msra.mxu0 0.0
  %5218 = vmatprep.subr.mxu0 0.0
  %5219 = vmatpush1.msra.mxu0 0.0
  %5220 = vmatprep.subr.mxu0 0.0
  %5221 = vmatpush1.msra.mxu0 0.0
  %5222 = vmatprep.subr.mxu0 0.0
  %5223 = vmatpush1.msra.mxu0 0.0
  %5224 = vmatprep.mubr.f32.mxu0 0.0
  %5225 = vmatmul.mubr.f32.gmra.mrb[0].mxu0 %v5088
  %v5226 = vpop.f32.mrb[0].mxu0
  %v5227 = vadd.f32 0.0, %v5226
  %v5228 = vpop.f32.mrb[0].mxu0
  %v5229 = vadd.f32 0.0, %v5228
  %5230 = vdwg.mxu0
  %v5232 = vrot.slane %v4714, 2
  %v5237 = vcombine.low %v5158, %v5227
  %v5239 = vunpack.c.l.s4 1983009808
  %v5240 = vunpack.c.0.s8 %v5239
  %v5241 = vlaneseq
  %v5242 = vshrl.u32 %v5241, 7
  %v5243 = vsub.s32 %v5240, %v5242
  %v5244 = vrot.slane %v5237, %v5243
  %v5246 = vunpack.c.l.s4 1983009808
  %v5247 = vunpack.c.0.s8 %v5246
  %v5248 = vlaneseq
  %v5249 = vshrl.u32 %v5248, 7
  %v5250 = vsub.s32 %v5247, %v5249
  %v5251 = vrot.slane %v5229, %v5250
  %v5252 = vcombine.low %v5244, %v5251
  %v5254 = vadd.f32 %v5232, %v5252
  %v5257 = vcombine.low %v4854, %v4856
  %v5259 = vunpack.c.l.s4 1983009808
  %v5260 = vunpack.c.0.s8 %v5259
  %v5261 = vlaneseq
  %v5262 = vshrl.u32 %v5261, 7
  %v5263 = vsub.s32 %v5260, %v5262
  %v5264 = vrot.slane %v5257, %v5263
  %v5266 = vadd.f32 %v5254, %v5264
  %v5267 = vmul.f32 %v5266, 0.5
  %v5268 = vtanh.pop %v5267
  %v5269 = vadd.f32 %v5268, 1.0
  %v5270 = vmul.f32 %v5269, 0.5
  %v5271 = vmul.f32 %v5270, %v4925
  %v5273 = vrot.slane %v5254, 4
  %v5275 = vadd.f32 %v5273, %v5271
  %v5276 = vtanh.pop %v5275
  %v5278 = vrot.slane %v5270, 2
  %v5280 = vsub.f32 1.0, %v5278
  %v5281 = vmul.f32 %v5280, %v5276
  %v5282 = vmul.f32 %v5278, %v4552
  %v5283 = vadd.f32 %v5281, %v5282
  %v5284 = vadd.f32 %v5156, %v4785
  %v5285 = vmax.f32 %v5284, 0.0
  %5286 = vmatprep.subr.mxu0 0.0
  %5287 = vmatpush1.msra.mxu0 %v236
  %5288 = vmatprep.subr.mxu0 0.0
  %5289 = vmatpush1.msra.mxu0 %v237
  %5290 = vmatprep.subr.mxu0 0.0
  %5291 = vmatpush1.msra.mxu0 %v238
  %5292 = vmatprep.subr.mxu0 0.0
  %5293 = vmatpush1.msra.mxu0 %v239
  %5294 = vmatprep.subr.mxu0 0.0
  %5295 = vmatpush1.msra.mxu0 %v240
  %5296 = vmatprep.subr.mxu0 0.0
  %5297 = vmatpush1.msra.mxu0 %v241
  %5298 = vmatprep.subr.mxu0 0.0
  %5299 = vmatpush1.msra.mxu0 %v242
  %5300 = vmatprep.subr.mxu0 0.0
  %5301 = vmatpush1.msra.mxu0 %v243
  %5302 = vmatprep.subr.mxu0 0.0
  %5303 = vmatpush1.msra.mxu0 %v244
  %5304 = vmatprep.subr.mxu0 0.0
  %5305 = vmatpush1.msra.mxu0 %v245
  %5306 = vmatprep.subr.mxu0 0.0
  %5307 = vmatpush1.msra.mxu0 %v246
  %5308 = vmatprep.subr.mxu0 0.0
  %5309 = vmatpush1.msra.mxu0 %v247
  %5310 = vmatprep.subr.mxu0 0.0
  %5311 = vmatpush1.msra.mxu0 %v248
  %5312 = vmatprep.subr.mxu0 0.0
  %5313 = vmatpush1.msra.mxu0 %v249
  %5314 = vmatprep.subr.mxu0 0.0
  %5315 = vmatpush1.msra.mxu0 %v250
  %5316 = vmatprep.subr.mxu0 0.0
  %5317 = vmatpush1.msra.mxu0 %v251
  %5318 = vmatprep.subr.mxu0 0.0
  %5319 = vmatpush1.msra.mxu0 0.0
  %5320 = vmatprep.subr.mxu0 0.0
  %5321 = vmatpush1.msra.mxu0 0.0
  %5322 = vmatprep.subr.mxu0 0.0
  %5323 = vmatpush1.msra.mxu0 0.0
  %5324 = vmatprep.subr.mxu0 0.0
  %5325 = vmatpush1.msra.mxu0 0.0
  %5326 = vmatprep.subr.mxu0 0.0
  %5327 = vmatpush1.msra.mxu0 0.0
  %5328 = vmatprep.subr.mxu0 0.0
  %5329 = vmatpush1.msra.mxu0 0.0
  %5330 = vmatprep.subr.mxu0 0.0
  %5331 = vmatpush1.msra.mxu0 0.0
  %5332 = vmatprep.subr.mxu0 0.0
  %5333 = vmatpush1.msra.mxu0 0.0
  %5334 = vmatprep.subr.mxu0 0.0
  %5335 = vmatpush1.msra.mxu0 0.0
  %5336 = vmatprep.subr.mxu0 0.0
  %5337 = vmatpush1.msra.mxu0 0.0
  %5338 = vmatprep.subr.mxu0 0.0
  %5339 = vmatpush1.msra.mxu0 0.0
  %5340 = vmatprep.subr.mxu0 0.0
  %5341 = vmatpush1.msra.mxu0 0.0
  %5342 = vmatprep.subr.mxu0 0.0
  %5343 = vmatpush1.msra.mxu0 0.0
  %5344 = vmatprep.subr.mxu0 0.0
  %5345 = vmatpush1.msra.mxu0 0.0
  %5346 = vmatprep.subr.mxu0 0.0
  %5347 = vmatpush1.msra.mxu0 0.0
  %5348 = vmatprep.subr.mxu0 0.0
  %5349 = vmatpush1.msra.mxu0 0.0
  %5350 = vmatprep.mubr.f32.mxu0 0.0
  %5351 = vmatmul.mubr.f32.gmra.mrb[0].mxu0 %v5285
  %v5352 = vpop.f32.mrb[0].mxu0
  %v5353 = vadd.f32 %v319, %v5352
  %v5354 = vpop.f32.mrb[0].mxu0
  %5355 = vdwg.mxu0
  %v5356 = vmax.f32 %v5353, 0.0
  %5357 = vmatprep.subr.mxu0 0.0
  %5358 = vmatpush1.msra.mxu0 %v252
  %5359 = vmatprep.subr.mxu0 0.0
  %5360 = vmatpush1.msra.mxu0 %v253
  %5361 = vmatprep.subr.mxu0 0.0
  %5362 = vmatpush1.msra.mxu0 %v254
  %5363 = vmatprep.subr.mxu0 0.0
  %5364 = vmatpush1.msra.mxu0 %v255
  %5365 = vmatprep.subr.mxu0 0.0
  %5366 = vmatpush1.msra.mxu0 %v256
  %5367 = vmatprep.subr.mxu0 0.0
  %5368 = vmatpush1.msra.mxu0 %v257
  %5369 = vmatprep.subr.mxu0 0.0
  %5370 = vmatpush1.msra.mxu0 %v258
  %5371 = vmatprep.subr.mxu0 0.0
  %5372 = vmatpush1.msra.mxu0 %v259
  %5373 = vmatprep.subr.mxu0 0.0
  %5374 = vmatpush1.msra.mxu0 %v260
  %5375 = vmatprep.subr.mxu0 0.0
  %5376 = vmatpush1.msra.mxu0 %v261
  %5377 = vmatprep.subr.mxu0 0.0
  %5378 = vmatpush1.msra.mxu0 %v262
  %5379 = vmatprep.subr.mxu0 0.0
  %5380 = vmatpush1.msra.mxu0 %v263
  %5381 = vmatprep.subr.mxu0 0.0
  %5382 = vmatpush1.msra.mxu0 %v264
  %5383 = vmatprep.subr.mxu0 0.0
  %5384 = vmatpush1.msra.mxu0 %v265
  %5385 = vmatprep.subr.mxu0 0.0
  %5386 = vmatpush1.msra.mxu0 %v266
  %5387 = vmatprep.subr.mxu0 0.0
  %5388 = vmatpush1.msra.mxu0 %v267
  %5389 = vmatprep.subr.mxu0 0.0
  %5390 = vmatpush1.msra.mxu0 0.0
  %5391 = vmatprep.subr.mxu0 0.0
  %5392 = vmatpush1.msra.mxu0 0.0
  %5393 = vmatprep.subr.mxu0 0.0
  %5394 = vmatpush1.msra.mxu0 0.0
  %5395 = vmatprep.subr.mxu0 0.0
  %5396 = vmatpush1.msra.mxu0 0.0
  %5397 = vmatprep.subr.mxu0 0.0
  %5398 = vmatpush1.msra.mxu0 0.0
  %5399 = vmatprep.subr.mxu0 0.0
  %5400 = vmatpush1.msra.mxu0 0.0
  %5401 = vmatprep.subr.mxu0 0.0
  %5402 = vmatpush1.msra.mxu0 0.0
  %5403 = vmatprep.subr.mxu0 0.0
  %5404 = vmatpush1.msra.mxu0 0.0
  %5405 = vmatprep.subr.mxu0 0.0
  %5406 = vmatpush1.msra.mxu0 0.0
  %5407 = vmatprep.subr.mxu0 0.0
  %5408 = vmatpush1.msra.mxu0 0.0
  %5409 = vmatprep.subr.mxu0 0.0
  %5410 = vmatpush1.msra.mxu0 0.0
  %5411 = vmatprep.subr.mxu0 0.0
  %5412 = vmatpush1.msra.mxu0 0.0
  %5413 = vmatprep.subr.mxu0 0.0
  %5414 = vmatpush1.msra.mxu0 0.0
  %5415 = vmatprep.subr.mxu0 0.0
  %5416 = vmatpush1.msra.mxu0 0.0
  %5417 = vmatprep.subr.mxu0 0.0
  %5418 = vmatpush1.msra.mxu0 0.0
  %5419 = vmatprep.subr.mxu0 0.0
  %5420 = vmatpush1.msra.mxu0 0.0
  %5421 = vmatprep.mubr.f32.mxu0 0.0
  %5422 = vmatmul.mubr.f32.gmra.mrb[0].mxu0 %v5356
  %v5423 = vpop.f32.mrb[0].mxu0
  %v5424 = vadd.f32 %v326, %v5423
  %v5425 = vpop.f32.mrb[0].mxu0
  %5426 = vdwg.mxu0
  %v5427 = vmul.f32 %v5424, 0.5
  %v5428 = vtanh.pop %v5427
  %v5429 = vadd.f32 %v5428, 1.0
  %v5430 = vmul.f32 %v5429, 0.5
  %v5433 = vcombine.low %v5430, %v5283
  %v5435 = vunpack.c.l.s4 1983009808
  %v5436 = vunpack.c.0.s8 %v5435
  %v5437 = vlaneseq
  %v5438 = vshrl.u32 %v5437, 7
  %v5439 = vsub.s32 %v5436, %v5438
  %v5440 = vrot.slane %v5433, %v5439
  %s5442 = scalar_lea.vmem %s13, 24
  %5443 = vst [vmem:[%s5442] sm:$0xf] %v5440
  %s5444 = scalar_lea.vmem %s0, 70
  %v5445 = vld [vmem:[%s5444] sm:$0xff]
  %v5446 = vld [vmem:[%s5444 + $0x8] sm:$0x3]
  %5447 = vmatprep.subr.mxu0 %v45
  %5448 = vmatpush1.msra.mxu0 %v44
  %5449 = vmatprep.subr.mxu0 %v50
  %5450 = vmatpush1.msra.mxu0 %v49
  %5451 = vmatprep.subr.mxu0 %v55
  %5452 = vmatpush1.msra.mxu0 %v54
  %5453 = vmatprep.subr.mxu0 %v60
  %5454 = vmatpush1.msra.mxu0 %v59
  %5455 = vmatprep.subr.mxu0 %v65
  %5456 = vmatpush1.msra.mxu0 %v64
  %5457 = vmatprep.subr.mxu0 %v70
  %5458 = vmatpush1.msra.mxu0 %v69
  %5459 = vmatprep.subr.mxu0 %v75
  %5460 = vmatpush1.msra.mxu0 %v74
  %5461 = vmatprep.subr.mxu0 %v80
  %5462 = vmatpush1.msra.mxu0 %v79
  %5463 = vmatprep.subr.mxu0 %v85
  %5464 = vmatpush1.msra.mxu0 %v84
  %5465 = vmatprep.subr.mxu0 %v90
  %5466 = vmatpush1.msra.mxu0 %v89
  %5467 = vmatprep.subr.mxu0 %v95
  %5468 = vmatpush1.msra.mxu0 %v94
  %5469 = vmatprep.subr.mxu0 %v100
  %5470 = vmatpush1.msra.mxu0 %v99
  %5471 = vmatprep.subr.mxu0 %v105
  %5472 = vmatpush1.msra.mxu0 %v104
  %5473 = vmatprep.subr.mxu0 %v110
  %5474 = vmatpush1.msra.mxu0 %v109
  %5475 = vmatprep.subr.mxu0 %v115
  %5476 = vmatpush1.msra.mxu0 %v114
  %5477 = vmatprep.subr.mxu0 %v120
  %5478 = vmatpush1.msra.mxu0 %v119
  %5479 = vmatprep.subr.mxu0 0.0
  %5480 = vmatpush1.msra.mxu0 0.0
  %5481 = vmatprep.subr.mxu0 0.0
  %5482 = vmatpush1.msra.mxu0 0.0
  %5483 = vmatprep.subr.mxu0 0.0
  %5484 = vmatpush1.msra.mxu0 0.0
  %5485 = vmatprep.subr.mxu0 0.0
  %5486 = vmatpush1.msra.mxu0 0.0
  %5487 = vmatprep.subr.mxu0 0.0
  %5488 = vmatpush1.msra.mxu0 0.0
  %5489 = vmatprep.subr.mxu0 0.0
  %5490 = vmatpush1.msra.mxu0 0.0
  %5491 = vmatprep.subr.mxu0 0.0
  %5492 = vmatpush1.msra.mxu0 0.0
  %5493 = vmatprep.subr.mxu0 0.0
  %5494 = vmatpush1.msra.mxu0 0.0
  %5495 = vmatprep.subr.mxu0 0.0
  %5496 = vmatpush1.msra.mxu0 0.0
  %5497 = vmatprep.subr.mxu0 0.0
  %5498 = vmatpush1.msra.mxu0 0.0
  %5499 = vmatprep.subr.mxu0 0.0
  %5500 = vmatpush1.msra.mxu0 0.0
  %5501 = vmatprep.subr.mxu0 0.0
  %5502 = vmatpush1.msra.mxu0 0.0
  %5503 = vmatprep.subr.mxu0 0.0
  %5504 = vmatpush1.msra.mxu0 0.0
  %5505 = vmatprep.subr.mxu0 0.0
  %5506 = vmatpush1.msra.mxu0 0.0
  %5507 = vmatprep.subr.mxu0 0.0
  %5508 = vmatpush1.msra.mxu0 0.0
  %5509 = vmatprep.subr.mxu0 0.0
  %5510 = vmatpush1.msra.mxu0 0.0
  %5511 = vmatprep.mubr.f32.mxu0 0.0
  %5512 = vmatmul.mubr.f32.gmra.mrb[0].mxu0 %v5283
  %v5513 = vpop.f32.mrb[0].mxu0
  %v5514 = vadd.f32 %v273, %v5513
  %v5515 = vpop.f32.mrb[0].mxu0
  %v5516 = vadd.f32 %v277, %v5515
  %5517 = vdwg.mxu0
  %5518 = vmatprep.subr.mxu0 %v47
  %5519 = vmatpush1.msra.mxu0 %v46
  %5520 = vmatprep.subr.mxu0 %v52
  %5521 = vmatpush1.msra.mxu0 %v51
  %5522 = vmatprep.subr.mxu0 %v57
  %5523 = vmatpush1.msra.mxu0 %v56
  %5524 = vmatprep.subr.mxu0 %v62
  %5525 = vmatpush1.msra.mxu0 %v61
  %5526 = vmatprep.subr.mxu0 %v67
  %5527 = vmatpush1.msra.mxu0 %v66
  %5528 = vmatprep.subr.mxu0 %v72
  %5529 = vmatpush1.msra.mxu0 %v71
  %5530 = vmatprep.subr.mxu0 %v77
  %5531 = vmatpush1.msra.mxu0 %v76
  %5532 = vmatprep.subr.mxu0 %v82
  %5533 = vmatpush1.msra.mxu0 %v81
  %5534 = vmatprep.subr.mxu0 %v87
  %5535 = vmatpush1.msra.mxu0 %v86
  %5536 = vmatprep.subr.mxu0 %v92
  %5537 = vmatpush1.msra.mxu0 %v91
  %5538 = vmatprep.subr.mxu0 %v97
  %5539 = vmatpush1.msra.mxu0 %v96
  %5540 = vmatprep.subr.mxu0 %v102
  %5541 = vmatpush1.msra.mxu0 %v101
  %5542 = vmatprep.subr.mxu0 %v107
  %5543 = vmatpush1.msra.mxu0 %v106
  %5544 = vmatprep.subr.mxu0 %v112
  %5545 = vmatpush1.msra.mxu0 %v111
  %5546 = vmatprep.subr.mxu0 %v117
  %5547 = vmatpush1.msra.mxu0 %v116
  %5548 = vmatprep.subr.mxu0 %v122
  %5549 = vmatpush1.msra.mxu0 %v121
  %5550 = vmatprep.subr.mxu0 0.0
  %5551 = vmatpush1.msra.mxu0 0.0
  %5552 = vmatprep.subr.mxu0 0.0
  %5553 = vmatpush1.msra.mxu0 0.0
  %5554 = vmatprep.subr.mxu0 0.0
  %5555 = vmatpush1.msra.mxu0 0.0
  %5556 = vmatprep.subr.mxu0 0.0
  %5557 = vmatpush1.msra.mxu0 0.0
  %5558 = vmatprep.subr.mxu0 0.0
  %5559 = vmatpush1.msra.mxu0 0.0
  %5560 = vmatprep.subr.mxu0 0.0
  %5561 = vmatpush1.msra.mxu0 0.0
  %5562 = vmatprep.subr.mxu0 0.0
  %5563 = vmatpush1.msra.mxu0 0.0
  %5564 = vmatprep.subr.mxu0 0.0
  %5565 = vmatpush1.msra.mxu0 0.0
  %5566 = vmatprep.subr.mxu0 0.0
  %5567 = vmatpush1.msra.mxu0 0.0
  %5568 = vmatprep.subr.mxu0 0.0
  %5569 = vmatpush1.msra.mxu0 0.0
  %5570 = vmatprep.subr.mxu0 0.0
  %5571 = vmatpush1.msra.mxu0 0.0
  %5572 = vmatprep.subr.mxu0 0.0
  %5573 = vmatpush1.msra.mxu0 0.0
  %5574 = vmatprep.subr.mxu0 0.0
  %5575 = vmatpush1.msra.mxu0 0.0
  %5576 = vmatprep.subr.mxu0 0.0
  %5577 = vmatpush1.msra.mxu0 0.0
  %5578 = vmatprep.subr.mxu0 0.0
  %5579 = vmatpush1.msra.mxu0 0.0
  %5580 = vmatprep.subr.mxu0 0.0
  %5581 = vmatpush1.msra.mxu0 0.0
  %5582 = vmatprep.mubr.f32.mxu0 0.0
  %5583 = vmatmul.mubr.f32.gmra.mrb[0].mxu0 %v5283
  %v5584 = vpop.f32.mrb[0].mxu0
  %v5585 = vadd.f32 %v281, %v5584
  %v5586 = vpop.f32.mrb[0].mxu0
  %v5587 = vadd.f32 %v285, %v5586
  %5588 = vdwg.mxu0
  %5589 = vmatprep.subr.mxu0 0.0
  %5590 = vmatpush1.msra.mxu0 %v48
  %5591 = vmatprep.subr.mxu0 0.0
  %5592 = vmatpush1.msra.mxu0 %v53
  %5593 = vmatprep.subr.mxu0 0.0
  %5594 = vmatpush1.msra.mxu0 %v58
  %5595 = vmatprep.subr.mxu0 0.0
  %5596 = vmatpush1.msra.mxu0 %v63
  %5597 = vmatprep.subr.mxu0 0.0
  %5598 = vmatpush1.msra.mxu0 %v68
  %5599 = vmatprep.subr.mxu0 0.0
  %5600 = vmatpush1.msra.mxu0 %v73
  %5601 = vmatprep.subr.mxu0 0.0
  %5602 = vmatpush1.msra.mxu0 %v78
  %5603 = vmatprep.subr.mxu0 0.0
  %5604 = vmatpush1.msra.mxu0 %v83
  %5605 = vmatprep.subr.mxu0 0.0
  %5606 = vmatpush1.msra.mxu0 %v88
  %5607 = vmatprep.subr.mxu0 0.0
  %5608 = vmatpush1.msra.mxu0 %v93
  %5609 = vmatprep.subr.mxu0 0.0
  %5610 = vmatpush1.msra.mxu0 %v98
  %5611 = vmatprep.subr.mxu0 0.0
  %5612 = vmatpush1.msra.mxu0 %v103
  %5613 = vmatprep.subr.mxu0 0.0
  %5614 = vmatpush1.msra.mxu0 %v108
  %5615 = vmatprep.subr.mxu0 0.0
  %5616 = vmatpush1.msra.mxu0 %v113
  %5617 = vmatprep.subr.mxu0 0.0
  %5618 = vmatpush1.msra.mxu0 %v118
  %5619 = vmatprep.subr.mxu0 0.0
  %5620 = vmatpush1.msra.mxu0 %v123
  %5621 = vmatprep.subr.mxu0 0.0
  %5622 = vmatpush1.msra.mxu0 0.0
  %5623 = vmatprep.subr.mxu0 0.0
  %5624 = vmatpush1.msra.mxu0 0.0
  %5625 = vmatprep.subr.mxu0 0.0
  %5626 = vmatpush1.msra.mxu0 0.0
  %5627 = vmatprep.subr.mxu0 0.0
  %5628 = vmatpush1.msra.mxu0 0.0
  %5629 = vmatprep.subr.mxu0 0.0
  %5630 = vmatpush1.msra.mxu0 0.0
  %5631 = vmatprep.subr.mxu0 0.0
  %5632 = vmatpush1.msra.mxu0 0.0
  %5633 = vmatprep.subr.mxu0 0.0
  %5634 = vmatpush1.msra.mxu0 0.0
  %5635 = vmatprep.subr.mxu0 0.0
  %5636 = vmatpush1.msra.mxu0 0.0
  %5637 = vmatprep.subr.mxu0 0.0
  %5638 = vmatpush1.msra.mxu0 0.0
  %5639 = vmatprep.subr.mxu0 0.0
  %5640 = vmatpush1.msra.mxu0 0.0
  %5641 = vmatprep.subr.mxu0 0.0
  %5642 = vmatpush1.msra.mxu0 0.0
  %5643 = vmatprep.subr.mxu0 0.0
  %5644 = vmatpush1.msra.mxu0 0.0
  %5645 = vmatprep.subr.mxu0 0.0
  %5646 = vmatpush1.msra.mxu0 0.0
  %5647 = vmatprep.subr.mxu0 0.0
  %5648 = vmatpush1.msra.mxu0 0.0
  %5649 = vmatprep.subr.mxu0 0.0
  %5650 = vmatpush1.msra.mxu0 0.0
  %5651 = vmatprep.subr.mxu0 0.0
  %5652 = vmatpush1.msra.mxu0 0.0
  %5653 = vmatprep.mubr.f32.mxu0 0.0
  %5654 = vmatmul.mubr.f32.gmra.mrb[0].mxu0 %v5283
  %v5655 = vpop.f32.mrb[0].mxu0
  %v5656 = vadd.f32 %v289, %v5655
  %v5657 = vpop.f32.mrb[0].mxu0
  %5658 = vdwg.mxu0
  %v5659 = vadd.f32 %v5445, %v5514
  %v5660 = vmax.f32 %v5659, 0.0
  %5661 = vmatprep.subr.mxu0 0.0
  %5662 = vmatpush1.msra.mxu0 %v188
  %5663 = vmatprep.subr.mxu0 0.0
  %5664 = vmatpush1.msra.mxu0 %v189
  %5665 = vmatprep.subr.mxu0 0.0
  %5666 = vmatpush1.msra.mxu0 %v190
  %5667 = vmatprep.subr.mxu0 0.0
  %5668 = vmatpush1.msra.mxu0 %v191
  %5669 = vmatprep.subr.mxu0 0.0
  %5670 = vmatpush1.msra.mxu0 %v192
  %5671 = vmatprep.subr.mxu0 0.0
  %5672 = vmatpush1.msra.mxu0 %v193
  %5673 = vmatprep.subr.mxu0 0.0
  %5674 = vmatpush1.msra.mxu0 %v194
  %5675 = vmatprep.subr.mxu0 0.0
  %5676 = vmatpush1.msra.mxu0 %v195
  %5677 = vmatprep.subr.mxu0 0.0
  %5678 = vmatpush1.msra.mxu0 %v196
  %5679 = vmatprep.subr.mxu0 0.0
  %5680 = vmatpush1.msra.mxu0 %v197
  %5681 = vmatprep.subr.mxu0 0.0
  %5682 = vmatpush1.msra.mxu0 %v198
  %5683 = vmatprep.subr.mxu0 0.0
  %5684 = vmatpush1.msra.mxu0 %v199
  %5685 = vmatprep.subr.mxu0 0.0
  %5686 = vmatpush1.msra.mxu0 %v200
  %5687 = vmatprep.subr.mxu0 0.0
  %5688 = vmatpush1.msra.mxu0 %v201
  %5689 = vmatprep.subr.mxu0 0.0
  %5690 = vmatpush1.msra.mxu0 %v202
  %5691 = vmatprep.subr.mxu0 0.0
  %5692 = vmatpush1.msra.mxu0 %v203
  %5693 = vmatprep.subr.mxu0 0.0
  %5694 = vmatpush1.msra.mxu0 0.0
  %5695 = vmatprep.subr.mxu0 0.0
  %5696 = vmatpush1.msra.mxu0 0.0
  %5697 = vmatprep.subr.mxu0 0.0
  %5698 = vmatpush1.msra.mxu0 0.0
  %5699 = vmatprep.subr.mxu0 0.0
  %5700 = vmatpush1.msra.mxu0 0.0
  %5701 = vmatprep.subr.mxu0 0.0
  %5702 = vmatpush1.msra.mxu0 0.0
  %5703 = vmatprep.subr.mxu0 0.0
  %5704 = vmatpush1.msra.mxu0 0.0
  %5705 = vmatprep.subr.mxu0 0.0
  %5706 = vmatpush1.msra.mxu0 0.0
  %5707 = vmatprep.subr.mxu0 0.0
  %5708 = vmatpush1.msra.mxu0 0.0
  %5709 = vmatprep.subr.mxu0 0.0
  %5710 = vmatpush1.msra.mxu0 0.0
  %5711 = vmatprep.subr.mxu0 0.0
  %5712 = vmatpush1.msra.mxu0 0.0
  %5713 = vmatprep.subr.mxu0 0.0
  %5714 = vmatpush1.msra.mxu0 0.0
  %5715 = vmatprep.subr.mxu0 0.0
  %5716 = vmatpush1.msra.mxu0 0.0
  %5717 = vmatprep.subr.mxu0 0.0
  %5718 = vmatpush1.msra.mxu0 0.0
  %5719 = vmatprep.subr.mxu0 0.0
  %5720 = vmatpush1.msra.mxu0 0.0
  %5721 = vmatprep.subr.mxu0 0.0
  %5722 = vmatpush1.msra.mxu0 0.0
  %5723 = vmatprep.subr.mxu0 0.0
  %5724 = vmatpush1.msra.mxu0 0.0
  %5725 = vmatprep.mubr.f32.mxu0 0.0
  %5726 = vmatmul.mubr.f32.gmra.mrb[0].mxu0 %v5660
  %v5727 = vpop.f32.mrb[0].mxu0
  %v5728 = vadd.f32 %v300, %v5727
  %v5729 = vpop.f32.mrb[0].mxu0
  %5730 = vdwg.mxu0
  %v5731 = vmax.f32 %v5728, 0.0
  %5732 = vmatprep.subr.mxu0 %v205
  %5733 = vmatpush1.msra.mxu0 %v204
  %5734 = vmatprep.subr.mxu0 %v207
  %5735 = vmatpush1.msra.mxu0 %v206
  %5736 = vmatprep.subr.mxu0 %v209
  %5737 = vmatpush1.msra.mxu0 %v208
  %5738 = vmatprep.subr.mxu0 %v211
  %5739 = vmatpush1.msra.mxu0 %v210
  %5740 = vmatprep.subr.mxu0 %v213
  %5741 = vmatpush1.msra.mxu0 %v212
  %5742 = vmatprep.subr.mxu0 %v215
  %5743 = vmatpush1.msra.mxu0 %v214
  %5744 = vmatprep.subr.mxu0 %v217
  %5745 = vmatpush1.msra.mxu0 %v216
  %5746 = vmatprep.subr.mxu0 %v219
  %5747 = vmatpush1.msra.mxu0 %v218
  %5748 = vmatprep.subr.mxu0 %v221
  %5749 = vmatpush1.msra.mxu0 %v220
  %5750 = vmatprep.subr.mxu0 %v223
  %5751 = vmatpush1.msra.mxu0 %v222
  %5752 = vmatprep.subr.mxu0 %v225
  %5753 = vmatpush1.msra.mxu0 %v224
  %5754 = vmatprep.subr.mxu0 %v227
  %5755 = vmatpush1.msra.mxu0 %v226
  %5756 = vmatprep.subr.mxu0 %v229
  %5757 = vmatpush1.msra.mxu0 %v228
  %5758 = vmatprep.subr.mxu0 %v231
  %5759 = vmatpush1.msra.mxu0 %v230
  %5760 = vmatprep.subr.mxu0 %v233
  %5761 = vmatpush1.msra.mxu0 %v232
  %5762 = vmatprep.subr.mxu0 %v235
  %5763 = vmatpush1.msra.mxu0 %v234
  %5764 = vmatprep.subr.mxu0 0.0
  %5765 = vmatpush1.msra.mxu0 0.0
  %5766 = vmatprep.subr.mxu0 0.0
  %5767 = vmatpush1.msra.mxu0 0.0
  %5768 = vmatprep.subr.mxu0 0.0
  %5769 = vmatpush1.msra.mxu0 0.0
  %5770 = vmatprep.subr.mxu0 0.0
  %5771 = vmatpush1.msra.mxu0 0.0
  %5772 = vmatprep.subr.mxu0 0.0
  %5773 = vmatpush1.msra.mxu0 0.0
  %5774 = vmatprep.subr.mxu0 0.0
  %5775 = vmatpush1.msra.mxu0 0.0
  %5776 = vmatprep.subr.mxu0 0.0
  %5777 = vmatpush1.msra.mxu0 0.0
  %5778 = vmatprep.subr.mxu0 0.0
  %5779 = vmatpush1.msra.mxu0 0.0
  %5780 = vmatprep.subr.mxu0 0.0
  %5781 = vmatpush1.msra.mxu0 0.0
  %5782 = vmatprep.subr.mxu0 0.0
  %5783 = vmatpush1.msra.mxu0 0.0
  %5784 = vmatprep.subr.mxu0 0.0
  %5785 = vmatpush1.msra.mxu0 0.0
  %5786 = vmatprep.subr.mxu0 0.0
  %5787 = vmatpush1.msra.mxu0 0.0
  %5788 = vmatprep.subr.mxu0 0.0
  %5789 = vmatpush1.msra.mxu0 0.0
  %5790 = vmatprep.subr.mxu0 0.0
  %5791 = vmatpush1.msra.mxu0 0.0
  %5792 = vmatprep.subr.mxu0 0.0
  %5793 = vmatpush1.msra.mxu0 0.0
  %5794 = vmatprep.subr.mxu0 0.0
  %5795 = vmatpush1.msra.mxu0 0.0
  %5796 = vmatprep.mubr.f32.mxu0 0.0
  %5797 = vmatmul.mubr.f32.gmra.mrb[0].mxu0 %v5731
  %v5798 = vpop.f32.mrb[0].mxu0
  %v5799 = vadd.f32 %v307, %v5798
  %v5800 = vpop.f32.mrb[0].mxu0
  %v5801 = vadd.f32 %v311, %v5800
  %5802 = vdwg.mxu0
  %v5803 = vmax.f32 %v5801, 0.0
  %v5804 = vand.u32 2147483647, %v5801
  %v5805 = vsub.f32 0.0, %v5804
  %v5806 = vmul.f32 %v5805, 1.442695
  %v5807 = vpow.pop %v5806
  %v5808 = vadd.f32 %v5807, 1.0
  %v5809 = vlog2.pop %v5808
  %v5810 = vmul.f32 %v5809, 0.6931472
  %v5811 = vmul.f32 -0.5, %v5807
  %v5812 = vadd.f32 %v5811, 1.0
  %v5813 = vmul.f32 %v5812, %v5807
  %v5814 = vand.u32 2147483647, %v5807
  %vm5815 = vcmp.lt.f32.partialorder %v5814, 0.0004427343
  %v5816 = vsel %vm5815, %v5813, %v5810
  %v5817 = vadd.f32 %v5803, %v5816
  %v5818 = vmul.f32 %v5446, %v5817
  %v5819 = vadd.f32 %v5818, %v5799
  %5820 = vmatprep.subr.mxu0 %v125
  %5821 = vmatpush1.msra.mxu0 %v124
  %5822 = vmatprep.subr.mxu0 %v129
  %5823 = vmatpush1.msra.mxu0 %v128
  %5824 = vmatprep.subr.mxu0 %v133
  %5825 = vmatpush1.msra.mxu0 %v132
  %5826 = vmatprep.subr.mxu0 %v137
  %5827 = vmatpush1.msra.mxu0 %v136
  %5828 = vmatprep.subr.mxu0 %v141
  %5829 = vmatpush1.msra.mxu0 %v140
  %5830 = vmatprep.subr.mxu0 %v145
  %5831 = vmatpush1.msra.mxu0 %v144
  %5832 = vmatprep.subr.mxu0 %v149
  %5833 = vmatpush1.msra.mxu0 %v148
  %5834 = vmatprep.subr.mxu0 %v153
  %5835 = vmatpush1.msra.mxu0 %v152
  %5836 = vmatprep.subr.mxu0 %v157
  %5837 = vmatpush1.msra.mxu0 %v156
  %5838 = vmatprep.subr.mxu0 %v161
  %5839 = vmatpush1.msra.mxu0 %v160
  %5840 = vmatprep.subr.mxu0 %v165
  %5841 = vmatpush1.msra.mxu0 %v164
  %5842 = vmatprep.subr.mxu0 %v169
  %5843 = vmatpush1.msra.mxu0 %v168
  %5844 = vmatprep.subr.mxu0 %v173
  %5845 = vmatpush1.msra.mxu0 %v172
  %5846 = vmatprep.subr.mxu0 %v177
  %5847 = vmatpush1.msra.mxu0 %v176
  %5848 = vmatprep.subr.mxu0 %v181
  %5849 = vmatpush1.msra.mxu0 %v180
  %5850 = vmatprep.subr.mxu0 %v185
  %5851 = vmatpush1.msra.mxu0 %v184
  %5852 = vmatprep.subr.mxu0 0.0
  %5853 = vmatpush1.msra.mxu0 0.0
  %5854 = vmatprep.subr.mxu0 0.0
  %5855 = vmatpush1.msra.mxu0 0.0
  %5856 = vmatprep.subr.mxu0 0.0
  %5857 = vmatpush1.msra.mxu0 0.0
  %5858 = vmatprep.subr.mxu0 0.0
  %5859 = vmatpush1.msra.mxu0 0.0
  %5860 = vmatprep.subr.mxu0 0.0
  %5861 = vmatpush1.msra.mxu0 0.0
  %5862 = vmatprep.subr.mxu0 0.0
  %5863 = vmatpush1.msra.mxu0 0.0
  %5864 = vmatprep.subr.mxu0 0.0
  %5865 = vmatpush1.msra.mxu0 0.0
  %5866 = vmatprep.subr.mxu0 0.0
  %5867 = vmatpush1.msra.mxu0 0.0
  %5868 = vmatprep.subr.mxu0 0.0
  %5869 = vmatpush1.msra.mxu0 0.0
  %5870 = vmatprep.subr.mxu0 0.0
  %5871 = vmatpush1.msra.mxu0 0.0
  %5872 = vmatprep.subr.mxu0 0.0
  %5873 = vmatpush1.msra.mxu0 0.0
  %5874 = vmatprep.subr.mxu0 0.0
  %5875 = vmatpush1.msra.mxu0 0.0
  %5876 = vmatprep.subr.mxu0 0.0
  %5877 = vmatpush1.msra.mxu0 0.0
  %5878 = vmatprep.subr.mxu0 0.0
  %5879 = vmatpush1.msra.mxu0 0.0
  %5880 = vmatprep.subr.mxu0 0.0
  %5881 = vmatpush1.msra.mxu0 0.0
  %5882 = vmatprep.subr.mxu0 0.0
  %5883 = vmatpush1.msra.mxu0 0.0
  %5884 = vmatprep.mubr.f32.mxu0 0.0
  %5885 = vmatmul.mubr.f32.gmra.mrb[0].mxu0 %v5819
  %v5886 = vpop.f32.mrb[0].mxu0
  %v5887 = vadd.f32 0.0, %v5886
  %v5888 = vpop.f32.mrb[0].mxu0
  %v5889 = vadd.f32 0.0, %v5888
  %5890 = vdwg.mxu0
  %5891 = vmatprep.subr.mxu0 %v127
  %5892 = vmatpush1.msra.mxu0 %v126
  %5893 = vmatprep.subr.mxu0 %v131
  %5894 = vmatpush1.msra.mxu0 %v130
  %5895 = vmatprep.subr.mxu0 %v135
  %5896 = vmatpush1.msra.mxu0 %v134
  %5897 = vmatprep.subr.mxu0 %v139
  %5898 = vmatpush1.msra.mxu0 %v138
  %5899 = vmatprep.subr.mxu0 %v143
  %5900 = vmatpush1.msra.mxu0 %v142
  %5901 = vmatprep.subr.mxu0 %v147
  %5902 = vmatpush1.msra.mxu0 %v146
  %5903 = vmatprep.subr.mxu0 %v151
  %5904 = vmatpush1.msra.mxu0 %v150
  %5905 = vmatprep.subr.mxu0 %v155
  %5906 = vmatpush1.msra.mxu0 %v154
  %5907 = vmatprep.subr.mxu0 %v159
  %5908 = vmatpush1.msra.mxu0 %v158
  %5909 = vmatprep.subr.mxu0 %v163
  %5910 = vmatpush1.msra.mxu0 %v162
  %5911 = vmatprep.subr.mxu0 %v167
  %5912 = vmatpush1.msra.mxu0 %v166
  %5913 = vmatprep.subr.mxu0 %v171
  %5914 = vmatpush1.msra.mxu0 %v170
  %5915 = vmatprep.subr.mxu0 %v175
  %5916 = vmatpush1.msra.mxu0 %v174
  %5917 = vmatprep.subr.mxu0 %v179
  %5918 = vmatpush1.msra.mxu0 %v178
  %5919 = vmatprep.subr.mxu0 %v183
  %5920 = vmatpush1.msra.mxu0 %v182
  %5921 = vmatprep.subr.mxu0 %v187
  %5922 = vmatpush1.msra.mxu0 %v186
  %5923 = vmatprep.subr.mxu0 0.0
  %5924 = vmatpush1.msra.mxu0 0.0
  %5925 = vmatprep.subr.mxu0 0.0
  %5926 = vmatpush1.msra.mxu0 0.0
  %5927 = vmatprep.subr.mxu0 0.0
  %5928 = vmatpush1.msra.mxu0 0.0
  %5929 = vmatprep.subr.mxu0 0.0
  %5930 = vmatpush1.msra.mxu0 0.0
  %5931 = vmatprep.subr.mxu0 0.0
  %5932 = vmatpush1.msra.mxu0 0.0
  %5933 = vmatprep.subr.mxu0 0.0
  %5934 = vmatpush1.msra.mxu0 0.0
  %5935 = vmatprep.subr.mxu0 0.0
  %5936 = vmatpush1.msra.mxu0 0.0
  %5937 = vmatprep.subr.mxu0 0.0
  %5938 = vmatpush1.msra.mxu0 0.0
  %5939 = vmatprep.subr.mxu0 0.0
  %5940 = vmatpush1.msra.mxu0 0.0
  %5941 = vmatprep.subr.mxu0 0.0
  %5942 = vmatpush1.msra.mxu0 0.0
  %5943 = vmatprep.subr.mxu0 0.0
  %5944 = vmatpush1.msra.mxu0 0.0
  %5945 = vmatprep.subr.mxu0 0.0
  %5946 = vmatpush1.msra.mxu0 0.0
  %5947 = vmatprep.subr.mxu0 0.0
  %5948 = vmatpush1.msra.mxu0 0.0
  %5949 = vmatprep.subr.mxu0 0.0
  %5950 = vmatpush1.msra.mxu0 0.0
  %5951 = vmatprep.subr.mxu0 0.0
  %5952 = vmatpush1.msra.mxu0 0.0
  %5953 = vmatprep.subr.mxu0 0.0
  %5954 = vmatpush1.msra.mxu0 0.0
  %5955 = vmatprep.mubr.f32.mxu0 0.0
  %5956 = vmatmul.mubr.f32.gmra.mrb[0].mxu0 %v5819
  %v5957 = vpop.f32.mrb[0].mxu0
  %v5958 = vadd.f32 0.0, %v5957
  %v5959 = vpop.f32.mrb[0].mxu0
  %v5960 = vadd.f32 0.0, %v5959
  %5961 = vdwg.mxu0
  %v5963 = vrot.slane %v5445, 2
  %v5968 = vcombine.low %v5889, %v5958
  %v5970 = vunpack.c.l.s4 1983009808
  %v5971 = vunpack.c.0.s8 %v5970
  %v5972 = vlaneseq
  %v5973 = vshrl.u32 %v5972, 7
  %v5974 = vsub.s32 %v5971, %v5973
  %v5975 = vrot.slane %v5968, %v5974
  %v5977 = vunpack.c.l.s4 1983009808
  %v5978 = vunpack.c.0.s8 %v5977
  %v5979 = vlaneseq
  %v5980 = vshrl.u32 %v5979, 7
  %v5981 = vsub.s32 %v5978, %v5980
  %v5982 = vrot.slane %v5960, %v5981
  %v5983 = vcombine.low %v5975, %v5982
  %v5985 = vadd.f32 %v5963, %v5983
  %v5988 = vcombine.low %v5585, %v5587
  %v5990 = vunpack.c.l.s4 1983009808
  %v5991 = vunpack.c.0.s8 %v5990
  %v5992 = vlaneseq
  %v5993 = vshrl.u32 %v5992, 7
  %v5994 = vsub.s32 %v5991, %v5993
  %v5995 = vrot.slane %v5988, %v5994
  %v5997 = vadd.f32 %v5985, %v5995
  %v5998 = vmul.f32 %v5997, 0.5
  %v5999 = vtanh.pop %v5998
  %v6000 = vadd.f32 %v5999, 1.0
  %v6001 = vmul.f32 %v6000, 0.5
  %v6002 = vmul.f32 %v6001, %v5656
  %v6004 = vrot.slane %v5985, 4
  %v6006 = vadd.f32 %v6004, %v6002
  %v6007 = vtanh.pop %v6006
  %v6009 = vrot.slane %v6001, 2
  %v6011 = vsub.f32 1.0, %v6009
  %v6012 = vmul.f32 %v6011, %v6007
  %v6013 = vmul.f32 %v6009, %v5283
  %v6014 = vadd.f32 %v6012, %v6013
  %v6015 = vadd.f32 %v5887, %v5516
  %v6016 = vmax.f32 %v6015, 0.0
  %6017 = vmatprep.subr.mxu0 0.0
  %6018 = vmatpush1.msra.mxu0 %v236
  %6019 = vmatprep.subr.mxu0 0.0
  %6020 = vmatpush1.msra.mxu0 %v237
  %6021 = vmatprep.subr.mxu0 0.0
  %6022 = vmatpush1.msra.mxu0 %v238
  %6023 = vmatprep.subr.mxu0 0.0
  %6024 = vmatpush1.msra.mxu0 %v239
  %6025 = vmatprep.subr.mxu0 0.0
  %6026 = vmatpush1.msra.mxu0 %v240
  %6027 = vmatprep.subr.mxu0 0.0
  %6028 = vmatpush1.msra.mxu0 %v241
  %6029 = vmatprep.subr.mxu0 0.0
  %6030 = vmatpush1.msra.mxu0 %v242
  %6031 = vmatprep.subr.mxu0 0.0
  %6032 = vmatpush1.msra.mxu0 %v243
  %6033 = vmatprep.subr.mxu0 0.0
  %6034 = vmatpush1.msra.mxu0 %v244
  %6035 = vmatprep.subr.mxu0 0.0
  %6036 = vmatpush1.msra.mxu0 %v245
  %6037 = vmatprep.subr.mxu0 0.0
  %6038 = vmatpush1.msra.mxu0 %v246
  %6039 = vmatprep.subr.mxu0 0.0
  %6040 = vmatpush1.msra.mxu0 %v247
  %6041 = vmatprep.subr.mxu0 0.0
  %6042 = vmatpush1.msra.mxu0 %v248
  %6043 = vmatprep.subr.mxu0 0.0
  %6044 = vmatpush1.msra.mxu0 %v249
  %6045 = vmatprep.subr.mxu0 0.0
  %6046 = vmatpush1.msra.mxu0 %v250
  %6047 = vmatprep.subr.mxu0 0.0
  %6048 = vmatpush1.msra.mxu0 %v251
  %6049 = vmatprep.subr.mxu0 0.0
  %6050 = vmatpush1.msra.mxu0 0.0
  %6051 = vmatprep.subr.mxu0 0.0
  %6052 = vmatpush1.msra.mxu0 0.0
  %6053 = vmatprep.subr.mxu0 0.0
  %6054 = vmatpush1.msra.mxu0 0.0
  %6055 = vmatprep.subr.mxu0 0.0
  %6056 = vmatpush1.msra.mxu0 0.0
  %6057 = vmatprep.subr.mxu0 0.0
  %6058 = vmatpush1.msra.mxu0 0.0
  %6059 = vmatprep.subr.mxu0 0.0
  %6060 = vmatpush1.msra.mxu0 0.0
  %6061 = vmatprep.subr.mxu0 0.0
  %6062 = vmatpush1.msra.mxu0 0.0
  %6063 = vmatprep.subr.mxu0 0.0
  %6064 = vmatpush1.msra.mxu0 0.0
  %6065 = vmatprep.subr.mxu0 0.0
  %6066 = vmatpush1.msra.mxu0 0.0
  %6067 = vmatprep.subr.mxu0 0.0
  %6068 = vmatpush1.msra.mxu0 0.0
  %6069 = vmatprep.subr.mxu0 0.0
  %6070 = vmatpush1.msra.mxu0 0.0
  %6071 = vmatprep.subr.mxu0 0.0
  %6072 = vmatpush1.msra.mxu0 0.0
  %6073 = vmatprep.subr.mxu0 0.0
  %6074 = vmatpush1.msra.mxu0 0.0
  %6075 = vmatprep.subr.mxu0 0.0
  %6076 = vmatpush1.msra.mxu0 0.0
  %6077 = vmatprep.subr.mxu0 0.0
  %6078 = vmatpush1.msra.mxu0 0.0
  %6079 = vmatprep.subr.mxu0 0.0
  %6080 = vmatpush1.msra.mxu0 0.0
  %6081 = vmatprep.mubr.f32.mxu0 0.0
  %6082 = vmatmul.mubr.f32.gmra.mrb[0].mxu0 %v6016
  %v6083 = vpop.f32.mrb[0].mxu0
  %v6084 = vadd.f32 %v319, %v6083
  %v6085 = vpop.f32.mrb[0].mxu0
  %6086 = vdwg.mxu0
  %v6087 = vmax.f32 %v6084, 0.0
  %6088 = vmatprep.subr.mxu0 0.0
  %6089 = vmatpush1.msra.mxu0 %v252
  %6090 = vmatprep.subr.mxu0 0.0
  %6091 = vmatpush1.msra.mxu0 %v253
  %6092 = vmatprep.subr.mxu0 0.0
  %6093 = vmatpush1.msra.mxu0 %v254
  %6094 = vmatprep.subr.mxu0 0.0
  %6095 = vmatpush1.msra.mxu0 %v255
  %6096 = vmatprep.subr.mxu0 0.0
  %6097 = vmatpush1.msra.mxu0 %v256
  %6098 = vmatprep.subr.mxu0 0.0
  %6099 = vmatpush1.msra.mxu0 %v257
  %6100 = vmatprep.subr.mxu0 0.0
  %6101 = vmatpush1.msra.mxu0 %v258
  %6102 = vmatprep.subr.mxu0 0.0
  %6103 = vmatpush1.msra.mxu0 %v259
  %6104 = vmatprep.subr.mxu0 0.0
  %6105 = vmatpush1.msra.mxu0 %v260
  %6106 = vmatprep.subr.mxu0 0.0
  %6107 = vmatpush1.msra.mxu0 %v261
  %6108 = vmatprep.subr.mxu0 0.0
  %6109 = vmatpush1.msra.mxu0 %v262
  %6110 = vmatprep.subr.mxu0 0.0
  %6111 = vmatpush1.msra.mxu0 %v263
  %6112 = vmatprep.subr.mxu0 0.0
  %6113 = vmatpush1.msra.mxu0 %v264
  %6114 = vmatprep.subr.mxu0 0.0
  %6115 = vmatpush1.msra.mxu0 %v265
  %6116 = vmatprep.subr.mxu0 0.0
  %6117 = vmatpush1.msra.mxu0 %v266
  %6118 = vmatprep.subr.mxu0 0.0
  %6119 = vmatpush1.msra.mxu0 %v267
  %6120 = vmatprep.subr.mxu0 0.0
  %6121 = vmatpush1.msra.mxu0 0.0
  %6122 = vmatprep.subr.mxu0 0.0
  %6123 = vmatpush1.msra.mxu0 0.0
  %6124 = vmatprep.subr.mxu0 0.0
  %6125 = vmatpush1.msra.mxu0 0.0
  %6126 = vmatprep.subr.mxu0 0.0
  %6127 = vmatpush1.msra.mxu0 0.0
  %6128 = vmatprep.subr.mxu0 0.0
  %6129 = vmatpush1.msra.mxu0 0.0
  %6130 = vmatprep.subr.mxu0 0.0
  %6131 = vmatpush1.msra.mxu0 0.0
  %6132 = vmatprep.subr.mxu0 0.0
  %6133 = vmatpush1.msra.mxu0 0.0
  %6134 = vmatprep.subr.mxu0 0.0
  %6135 = vmatpush1.msra.mxu0 0.0
  %6136 = vmatprep.subr.mxu0 0.0
  %6137 = vmatpush1.msra.mxu0 0.0
  %6138 = vmatprep.subr.mxu0 0.0
  %6139 = vmatpush1.msra.mxu0 0.0
  %6140 = vmatprep.subr.mxu0 0.0
  %6141 = vmatpush1.msra.mxu0 0.0
  %6142 = vmatprep.subr.mxu0 0.0
  %6143 = vmatpush1.msra.mxu0 0.0
  %6144 = vmatprep.subr.mxu0 0.0
  %6145 = vmatpush1.msra.mxu0 0.0
  %6146 = vmatprep.subr.mxu0 0.0
  %6147 = vmatpush1.msra.mxu0 0.0
  %6148 = vmatprep.subr.mxu0 0.0
  %6149 = vmatpush1.msra.mxu0 0.0
  %6150 = vmatprep.subr.mxu0 0.0
  %6151 = vmatpush1.msra.mxu0 0.0
  %6152 = vmatprep.mubr.f32.mxu0 0.0
  %6153 = vmatmul.mubr.f32.gmra.mrb[0].mxu0 %v6087
  %v6154 = vpop.f32.mrb[0].mxu0
  %v6155 = vadd.f32 %v326, %v6154
  %v6156 = vpop.f32.mrb[0].mxu0
  %6157 = vdwg.mxu0
  %v6158 = vmul.f32 %v6155, 0.5
  %v6159 = vtanh.pop %v6158
  %v6160 = vadd.f32 %v6159, 1.0
  %v6161 = vmul.f32 %v6160, 0.5
  %v6164 = vcombine.low %v6161, %v6014
  %v6166 = vunpack.c.l.s4 1983009808
  %v6167 = vunpack.c.0.s8 %v6166
  %v6168 = vlaneseq
  %v6169 = vshrl.u32 %v6168, 7
  %v6170 = vsub.s32 %v6167, %v6169
  %v6171 = vrot.slane %v6164, %v6170
  %s6173 = scalar_lea.vmem %s13, 28
  %6174 = vst [vmem:[%s6173] sm:$0xf] %v6171
  // Predicated region
  $region54: #{vrnn_forward.1} parent=0 // pred_check
    _
  $region55: #{vrnn_forward.1} parent=0 // pred_check_branch
    %6176 = sbr.rel (0) target = $region57
  $region56: #{vrnn_forward.1} parent=0 // pred_region
    _
  $region57: #{vrnn_forward.1} parent=0 // pred_fallthru
    _
  // Predicated region
  $region58: #{vrnn_forward.1} parent=0 // pred_check
    _
  $region59: #{vrnn_forward.1} parent=0 // pred_check_branch
    %6178 = sbr.rel (0) target = $region61
  $region60: #{vrnn_forward.1} parent=0 // pred_region
    _
  $region61: #{vrnn_forward.1} parent=0 // pred_fallthru
    _

</llo_original>
